<compile_context>
chip_gen: v7x
topology: tpu7x:2x2x1
jax: 0.10.0
libtpu: 0.0.40
codegen_flags: <defaults>
</compile_context>

<pallas_src>
import functools

import jax
import jax.numpy as jnp
from jax import lax
from jax.experimental import pallas as pl
from jax.experimental.pallas import tpu as pltpu

EPS = 1e-5


def _round_up(x, m):
    return ((x + m - 1) // m) * m


def _bn_act(h, gamma, beta, inv_n, relu):
    """Training-mode BatchNorm (batch stats, biased variance) + optional ReLU.

    Single pass: sum & sum-of-squares, scale = gamma * rsqrt(var + eps),
    bias = beta - mean * scale, then one FMA (ReLU fused)."""
    s1 = jnp.sum(h, axis=0, keepdims=True)
    s2 = jnp.sum(h * h, axis=0, keepdims=True)
    mean = s1 * inv_n
    var = s2 * inv_n - mean * mean
    scale = gamma * lax.rsqrt(var + EPS)
    bias = beta - mean * scale
    out = h * scale + bias
    return jnp.maximum(out, 0.0) if relu else out


def bottleneck_kernel(x_ref, hh_ref, ww_ref,
                      w1_ref, g1_ref, b1_ref,
                      w2_ref, g2_ref, b2_ref,
                      w3_ref, g3_ref, b3_ref,
                      out_ref, pad_ref, im2col_ref, *, H, W, band):
    M, CP = x_ref.shape
    PP = w1_ref.shape[1]
    inv_m = 1.0 / M

    # ---- conv1 (1x1) + bn1 + relu : channel matmul, bf16 in / f32 acc ------
    h1 = jnp.dot(x_ref[...].astype(jnp.bfloat16), w1_ref[...],
                 preferred_element_type=jnp.float32)          # (M, PP) f32
    h1 = _bn_act(h1, g1_ref[...], b1_ref[...], inv_m, relu=True)

    # ---- conv2 (3x3, stride 1, pad 1) as ONE fused im2col matmul ----------
    # h1 goes once into a flat row-padded scratch; each 3x3 tap is a static
    # row shift of the (n, h, w)-ordered slab.  Rows whose tap falls outside
    # the HxW grid (or crosses a batch/row boundary) are zeroed with an (M, 1)
    # mask multiply.
    zero_band = jnp.zeros((band, PP), jnp.float32)
    pad_ref[pl.ds(0, band), :] = zero_band
    pad_ref[pl.ds(band + M, band), :] = zero_band
    pad_ref[pl.ds(band, M), :] = h1                            # aligned store

    hh = hh_ref[...]                                           # (M, 1) int32
    ww = ww_ref[...]                                           # (M, 1) int32
    # Boundary masks hoisted out of the tap loop: 4 compares total instead of
    # re-deriving them per tap.
    row_mask = {-1: (hh >= 1).astype(jnp.float32),
                0: None,
                1: (hh <= H - 2).astype(jnp.float32)}
    col_mask = {-1: (ww >= 1).astype(jnp.float32),
                0: None,
                1: (ww <= W - 2).astype(jnp.float32)}

    t = 0
    for dy in (-1, 0, 1):
        for dx in (-1, 0, 1):
            s = pad_ref[pl.ds(band + dy * W + dx, M), :]       # (M, PP) f32
            mask = None
            for m in (row_mask[dy], col_mask[dx]):
                if m is not None:
                    mask = m if mask is None else mask * m     # (M, 1)
            if mask is not None:
                s = s * mask                                   # zero halo rows
            im2col_ref[:, t * PP:(t + 1) * PP] = s.astype(jnp.bfloat16)
            t += 1

    h2 = jnp.dot(im2col_ref[...], w2_ref[...],
                 preferred_element_type=jnp.float32)           # (M, PP) f32
    h2 = _bn_act(h2, g2_ref[...], b2_ref[...], inv_m, relu=True)

    # ---- conv3 (1x1) + bn3 + residual add + relu ---------------------------
    h3 = jnp.dot(h2.astype(jnp.bfloat16), w3_ref[...],
                 preferred_element_type=jnp.float32)           # (M, CP) f32
    h3 = _bn_act(h3, g3_ref[...], b3_ref[...], inv_m, relu=False)
    out_ref[...] = jnp.maximum(h3 + x_ref[...], 0.0)           # lane-dense store


def bottleneck_forward(x_nchw, params):
    """x_nchw: (N, Cin, H, W) float32.  Returns (N, Cout, H, W) float32."""
    w1, g1, b1, w2, g2, b2, w3, g3, b3 = params
    N, Cin, H, W = x_nchw.shape
    P = w1.shape[1]
    Cout = w3.shape[1]
    assert Cin == Cout, (
        "identity residual requires inplanes == planes * expansion "
        f"(got Cin={Cin}, Cout={Cout})")

    M = N * H * W
    CP = _round_up(Cin, 128)       # padded in/out channel width (lane axis)
    PP = _round_up(P, 128)         # padded bottleneck width
    BAND = _round_up(W + 1, 8)     # halo rows of the flat conv2 scratch

    # Lane-dense activation slab: rows ordered (n, h, w), channels on lanes.
    x2d = jnp.transpose(x_nchw, (0, 2, 3, 1)).reshape(M, Cin).astype(jnp.float32)
    x2d = jnp.pad(x2d, ((0, 0), (0, CP - Cin)))

    # Weights in matmul layout, zero-padded to MXU-friendly widths, bf16.
    w1p = jnp.pad(w1, ((0, CP - Cin), (0, PP - P))).astype(jnp.bfloat16)
    w2p = jnp.pad(w2, ((0, 0), (0, 0), (0, PP - P), (0, PP - P))
                  ).astype(jnp.bfloat16).reshape(9 * PP, PP)
    w3p = jnp.pad(w3, ((0, PP - P), (0, CP - Cout))).astype(jnp.bfloat16)

    def pad_vec(v, c):
        v = v.astype(jnp.float32).reshape(1, -1)
        return jnp.pad(v, ((0, 0), (0, c - v.shape[1])))

    g1p, b1p = pad_vec(g1, PP), pad_vec(b1, PP)
    g2p, b2p = pad_vec(g2, PP), pad_vec(b2, PP)
    g3p, b3p = pad_vec(g3, CP), pad_vec(b3, CP)

    # Per-row spatial indices for the 3x3 boundary masks (tiny side inputs).
    rows = jnp.arange(M, dtype=jnp.int32)
    hh = ((rows // W) % H).reshape(M, 1)
    ww = (rows % W).reshape(M, 1)

    kernel = functools.partial(bottleneck_kernel, H=H, W=W, band=BAND)
    out2d = pl.pallas_call(
        kernel,
        out_shape=jax.ShapeDtypeStruct((M, CP), jnp.float32),
        in_specs=[pl.BlockSpec(memory_space=pltpu.MemorySpace.VMEM)] * 12,
        out_specs=pl.BlockSpec(memory_space=pltpu.MemorySpace.VMEM),
        scratch_shapes=[
            pltpu.VMEM((M + 2 * BAND, PP), jnp.float32),   # conv2 halo scratch
            pltpu.VMEM((M, 9 * PP), jnp.bfloat16),         # im2col slab
        ],
        compiler_params=pltpu.CompilerParams(
            vmem_limit_bytes=32 * 1024 * 1024),
    )(x2d, hh, ww, w1p, g1p, b1p, w2p, g2p, b2p, w3p, g3p, b3p)

    out = out2d[:, :Cout].reshape(N, H, W, Cout)
    return jnp.transpose(out, (0, 3, 1, 2))


def ref_forward(x_nchw, params):
    """Pure-JAX reference with the kernel's numerics: bf16 conv/matmul
    operands, f32 accumulation, f32 training-mode BatchNorm."""
    w1, g1, b1, w2, g2, b2, w3, g3, b3 = params
    x = jnp.transpose(x_nchw, (0, 2, 3, 1)).astype(jnp.float32)  # NHWC

    def bn(h, g, b, relu):
        m = jnp.mean(h, axis=(0, 1, 2), keepdims=True)
        v = jnp.mean((h - m) ** 2, axis=(0, 1, 2), keepdims=True)
        out = (h - m) * lax.rsqrt(v + EPS) * g.reshape(1, 1, 1, -1) \
            + b.reshape(1, 1, 1, -1)
        return jnp.maximum(out, 0.0) if relu else out

    h = jnp.einsum('nhwc,co->nhwo', x.astype(jnp.bfloat16),
                   w1.astype(jnp.bfloat16),
                   preferred_element_type=jnp.float32)
    h = bn(h, g1, b1, True)
    h = lax.conv_general_dilated(h.astype(jnp.bfloat16),
                                 w2.astype(jnp.bfloat16),
                                 window_strides=(1, 1), padding='SAME',
                                 dimension_numbers=('NHWC', 'HWIO', 'NHWC'),
                                 preferred_element_type=jnp.float32)
    h = bn(h, g2, b2, True)
    h = jnp.einsum('nhwc,co->nhwo', h.astype(jnp.bfloat16),
                   w3.astype(jnp.bfloat16),
                   preferred_element_type=jnp.float32)
    h = bn(h, g3, b3, False)
    out = jnp.maximum(h + x, 0.0)
    return jnp.transpose(out, (0, 3, 1, 2))


def make_params(key, inplanes, planes, expansion=4):
    ks = jax.random.split(key, 9)
    cout = planes * expansion
    # conv weights stored directly in matmul / HWIO layout.
    w1 = 0.2 * jax.random.normal(ks[0], (inplanes, planes), jnp.float32)
    w2 = 0.2 * jax.random.normal(ks[1], (3, 3, planes, planes), jnp.float32)
    w3 = 0.2 * jax.random.normal(ks[2], (planes, cout), jnp.float32)
    g1 = 1.0 + 0.1 * jax.random.normal(ks[3], (planes,), jnp.float32)
    b1 = 0.1 * jax.random.normal(ks[4], (planes,), jnp.float32)
    g2 = 1.0 + 0.1 * jax.random.normal(ks[5], (planes,), jnp.float32)
    b2 = 0.1 * jax.random.normal(ks[6], (planes,), jnp.float32)
    g3 = 1.0 + 0.1 * jax.random.normal(ks[7], (cout,), jnp.float32)
    b3 = 0.1 * jax.random.normal(ks[8], (cout,), jnp.float32)
    return (w1, g1, b1, w2, g2, b2, w3, g3, b3)


if __name__ == "__main__":
    # Bottleneck(inplanes=16, planes=4): identity add requires inplanes == planes*4.
    N, Cin, H, W = 2, 16, 16, 16
    planes = 4

    key = jax.random.PRNGKey(0)
    kx, kp = jax.random.split(key)
    x = jax.random.normal(kx, (N, Cin, H, W), jnp.float32)
    params = make_params(kp, Cin, planes)

    out = jax.block_until_ready(bottleneck_forward(x, params))
    ref = jax.block_until_ready(ref_forward(x, params))

    assert out.shape == (N, planes * 4, H, W)
    max_err = float(jnp.max(jnp.abs(out - ref)))
    mean_err = float(jnp.mean(jnp.abs(out - ref)))
    # Tolerance sized for bf16 MXU operands: an f32 intermediate landing within
    # ~1e-6 of a bf16 rounding boundary can snap differently between the kernel
    # and the XLA reference, and the downstream BN normalization can amplify a
    # single such element to ~1e-2.  Real bugs show up as O(0.1+) errors.
    assert max_err < 2e-2, max_err
    assert mean_err < 1e-3, mean_err
    print("KERNEL_OK")
</pallas_src>

<mosaic_0001>
module attributes {stable_mosaic.version = 11 : i64} {
  func.func @bottleneck_kernel(%arg0: memref<512x128xf32, #tpu.memory_space<vmem>>, %arg1: memref<512x1xi32, #tpu.memory_space<vmem>>, %arg2: memref<512x1xi32, #tpu.memory_space<vmem>>, %arg3: memref<128x128xbf16, #tpu.memory_space<vmem>>, %arg4: memref<1x128xf32, #tpu.memory_space<vmem>>, %arg5: memref<1x128xf32, #tpu.memory_space<vmem>>, %arg6: memref<1152x128xbf16, #tpu.memory_space<vmem>>, %arg7: memref<1x128xf32, #tpu.memory_space<vmem>>, %arg8: memref<1x128xf32, #tpu.memory_space<vmem>>, %arg9: memref<128x128xbf16, #tpu.memory_space<vmem>>, %arg10: memref<1x128xf32, #tpu.memory_space<vmem>>, %arg11: memref<1x128xf32, #tpu.memory_space<vmem>>, %arg12: memref<512x128xf32, #tpu.memory_space<vmem>>, %arg13: memref<560x128xf32, #tpu.memory_space<vmem>>, %arg14: memref<512x1152xbf16, #tpu.memory_space<vmem>>) attributes {dimension_semantics = [], scalar_prefetch = 0 : i64, scratch_operands = 2 : i64, tpu.core_type = #tpu.core_type<tc>} {
    %c0 = arith.constant 0 : index
    %c0_0 = arith.constant 0 : index
    %0 = vector.load %arg0[%c0, %c0_0] : memref<512x128xf32, #tpu.memory_space<vmem>>, vector<512x128xf32>
    %1 = arith.truncf %0 : vector<512x128xf32> to vector<512x128xbf16>
    %c0_1 = arith.constant 0 : index
    %c0_2 = arith.constant 0 : index
    %2 = vector.load %arg3[%c0_1, %c0_2] : memref<128x128xbf16, #tpu.memory_space<vmem>>, vector<128x128xbf16>
    %cst = arith.constant dense<0.000000e+00> : vector<512x128xf32>
    %3 = tpu.matmul %1, %2, %cst {dimension_numbers = #tpu.dot_dimension_numbers<[1], [0], [0], [1], [0, 0, 1, 1], [], []>} : vector<512x128xbf16>, vector<128x128xbf16>, vector<512x128xf32> -> vector<512x128xf32>
    %c0_3 = arith.constant 0 : index
    %c0_4 = arith.constant 0 : index
    %4 = vector.load %arg4[%c0_3, %c0_4] : memref<1x128xf32, #tpu.memory_space<vmem>>, vector<1x128xf32>
    %c0_5 = arith.constant 0 : index
    %c0_6 = arith.constant 0 : index
    %5 = vector.load %arg5[%c0_5, %c0_6] : memref<1x128xf32, #tpu.memory_space<vmem>>, vector<1x128xf32>
    %cst_7 = arith.constant dense<0.000000e+00> : vector<128xf32>
    %6 = vector.multi_reduction <add>, %3, %cst_7 [0] : vector<512x128xf32> to vector<128xf32>
    %7 = vector.shape_cast %6 : vector<128xf32> to vector<1x128xf32>
    %8 = arith.mulf %3, %3 : vector<512x128xf32>
    %cst_8 = arith.constant dense<0.000000e+00> : vector<128xf32>
    %9 = vector.multi_reduction <add>, %8, %cst_8 [0] : vector<512x128xf32> to vector<128xf32>
    %10 = vector.shape_cast %9 : vector<128xf32> to vector<1x128xf32>
    %cst_9 = arith.constant 0.001953125 : f32
    %11 = vector.broadcast %cst_9 : f32 to vector<1x128xf32>
    %12 = arith.mulf %7, %11 : vector<1x128xf32>
    %cst_10 = arith.constant 0.001953125 : f32
    %13 = vector.broadcast %cst_10 : f32 to vector<1x128xf32>
    %14 = arith.mulf %10, %13 : vector<1x128xf32>
    %15 = arith.mulf %12, %12 : vector<1x128xf32>
    %16 = arith.subf %14, %15 : vector<1x128xf32>
    %cst_11 = arith.constant 9.99999974E-6 : f32
    %17 = vector.broadcast %cst_11 : f32 to vector<1x128xf32>
    %18 = arith.addf %16, %17 : vector<1x128xf32>
    %19 = math.rsqrt %18 : vector<1x128xf32>
    %20 = arith.mulf %4, %19 : vector<1x128xf32>
    %21 = arith.mulf %12, %20 : vector<1x128xf32>
    %22 = arith.subf %5, %21 : vector<1x128xf32>
    %23 = vector.broadcast %20 : vector<1x128xf32> to vector<512x128xf32>
    %24 = arith.mulf %3, %23 : vector<512x128xf32>
    %25 = vector.broadcast %22 : vector<1x128xf32> to vector<512x128xf32>
    %26 = arith.addf %24, %25 : vector<512x128xf32>
    %cst_12 = arith.constant 0.000000e+00 : f32
    %27 = vector.broadcast %cst_12 : f32 to vector<512x128xf32>
    %28 = arith.maximumf %26, %27 : vector<512x128xf32>
    %cst_13 = arith.constant 0.000000e+00 : f32
    %29 = vector.broadcast %cst_13 : f32 to vector<24x128xf32>
    %c0_14 = arith.constant 0 : index
    %c0_15 = arith.constant 0 : index
    %30 = vector.load %arg13[%c0_14, %c0_15] : memref<560x128xf32, #tpu.memory_space<vmem>>, vector<24x128xf32>
    tpu.vector_store %arg13[%c0_14, %c0_15], %29 {strides = array<i32>} : memref<560x128xf32, #tpu.memory_space<vmem>>, vector<24x128xf32>,
    %c536 = arith.constant 536 : index
    %c0_16 = arith.constant 0 : index
    %31 = vector.load %arg13[%c536, %c0_16] : memref<560x128xf32, #tpu.memory_space<vmem>>, vector<24x128xf32>
    tpu.vector_store %arg13[%c536, %c0_16], %29 {strides = array<i32>} : memref<560x128xf32, #tpu.memory_space<vmem>>, vector<24x128xf32>,
    %c24 = arith.constant 24 : index
    %c0_17 = arith.constant 0 : index
    %32 = vector.load %arg13[%c24, %c0_17] : memref<560x128xf32, #tpu.memory_space<vmem>>, vector<512x128xf32>
    tpu.vector_store %arg13[%c24, %c0_17], %28 {strides = array<i32>} : memref<560x128xf32, #tpu.memory_space<vmem>>, vector<512x128xf32>,
    %c0_18 = arith.constant 0 : index
    %c0_19 = arith.constant 0 : index
    %33 = vector.load %arg1[%c0_18, %c0_19] : memref<512x1xi32, #tpu.memory_space<vmem>>, vector<512x1xi32>
    %c0_20 = arith.constant 0 : index
    %c0_21 = arith.constant 0 : index
    %34 = vector.load %arg2[%c0_20, %c0_21] : memref<512x1xi32, #tpu.memory_space<vmem>>, vector<512x1xi32>
    %c1_i32 = arith.constant 1 : i32
    %35 = vector.broadcast %c1_i32 : i32 to vector<512x1xi32>
    %36 = arith.cmpi sge, %33, %35 : vector<512x1xi32>
    %37 = arith.extui %36 : vector<512x1xi1> to vector<512x1xi32>
    %38 = arith.sitofp %37 : vector<512x1xi32> to vector<512x1xf32>
    %c14_i32 = arith.constant 14 : i32
    %39 = vector.broadcast %c14_i32 : i32 to vector<512x1xi32>
    %40 = arith.cmpi sle, %33, %39 : vector<512x1xi32>
    %41 = arith.extui %40 : vector<512x1xi1> to vector<512x1xi32>
    %42 = arith.sitofp %41 : vector<512x1xi32> to vector<512x1xf32>
    %c1_i32_22 = arith.constant 1 : i32
    %43 = vector.broadcast %c1_i32_22 : i32 to vector<512x1xi32>
    %44 = arith.cmpi sge, %34, %43 : vector<512x1xi32>
    %45 = arith.extui %44 : vector<512x1xi1> to vector<512x1xi32>
    %46 = arith.sitofp %45 : vector<512x1xi32> to vector<512x1xf32>
    %c14_i32_23 = arith.constant 14 : i32
    %47 = vector.broadcast %c14_i32_23 : i32 to vector<512x1xi32>
    %48 = arith.cmpi sle, %34, %47 : vector<512x1xi32>
    %49 = arith.extui %48 : vector<512x1xi1> to vector<512x1xi32>
    %50 = arith.sitofp %49 : vector<512x1xi32> to vector<512x1xf32>
    %c7 = arith.constant 7 : index
    %c0_24 = arith.constant 0 : index
    %51 = vector.load %arg13[%c7, %c0_24] : memref<560x128xf32, #tpu.memory_space<vmem>>, vector<512x128xf32>
    %52 = arith.mulf %38, %46 : vector<512x1xf32>
    %53 = vector.broadcast %52 : vector<512x1xf32> to vector<512x128xf32>
    %54 = arith.mulf %51, %53 : vector<512x128xf32>
    %55 = arith.truncf %54 : vector<512x128xf32> to vector<512x128xbf16>
    %c0_25 = arith.constant 0 : index
    %c0_26 = arith.constant 0 : index
    %56 = vector.load %arg14[%c0_25, %c0_26] : memref<512x1152xbf16, #tpu.memory_space<vmem>>, vector<512x128xbf16>
    tpu.vector_store %arg14[%c0_25, %c0_26], %55 {strides = array<i32>} : memref<512x1152xbf16, #tpu.memory_space<vmem>>, vector<512x128xbf16>,
    %c8 = arith.constant 8 : index
    %c0_27 = arith.constant 0 : index
    %57 = vector.load %arg13[%c8, %c0_27] : memref<560x128xf32, #tpu.memory_space<vmem>>, vector<512x128xf32>
    %58 = vector.broadcast %38 : vector<512x1xf32> to vector<512x128xf32>
    %59 = arith.mulf %57, %58 : vector<512x128xf32>
    %60 = arith.truncf %59 : vector<512x128xf32> to vector<512x128xbf16>
    %c0_28 = arith.constant 0 : index
    %c128 = arith.constant 128 : index
    %61 = vector.load %arg14[%c0_28, %c128] : memref<512x1152xbf16, #tpu.memory_space<vmem>>, vector<512x128xbf16>
    tpu.vector_store %arg14[%c0_28, %c128], %60 {strides = array<i32>} : memref<512x1152xbf16, #tpu.memory_space<vmem>>, vector<512x128xbf16>,
    %c9 = arith.constant 9 : index
    %c0_29 = arith.constant 0 : index
    %62 = vector.load %arg13[%c9, %c0_29] : memref<560x128xf32, #tpu.memory_space<vmem>>, vector<512x128xf32>
    %63 = arith.mulf %38, %50 : vector<512x1xf32>
    %64 = vector.broadcast %63 : vector<512x1xf32> to vector<512x128xf32>
    %65 = arith.mulf %62, %64 : vector<512x128xf32>
    %66 = arith.truncf %65 : vector<512x128xf32> to vector<512x128xbf16>
    %c0_30 = arith.constant 0 : index
    %c256 = arith.constant 256 : index
    %67 = vector.load %arg14[%c0_30, %c256] : memref<512x1152xbf16, #tpu.memory_space<vmem>>, vector<512x128xbf16>
    tpu.vector_store %arg14[%c0_30, %c256], %66 {strides = array<i32>} : memref<512x1152xbf16, #tpu.memory_space<vmem>>, vector<512x128xbf16>,
    %c23 = arith.constant 23 : index
    %c0_31 = arith.constant 0 : index
    %68 = vector.load %arg13[%c23, %c0_31] : memref<560x128xf32, #tpu.memory_space<vmem>>, vector<512x128xf32>
    %69 = vector.broadcast %46 : vector<512x1xf32> to vector<512x128xf32>
    %70 = arith.mulf %68, %69 : vector<512x128xf32>
    %71 = arith.truncf %70 : vector<512x128xf32> to vector<512x128xbf16>
    %c0_32 = arith.constant 0 : index
    %c384 = arith.constant 384 : index
    %72 = vector.load %arg14[%c0_32, %c384] : memref<512x1152xbf16, #tpu.memory_space<vmem>>, vector<512x128xbf16>
    tpu.vector_store %arg14[%c0_32, %c384], %71 {strides = array<i32>} : memref<512x1152xbf16, #tpu.memory_space<vmem>>, vector<512x128xbf16>,
    %c24_33 = arith.constant 24 : index
    %c0_34 = arith.constant 0 : index
    %73 = vector.load %arg13[%c24_33, %c0_34] : memref<560x128xf32, #tpu.memory_space<vmem>>, vector<512x128xf32>
    %74 = arith.truncf %73 : vector<512x128xf32> to vector<512x128xbf16>
    %c0_35 = arith.constant 0 : index
    %c512 = arith.constant 512 : index
    %75 = vector.load %arg14[%c0_35, %c512] : memref<512x1152xbf16, #tpu.memory_space<vmem>>, vector<512x128xbf16>
    tpu.vector_store %arg14[%c0_35, %c512], %74 {strides = array<i32>} : memref<512x1152xbf16, #tpu.memory_space<vmem>>, vector<512x128xbf16>,
    %c25 = arith.constant 25 : index
    %c0_36 = arith.constant 0 : index
    %76 = vector.load %arg13[%c25, %c0_36] : memref<560x128xf32, #tpu.memory_space<vmem>>, vector<512x128xf32>
    %77 = vector.broadcast %50 : vector<512x1xf32> to vector<512x128xf32>
    %78 = arith.mulf %76, %77 : vector<512x128xf32>
    %79 = arith.truncf %78 : vector<512x128xf32> to vector<512x128xbf16>
    %c0_37 = arith.constant 0 : index
    %c640 = arith.constant 640 : index
    %80 = vector.load %arg14[%c0_37, %c640] : memref<512x1152xbf16, #tpu.memory_space<vmem>>, vector<512x128xbf16>
    tpu.vector_store %arg14[%c0_37, %c640], %79 {strides = array<i32>} : memref<512x1152xbf16, #tpu.memory_space<vmem>>, vector<512x128xbf16>,
    %c39 = arith.constant 39 : index
    %c0_38 = arith.constant 0 : index
    %81 = vector.load %arg13[%c39, %c0_38] : memref<560x128xf32, #tpu.memory_space<vmem>>, vector<512x128xf32>
    %82 = arith.mulf %42, %46 : vector<512x1xf32>
    %83 = vector.broadcast %82 : vector<512x1xf32> to vector<512x128xf32>
    %84 = arith.mulf %81, %83 : vector<512x128xf32>
    %85 = arith.truncf %84 : vector<512x128xf32> to vector<512x128xbf16>
    %c0_39 = arith.constant 0 : index
    %c768 = arith.constant 768 : index
    %86 = vector.load %arg14[%c0_39, %c768] : memref<512x1152xbf16, #tpu.memory_space<vmem>>, vector<512x128xbf16>
    tpu.vector_store %arg14[%c0_39, %c768], %85 {strides = array<i32>} : memref<512x1152xbf16, #tpu.memory_space<vmem>>, vector<512x128xbf16>,
    %c40 = arith.constant 40 : index
    %c0_40 = arith.constant 0 : index
    %87 = vector.load %arg13[%c40, %c0_40] : memref<560x128xf32, #tpu.memory_space<vmem>>, vector<512x128xf32>
    %88 = vector.broadcast %42 : vector<512x1xf32> to vector<512x128xf32>
    %89 = arith.mulf %87, %88 : vector<512x128xf32>
    %90 = arith.truncf %89 : vector<512x128xf32> to vector<512x128xbf16>
    %c0_41 = arith.constant 0 : index
    %c896 = arith.constant 896 : index
    %91 = vector.load %arg14[%c0_41, %c896] : memref<512x1152xbf16, #tpu.memory_space<vmem>>, vector<512x128xbf16>
    tpu.vector_store %arg14[%c0_41, %c896], %90 {strides = array<i32>} : memref<512x1152xbf16, #tpu.memory_space<vmem>>, vector<512x128xbf16>,
    %c41 = arith.constant 41 : index
    %c0_42 = arith.constant 0 : index
    %92 = vector.load %arg13[%c41, %c0_42] : memref<560x128xf32, #tpu.memory_space<vmem>>, vector<512x128xf32>
    %93 = arith.mulf %42, %50 : vector<512x1xf32>
    %94 = vector.broadcast %93 : vector<512x1xf32> to vector<512x128xf32>
    %95 = arith.mulf %92, %94 : vector<512x128xf32>
    %96 = arith.truncf %95 : vector<512x128xf32> to vector<512x128xbf16>
    %c0_43 = arith.constant 0 : index
    %c1024 = arith.constant 1024 : index
    %97 = vector.load %arg14[%c0_43, %c1024] : memref<512x1152xbf16, #tpu.memory_space<vmem>>, vector<512x128xbf16>
    tpu.vector_store %arg14[%c0_43, %c1024], %96 {strides = array<i32>} : memref<512x1152xbf16, #tpu.memory_space<vmem>>, vector<512x128xbf16>,
    %c0_44 = arith.constant 0 : index
    %c0_45 = arith.constant 0 : index
    %98 = vector.load %arg14[%c0_44, %c0_45] : memref<512x1152xbf16, #tpu.memory_space<vmem>>, vector<512x1152xbf16>
    %c0_46 = arith.constant 0 : index
    %c0_47 = arith.constant 0 : index
    %99 = vector.load %arg6[%c0_46, %c0_47] : memref<1152x128xbf16, #tpu.memory_space<vmem>>, vector<1152x128xbf16>
    %cst_48 = arith.constant dense<0.000000e+00> : vector<512x128xf32>
    %100 = tpu.matmul %98, %99, %cst_48 {dimension_numbers = #tpu.dot_dimension_numbers<[1], [0], [0], [1], [0, 0, 1, 1], [], []>} : vector<512x1152xbf16>, vector<1152x128xbf16>, vector<512x128xf32> -> vector<512x128xf32>
    %c0_49 = arith.constant 0 : index
    %c0_50 = arith.constant 0 : index
    %101 = vector.load %arg7[%c0_49, %c0_50] : memref<1x128xf32, #tpu.memory_space<vmem>>, vector<1x128xf32>
    %c0_51 = arith.constant 0 : index
    %c0_52 = arith.constant 0 : index
    %102 = vector.load %arg8[%c0_51, %c0_52] : memref<1x128xf32, #tpu.memory_space<vmem>>, vector<1x128xf32>
    %cst_53 = arith.constant dense<0.000000e+00> : vector<128xf32>
    %103 = vector.multi_reduction <add>, %100, %cst_53 [0] : vector<512x128xf32> to vector<128xf32>
    %104 = vector.shape_cast %103 : vector<128xf32> to vector<1x128xf32>
    %105 = arith.mulf %100, %100 : vector<512x128xf32>
    %cst_54 = arith.constant dense<0.000000e+00> : vector<128xf32>
    %106 = vector.multi_reduction <add>, %105, %cst_54 [0] : vector<512x128xf32> to vector<128xf32>
    %107 = vector.shape_cast %106 : vector<128xf32> to vector<1x128xf32>
    %cst_55 = arith.constant 0.001953125 : f32
    %108 = vector.broadcast %cst_55 : f32 to vector<1x128xf32>
    %109 = arith.mulf %104, %108 : vector<1x128xf32>
    %cst_56 = arith.constant 0.001953125 : f32
    %110 = vector.broadcast %cst_56 : f32 to vector<1x128xf32>
    %111 = arith.mulf %107, %110 : vector<1x128xf32>
    %112 = arith.mulf %109, %109 : vector<1x128xf32>
    %113 = arith.subf %111, %112 : vector<1x128xf32>
    %cst_57 = arith.constant 9.99999974E-6 : f32
    %114 = vector.broadcast %cst_57 : f32 to vector<1x128xf32>
    %115 = arith.addf %113, %114 : vector<1x128xf32>
    %116 = math.rsqrt %115 : vector<1x128xf32>
    %117 = arith.mulf %101, %116 : vector<1x128xf32>
    %118 = arith.mulf %109, %117 : vector<1x128xf32>
    %119 = arith.subf %102, %118 : vector<1x128xf32>
    %120 = vector.broadcast %117 : vector<1x128xf32> to vector<512x128xf32>
    %121 = arith.mulf %100, %120 : vector<512x128xf32>
    %122 = vector.broadcast %119 : vector<1x128xf32> to vector<512x128xf32>
    %123 = arith.addf %121, %122 : vector<512x128xf32>
    %cst_58 = arith.constant 0.000000e+00 : f32
    %124 = vector.broadcast %cst_58 : f32 to vector<512x128xf32>
    %125 = arith.maximumf %123, %124 : vector<512x128xf32>
    %126 = arith.truncf %125 : vector<512x128xf32> to vector<512x128xbf16>
    %c0_59 = arith.constant 0 : index
    %c0_60 = arith.constant 0 : index
    %127 = vector.load %arg9[%c0_59, %c0_60] : memref<128x128xbf16, #tpu.memory_space<vmem>>, vector<128x128xbf16>
    %cst_61 = arith.constant dense<0.000000e+00> : vector<512x128xf32>
    %128 = tpu.matmul %126, %127, %cst_61 {dimension_numbers = #tpu.dot_dimension_numbers<[1], [0], [0], [1], [0, 0, 1, 1], [], []>} : vector<512x128xbf16>, vector<128x128xbf16>, vector<512x128xf32> -> vector<512x128xf32>
    %c0_62 = arith.constant 0 : index
    %c0_63 = arith.constant 0 : index
    %129 = vector.load %arg10[%c0_62, %c0_63] : memref<1x128xf32, #tpu.memory_space<vmem>>, vector<1x128xf32>
    %c0_64 = arith.constant 0 : index
    %c0_65 = arith.constant 0 : index
    %130 = vector.load %arg11[%c0_64, %c0_65] : memref<1x128xf32, #tpu.memory_space<vmem>>, vector<1x128xf32>
    %cst_66 = arith.constant dense<0.000000e+00> : vector<128xf32>
    %131 = vector.multi_reduction <add>, %128, %cst_66 [0] : vector<512x128xf32> to vector<128xf32>
    %132 = vector.shape_cast %131 : vector<128xf32> to vector<1x128xf32>
    %133 = arith.mulf %128, %128 : vector<512x128xf32>
    %cst_67 = arith.constant dense<0.000000e+00> : vector<128xf32>
    %134 = vector.multi_reduction <add>, %133, %cst_67 [0] : vector<512x128xf32> to vector<128xf32>
    %135 = vector.shape_cast %134 : vector<128xf32> to vector<1x128xf32>
    %cst_68 = arith.constant 0.001953125 : f32
    %136 = vector.broadcast %cst_68 : f32 to vector<1x128xf32>
    %137 = arith.mulf %132, %136 : vector<1x128xf32>
    %cst_69 = arith.constant 0.001953125 : f32
    %138 = vector.broadcast %cst_69 : f32 to vector<1x128xf32>
    %139 = arith.mulf %135, %138 : vector<1x128xf32>
    %140 = arith.mulf %137, %137 : vector<1x128xf32>
    %141 = arith.subf %139, %140 : vector<1x128xf32>
    %cst_70 = arith.constant 9.99999974E-6 : f32
    %142 = vector.broadcast %cst_70 : f32 to vector<1x128xf32>
    %143 = arith.addf %141, %142 : vector<1x128xf32>
    %144 = math.rsqrt %143 : vector<1x128xf32>
    %145 = arith.mulf %129, %144 : vector<1x128xf32>
    %146 = arith.mulf %137, %145 : vector<1x128xf32>
    %147 = arith.subf %130, %146 : vector<1x128xf32>
    %148 = vector.broadcast %145 : vector<1x128xf32> to vector<512x128xf32>
    %149 = arith.mulf %128, %148 : vector<512x128xf32>
    %150 = vector.broadcast %147 : vector<1x128xf32> to vector<512x128xf32>
    %151 = arith.addf %149, %150 : vector<512x128xf32>
    %c0_71 = arith.constant 0 : index
    %c0_72 = arith.constant 0 : index
    %152 = vector.load %arg0[%c0_71, %c0_72] : memref<512x128xf32, #tpu.memory_space<vmem>>, vector<512x128xf32>
    %153 = arith.addf %151, %152 : vector<512x128xf32>
    %cst_73 = arith.constant 0.000000e+00 : f32
    %154 = vector.broadcast %cst_73 : f32 to vector<512x128xf32>
    %155 = arith.maximumf %153, %154 : vector<512x128xf32>
    %c0_74 = arith.constant 0 : index
    %c0_75 = arith.constant 0 : index
    %156 = vector.load %arg12[%c0_74, %c0_75] : memref<512x128xf32, #tpu.memory_space<vmem>>, vector<512x128xf32>
    tpu.vector_store %arg12[%c0_74, %c0_75], %155 {strides = array<i32>} : memref<512x128xf32, #tpu.memory_space<vmem>>, vector<512x128xf32>,
    return
  }
}

</mosaic_0001>

<llo_original>
// kernel: tpu_custom_call.1
$region0: #{tpu_custom_call.1}
  #allocation0 [shape = 'u32[]', space=smem, size = 0x4, offset = 0x4, fixed_abs, tag = 'smem constant byte address 0x4 - core index']
  #allocation1 [shape = 'u32[144,128]{1,0:T(1,128)}', space=vmem, size = 0x12000, scoped, tag = 'internal scratch']
  #allocation2 [shape = 'f32[560,128]{1,0:T(8,128)}', space=vmem, size = 0x46000, scoped, tag = 'scratch operand']
  #allocation3 [shape = 'bf16[512,1152]{1,0:T(16,128)(2,1)}', space=vmem, size = 0x120000, scoped, tag = 'scratch operand']
  %s0 = inlined_call_operand.hbm [shape: f32[512,128], index: 0, kind: input, shape index: {}]
  %s1 = inlined_call_operand.vmem [shape: s32[512,1], index: 1, kind: input, shape index: {}]
  %s2 = inlined_call_operand.vmem [shape: s32[512,1], index: 2, kind: input, shape index: {}]
  %s3 = inlined_call_operand.vmem [shape: bf16[128,128], index: 3, kind: input, shape index: {}]
  %s4 = inlined_call_operand.vmem [shape: f32[1,128], index: 4, kind: input, shape index: {}]
  %s5 = inlined_call_operand.vmem [shape: f32[1,128], index: 5, kind: input, shape index: {}]
  %s6 = inlined_call_operand.vmem [shape: bf16[1152,128], index: 6, kind: input, shape index: {}]
  %s7 = inlined_call_operand.vmem [shape: f32[1,128], index: 7, kind: input, shape index: {}]
  %s8 = inlined_call_operand.vmem [shape: f32[1,128], index: 8, kind: input, shape index: {}]
  %s9 = inlined_call_operand.vmem [shape: bf16[128,128], index: 9, kind: input, shape index: {}]
  %s10 = inlined_call_operand.vmem [shape: f32[1,128], index: 10, kind: input, shape index: {}]
  %s11 = inlined_call_operand.vmem [shape: f32[1,128], index: 11, kind: input, shape index: {}]
  %s12 = inlined_call_operand.hbm [shape: f32[512,128], index: 12, kind: output, shape index: {}]
  %s13 = sld [smem:[#allocation0]]
  $region62: #{tpu_custom_call.1} parent=0
    _
  %s15 = ssub.s32 1, %s13
  %s16 = scalar_select 0, %s15, %s13
  $region1: #{tpu_custom_call.1} parent=0
    #allocation4 [shape = 'u8[262144]{0}', space=vmem, size = 0x40000, scoped, tag = 'input window, operand 0, single buffered']
    #allocation5 [shape = 's32[1]{0}', space=sflag, size = 0x4, scoped, tag = 'scoped memory for tpu_custom_call.1']
    #allocation6 [shape = 's32[1]{0}', space=sflag, size = 0x4, scoped, tag = 'scoped memory for tpu_custom_call.1']
    #allocation7 [shape = 'u8[262144]{0}', space=vmem, size = 0x40000, scoped, tag = 'output window, operand 0, single buffered']
    %17 = vsyncpa [#allocation5], 0
    %18 = vsyncpa [#allocation6], 0
    // Predicated region
    $region2: #{tpu_custom_call.1} parent=1 // pred_check
      _
    $region3: #{tpu_custom_call.1} parent=1 // pred_check_branch
      %20 = sbr.rel (0) target = $region5
    $region4: #{tpu_custom_call.1} parent=1 // pred_region
      %s22 = ssub.s32 8192, 8192
      %23 = vsyncadd [#allocation5], %s22
      %s24 = sshll.u32 [#allocation4], 4
      %s25 = int_to_ptr.vmem [resolvable:$true] %s24
      %30 = dma.hbm_to_vmem [thread:$0]  %s0, 8192, %s25, [#allocation5], 128, 128, 8
    $region5: #{tpu_custom_call.1} parent=1 // pred_fallthru
      _
    // Predicated region
    $region6: #{tpu_custom_call.1} parent=1 // pred_check
      _
    $region7: #{tpu_custom_call.1} parent=1 // pred_check_branch
      %32 = sbr.rel (0) target = $region9
    $region8: #{tpu_custom_call.1} parent=1 // pred_region
      _
    $region9: #{tpu_custom_call.1} parent=1 // pred_fallthru
      _
    // Predicated region
    $region10: #{tpu_custom_call.1} parent=1 // pred_check
      _
    $region11: #{tpu_custom_call.1} parent=1 // pred_check_branch
      %34 = sbr.rel (0) target = $region13
    $region12: #{tpu_custom_call.1} parent=1 // pred_region
      _
    $region13: #{tpu_custom_call.1} parent=1 // pred_fallthru
      _
    // Predicated region
    $region14: #{tpu_custom_call.1} parent=1 // pred_check
      _
    $region15: #{tpu_custom_call.1} parent=1 // pred_check_branch
      %36 = sbr.rel (0) target = $region17
    $region16: #{tpu_custom_call.1} parent=1 // pred_region
      _
    $region17: #{tpu_custom_call.1} parent=1 // pred_fallthru
      _
    // Predicated region
    $region18: #{tpu_custom_call.1} parent=1 // pred_check
      _
    $region19: #{tpu_custom_call.1} parent=1 // pred_check_branch
      %38 = sbr.rel (0) target = $region21
    $region20: #{tpu_custom_call.1} parent=1 // pred_region
      _
    $region21: #{tpu_custom_call.1} parent=1 // pred_fallthru
      _
    // Predicated region
    $region22: #{tpu_custom_call.1} parent=1 // pred_check
      _
    $region23: #{tpu_custom_call.1} parent=1 // pred_check_branch
      %40 = sbr.rel (0) target = $region25
    $region24: #{tpu_custom_call.1} parent=1 // pred_region
      _
    $region25: #{tpu_custom_call.1} parent=1 // pred_fallthru
      _
    // Predicated region
    $region26: #{tpu_custom_call.1} parent=1 // pred_check
      _
    $region27: #{tpu_custom_call.1} parent=1 // pred_check_branch
      %42 = sbr.rel (0) target = $region29
    $region28: #{tpu_custom_call.1} parent=1 // pred_region
      _
    $region29: #{tpu_custom_call.1} parent=1 // pred_fallthru
      _
    // Predicated region
    $region30: #{tpu_custom_call.1} parent=1 // pred_check
      _
    $region31: #{tpu_custom_call.1} parent=1 // pred_check_branch
      %44 = sbr.rel (0) target = $region33
    $region32: #{tpu_custom_call.1} parent=1 // pred_region
      _
    $region33: #{tpu_custom_call.1} parent=1 // pred_fallthru
      _
    // Predicated region
    $region34: #{tpu_custom_call.1} parent=1 // pred_check
      _
    $region35: #{tpu_custom_call.1} parent=1 // pred_check_branch
      %46 = sbr.rel (0) target = $region37
    $region36: #{tpu_custom_call.1} parent=1 // pred_region
      _
    $region37: #{tpu_custom_call.1} parent=1 // pred_fallthru
      _
    // Predicated region
    $region38: #{tpu_custom_call.1} parent=1 // pred_check
      _
    $region39: #{tpu_custom_call.1} parent=1 // pred_check_branch
      %48 = sbr.rel (0) target = $region41
    $region40: #{tpu_custom_call.1} parent=1 // pred_region
      _
    $region41: #{tpu_custom_call.1} parent=1 // pred_fallthru
      _
    // Predicated region
    $region42: #{tpu_custom_call.1} parent=1 // pred_check
      _
    $region43: #{tpu_custom_call.1} parent=1 // pred_check_branch
      %50 = sbr.rel (0) target = $region45
    $region44: #{tpu_custom_call.1} parent=1 // pred_region
      _
    $region45: #{tpu_custom_call.1} parent=1 // pred_fallthru
      _
    // Predicated region
    $region46: #{tpu_custom_call.1} parent=1 // pred_check
      _
    $region47: #{tpu_custom_call.1} parent=1 // pred_check_branch
      %52 = sbr.rel (0) target = $region49
    $region48: #{tpu_custom_call.1} parent=1 // pred_region
      _
    $region49: #{tpu_custom_call.1} parent=1 // pred_fallthru
      _
    // Predicated region
    $region50: #{tpu_custom_call.1} parent=1 // pred_check
      _
    $region51: #{tpu_custom_call.1} parent=1 // pred_check_branch
      %54 = sbr.rel (0) target = $region53
    $region52: #{tpu_custom_call.1} parent=1 // pred_region
      %55 = dma.done [#allocation5], 8192
    $region53: #{tpu_custom_call.1} parent=1 // pred_fallthru
      _
    %v57 = vld [vmem:[#allocation4] sm:$0xff]
    %v58 = vld [vmem:[#allocation4 + $0x8] sm:$0xff]
    %v59 = vld [vmem:[#allocation4 + $0x10] sm:$0xff]
    %v60 = vld [vmem:[#allocation4 + $0x18] sm:$0xff]
    %v61 = vld [vmem:[#allocation4 + $0x20] sm:$0xff]
    %v62 = vld [vmem:[#allocation4 + $0x28] sm:$0xff]
    %v63 = vld [vmem:[#allocation4 + $0x30] sm:$0xff]
    %v64 = vld [vmem:[#allocation4 + $0x38] sm:$0xff]
    %v65 = vld [vmem:[#allocation4 + $0x40] sm:$0xff]
    %v66 = vld [vmem:[#allocation4 + $0x48] sm:$0xff]
    %v67 = vld [vmem:[#allocation4 + $0x50] sm:$0xff]
    %v68 = vld [vmem:[#allocation4 + $0x58] sm:$0xff]
    %v69 = vld [vmem:[#allocation4 + $0x60] sm:$0xff]
    %v70 = vld [vmem:[#allocation4 + $0x68] sm:$0xff]
    %v71 = vld [vmem:[#allocation4 + $0x70] sm:$0xff]
    %v72 = vld [vmem:[#allocation4 + $0x78] sm:$0xff]
    %v73 = vld [vmem:[#allocation4 + $0x80] sm:$0xff]
    %v74 = vld [vmem:[#allocation4 + $0x88] sm:$0xff]
    %v75 = vld [vmem:[#allocation4 + $0x90] sm:$0xff]
    %v76 = vld [vmem:[#allocation4 + $0x98] sm:$0xff]
    %v77 = vld [vmem:[#allocation4 + $0xa0] sm:$0xff]
    %v78 = vld [vmem:[#allocation4 + $0xa8] sm:$0xff]
    %v79 = vld [vmem:[#allocation4 + $0xb0] sm:$0xff]
    %v80 = vld [vmem:[#allocation4 + $0xb8] sm:$0xff]
    %v81 = vld [vmem:[#allocation4 + $0xc0] sm:$0xff]
    %v82 = vld [vmem:[#allocation4 + $0xc8] sm:$0xff]
    %v83 = vld [vmem:[#allocation4 + $0xd0] sm:$0xff]
    %v84 = vld [vmem:[#allocation4 + $0xd8] sm:$0xff]
    %v85 = vld [vmem:[#allocation4 + $0xe0] sm:$0xff]
    %v86 = vld [vmem:[#allocation4 + $0xe8] sm:$0xff]
    %v87 = vld [vmem:[#allocation4 + $0xf0] sm:$0xff]
    %v88 = vld [vmem:[#allocation4 + $0xf8] sm:$0xff]
    %v89 = vld [vmem:[#allocation4 + $0x100] sm:$0xff]
    %v90 = vld [vmem:[#allocation4 + $0x108] sm:$0xff]
    %v91 = vld [vmem:[#allocation4 + $0x110] sm:$0xff]
    %v92 = vld [vmem:[#allocation4 + $0x118] sm:$0xff]
    %v93 = vld [vmem:[#allocation4 + $0x120] sm:$0xff]
    %v94 = vld [vmem:[#allocation4 + $0x128] sm:$0xff]
    %v95 = vld [vmem:[#allocation4 + $0x130] sm:$0xff]
    %v96 = vld [vmem:[#allocation4 + $0x138] sm:$0xff]
    %v97 = vld [vmem:[#allocation4 + $0x140] sm:$0xff]
    %v98 = vld [vmem:[#allocation4 + $0x148] sm:$0xff]
    %v99 = vld [vmem:[#allocation4 + $0x150] sm:$0xff]
    %v100 = vld [vmem:[#allocation4 + $0x158] sm:$0xff]
    %v101 = vld [vmem:[#allocation4 + $0x160] sm:$0xff]
    %v102 = vld [vmem:[#allocation4 + $0x168] sm:$0xff]
    %v103 = vld [vmem:[#allocation4 + $0x170] sm:$0xff]
    %v104 = vld [vmem:[#allocation4 + $0x178] sm:$0xff]
    %v105 = vld [vmem:[#allocation4 + $0x180] sm:$0xff]
    %v106 = vld [vmem:[#allocation4 + $0x188] sm:$0xff]
    %v107 = vld [vmem:[#allocation4 + $0x190] sm:$0xff]
    %v108 = vld [vmem:[#allocation4 + $0x198] sm:$0xff]
    %v109 = vld [vmem:[#allocation4 + $0x1a0] sm:$0xff]
    %v110 = vld [vmem:[#allocation4 + $0x1a8] sm:$0xff]
    %v111 = vld [vmem:[#allocation4 + $0x1b0] sm:$0xff]
    %v112 = vld [vmem:[#allocation4 + $0x1b8] sm:$0xff]
    %v113 = vld [vmem:[#allocation4 + $0x1c0] sm:$0xff]
    %v114 = vld [vmem:[#allocation4 + $0x1c8] sm:$0xff]
    %v115 = vld [vmem:[#allocation4 + $0x1d0] sm:$0xff]
    %v116 = vld [vmem:[#allocation4 + $0x1d8] sm:$0xff]
    %v117 = vld [vmem:[#allocation4 + $0x1e0] sm:$0xff]
    %v118 = vld [vmem:[#allocation4 + $0x1e8] sm:$0xff]
    %v119 = vld [vmem:[#allocation4 + $0x1f0] sm:$0xff]
    %v120 = vld [vmem:[#allocation4 + $0x1f8] sm:$0xff]
    %v121 = vpack.c.bf16 %v58, %v57
    %v122 = vpack.c.bf16 %v60, %v59
    %v123 = vpack.c.bf16 %v62, %v61
    %v124 = vpack.c.bf16 %v64, %v63
    %v125 = vpack.c.bf16 %v66, %v65
    %v126 = vpack.c.bf16 %v68, %v67
    %v127 = vpack.c.bf16 %v70, %v69
    %v128 = vpack.c.bf16 %v72, %v71
    %v129 = vpack.c.bf16 %v74, %v73
    %v130 = vpack.c.bf16 %v76, %v75
    %v131 = vpack.c.bf16 %v78, %v77
    %v132 = vpack.c.bf16 %v80, %v79
    %v133 = vpack.c.bf16 %v82, %v81
    %v134 = vpack.c.bf16 %v84, %v83
    %v135 = vpack.c.bf16 %v86, %v85
    %v136 = vpack.c.bf16 %v88, %v87
    %v137 = vpack.c.bf16 %v90, %v89
    %v138 = vpack.c.bf16 %v92, %v91
    %v139 = vpack.c.bf16 %v94, %v93
    %v140 = vpack.c.bf16 %v96, %v95
    %v141 = vpack.c.bf16 %v98, %v97
    %v142 = vpack.c.bf16 %v100, %v99
    %v143 = vpack.c.bf16 %v102, %v101
    %v144 = vpack.c.bf16 %v104, %v103
    %v145 = vpack.c.bf16 %v106, %v105
    %v146 = vpack.c.bf16 %v108, %v107
    %v147 = vpack.c.bf16 %v110, %v109
    %v148 = vpack.c.bf16 %v112, %v111
    %v149 = vpack.c.bf16 %v114, %v113
    %v150 = vpack.c.bf16 %v116, %v115
    %v151 = vpack.c.bf16 %v118, %v117
    %v152 = vpack.c.bf16 %v120, %v119
    %v153 = vld [vmem:[%s3] sm:$0xf]
    %v154 = vld [vmem:[%s3 + $0x4] sm:$0xf]
    %v155 = vld [vmem:[%s3 + $0x8] sm:$0xf]
    %v156 = vld [vmem:[%s3 + $0xc] sm:$0xf]
    %v157 = vld [vmem:[%s3 + $0x10] sm:$0xf]
    %v158 = vld [vmem:[%s3 + $0x14] sm:$0xf]
    %v159 = vld [vmem:[%s3 + $0x18] sm:$0xf]
    %v160 = vld [vmem:[%s3 + $0x1c] sm:$0xf]
    %v161 = vld [vmem:[%s3 + $0x20] sm:$0xf]
    %v162 = vld [vmem:[%s3 + $0x24] sm:$0xf]
    %v163 = vld [vmem:[%s3 + $0x28] sm:$0xf]
    %v164 = vld [vmem:[%s3 + $0x2c] sm:$0xf]
    %v165 = vld [vmem:[%s3 + $0x30] sm:$0xf]
    %v166 = vld [vmem:[%s3 + $0x34] sm:$0xf]
    %v167 = vld [vmem:[%s3 + $0x38] sm:$0xf]
    %v168 = vld [vmem:[%s3 + $0x3c] sm:$0xf]
    %v185 = vunpack.c.l.b16 %v153
    %v186 = vunpack.c.l.b16 %v154
    %v187 = vunpack.c.l.b16 %v155
    %v188 = vunpack.c.l.b16 %v156
    %v189 = vunpack.c.l.b16 %v157
    %v190 = vunpack.c.l.b16 %v158
    %v191 = vunpack.c.l.b16 %v159
    %v192 = vunpack.c.l.b16 %v160
    %v193 = vunpack.c.l.b16 %v161
    %v194 = vunpack.c.l.b16 %v162
    %v195 = vunpack.c.l.b16 %v163
    %v196 = vunpack.c.l.b16 %v164
    %v197 = vunpack.c.l.b16 %v165
    %v198 = vunpack.c.l.b16 %v166
    %v199 = vunpack.c.l.b16 %v167
    %v200 = vunpack.c.l.b16 %v168
    %v201 = vpack.c.b16 %v186, %v185
    %v202 = vpack.c.b16 %v188, %v187
    %v203 = vpack.c.b16 %v190, %v189
    %v204 = vpack.c.b16 %v192, %v191
    %v205 = vpack.c.b16 %v194, %v193
    %v206 = vpack.c.b16 %v196, %v195
    %v207 = vpack.c.b16 %v198, %v197
    %v208 = vpack.c.b16 %v200, %v199
    %217 = vmatprep.subr.bf16.mxu0 0
    %218 = vmatpush1.bf16.msra.mxu0 %v201
    %219 = vmatprep.subr.bf16.mxu0 0
    %220 = vmatpush1.bf16.msra.mxu0 %v202
    %221 = vmatprep.subr.bf16.mxu0 0
    %222 = vmatpush1.bf16.msra.mxu0 %v203
    %223 = vmatprep.subr.bf16.mxu0 0
    %224 = vmatpush1.bf16.msra.mxu0 %v204
    %225 = vmatprep.subr.bf16.mxu0 0
    %226 = vmatpush1.bf16.msra.mxu0 %v205
    %227 = vmatprep.subr.bf16.mxu0 0
    %228 = vmatpush1.bf16.msra.mxu0 %v206
    %229 = vmatprep.subr.bf16.mxu0 0
    %230 = vmatpush1.bf16.msra.mxu0 %v207
    %231 = vmatprep.subr.bf16.mxu0 0
    %232 = vmatpush1.bf16.msra.mxu0 %v208
    %233 = vmatprep.subr.bf16.mxu0 0
    %234 = vmatpush1.bf16.msra.mxu0 0
    %235 = vmatprep.subr.bf16.mxu0 0
    %236 = vmatpush1.bf16.msra.mxu0 0
    %237 = vmatprep.subr.bf16.mxu0 0
    %238 = vmatpush1.bf16.msra.mxu0 0
    %239 = vmatprep.subr.bf16.mxu0 0
    %240 = vmatpush1.bf16.msra.mxu0 0
    %241 = vmatprep.subr.bf16.mxu0 0
    %242 = vmatpush1.bf16.msra.mxu0 0
    %243 = vmatprep.subr.bf16.mxu0 0
    %244 = vmatpush1.bf16.msra.mxu0 0
    %245 = vmatprep.subr.bf16.mxu0 0
    %246 = vmatpush1.bf16.msra.mxu0 0
    %247 = vmatprep.subr.bf16.mxu0 0
    %248 = vmatpush1.bf16.msra.mxu0 0
    %249 = vmatprep.mubr.bf16.mxu0 0
    %250 = vmatmul.mubr.bf16.gmra.mrb[0].mxu0 %v121
    %v251 = vpop.f32.mrb[0].mxu0
    %v252 = vadd.f32 0.0, %v251
    %v253 = vpop.f32.mrb[0].mxu0
    %v254 = vpop.f32.mrb[0].mxu0
    %v255 = vadd.f32 0.0, %v254
    %v256 = vpop.f32.mrb[0].mxu0
    %257 = vmatprep.mubr.bf16.mxu0 0
    %258 = vmatmul.mubr.bf16.gmra.mrb[0].mxu0 %v122
    %v259 = vpop.f32.mrb[0].mxu0
    %v260 = vadd.f32 0.0, %v259
    %v261 = vpop.f32.mrb[0].mxu0
    %v262 = vpop.f32.mrb[0].mxu0
    %v263 = vadd.f32 0.0, %v262
    %v264 = vpop.f32.mrb[0].mxu0
    %265 = vmatprep.mubr.bf16.mxu0 0
    %266 = vmatmul.mubr.bf16.gmra.mrb[0].mxu0 %v123
    %v267 = vpop.f32.mrb[0].mxu0
    %v268 = vadd.f32 0.0, %v267
    %v269 = vpop.f32.mrb[0].mxu0
    %v270 = vpop.f32.mrb[0].mxu0
    %v271 = vadd.f32 0.0, %v270
    %v272 = vpop.f32.mrb[0].mxu0
    %273 = vmatprep.mubr.bf16.mxu0 0
    %274 = vmatmul.mubr.bf16.gmra.mrb[0].mxu0 %v124
    %v275 = vpop.f32.mrb[0].mxu0
    %v276 = vadd.f32 0.0, %v275
    %v277 = vpop.f32.mrb[0].mxu0
    %v278 = vpop.f32.mrb[0].mxu0
    %v279 = vadd.f32 0.0, %v278
    %v280 = vpop.f32.mrb[0].mxu0
    %281 = vmatprep.mubr.bf16.mxu0 0
    %282 = vmatmul.mubr.bf16.gmra.mrb[0].mxu0 %v125
    %v283 = vpop.f32.mrb[0].mxu0
    %v284 = vadd.f32 0.0, %v283
    %v285 = vpop.f32.mrb[0].mxu0
    %v286 = vpop.f32.mrb[0].mxu0
    %v287 = vadd.f32 0.0, %v286
    %v288 = vpop.f32.mrb[0].mxu0
    %289 = vmatprep.mubr.bf16.mxu0 0
    %290 = vmatmul.mubr.bf16.gmra.mrb[0].mxu0 %v126
    %v291 = vpop.f32.mrb[0].mxu0
    %v292 = vadd.f32 0.0, %v291
    %v293 = vpop.f32.mrb[0].mxu0
    %v294 = vpop.f32.mrb[0].mxu0
    %v295 = vadd.f32 0.0, %v294
    %v296 = vpop.f32.mrb[0].mxu0
    %297 = vmatprep.mubr.bf16.mxu0 0
    %298 = vmatmul.mubr.bf16.gmra.mrb[0].mxu0 %v127
    %v299 = vpop.f32.mrb[0].mxu0
    %v300 = vadd.f32 0.0, %v299
    %v301 = vpop.f32.mrb[0].mxu0
    %v302 = vpop.f32.mrb[0].mxu0
    %v303 = vadd.f32 0.0, %v302
    %v304 = vpop.f32.mrb[0].mxu0
    %305 = vmatprep.mubr.bf16.mxu0 0
    %306 = vmatmul.mubr.bf16.gmra.mrb[0].mxu0 %v128
    %v307 = vpop.f32.mrb[0].mxu0
    %v308 = vadd.f32 0.0, %v307
    %v309 = vpop.f32.mrb[0].mxu0
    %v310 = vpop.f32.mrb[0].mxu0
    %v311 = vadd.f32 0.0, %v310
    %v312 = vpop.f32.mrb[0].mxu0
    %313 = vmatprep.mubr.bf16.mxu0 0
    %314 = vmatmul.mubr.bf16.gmra.mrb[0].mxu0 %v129
    %v315 = vpop.f32.mrb[0].mxu0
    %v316 = vadd.f32 0.0, %v315
    %v317 = vpop.f32.mrb[0].mxu0
    %v318 = vpop.f32.mrb[0].mxu0
    %v319 = vadd.f32 0.0, %v318
    %v320 = vpop.f32.mrb[0].mxu0
    %321 = vmatprep.mubr.bf16.mxu0 0
    %322 = vmatmul.mubr.bf16.gmra.mrb[0].mxu0 %v130
    %v323 = vpop.f32.mrb[0].mxu0
    %v324 = vadd.f32 0.0, %v323
    %v325 = vpop.f32.mrb[0].mxu0
    %v326 = vpop.f32.mrb[0].mxu0
    %v327 = vadd.f32 0.0, %v326
    %v328 = vpop.f32.mrb[0].mxu0
    %329 = vmatprep.mubr.bf16.mxu0 0
    %330 = vmatmul.mubr.bf16.gmra.mrb[0].mxu0 %v131
    %v331 = vpop.f32.mrb[0].mxu0
    %v332 = vadd.f32 0.0, %v331
    %v333 = vpop.f32.mrb[0].mxu0
    %v334 = vpop.f32.mrb[0].mxu0
    %v335 = vadd.f32 0.0, %v334
    %v336 = vpop.f32.mrb[0].mxu0
    %337 = vmatprep.mubr.bf16.mxu0 0
    %338 = vmatmul.mubr.bf16.gmra.mrb[0].mxu0 %v132
    %v339 = vpop.f32.mrb[0].mxu0
    %v340 = vadd.f32 0.0, %v339
    %v341 = vpop.f32.mrb[0].mxu0
    %v342 = vpop.f32.mrb[0].mxu0
    %v343 = vadd.f32 0.0, %v342
    %v344 = vpop.f32.mrb[0].mxu0
    %345 = vmatprep.mubr.bf16.mxu0 0
    %346 = vmatmul.mubr.bf16.gmra.mrb[0].mxu0 %v133
    %v347 = vpop.f32.mrb[0].mxu0
    %v348 = vadd.f32 0.0, %v347
    %v349 = vpop.f32.mrb[0].mxu0
    %v350 = vpop.f32.mrb[0].mxu0
    %v351 = vadd.f32 0.0, %v350
    %v352 = vpop.f32.mrb[0].mxu0
    %353 = vmatprep.mubr.bf16.mxu0 0
    %354 = vmatmul.mubr.bf16.gmra.mrb[0].mxu0 %v134
    %v355 = vpop.f32.mrb[0].mxu0
    %v356 = vadd.f32 0.0, %v355
    %v357 = vpop.f32.mrb[0].mxu0
    %v358 = vpop.f32.mrb[0].mxu0
    %v359 = vadd.f32 0.0, %v358
    %v360 = vpop.f32.mrb[0].mxu0
    %361 = vmatprep.mubr.bf16.mxu0 0
    %362 = vmatmul.mubr.bf16.gmra.mrb[0].mxu0 %v135
    %v363 = vpop.f32.mrb[0].mxu0
    %v364 = vadd.f32 0.0, %v363
    %v365 = vpop.f32.mrb[0].mxu0
    %v366 = vpop.f32.mrb[0].mxu0
    %v367 = vadd.f32 0.0, %v366
    %v368 = vpop.f32.mrb[0].mxu0
    %369 = vmatprep.mubr.bf16.mxu0 0
    %370 = vmatmul.mubr.bf16.gmra.mrb[0].mxu0 %v136
    %v371 = vpop.f32.mrb[0].mxu0
    %v372 = vadd.f32 0.0, %v371
    %v373 = vpop.f32.mrb[0].mxu0
    %v374 = vpop.f32.mrb[0].mxu0
    %v375 = vadd.f32 0.0, %v374
    %v376 = vpop.f32.mrb[0].mxu0
    %377 = vmatprep.mubr.bf16.mxu0 0
    %378 = vmatmul.mubr.bf16.gmra.mrb[0].mxu0 %v137
    %v379 = vpop.f32.mrb[0].mxu0
    %v380 = vadd.f32 0.0, %v379
    %v381 = vpop.f32.mrb[0].mxu0
    %v382 = vpop.f32.mrb[0].mxu0
    %v383 = vadd.f32 0.0, %v382
    %v384 = vpop.f32.mrb[0].mxu0
    %385 = vmatprep.mubr.bf16.mxu0 0
    %386 = vmatmul.mubr.bf16.gmra.mrb[0].mxu0 %v138
    %v387 = vpop.f32.mrb[0].mxu0
    %v388 = vadd.f32 0.0, %v387
    %v389 = vpop.f32.mrb[0].mxu0
    %v390 = vpop.f32.mrb[0].mxu0
    %v391 = vadd.f32 0.0, %v390
    %v392 = vpop.f32.mrb[0].mxu0
    %393 = vmatprep.mubr.bf16.mxu0 0
    %394 = vmatmul.mubr.bf16.gmra.mrb[0].mxu0 %v139
    %v395 = vpop.f32.mrb[0].mxu0
    %v396 = vadd.f32 0.0, %v395
    %v397 = vpop.f32.mrb[0].mxu0
    %v398 = vpop.f32.mrb[0].mxu0
    %v399 = vadd.f32 0.0, %v398
    %v400 = vpop.f32.mrb[0].mxu0
    %401 = vmatprep.mubr.bf16.mxu0 0
    %402 = vmatmul.mubr.bf16.gmra.mrb[0].mxu0 %v140
    %v403 = vpop.f32.mrb[0].mxu0
    %v404 = vadd.f32 0.0, %v403
    %v405 = vpop.f32.mrb[0].mxu0
    %v406 = vpop.f32.mrb[0].mxu0
    %v407 = vadd.f32 0.0, %v406
    %v408 = vpop.f32.mrb[0].mxu0
    %409 = vmatprep.mubr.bf16.mxu0 0
    %410 = vmatmul.mubr.bf16.gmra.mrb[0].mxu0 %v141
    %v411 = vpop.f32.mrb[0].mxu0
    %v412 = vadd.f32 0.0, %v411
    %v413 = vpop.f32.mrb[0].mxu0
    %v414 = vpop.f32.mrb[0].mxu0
    %v415 = vadd.f32 0.0, %v414
    %v416 = vpop.f32.mrb[0].mxu0
    %417 = vmatprep.mubr.bf16.mxu0 0
    %418 = vmatmul.mubr.bf16.gmra.mrb[0].mxu0 %v142
    %v419 = vpop.f32.mrb[0].mxu0
    %v420 = vadd.f32 0.0, %v419
    %v421 = vpop.f32.mrb[0].mxu0
    %v422 = vpop.f32.mrb[0].mxu0
    %v423 = vadd.f32 0.0, %v422
    %v424 = vpop.f32.mrb[0].mxu0
    %425 = vmatprep.mubr.bf16.mxu0 0
    %426 = vmatmul.mubr.bf16.gmra.mrb[0].mxu0 %v143
    %v427 = vpop.f32.mrb[0].mxu0
    %v428 = vadd.f32 0.0, %v427
    %v429 = vpop.f32.mrb[0].mxu0
    %v430 = vpop.f32.mrb[0].mxu0
    %v431 = vadd.f32 0.0, %v430
    %v432 = vpop.f32.mrb[0].mxu0
    %433 = vmatprep.mubr.bf16.mxu0 0
    %434 = vmatmul.mubr.bf16.gmra.mrb[0].mxu0 %v144
    %v435 = vpop.f32.mrb[0].mxu0
    %v436 = vadd.f32 0.0, %v435
    %v437 = vpop.f32.mrb[0].mxu0
    %v438 = vpop.f32.mrb[0].mxu0
    %v439 = vadd.f32 0.0, %v438
    %v440 = vpop.f32.mrb[0].mxu0
    %441 = vmatprep.mubr.bf16.mxu0 0
    %442 = vmatmul.mubr.bf16.gmra.mrb[0].mxu0 %v145
    %v443 = vpop.f32.mrb[0].mxu0
    %v444 = vadd.f32 0.0, %v443
    %v445 = vpop.f32.mrb[0].mxu0
    %v446 = vpop.f32.mrb[0].mxu0
    %v447 = vadd.f32 0.0, %v446
    %v448 = vpop.f32.mrb[0].mxu0
    %449 = vmatprep.mubr.bf16.mxu0 0
    %450 = vmatmul.mubr.bf16.gmra.mrb[0].mxu0 %v146
    %v451 = vpop.f32.mrb[0].mxu0
    %v452 = vadd.f32 0.0, %v451
    %v453 = vpop.f32.mrb[0].mxu0
    %v454 = vpop.f32.mrb[0].mxu0
    %v455 = vadd.f32 0.0, %v454
    %v456 = vpop.f32.mrb[0].mxu0
    %457 = vmatprep.mubr.bf16.mxu0 0
    %458 = vmatmul.mubr.bf16.gmra.mrb[0].mxu0 %v147
    %v459 = vpop.f32.mrb[0].mxu0
    %v460 = vadd.f32 0.0, %v459
    %v461 = vpop.f32.mrb[0].mxu0
    %v462 = vpop.f32.mrb[0].mxu0
    %v463 = vadd.f32 0.0, %v462
    %v464 = vpop.f32.mrb[0].mxu0
    %465 = vmatprep.mubr.bf16.mxu0 0
    %466 = vmatmul.mubr.bf16.gmra.mrb[0].mxu0 %v148
    %v467 = vpop.f32.mrb[0].mxu0
    %v468 = vadd.f32 0.0, %v467
    %v469 = vpop.f32.mrb[0].mxu0
    %v470 = vpop.f32.mrb[0].mxu0
    %v471 = vadd.f32 0.0, %v470
    %v472 = vpop.f32.mrb[0].mxu0
    %473 = vmatprep.mubr.bf16.mxu0 0
    %474 = vmatmul.mubr.bf16.gmra.mrb[0].mxu0 %v149
    %v475 = vpop.f32.mrb[0].mxu0
    %v476 = vadd.f32 0.0, %v475
    %v477 = vpop.f32.mrb[0].mxu0
    %v478 = vpop.f32.mrb[0].mxu0
    %v479 = vadd.f32 0.0, %v478
    %v480 = vpop.f32.mrb[0].mxu0
    %481 = vmatprep.mubr.bf16.mxu0 0
    %482 = vmatmul.mubr.bf16.gmra.mrb[0].mxu0 %v150
    %v483 = vpop.f32.mrb[0].mxu0
    %v484 = vadd.f32 0.0, %v483
    %v485 = vpop.f32.mrb[0].mxu0
    %v486 = vpop.f32.mrb[0].mxu0
    %v487 = vadd.f32 0.0, %v486
    %v488 = vpop.f32.mrb[0].mxu0
    %489 = vmatprep.mubr.bf16.mxu0 0
    %490 = vmatmul.mubr.bf16.gmra.mrb[0].mxu0 %v151
    %v491 = vpop.f32.mrb[0].mxu0
    %v492 = vadd.f32 0.0, %v491
    %v493 = vpop.f32.mrb[0].mxu0
    %v494 = vpop.f32.mrb[0].mxu0
    %v495 = vadd.f32 0.0, %v494
    %v496 = vpop.f32.mrb[0].mxu0
    %497 = vmatprep.mubr.bf16.mxu0 0
    %498 = vmatmul.mubr.bf16.gmra.mrb[0].mxu0 %v152
    %v499 = vpop.f32.mrb[0].mxu0
    %v500 = vadd.f32 0.0, %v499
    %v501 = vpop.f32.mrb[0].mxu0
    %v502 = vpop.f32.mrb[0].mxu0
    %v503 = vadd.f32 0.0, %v502
    %v504 = vpop.f32.mrb[0].mxu0
    %505 = vdwg.mxu0
    %v506 = vld [vmem:[%s4] sm:$0x1]
    %v507 = vld [vmem:[%s5] sm:$0x1]
    %v508 = vadd.f32 %v252, %v255
    %v509 = vadd.f32 %v508, %v260
    %v510 = vadd.f32 %v509, %v263
    %v511 = vadd.f32 %v510, %v268
    %v512 = vadd.f32 %v511, %v271
    %v513 = vadd.f32 %v512, %v276
    %v514 = vadd.f32 %v513, %v279
    %v515 = vadd.f32 %v514, %v284
    %v516 = vadd.f32 %v515, %v287
    %v517 = vadd.f32 %v516, %v292
    %v518 = vadd.f32 %v517, %v295
    %v519 = vadd.f32 %v518, %v300
    %v520 = vadd.f32 %v519, %v303
    %v521 = vadd.f32 %v520, %v308
    %v522 = vadd.f32 %v521, %v311
    %v523 = vadd.f32 %v522, %v316
    %v524 = vadd.f32 %v523, %v319
    %v525 = vadd.f32 %v524, %v324
    %v526 = vadd.f32 %v525, %v327
    %v527 = vadd.f32 %v526, %v332
    %v528 = vadd.f32 %v527, %v335
    %v529 = vadd.f32 %v528, %v340
    %v530 = vadd.f32 %v529, %v343
    %v531 = vadd.f32 %v530, %v348
    %v532 = vadd.f32 %v531, %v351
    %v533 = vadd.f32 %v532, %v356
    %v534 = vadd.f32 %v533, %v359
    %v535 = vadd.f32 %v534, %v364
    %v536 = vadd.f32 %v535, %v367
    %v537 = vadd.f32 %v536, %v372
    %v538 = vadd.f32 %v537, %v375
    %v539 = vadd.f32 %v538, %v380
    %v540 = vadd.f32 %v539, %v383
    %v541 = vadd.f32 %v540, %v388
    %v542 = vadd.f32 %v541, %v391
    %v543 = vadd.f32 %v542, %v396
    %v544 = vadd.f32 %v543, %v399
    %v545 = vadd.f32 %v544, %v404
    %v546 = vadd.f32 %v545, %v407
    %v547 = vadd.f32 %v546, %v412
    %v548 = vadd.f32 %v547, %v415
    %v549 = vadd.f32 %v548, %v420
    %v550 = vadd.f32 %v549, %v423
    %v551 = vadd.f32 %v550, %v428
    %v552 = vadd.f32 %v551, %v431
    %v553 = vadd.f32 %v552, %v436
    %v554 = vadd.f32 %v553, %v439
    %v555 = vadd.f32 %v554, %v444
    %v556 = vadd.f32 %v555, %v447
    %v557 = vadd.f32 %v556, %v452
    %v558 = vadd.f32 %v557, %v455
    %v559 = vadd.f32 %v558, %v460
    %v560 = vadd.f32 %v559, %v463
    %v561 = vadd.f32 %v560, %v468
    %v562 = vadd.f32 %v561, %v471
    %v563 = vadd.f32 %v562, %v476
    %v564 = vadd.f32 %v563, %v479
    %v565 = vadd.f32 %v564, %v484
    %v566 = vadd.f32 %v565, %v487
    %v567 = vadd.f32 %v566, %v492
    %v568 = vadd.f32 %v567, %v495
    %v569 = vadd.f32 %v568, %v500
    %v570 = vadd.f32 %v569, %v503
    %v571 = vrot.slane %v570, 4
    %v572 = vadd.f32 %v570, %v571
    %v573 = vrot.slane %v572, 2
    %v574 = vadd.f32 %v572, %v573
    %v575 = vrot.slane %v574, 1
    %v576 = vadd.f32 %v574, %v575
    %v577 = vmul.f32 %v252, %v252
    %v578 = vmul.f32 %v255, %v255
    %v579 = vmul.f32 %v260, %v260
    %v580 = vmul.f32 %v263, %v263
    %v581 = vmul.f32 %v268, %v268
    %v582 = vmul.f32 %v271, %v271
    %v583 = vmul.f32 %v276, %v276
    %v584 = vmul.f32 %v279, %v279
    %v585 = vmul.f32 %v284, %v284
    %v586 = vmul.f32 %v287, %v287
    %v587 = vmul.f32 %v292, %v292
    %v588 = vmul.f32 %v295, %v295
    %v589 = vmul.f32 %v300, %v300
    %v590 = vmul.f32 %v303, %v303
    %v591 = vmul.f32 %v308, %v308
    %v592 = vmul.f32 %v311, %v311
    %v593 = vmul.f32 %v316, %v316
    %v594 = vmul.f32 %v319, %v319
    %v595 = vmul.f32 %v324, %v324
    %v596 = vmul.f32 %v327, %v327
    %v597 = vmul.f32 %v332, %v332
    %v598 = vmul.f32 %v335, %v335
    %v599 = vmul.f32 %v340, %v340
    %v600 = vmul.f32 %v343, %v343
    %v601 = vmul.f32 %v348, %v348
    %v602 = vmul.f32 %v351, %v351
    %v603 = vmul.f32 %v356, %v356
    %v604 = vmul.f32 %v359, %v359
    %v605 = vmul.f32 %v364, %v364
    %v606 = vmul.f32 %v367, %v367
    %v607 = vmul.f32 %v372, %v372
    %v608 = vmul.f32 %v375, %v375
    %v609 = vmul.f32 %v380, %v380
    %v610 = vmul.f32 %v383, %v383
    %v611 = vmul.f32 %v388, %v388
    %v612 = vmul.f32 %v391, %v391
    %v613 = vmul.f32 %v396, %v396
    %v614 = vmul.f32 %v399, %v399
    %v615 = vmul.f32 %v404, %v404
    %v616 = vmul.f32 %v407, %v407
    %v617 = vmul.f32 %v412, %v412
    %v618 = vmul.f32 %v415, %v415
    %v619 = vmul.f32 %v420, %v420
    %v620 = vmul.f32 %v423, %v423
    %v621 = vmul.f32 %v428, %v428
    %v622 = vmul.f32 %v431, %v431
    %v623 = vmul.f32 %v436, %v436
    %v624 = vmul.f32 %v439, %v439
    %v625 = vmul.f32 %v444, %v444
    %v626 = vmul.f32 %v447, %v447
    %v627 = vmul.f32 %v452, %v452
    %v628 = vmul.f32 %v455, %v455
    %v629 = vmul.f32 %v460, %v460
    %v630 = vmul.f32 %v463, %v463
    %v631 = vmul.f32 %v468, %v468
    %v632 = vmul.f32 %v471, %v471
    %v633 = vmul.f32 %v476, %v476
    %v634 = vmul.f32 %v479, %v479
    %v635 = vmul.f32 %v484, %v484
    %v636 = vmul.f32 %v487, %v487
    %v637 = vmul.f32 %v492, %v492
    %v638 = vmul.f32 %v495, %v495
    %v639 = vmul.f32 %v500, %v500
    %v640 = vmul.f32 %v503, %v503
    %v641 = vadd.f32 %v577, %v578
    %v642 = vadd.f32 %v641, %v579
    %v643 = vadd.f32 %v642, %v580
    %v644 = vadd.f32 %v643, %v581
    %v645 = vadd.f32 %v644, %v582
    %v646 = vadd.f32 %v645, %v583
    %v647 = vadd.f32 %v646, %v584
    %v648 = vadd.f32 %v647, %v585
    %v649 = vadd.f32 %v648, %v586
    %v650 = vadd.f32 %v649, %v587
    %v651 = vadd.f32 %v650, %v588
    %v652 = vadd.f32 %v651, %v589
    %v653 = vadd.f32 %v652, %v590
    %v654 = vadd.f32 %v653, %v591
    %v655 = vadd.f32 %v654, %v592
    %v656 = vadd.f32 %v655, %v593
    %v657 = vadd.f32 %v656, %v594
    %v658 = vadd.f32 %v657, %v595
    %v659 = vadd.f32 %v658, %v596
    %v660 = vadd.f32 %v659, %v597
    %v661 = vadd.f32 %v660, %v598
    %v662 = vadd.f32 %v661, %v599
    %v663 = vadd.f32 %v662, %v600
    %v664 = vadd.f32 %v663, %v601
    %v665 = vadd.f32 %v664, %v602
    %v666 = vadd.f32 %v665, %v603
    %v667 = vadd.f32 %v666, %v604
    %v668 = vadd.f32 %v667, %v605
    %v669 = vadd.f32 %v668, %v606
    %v670 = vadd.f32 %v669, %v607
    %v671 = vadd.f32 %v670, %v608
    %v672 = vadd.f32 %v671, %v609
    %v673 = vadd.f32 %v672, %v610
    %v674 = vadd.f32 %v673, %v611
    %v675 = vadd.f32 %v674, %v612
    %v676 = vadd.f32 %v675, %v613
    %v677 = vadd.f32 %v676, %v614
    %v678 = vadd.f32 %v677, %v615
    %v679 = vadd.f32 %v678, %v616
    %v680 = vadd.f32 %v679, %v617
    %v681 = vadd.f32 %v680, %v618
    %v682 = vadd.f32 %v681, %v619
    %v683 = vadd.f32 %v682, %v620
    %v684 = vadd.f32 %v683, %v621
    %v685 = vadd.f32 %v684, %v622
    %v686 = vadd.f32 %v685, %v623
    %v687 = vadd.f32 %v686, %v624
    %v688 = vadd.f32 %v687, %v625
    %v689 = vadd.f32 %v688, %v626
    %v690 = vadd.f32 %v689, %v627
    %v691 = vadd.f32 %v690, %v628
    %v692 = vadd.f32 %v691, %v629
    %v693 = vadd.f32 %v692, %v630
    %v694 = vadd.f32 %v693, %v631
    %v695 = vadd.f32 %v694, %v632
    %v696 = vadd.f32 %v695, %v633
    %v697 = vadd.f32 %v696, %v634
    %v698 = vadd.f32 %v697, %v635
    %v699 = vadd.f32 %v698, %v636
    %v700 = vadd.f32 %v699, %v637
    %v701 = vadd.f32 %v700, %v638
    %v702 = vadd.f32 %v701, %v639
    %v703 = vadd.f32 %v702, %v640
    %v704 = vrot.slane %v703, 4
    %v705 = vadd.f32 %v703, %v704
    %v706 = vrot.slane %v705, 2
    %v707 = vadd.f32 %v705, %v706
    %v708 = vrot.slane %v707, 1
    %v709 = vadd.f32 %v707, %v708
    %v710 = vmul.f32 %v576, 0.001953125
    %v711 = vmul.f32 %v709, 0.001953125
    %v712 = vmul.f32 %v710, %v710
    %v713 = vsub.f32 %v711, %v712
    %v714 = vadd.f32 %v713, 1e-05
    %v715 = vrsqrt.pop %v714
    %v716 = vmul.f32 %v506, %v715
    %v717 = vmul.f32 %v710, %v716
    %v718 = vsub.f32 %v507, %v717
    %v720 = vlaneseq
    %v721 = vshrl.u32 %v720, 7
    %v722 = vsub.s32 0, %v721
    %v723 = vrot.slane %v716, %v722
    %v725 = vmul.f32 %v252, %v723
    %v726 = vmul.f32 %v255, %v723
    %v727 = vmul.f32 %v260, %v723
    %v728 = vmul.f32 %v263, %v723
    %v729 = vmul.f32 %v268, %v723
    %v730 = vmul.f32 %v271, %v723
    %v731 = vmul.f32 %v276, %v723
    %v732 = vmul.f32 %v279, %v723
    %v733 = vmul.f32 %v284, %v723
    %v734 = vmul.f32 %v287, %v723
    %v735 = vmul.f32 %v292, %v723
    %v736 = vmul.f32 %v295, %v723
    %v737 = vmul.f32 %v300, %v723
    %v738 = vmul.f32 %v303, %v723
    %v739 = vmul.f32 %v308, %v723
    %v740 = vmul.f32 %v311, %v723
    %v741 = vmul.f32 %v316, %v723
    %v742 = vmul.f32 %v319, %v723
    %v743 = vmul.f32 %v324, %v723
    %v744 = vmul.f32 %v327, %v723
    %v745 = vmul.f32 %v332, %v723
    %v746 = vmul.f32 %v335, %v723
    %v747 = vmul.f32 %v340, %v723
    %v748 = vmul.f32 %v343, %v723
    %v749 = vmul.f32 %v348, %v723
    %v750 = vmul.f32 %v351, %v723
    %v751 = vmul.f32 %v356, %v723
    %v752 = vmul.f32 %v359, %v723
    %v753 = vmul.f32 %v364, %v723
    %v754 = vmul.f32 %v367, %v723
    %v755 = vmul.f32 %v372, %v723
    %v756 = vmul.f32 %v375, %v723
    %v757 = vmul.f32 %v380, %v723
    %v758 = vmul.f32 %v383, %v723
    %v759 = vmul.f32 %v388, %v723
    %v760 = vmul.f32 %v391, %v723
    %v761 = vmul.f32 %v396, %v723
    %v762 = vmul.f32 %v399, %v723
    %v763 = vmul.f32 %v404, %v723
    %v764 = vmul.f32 %v407, %v723
    %v765 = vmul.f32 %v412, %v723
    %v766 = vmul.f32 %v415, %v723
    %v767 = vmul.f32 %v420, %v723
    %v768 = vmul.f32 %v423, %v723
    %v769 = vmul.f32 %v428, %v723
    %v770 = vmul.f32 %v431, %v723
    %v771 = vmul.f32 %v436, %v723
    %v772 = vmul.f32 %v439, %v723
    %v773 = vmul.f32 %v444, %v723
    %v774 = vmul.f32 %v447, %v723
    %v775 = vmul.f32 %v452, %v723
    %v776 = vmul.f32 %v455, %v723
    %v777 = vmul.f32 %v460, %v723
    %v778 = vmul.f32 %v463, %v723
    %v779 = vmul.f32 %v468, %v723
    %v780 = vmul.f32 %v471, %v723
    %v781 = vmul.f32 %v476, %v723
    %v782 = vmul.f32 %v479, %v723
    %v783 = vmul.f32 %v484, %v723
    %v784 = vmul.f32 %v487, %v723
    %v785 = vmul.f32 %v492, %v723
    %v786 = vmul.f32 %v495, %v723
    %v787 = vmul.f32 %v500, %v723
    %v788 = vmul.f32 %v503, %v723
    %v790 = vlaneseq
    %v791 = vshrl.u32 %v790, 7
    %v792 = vsub.s32 0, %v791
    %v793 = vrot.slane %v718, %v792
    %v795 = vadd.f32 %v725, %v793
    %v796 = vadd.f32 %v726, %v793
    %v797 = vadd.f32 %v727, %v793
    %v798 = vadd.f32 %v728, %v793
    %v799 = vadd.f32 %v729, %v793
    %v800 = vadd.f32 %v730, %v793
    %v801 = vadd.f32 %v731, %v793
    %v802 = vadd.f32 %v732, %v793
    %v803 = vadd.f32 %v733, %v793
    %v804 = vadd.f32 %v734, %v793
    %v805 = vadd.f32 %v735, %v793
    %v806 = vadd.f32 %v736, %v793
    %v807 = vadd.f32 %v737, %v793
    %v808 = vadd.f32 %v738, %v793
    %v809 = vadd.f32 %v739, %v793
    %v810 = vadd.f32 %v740, %v793
    %v811 = vadd.f32 %v741, %v793
    %v812 = vadd.f32 %v742, %v793
    %v813 = vadd.f32 %v743, %v793
    %v814 = vadd.f32 %v744, %v793
    %v815 = vadd.f32 %v745, %v793
    %v816 = vadd.f32 %v746, %v793
    %v817 = vadd.f32 %v747, %v793
    %v818 = vadd.f32 %v748, %v793
    %v819 = vadd.f32 %v749, %v793
    %v820 = vadd.f32 %v750, %v793
    %v821 = vadd.f32 %v751, %v793
    %v822 = vadd.f32 %v752, %v793
    %v823 = vadd.f32 %v753, %v793
    %v824 = vadd.f32 %v754, %v793
    %v825 = vadd.f32 %v755, %v793
    %v826 = vadd.f32 %v756, %v793
    %v827 = vadd.f32 %v757, %v793
    %v828 = vadd.f32 %v758, %v793
    %v829 = vadd.f32 %v759, %v793
    %v830 = vadd.f32 %v760, %v793
    %v831 = vadd.f32 %v761, %v793
    %v832 = vadd.f32 %v762, %v793
    %v833 = vadd.f32 %v763, %v793
    %v834 = vadd.f32 %v764, %v793
    %v835 = vadd.f32 %v765, %v793
    %v836 = vadd.f32 %v766, %v793
    %v837 = vadd.f32 %v767, %v793
    %v838 = vadd.f32 %v768, %v793
    %v839 = vadd.f32 %v769, %v793
    %v840 = vadd.f32 %v770, %v793
    %v841 = vadd.f32 %v771, %v793
    %v842 = vadd.f32 %v772, %v793
    %v843 = vadd.f32 %v773, %v793
    %v844 = vadd.f32 %v774, %v793
    %v845 = vadd.f32 %v775, %v793
    %v846 = vadd.f32 %v776, %v793
    %v847 = vadd.f32 %v777, %v793
    %v848 = vadd.f32 %v778, %v793
    %v849 = vadd.f32 %v779, %v793
    %v850 = vadd.f32 %v780, %v793
    %v851 = vadd.f32 %v781, %v793
    %v852 = vadd.f32 %v782, %v793
    %v853 = vadd.f32 %v783, %v793
    %v854 = vadd.f32 %v784, %v793
    %v855 = vadd.f32 %v785, %v793
    %v856 = vadd.f32 %v786, %v793
    %v857 = vadd.f32 %v787, %v793
    %v858 = vadd.f32 %v788, %v793
    %v859 = vmax.f32 %v795, 0.0
    %v860 = vmax.f32 %v796, 0.0
    %v861 = vmax.f32 %v797, 0.0
    %v862 = vmax.f32 %v798, 0.0
    %v863 = vmax.f32 %v799, 0.0
    %v864 = vmax.f32 %v800, 0.0
    %v865 = vmax.f32 %v801, 0.0
    %v866 = vmax.f32 %v802, 0.0
    %v867 = vmax.f32 %v803, 0.0
    %v868 = vmax.f32 %v804, 0.0
    %v869 = vmax.f32 %v805, 0.0
    %v870 = vmax.f32 %v806, 0.0
    %v871 = vmax.f32 %v807, 0.0
    %v872 = vmax.f32 %v808, 0.0
    %v873 = vmax.f32 %v809, 0.0
    %v874 = vmax.f32 %v810, 0.0
    %v875 = vmax.f32 %v811, 0.0
    %v876 = vmax.f32 %v812, 0.0
    %v877 = vmax.f32 %v813, 0.0
    %v878 = vmax.f32 %v814, 0.0
    %v879 = vmax.f32 %v815, 0.0
    %v880 = vmax.f32 %v816, 0.0
    %v881 = vmax.f32 %v817, 0.0
    %v882 = vmax.f32 %v818, 0.0
    %v883 = vmax.f32 %v819, 0.0
    %v884 = vmax.f32 %v820, 0.0
    %v885 = vmax.f32 %v821, 0.0
    %v886 = vmax.f32 %v822, 0.0
    %v887 = vmax.f32 %v823, 0.0
    %v888 = vmax.f32 %v824, 0.0
    %v889 = vmax.f32 %v825, 0.0
    %v890 = vmax.f32 %v826, 0.0
    %v891 = vmax.f32 %v827, 0.0
    %v892 = vmax.f32 %v828, 0.0
    %v893 = vmax.f32 %v829, 0.0
    %v894 = vmax.f32 %v830, 0.0
    %v895 = vmax.f32 %v831, 0.0
    %v896 = vmax.f32 %v832, 0.0
    %v897 = vmax.f32 %v833, 0.0
    %v898 = vmax.f32 %v834, 0.0
    %v899 = vmax.f32 %v835, 0.0
    %v900 = vmax.f32 %v836, 0.0
    %v901 = vmax.f32 %v837, 0.0
    %v902 = vmax.f32 %v838, 0.0
    %v903 = vmax.f32 %v839, 0.0
    %v904 = vmax.f32 %v840, 0.0
    %v905 = vmax.f32 %v841, 0.0
    %v906 = vmax.f32 %v842, 0.0
    %v907 = vmax.f32 %v843, 0.0
    %v908 = vmax.f32 %v844, 0.0
    %v909 = vmax.f32 %v845, 0.0
    %v910 = vmax.f32 %v846, 0.0
    %v911 = vmax.f32 %v847, 0.0
    %v912 = vmax.f32 %v848, 0.0
    %v913 = vmax.f32 %v849, 0.0
    %v914 = vmax.f32 %v850, 0.0
    %v915 = vmax.f32 %v851, 0.0
    %v916 = vmax.f32 %v852, 0.0
    %v917 = vmax.f32 %v853, 0.0
    %v918 = vmax.f32 %v854, 0.0
    %v919 = vmax.f32 %v855, 0.0
    %v920 = vmax.f32 %v856, 0.0
    %v921 = vmax.f32 %v857, 0.0
    %v922 = vmax.f32 %v858, 0.0
    %923 = vst [vmem:[#allocation2] sm:$0xff] 0.0
    %924 = vst [vmem:[#allocation2 + $0x8] sm:$0xff] 0.0
    %925 = vst [vmem:[#allocation2 + $0x10] sm:$0xff] 0.0
    %926 = vst [vmem:[#allocation2 + $0x218] sm:$0xff] 0.0
    %927 = vst [vmem:[#allocation2 + $0x220] sm:$0xff] 0.0
    %928 = vst [vmem:[#allocation2 + $0x228] sm:$0xff] 0.0
    %929 = vst [vmem:[#allocation2 + $0x18] sm:$0xff] %v859
    %930 = vst [vmem:[#allocation2 + $0x20] sm:$0xff] %v860
    %931 = vst [vmem:[#allocation2 + $0x28] sm:$0xff] %v861
    %932 = vst [vmem:[#allocation2 + $0x30] sm:$0xff] %v862
    %933 = vst [vmem:[#allocation2 + $0x38] sm:$0xff] %v863
    %934 = vst [vmem:[#allocation2 + $0x40] sm:$0xff] %v864
    %935 = vst [vmem:[#allocation2 + $0x48] sm:$0xff] %v865
    %936 = vst [vmem:[#allocation2 + $0x50] sm:$0xff] %v866
    %937 = vst [vmem:[#allocation2 + $0x58] sm:$0xff] %v867
    %938 = vst [vmem:[#allocation2 + $0x60] sm:$0xff] %v868
    %939 = vst [vmem:[#allocation2 + $0x68] sm:$0xff] %v869
    %940 = vst [vmem:[#allocation2 + $0x70] sm:$0xff] %v870
    %941 = vst [vmem:[#allocation2 + $0x78] sm:$0xff] %v871
    %942 = vst [vmem:[#allocation2 + $0x80] sm:$0xff] %v872
    %943 = vst [vmem:[#allocation2 + $0x88] sm:$0xff] %v873
    %944 = vst [vmem:[#allocation2 + $0x90] sm:$0xff] %v874
    %945 = vst [vmem:[#allocation2 + $0x98] sm:$0xff] %v875
    %946 = vst [vmem:[#allocation2 + $0xa0] sm:$0xff] %v876
    %947 = vst [vmem:[#allocation2 + $0xa8] sm:$0xff] %v877
    %948 = vst [vmem:[#allocation2 + $0xb0] sm:$0xff] %v878
    %949 = vst [vmem:[#allocation2 + $0xb8] sm:$0xff] %v879
    %950 = vst [vmem:[#allocation2 + $0xc0] sm:$0xff] %v880
    %951 = vst [vmem:[#allocation2 + $0xc8] sm:$0xff] %v881
    %952 = vst [vmem:[#allocation2 + $0xd0] sm:$0xff] %v882
    %953 = vst [vmem:[#allocation2 + $0xd8] sm:$0xff] %v883
    %954 = vst [vmem:[#allocation2 + $0xe0] sm:$0xff] %v884
    %955 = vst [vmem:[#allocation2 + $0xe8] sm:$0xff] %v885
    %956 = vst [vmem:[#allocation2 + $0xf0] sm:$0xff] %v886
    %957 = vst [vmem:[#allocation2 + $0xf8] sm:$0xff] %v887
    %958 = vst [vmem:[#allocation2 + $0x100] sm:$0xff] %v888
    %959 = vst [vmem:[#allocation2 + $0x108] sm:$0xff] %v889
    %960 = vst [vmem:[#allocation2 + $0x110] sm:$0xff] %v890
    %961 = vst [vmem:[#allocation2 + $0x118] sm:$0xff] %v891
    %962 = vst [vmem:[#allocation2 + $0x120] sm:$0xff] %v892
    %963 = vst [vmem:[#allocation2 + $0x128] sm:$0xff] %v893
    %964 = vst [vmem:[#allocation2 + $0x130] sm:$0xff] %v894
    %965 = vst [vmem:[#allocation2 + $0x138] sm:$0xff] %v895
    %966 = vst [vmem:[#allocation2 + $0x140] sm:$0xff] %v896
    %967 = vst [vmem:[#allocation2 + $0x148] sm:$0xff] %v897
    %968 = vst [vmem:[#allocation2 + $0x150] sm:$0xff] %v898
    %969 = vst [vmem:[#allocation2 + $0x158] sm:$0xff] %v899
    %970 = vst [vmem:[#allocation2 + $0x160] sm:$0xff] %v900
    %971 = vst [vmem:[#allocation2 + $0x168] sm:$0xff] %v901
    %972 = vst [vmem:[#allocation2 + $0x170] sm:$0xff] %v902
    %973 = vst [vmem:[#allocation2 + $0x178] sm:$0xff] %v903
    %974 = vst [vmem:[#allocation2 + $0x180] sm:$0xff] %v904
    %975 = vst [vmem:[#allocation2 + $0x188] sm:$0xff] %v905
    %976 = vst [vmem:[#allocation2 + $0x190] sm:$0xff] %v906
    %977 = vst [vmem:[#allocation2 + $0x198] sm:$0xff] %v907
    %978 = vst [vmem:[#allocation2 + $0x1a0] sm:$0xff] %v908
    %979 = vst [vmem:[#allocation2 + $0x1a8] sm:$0xff] %v909
    %980 = vst [vmem:[#allocation2 + $0x1b0] sm:$0xff] %v910
    %981 = vst [vmem:[#allocation2 + $0x1b8] sm:$0xff] %v911
    %982 = vst [vmem:[#allocation2 + $0x1c0] sm:$0xff] %v912
    %983 = vst [vmem:[#allocation2 + $0x1c8] sm:$0xff] %v913
    %984 = vst [vmem:[#allocation2 + $0x1d0] sm:$0xff] %v914
    %985 = vst [vmem:[#allocation2 + $0x1d8] sm:$0xff] %v915
    %986 = vst [vmem:[#allocation2 + $0x1e0] sm:$0xff] %v916
    %987 = vst [vmem:[#allocation2 + $0x1e8] sm:$0xff] %v917
    %988 = vst [vmem:[#allocation2 + $0x1f0] sm:$0xff] %v918
    %989 = vst [vmem:[#allocation2 + $0x1f8] sm:$0xff] %v919
    %990 = vst [vmem:[#allocation2 + $0x200] sm:$0xff] %v920
    %991 = vst [vmem:[#allocation2 + $0x208] sm:$0xff] %v921
    %992 = vst [vmem:[#allocation2 + $0x210] sm:$0xff] %v922
    %v993 = vld [vmem:[%s1] sm:$0xff]
    %v994 = vld [vmem:[%s1 + $0x8] sm:$0xff]
    %v995 = vld [vmem:[%s1 + $0x10] sm:$0xff]
    %v996 = vld [vmem:[%s1 + $0x18] sm:$0xff]
    %v997 = vld [vmem:[%s1 + $0x20] sm:$0xff]
    %v998 = vld [vmem:[%s1 + $0x28] sm:$0xff]
    %v999 = vld [vmem:[%s1 + $0x30] sm:$0xff]
    %v1000 = vld [vmem:[%s1 + $0x38] sm:$0xff]
    %v1001 = vld [vmem:[%s1 + $0x40] sm:$0xff]
    %v1002 = vld [vmem:[%s1 + $0x48] sm:$0xff]
    %v1003 = vld [vmem:[%s1 + $0x50] sm:$0xff]
    %v1004 = vld [vmem:[%s1 + $0x58] sm:$0xff]
    %v1005 = vld [vmem:[%s1 + $0x60] sm:$0xff]
    %v1006 = vld [vmem:[%s1 + $0x68] sm:$0xff]
    %v1007 = vld [vmem:[%s1 + $0x70] sm:$0xff]
    %v1008 = vld [vmem:[%s1 + $0x78] sm:$0xff]
    %v1009 = vld [vmem:[%s1 + $0x80] sm:$0xff]
    %v1010 = vld [vmem:[%s1 + $0x88] sm:$0xff]
    %v1011 = vld [vmem:[%s1 + $0x90] sm:$0xff]
    %v1012 = vld [vmem:[%s1 + $0x98] sm:$0xff]
    %v1013 = vld [vmem:[%s1 + $0xa0] sm:$0xff]
    %v1014 = vld [vmem:[%s1 + $0xa8] sm:$0xff]
    %v1015 = vld [vmem:[%s1 + $0xb0] sm:$0xff]
    %v1016 = vld [vmem:[%s1 + $0xb8] sm:$0xff]
    %v1017 = vld [vmem:[%s1 + $0xc0] sm:$0xff]
    %v1018 = vld [vmem:[%s1 + $0xc8] sm:$0xff]
    %v1019 = vld [vmem:[%s1 + $0xd0] sm:$0xff]
    %v1020 = vld [vmem:[%s1 + $0xd8] sm:$0xff]
    %v1021 = vld [vmem:[%s1 + $0xe0] sm:$0xff]
    %v1022 = vld [vmem:[%s1 + $0xe8] sm:$0xff]
    %v1023 = vld [vmem:[%s1 + $0xf0] sm:$0xff]
    %v1024 = vld [vmem:[%s1 + $0xf8] sm:$0xff]
    %v1025 = vld [vmem:[%s1 + $0x100] sm:$0xff]
    %v1026 = vld [vmem:[%s1 + $0x108] sm:$0xff]
    %v1027 = vld [vmem:[%s1 + $0x110] sm:$0xff]
    %v1028 = vld [vmem:[%s1 + $0x118] sm:$0xff]
    %v1029 = vld [vmem:[%s1 + $0x120] sm:$0xff]
    %v1030 = vld [vmem:[%s1 + $0x128] sm:$0xff]
    %v1031 = vld [vmem:[%s1 + $0x130] sm:$0xff]
    %v1032 = vld [vmem:[%s1 + $0x138] sm:$0xff]
    %v1033 = vld [vmem:[%s1 + $0x140] sm:$0xff]
    %v1034 = vld [vmem:[%s1 + $0x148] sm:$0xff]
    %v1035 = vld [vmem:[%s1 + $0x150] sm:$0xff]
    %v1036 = vld [vmem:[%s1 + $0x158] sm:$0xff]
    %v1037 = vld [vmem:[%s1 + $0x160] sm:$0xff]
    %v1038 = vld [vmem:[%s1 + $0x168] sm:$0xff]
    %v1039 = vld [vmem:[%s1 + $0x170] sm:$0xff]
    %v1040 = vld [vmem:[%s1 + $0x178] sm:$0xff]
    %v1041 = vld [vmem:[%s1 + $0x180] sm:$0xff]
    %v1042 = vld [vmem:[%s1 + $0x188] sm:$0xff]
    %v1043 = vld [vmem:[%s1 + $0x190] sm:$0xff]
    %v1044 = vld [vmem:[%s1 + $0x198] sm:$0xff]
    %v1045 = vld [vmem:[%s1 + $0x1a0] sm:$0xff]
    %v1046 = vld [vmem:[%s1 + $0x1a8] sm:$0xff]
    %v1047 = vld [vmem:[%s1 + $0x1b0] sm:$0xff]
    %v1048 = vld [vmem:[%s1 + $0x1b8] sm:$0xff]
    %v1049 = vld [vmem:[%s1 + $0x1c0] sm:$0xff]
    %v1050 = vld [vmem:[%s1 + $0x1c8] sm:$0xff]
    %v1051 = vld [vmem:[%s1 + $0x1d0] sm:$0xff]
    %v1052 = vld [vmem:[%s1 + $0x1d8] sm:$0xff]
    %v1053 = vld [vmem:[%s1 + $0x1e0] sm:$0xff]
    %v1054 = vld [vmem:[%s1 + $0x1e8] sm:$0xff]
    %v1055 = vld [vmem:[%s1 + $0x1f0] sm:$0xff]
    %v1056 = vld [vmem:[%s1 + $0x1f8] sm:$0xff]
    %v1057 = vld [vmem:[%s2] sm:$0xff]
    %v1058 = vld [vmem:[%s2 + $0x8] sm:$0xff]
    %v1059 = vld [vmem:[%s2 + $0x10] sm:$0xff]
    %v1060 = vld [vmem:[%s2 + $0x18] sm:$0xff]
    %v1061 = vld [vmem:[%s2 + $0x20] sm:$0xff]
    %v1062 = vld [vmem:[%s2 + $0x28] sm:$0xff]
    %v1063 = vld [vmem:[%s2 + $0x30] sm:$0xff]
    %v1064 = vld [vmem:[%s2 + $0x38] sm:$0xff]
    %v1065 = vld [vmem:[%s2 + $0x40] sm:$0xff]
    %v1066 = vld [vmem:[%s2 + $0x48] sm:$0xff]
    %v1067 = vld [vmem:[%s2 + $0x50] sm:$0xff]
    %v1068 = vld [vmem:[%s2 + $0x58] sm:$0xff]
    %v1069 = vld [vmem:[%s2 + $0x60] sm:$0xff]
    %v1070 = vld [vmem:[%s2 + $0x68] sm:$0xff]
    %v1071 = vld [vmem:[%s2 + $0x70] sm:$0xff]
    %v1072 = vld [vmem:[%s2 + $0x78] sm:$0xff]
    %v1073 = vld [vmem:[%s2 + $0x80] sm:$0xff]
    %v1074 = vld [vmem:[%s2 + $0x88] sm:$0xff]
    %v1075 = vld [vmem:[%s2 + $0x90] sm:$0xff]
    %v1076 = vld [vmem:[%s2 + $0x98] sm:$0xff]
    %v1077 = vld [vmem:[%s2 + $0xa0] sm:$0xff]
    %v1078 = vld [vmem:[%s2 + $0xa8] sm:$0xff]
    %v1079 = vld [vmem:[%s2 + $0xb0] sm:$0xff]
    %v1080 = vld [vmem:[%s2 + $0xb8] sm:$0xff]
    %v1081 = vld [vmem:[%s2 + $0xc0] sm:$0xff]
    %v1082 = vld [vmem:[%s2 + $0xc8] sm:$0xff]
    %v1083 = vld [vmem:[%s2 + $0xd0] sm:$0xff]
    %v1084 = vld [vmem:[%s2 + $0xd8] sm:$0xff]
    %v1085 = vld [vmem:[%s2 + $0xe0] sm:$0xff]
    %v1086 = vld [vmem:[%s2 + $0xe8] sm:$0xff]
    %v1087 = vld [vmem:[%s2 + $0xf0] sm:$0xff]
    %v1088 = vld [vmem:[%s2 + $0xf8] sm:$0xff]
    %v1089 = vld [vmem:[%s2 + $0x100] sm:$0xff]
    %v1090 = vld [vmem:[%s2 + $0x108] sm:$0xff]
    %v1091 = vld [vmem:[%s2 + $0x110] sm:$0xff]
    %v1092 = vld [vmem:[%s2 + $0x118] sm:$0xff]
    %v1093 = vld [vmem:[%s2 + $0x120] sm:$0xff]
    %v1094 = vld [vmem:[%s2 + $0x128] sm:$0xff]
    %v1095 = vld [vmem:[%s2 + $0x130] sm:$0xff]
    %v1096 = vld [vmem:[%s2 + $0x138] sm:$0xff]
    %v1097 = vld [vmem:[%s2 + $0x140] sm:$0xff]
    %v1098 = vld [vmem:[%s2 + $0x148] sm:$0xff]
    %v1099 = vld [vmem:[%s2 + $0x150] sm:$0xff]
    %v1100 = vld [vmem:[%s2 + $0x158] sm:$0xff]
    %v1101 = vld [vmem:[%s2 + $0x160] sm:$0xff]
    %v1102 = vld [vmem:[%s2 + $0x168] sm:$0xff]
    %v1103 = vld [vmem:[%s2 + $0x170] sm:$0xff]
    %v1104 = vld [vmem:[%s2 + $0x178] sm:$0xff]
    %v1105 = vld [vmem:[%s2 + $0x180] sm:$0xff]
    %v1106 = vld [vmem:[%s2 + $0x188] sm:$0xff]
    %v1107 = vld [vmem:[%s2 + $0x190] sm:$0xff]
    %v1108 = vld [vmem:[%s2 + $0x198] sm:$0xff]
    %v1109 = vld [vmem:[%s2 + $0x1a0] sm:$0xff]
    %v1110 = vld [vmem:[%s2 + $0x1a8] sm:$0xff]
    %v1111 = vld [vmem:[%s2 + $0x1b0] sm:$0xff]
    %v1112 = vld [vmem:[%s2 + $0x1b8] sm:$0xff]
    %v1113 = vld [vmem:[%s2 + $0x1c0] sm:$0xff]
    %v1114 = vld [vmem:[%s2 + $0x1c8] sm:$0xff]
    %v1115 = vld [vmem:[%s2 + $0x1d0] sm:$0xff]
    %v1116 = vld [vmem:[%s2 + $0x1d8] sm:$0xff]
    %v1117 = vld [vmem:[%s2 + $0x1e0] sm:$0xff]
    %v1118 = vld [vmem:[%s2 + $0x1e8] sm:$0xff]
    %v1119 = vld [vmem:[%s2 + $0x1f0] sm:$0xff]
    %v1120 = vld [vmem:[%s2 + $0x1f8] sm:$0xff]
    %vm1121 = vcmp.ge.s32.totalorder %v993, 1
    %vm1122 = vcmp.ge.s32.totalorder %v994, 1
    %vm1123 = vcmp.ge.s32.totalorder %v995, 1
    %vm1124 = vcmp.ge.s32.totalorder %v996, 1
    %vm1125 = vcmp.ge.s32.totalorder %v997, 1
    %vm1126 = vcmp.ge.s32.totalorder %v998, 1
    %vm1127 = vcmp.ge.s32.totalorder %v999, 1
    %vm1128 = vcmp.ge.s32.totalorder %v1000, 1
    %vm1129 = vcmp.ge.s32.totalorder %v1001, 1
    %vm1130 = vcmp.ge.s32.totalorder %v1002, 1
    %vm1131 = vcmp.ge.s32.totalorder %v1003, 1
    %vm1132 = vcmp.ge.s32.totalorder %v1004, 1
    %vm1133 = vcmp.ge.s32.totalorder %v1005, 1
    %vm1134 = vcmp.ge.s32.totalorder %v1006, 1
    %vm1135 = vcmp.ge.s32.totalorder %v1007, 1
    %vm1136 = vcmp.ge.s32.totalorder %v1008, 1
    %vm1137 = vcmp.ge.s32.totalorder %v1009, 1
    %vm1138 = vcmp.ge.s32.totalorder %v1010, 1
    %vm1139 = vcmp.ge.s32.totalorder %v1011, 1
    %vm1140 = vcmp.ge.s32.totalorder %v1012, 1
    %vm1141 = vcmp.ge.s32.totalorder %v1013, 1
    %vm1142 = vcmp.ge.s32.totalorder %v1014, 1
    %vm1143 = vcmp.ge.s32.totalorder %v1015, 1
    %vm1144 = vcmp.ge.s32.totalorder %v1016, 1
    %vm1145 = vcmp.ge.s32.totalorder %v1017, 1
    %vm1146 = vcmp.ge.s32.totalorder %v1018, 1
    %vm1147 = vcmp.ge.s32.totalorder %v1019, 1
    %vm1148 = vcmp.ge.s32.totalorder %v1020, 1
    %vm1149 = vcmp.ge.s32.totalorder %v1021, 1
    %vm1150 = vcmp.ge.s32.totalorder %v1022, 1
    %vm1151 = vcmp.ge.s32.totalorder %v1023, 1
    %vm1152 = vcmp.ge.s32.totalorder %v1024, 1
    %vm1153 = vcmp.ge.s32.totalorder %v1025, 1
    %vm1154 = vcmp.ge.s32.totalorder %v1026, 1
    %vm1155 = vcmp.ge.s32.totalorder %v1027, 1
    %vm1156 = vcmp.ge.s32.totalorder %v1028, 1
    %vm1157 = vcmp.ge.s32.totalorder %v1029, 1
    %vm1158 = vcmp.ge.s32.totalorder %v1030, 1
    %vm1159 = vcmp.ge.s32.totalorder %v1031, 1
    %vm1160 = vcmp.ge.s32.totalorder %v1032, 1
    %vm1161 = vcmp.ge.s32.totalorder %v1033, 1
    %vm1162 = vcmp.ge.s32.totalorder %v1034, 1
    %vm1163 = vcmp.ge.s32.totalorder %v1035, 1
    %vm1164 = vcmp.ge.s32.totalorder %v1036, 1
    %vm1165 = vcmp.ge.s32.totalorder %v1037, 1
    %vm1166 = vcmp.ge.s32.totalorder %v1038, 1
    %vm1167 = vcmp.ge.s32.totalorder %v1039, 1
    %vm1168 = vcmp.ge.s32.totalorder %v1040, 1
    %vm1169 = vcmp.ge.s32.totalorder %v1041, 1
    %vm1170 = vcmp.ge.s32.totalorder %v1042, 1
    %vm1171 = vcmp.ge.s32.totalorder %v1043, 1
    %vm1172 = vcmp.ge.s32.totalorder %v1044, 1
    %vm1173 = vcmp.ge.s32.totalorder %v1045, 1
    %vm1174 = vcmp.ge.s32.totalorder %v1046, 1
    %vm1175 = vcmp.ge.s32.totalorder %v1047, 1
    %vm1176 = vcmp.ge.s32.totalorder %v1048, 1
    %vm1177 = vcmp.ge.s32.totalorder %v1049, 1
    %vm1178 = vcmp.ge.s32.totalorder %v1050, 1
    %vm1179 = vcmp.ge.s32.totalorder %v1051, 1
    %vm1180 = vcmp.ge.s32.totalorder %v1052, 1
    %vm1181 = vcmp.ge.s32.totalorder %v1053, 1
    %vm1182 = vcmp.ge.s32.totalorder %v1054, 1
    %vm1183 = vcmp.ge.s32.totalorder %v1055, 1
    %vm1184 = vcmp.ge.s32.totalorder %v1056, 1
    %v1185 = vsel %vm1121, 1, 0
    %v1186 = vsel %vm1122, 1, 0
    %v1187 = vsel %vm1123, 1, 0
    %v1188 = vsel %vm1124, 1, 0
    %v1189 = vsel %vm1125, 1, 0
    %v1190 = vsel %vm1126, 1, 0
    %v1191 = vsel %vm1127, 1, 0
    %v1192 = vsel %vm1128, 1, 0
    %v1193 = vsel %vm1129, 1, 0
    %v1194 = vsel %vm1130, 1, 0
    %v1195 = vsel %vm1131, 1, 0
    %v1196 = vsel %vm1132, 1, 0
    %v1197 = vsel %vm1133, 1, 0
    %v1198 = vsel %vm1134, 1, 0
    %v1199 = vsel %vm1135, 1, 0
    %v1200 = vsel %vm1136, 1, 0
    %v1201 = vsel %vm1137, 1, 0
    %v1202 = vsel %vm1138, 1, 0
    %v1203 = vsel %vm1139, 1, 0
    %v1204 = vsel %vm1140, 1, 0
    %v1205 = vsel %vm1141, 1, 0
    %v1206 = vsel %vm1142, 1, 0
    %v1207 = vsel %vm1143, 1, 0
    %v1208 = vsel %vm1144, 1, 0
    %v1209 = vsel %vm1145, 1, 0
    %v1210 = vsel %vm1146, 1, 0
    %v1211 = vsel %vm1147, 1, 0
    %v1212 = vsel %vm1148, 1, 0
    %v1213 = vsel %vm1149, 1, 0
    %v1214 = vsel %vm1150, 1, 0
    %v1215 = vsel %vm1151, 1, 0
    %v1216 = vsel %vm1152, 1, 0
    %v1217 = vsel %vm1153, 1, 0
    %v1218 = vsel %vm1154, 1, 0
    %v1219 = vsel %vm1155, 1, 0
    %v1220 = vsel %vm1156, 1, 0
    %v1221 = vsel %vm1157, 1, 0
    %v1222 = vsel %vm1158, 1, 0
    %v1223 = vsel %vm1159, 1, 0
    %v1224 = vsel %vm1160, 1, 0
    %v1225 = vsel %vm1161, 1, 0
    %v1226 = vsel %vm1162, 1, 0
    %v1227 = vsel %vm1163, 1, 0
    %v1228 = vsel %vm1164, 1, 0
    %v1229 = vsel %vm1165, 1, 0
    %v1230 = vsel %vm1166, 1, 0
    %v1231 = vsel %vm1167, 1, 0
    %v1232 = vsel %vm1168, 1, 0
    %v1233 = vsel %vm1169, 1, 0
    %v1234 = vsel %vm1170, 1, 0
    %v1235 = vsel %vm1171, 1, 0
    %v1236 = vsel %vm1172, 1, 0
    %v1237 = vsel %vm1173, 1, 0
    %v1238 = vsel %vm1174, 1, 0
    %v1239 = vsel %vm1175, 1, 0
    %v1240 = vsel %vm1176, 1, 0
    %v1241 = vsel %vm1177, 1, 0
    %v1242 = vsel %vm1178, 1, 0
    %v1243 = vsel %vm1179, 1, 0
    %v1244 = vsel %vm1180, 1, 0
    %v1245 = vsel %vm1181, 1, 0
    %v1246 = vsel %vm1182, 1, 0
    %v1247 = vsel %vm1183, 1, 0
    %v1248 = vsel %vm1184, 1, 0
    %v1249 = vcvt.s32.f32 %v1185
    %v1250 = vcvt.s32.f32 %v1186
    %v1251 = vcvt.s32.f32 %v1187
    %v1252 = vcvt.s32.f32 %v1188
    %v1253 = vcvt.s32.f32 %v1189
    %v1254 = vcvt.s32.f32 %v1190
    %v1255 = vcvt.s32.f32 %v1191
    %v1256 = vcvt.s32.f32 %v1192
    %v1257 = vcvt.s32.f32 %v1193
    %v1258 = vcvt.s32.f32 %v1194
    %v1259 = vcvt.s32.f32 %v1195
    %v1260 = vcvt.s32.f32 %v1196
    %v1261 = vcvt.s32.f32 %v1197
    %v1262 = vcvt.s32.f32 %v1198
    %v1263 = vcvt.s32.f32 %v1199
    %v1264 = vcvt.s32.f32 %v1200
    %v1265 = vcvt.s32.f32 %v1201
    %v1266 = vcvt.s32.f32 %v1202
    %v1267 = vcvt.s32.f32 %v1203
    %v1268 = vcvt.s32.f32 %v1204
    %v1269 = vcvt.s32.f32 %v1205
    %v1270 = vcvt.s32.f32 %v1206
    %v1271 = vcvt.s32.f32 %v1207
    %v1272 = vcvt.s32.f32 %v1208
    %v1273 = vcvt.s32.f32 %v1209
    %v1274 = vcvt.s32.f32 %v1210
    %v1275 = vcvt.s32.f32 %v1211
    %v1276 = vcvt.s32.f32 %v1212
    %v1277 = vcvt.s32.f32 %v1213
    %v1278 = vcvt.s32.f32 %v1214
    %v1279 = vcvt.s32.f32 %v1215
    %v1280 = vcvt.s32.f32 %v1216
    %v1281 = vcvt.s32.f32 %v1217
    %v1282 = vcvt.s32.f32 %v1218
    %v1283 = vcvt.s32.f32 %v1219
    %v1284 = vcvt.s32.f32 %v1220
    %v1285 = vcvt.s32.f32 %v1221
    %v1286 = vcvt.s32.f32 %v1222
    %v1287 = vcvt.s32.f32 %v1223
    %v1288 = vcvt.s32.f32 %v1224
    %v1289 = vcvt.s32.f32 %v1225
    %v1290 = vcvt.s32.f32 %v1226
    %v1291 = vcvt.s32.f32 %v1227
    %v1292 = vcvt.s32.f32 %v1228
    %v1293 = vcvt.s32.f32 %v1229
    %v1294 = vcvt.s32.f32 %v1230
    %v1295 = vcvt.s32.f32 %v1231
    %v1296 = vcvt.s32.f32 %v1232
    %v1297 = vcvt.s32.f32 %v1233
    %v1298 = vcvt.s32.f32 %v1234
    %v1299 = vcvt.s32.f32 %v1235
    %v1300 = vcvt.s32.f32 %v1236
    %v1301 = vcvt.s32.f32 %v1237
    %v1302 = vcvt.s32.f32 %v1238
    %v1303 = vcvt.s32.f32 %v1239
    %v1304 = vcvt.s32.f32 %v1240
    %v1305 = vcvt.s32.f32 %v1241
    %v1306 = vcvt.s32.f32 %v1242
    %v1307 = vcvt.s32.f32 %v1243
    %v1308 = vcvt.s32.f32 %v1244
    %v1309 = vcvt.s32.f32 %v1245
    %v1310 = vcvt.s32.f32 %v1246
    %v1311 = vcvt.s32.f32 %v1247
    %v1312 = vcvt.s32.f32 %v1248
    %vm1313 = vcmp.le.s32.totalorder %v993, 14
    %vm1314 = vcmp.le.s32.totalorder %v994, 14
    %vm1315 = vcmp.le.s32.totalorder %v995, 14
    %vm1316 = vcmp.le.s32.totalorder %v996, 14
    %vm1317 = vcmp.le.s32.totalorder %v997, 14
    %vm1318 = vcmp.le.s32.totalorder %v998, 14
    %vm1319 = vcmp.le.s32.totalorder %v999, 14
    %vm1320 = vcmp.le.s32.totalorder %v1000, 14
    %vm1321 = vcmp.le.s32.totalorder %v1001, 14
    %vm1322 = vcmp.le.s32.totalorder %v1002, 14
    %vm1323 = vcmp.le.s32.totalorder %v1003, 14
    %vm1324 = vcmp.le.s32.totalorder %v1004, 14
    %vm1325 = vcmp.le.s32.totalorder %v1005, 14
    %vm1326 = vcmp.le.s32.totalorder %v1006, 14
    %vm1327 = vcmp.le.s32.totalorder %v1007, 14
    %vm1328 = vcmp.le.s32.totalorder %v1008, 14
    %vm1329 = vcmp.le.s32.totalorder %v1009, 14
    %vm1330 = vcmp.le.s32.totalorder %v1010, 14
    %vm1331 = vcmp.le.s32.totalorder %v1011, 14
    %vm1332 = vcmp.le.s32.totalorder %v1012, 14
    %vm1333 = vcmp.le.s32.totalorder %v1013, 14
    %vm1334 = vcmp.le.s32.totalorder %v1014, 14
    %vm1335 = vcmp.le.s32.totalorder %v1015, 14
    %vm1336 = vcmp.le.s32.totalorder %v1016, 14
    %vm1337 = vcmp.le.s32.totalorder %v1017, 14
    %vm1338 = vcmp.le.s32.totalorder %v1018, 14
    %vm1339 = vcmp.le.s32.totalorder %v1019, 14
    %vm1340 = vcmp.le.s32.totalorder %v1020, 14
    %vm1341 = vcmp.le.s32.totalorder %v1021, 14
    %vm1342 = vcmp.le.s32.totalorder %v1022, 14
    %vm1343 = vcmp.le.s32.totalorder %v1023, 14
    %vm1344 = vcmp.le.s32.totalorder %v1024, 14
    %vm1345 = vcmp.le.s32.totalorder %v1025, 14
    %vm1346 = vcmp.le.s32.totalorder %v1026, 14
    %vm1347 = vcmp.le.s32.totalorder %v1027, 14
    %vm1348 = vcmp.le.s32.totalorder %v1028, 14
    %vm1349 = vcmp.le.s32.totalorder %v1029, 14
    %vm1350 = vcmp.le.s32.totalorder %v1030, 14
    %vm1351 = vcmp.le.s32.totalorder %v1031, 14
    %vm1352 = vcmp.le.s32.totalorder %v1032, 14
    %vm1353 = vcmp.le.s32.totalorder %v1033, 14
    %vm1354 = vcmp.le.s32.totalorder %v1034, 14
    %vm1355 = vcmp.le.s32.totalorder %v1035, 14
    %vm1356 = vcmp.le.s32.totalorder %v1036, 14
    %vm1357 = vcmp.le.s32.totalorder %v1037, 14
    %vm1358 = vcmp.le.s32.totalorder %v1038, 14
    %vm1359 = vcmp.le.s32.totalorder %v1039, 14
    %vm1360 = vcmp.le.s32.totalorder %v1040, 14
    %vm1361 = vcmp.le.s32.totalorder %v1041, 14
    %vm1362 = vcmp.le.s32.totalorder %v1042, 14
    %vm1363 = vcmp.le.s32.totalorder %v1043, 14
    %vm1364 = vcmp.le.s32.totalorder %v1044, 14
    %vm1365 = vcmp.le.s32.totalorder %v1045, 14
    %vm1366 = vcmp.le.s32.totalorder %v1046, 14
    %vm1367 = vcmp.le.s32.totalorder %v1047, 14
    %vm1368 = vcmp.le.s32.totalorder %v1048, 14
    %vm1369 = vcmp.le.s32.totalorder %v1049, 14
    %vm1370 = vcmp.le.s32.totalorder %v1050, 14
    %vm1371 = vcmp.le.s32.totalorder %v1051, 14
    %vm1372 = vcmp.le.s32.totalorder %v1052, 14
    %vm1373 = vcmp.le.s32.totalorder %v1053, 14
    %vm1374 = vcmp.le.s32.totalorder %v1054, 14
    %vm1375 = vcmp.le.s32.totalorder %v1055, 14
    %vm1376 = vcmp.le.s32.totalorder %v1056, 14
    %v1377 = vsel %vm1313, 1, 0
    %v1378 = vsel %vm1314, 1, 0
    %v1379 = vsel %vm1315, 1, 0
    %v1380 = vsel %vm1316, 1, 0
    %v1381 = vsel %vm1317, 1, 0
    %v1382 = vsel %vm1318, 1, 0
    %v1383 = vsel %vm1319, 1, 0
    %v1384 = vsel %vm1320, 1, 0
    %v1385 = vsel %vm1321, 1, 0
    %v1386 = vsel %vm1322, 1, 0
    %v1387 = vsel %vm1323, 1, 0
    %v1388 = vsel %vm1324, 1, 0
    %v1389 = vsel %vm1325, 1, 0
    %v1390 = vsel %vm1326, 1, 0
    %v1391 = vsel %vm1327, 1, 0
    %v1392 = vsel %vm1328, 1, 0
    %v1393 = vsel %vm1329, 1, 0
    %v1394 = vsel %vm1330, 1, 0
    %v1395 = vsel %vm1331, 1, 0
    %v1396 = vsel %vm1332, 1, 0
    %v1397 = vsel %vm1333, 1, 0
    %v1398 = vsel %vm1334, 1, 0
    %v1399 = vsel %vm1335, 1, 0
    %v1400 = vsel %vm1336, 1, 0
    %v1401 = vsel %vm1337, 1, 0
    %v1402 = vsel %vm1338, 1, 0
    %v1403 = vsel %vm1339, 1, 0
    %v1404 = vsel %vm1340, 1, 0
    %v1405 = vsel %vm1341, 1, 0
    %v1406 = vsel %vm1342, 1, 0
    %v1407 = vsel %vm1343, 1, 0
    %v1408 = vsel %vm1344, 1, 0
    %v1409 = vsel %vm1345, 1, 0
    %v1410 = vsel %vm1346, 1, 0
    %v1411 = vsel %vm1347, 1, 0
    %v1412 = vsel %vm1348, 1, 0
    %v1413 = vsel %vm1349, 1, 0
    %v1414 = vsel %vm1350, 1, 0
    %v1415 = vsel %vm1351, 1, 0
    %v1416 = vsel %vm1352, 1, 0
    %v1417 = vsel %vm1353, 1, 0
    %v1418 = vsel %vm1354, 1, 0
    %v1419 = vsel %vm1355, 1, 0
    %v1420 = vsel %vm1356, 1, 0
    %v1421 = vsel %vm1357, 1, 0
    %v1422 = vsel %vm1358, 1, 0
    %v1423 = vsel %vm1359, 1, 0
    %v1424 = vsel %vm1360, 1, 0
    %v1425 = vsel %vm1361, 1, 0
    %v1426 = vsel %vm1362, 1, 0
    %v1427 = vsel %vm1363, 1, 0
    %v1428 = vsel %vm1364, 1, 0
    %v1429 = vsel %vm1365, 1, 0
    %v1430 = vsel %vm1366, 1, 0
    %v1431 = vsel %vm1367, 1, 0
    %v1432 = vsel %vm1368, 1, 0
    %v1433 = vsel %vm1369, 1, 0
    %v1434 = vsel %vm1370, 1, 0
    %v1435 = vsel %vm1371, 1, 0
    %v1436 = vsel %vm1372, 1, 0
    %v1437 = vsel %vm1373, 1, 0
    %v1438 = vsel %vm1374, 1, 0
    %v1439 = vsel %vm1375, 1, 0
    %v1440 = vsel %vm1376, 1, 0
    %v1441 = vcvt.s32.f32 %v1377
    %v1442 = vcvt.s32.f32 %v1378
    %v1443 = vcvt.s32.f32 %v1379
    %v1444 = vcvt.s32.f32 %v1380
    %v1445 = vcvt.s32.f32 %v1381
    %v1446 = vcvt.s32.f32 %v1382
    %v1447 = vcvt.s32.f32 %v1383
    %v1448 = vcvt.s32.f32 %v1384
    %v1449 = vcvt.s32.f32 %v1385
    %v1450 = vcvt.s32.f32 %v1386
    %v1451 = vcvt.s32.f32 %v1387
    %v1452 = vcvt.s32.f32 %v1388
    %v1453 = vcvt.s32.f32 %v1389
    %v1454 = vcvt.s32.f32 %v1390
    %v1455 = vcvt.s32.f32 %v1391
    %v1456 = vcvt.s32.f32 %v1392
    %v1457 = vcvt.s32.f32 %v1393
    %v1458 = vcvt.s32.f32 %v1394
    %v1459 = vcvt.s32.f32 %v1395
    %v1460 = vcvt.s32.f32 %v1396
    %v1461 = vcvt.s32.f32 %v1397
    %v1462 = vcvt.s32.f32 %v1398
    %v1463 = vcvt.s32.f32 %v1399
    %v1464 = vcvt.s32.f32 %v1400
    %v1465 = vcvt.s32.f32 %v1401
    %v1466 = vcvt.s32.f32 %v1402
    %v1467 = vcvt.s32.f32 %v1403
    %v1468 = vcvt.s32.f32 %v1404
    %v1469 = vcvt.s32.f32 %v1405
    %v1470 = vcvt.s32.f32 %v1406
    %v1471 = vcvt.s32.f32 %v1407
    %v1472 = vcvt.s32.f32 %v1408
    %v1473 = vcvt.s32.f32 %v1409
    %v1474 = vcvt.s32.f32 %v1410
    %v1475 = vcvt.s32.f32 %v1411
    %v1476 = vcvt.s32.f32 %v1412
    %v1477 = vcvt.s32.f32 %v1413
    %v1478 = vcvt.s32.f32 %v1414
    %v1479 = vcvt.s32.f32 %v1415
    %v1480 = vcvt.s32.f32 %v1416
    %v1481 = vcvt.s32.f32 %v1417
    %v1482 = vcvt.s32.f32 %v1418
    %v1483 = vcvt.s32.f32 %v1419
    %v1484 = vcvt.s32.f32 %v1420
    %v1485 = vcvt.s32.f32 %v1421
    %v1486 = vcvt.s32.f32 %v1422
    %v1487 = vcvt.s32.f32 %v1423
    %v1488 = vcvt.s32.f32 %v1424
    %v1489 = vcvt.s32.f32 %v1425
    %v1490 = vcvt.s32.f32 %v1426
    %v1491 = vcvt.s32.f32 %v1427
    %v1492 = vcvt.s32.f32 %v1428
    %v1493 = vcvt.s32.f32 %v1429
    %v1494 = vcvt.s32.f32 %v1430
    %v1495 = vcvt.s32.f32 %v1431
    %v1496 = vcvt.s32.f32 %v1432
    %v1497 = vcvt.s32.f32 %v1433
    %v1498 = vcvt.s32.f32 %v1434
    %v1499 = vcvt.s32.f32 %v1435
    %v1500 = vcvt.s32.f32 %v1436
    %v1501 = vcvt.s32.f32 %v1437
    %v1502 = vcvt.s32.f32 %v1438
    %v1503 = vcvt.s32.f32 %v1439
    %v1504 = vcvt.s32.f32 %v1440
    %vm1505 = vcmp.ge.s32.totalorder %v1057, 1
    %vm1506 = vcmp.ge.s32.totalorder %v1058, 1
    %vm1507 = vcmp.ge.s32.totalorder %v1059, 1
    %vm1508 = vcmp.ge.s32.totalorder %v1060, 1
    %vm1509 = vcmp.ge.s32.totalorder %v1061, 1
    %vm1510 = vcmp.ge.s32.totalorder %v1062, 1
    %vm1511 = vcmp.ge.s32.totalorder %v1063, 1
    %vm1512 = vcmp.ge.s32.totalorder %v1064, 1
    %vm1513 = vcmp.ge.s32.totalorder %v1065, 1
    %vm1514 = vcmp.ge.s32.totalorder %v1066, 1
    %vm1515 = vcmp.ge.s32.totalorder %v1067, 1
    %vm1516 = vcmp.ge.s32.totalorder %v1068, 1
    %vm1517 = vcmp.ge.s32.totalorder %v1069, 1
    %vm1518 = vcmp.ge.s32.totalorder %v1070, 1
    %vm1519 = vcmp.ge.s32.totalorder %v1071, 1
    %vm1520 = vcmp.ge.s32.totalorder %v1072, 1
    %vm1521 = vcmp.ge.s32.totalorder %v1073, 1
    %vm1522 = vcmp.ge.s32.totalorder %v1074, 1
    %vm1523 = vcmp.ge.s32.totalorder %v1075, 1
    %vm1524 = vcmp.ge.s32.totalorder %v1076, 1
    %vm1525 = vcmp.ge.s32.totalorder %v1077, 1
    %vm1526 = vcmp.ge.s32.totalorder %v1078, 1
    %vm1527 = vcmp.ge.s32.totalorder %v1079, 1
    %vm1528 = vcmp.ge.s32.totalorder %v1080, 1
    %vm1529 = vcmp.ge.s32.totalorder %v1081, 1
    %vm1530 = vcmp.ge.s32.totalorder %v1082, 1
    %vm1531 = vcmp.ge.s32.totalorder %v1083, 1
    %vm1532 = vcmp.ge.s32.totalorder %v1084, 1
    %vm1533 = vcmp.ge.s32.totalorder %v1085, 1
    %vm1534 = vcmp.ge.s32.totalorder %v1086, 1
    %vm1535 = vcmp.ge.s32.totalorder %v1087, 1
    %vm1536 = vcmp.ge.s32.totalorder %v1088, 1
    %vm1537 = vcmp.ge.s32.totalorder %v1089, 1
    %vm1538 = vcmp.ge.s32.totalorder %v1090, 1
    %vm1539 = vcmp.ge.s32.totalorder %v1091, 1
    %vm1540 = vcmp.ge.s32.totalorder %v1092, 1
    %vm1541 = vcmp.ge.s32.totalorder %v1093, 1
    %vm1542 = vcmp.ge.s32.totalorder %v1094, 1
    %vm1543 = vcmp.ge.s32.totalorder %v1095, 1
    %vm1544 = vcmp.ge.s32.totalorder %v1096, 1
    %vm1545 = vcmp.ge.s32.totalorder %v1097, 1
    %vm1546 = vcmp.ge.s32.totalorder %v1098, 1
    %vm1547 = vcmp.ge.s32.totalorder %v1099, 1
    %vm1548 = vcmp.ge.s32.totalorder %v1100, 1
    %vm1549 = vcmp.ge.s32.totalorder %v1101, 1
    %vm1550 = vcmp.ge.s32.totalorder %v1102, 1
    %vm1551 = vcmp.ge.s32.totalorder %v1103, 1
    %vm1552 = vcmp.ge.s32.totalorder %v1104, 1
    %vm1553 = vcmp.ge.s32.totalorder %v1105, 1
    %vm1554 = vcmp.ge.s32.totalorder %v1106, 1
    %vm1555 = vcmp.ge.s32.totalorder %v1107, 1
    %vm1556 = vcmp.ge.s32.totalorder %v1108, 1
    %vm1557 = vcmp.ge.s32.totalorder %v1109, 1
    %vm1558 = vcmp.ge.s32.totalorder %v1110, 1
    %vm1559 = vcmp.ge.s32.totalorder %v1111, 1
    %vm1560 = vcmp.ge.s32.totalorder %v1112, 1
    %vm1561 = vcmp.ge.s32.totalorder %v1113, 1
    %vm1562 = vcmp.ge.s32.totalorder %v1114, 1
    %vm1563 = vcmp.ge.s32.totalorder %v1115, 1
    %vm1564 = vcmp.ge.s32.totalorder %v1116, 1
    %vm1565 = vcmp.ge.s32.totalorder %v1117, 1
    %vm1566 = vcmp.ge.s32.totalorder %v1118, 1
    %vm1567 = vcmp.ge.s32.totalorder %v1119, 1
    %vm1568 = vcmp.ge.s32.totalorder %v1120, 1
    %v1569 = vsel %vm1505, 1, 0
    %v1570 = vsel %vm1506, 1, 0
    %v1571 = vsel %vm1507, 1, 0
    %v1572 = vsel %vm1508, 1, 0
    %v1573 = vsel %vm1509, 1, 0
    %v1574 = vsel %vm1510, 1, 0
    %v1575 = vsel %vm1511, 1, 0
    %v1576 = vsel %vm1512, 1, 0
    %v1577 = vsel %vm1513, 1, 0
    %v1578 = vsel %vm1514, 1, 0
    %v1579 = vsel %vm1515, 1, 0
    %v1580 = vsel %vm1516, 1, 0
    %v1581 = vsel %vm1517, 1, 0
    %v1582 = vsel %vm1518, 1, 0
    %v1583 = vsel %vm1519, 1, 0
    %v1584 = vsel %vm1520, 1, 0
    %v1585 = vsel %vm1521, 1, 0
    %v1586 = vsel %vm1522, 1, 0
    %v1587 = vsel %vm1523, 1, 0
    %v1588 = vsel %vm1524, 1, 0
    %v1589 = vsel %vm1525, 1, 0
    %v1590 = vsel %vm1526, 1, 0
    %v1591 = vsel %vm1527, 1, 0
    %v1592 = vsel %vm1528, 1, 0
    %v1593 = vsel %vm1529, 1, 0
    %v1594 = vsel %vm1530, 1, 0
    %v1595 = vsel %vm1531, 1, 0
    %v1596 = vsel %vm1532, 1, 0
    %v1597 = vsel %vm1533, 1, 0
    %v1598 = vsel %vm1534, 1, 0
    %v1599 = vsel %vm1535, 1, 0
    %v1600 = vsel %vm1536, 1, 0
    %v1601 = vsel %vm1537, 1, 0
    %v1602 = vsel %vm1538, 1, 0
    %v1603 = vsel %vm1539, 1, 0
    %v1604 = vsel %vm1540, 1, 0
    %v1605 = vsel %vm1541, 1, 0
    %v1606 = vsel %vm1542, 1, 0
    %v1607 = vsel %vm1543, 1, 0
    %v1608 = vsel %vm1544, 1, 0
    %v1609 = vsel %vm1545, 1, 0
    %v1610 = vsel %vm1546, 1, 0
    %v1611 = vsel %vm1547, 1, 0
    %v1612 = vsel %vm1548, 1, 0
    %v1613 = vsel %vm1549, 1, 0
    %v1614 = vsel %vm1550, 1, 0
    %v1615 = vsel %vm1551, 1, 0
    %v1616 = vsel %vm1552, 1, 0
    %v1617 = vsel %vm1553, 1, 0
    %v1618 = vsel %vm1554, 1, 0
    %v1619 = vsel %vm1555, 1, 0
    %v1620 = vsel %vm1556, 1, 0
    %v1621 = vsel %vm1557, 1, 0
    %v1622 = vsel %vm1558, 1, 0
    %v1623 = vsel %vm1559, 1, 0
    %v1624 = vsel %vm1560, 1, 0
    %v1625 = vsel %vm1561, 1, 0
    %v1626 = vsel %vm1562, 1, 0
    %v1627 = vsel %vm1563, 1, 0
    %v1628 = vsel %vm1564, 1, 0
    %v1629 = vsel %vm1565, 1, 0
    %v1630 = vsel %vm1566, 1, 0
    %v1631 = vsel %vm1567, 1, 0
    %v1632 = vsel %vm1568, 1, 0
    %v1633 = vcvt.s32.f32 %v1569
    %v1634 = vcvt.s32.f32 %v1570
    %v1635 = vcvt.s32.f32 %v1571
    %v1636 = vcvt.s32.f32 %v1572
    %v1637 = vcvt.s32.f32 %v1573
    %v1638 = vcvt.s32.f32 %v1574
    %v1639 = vcvt.s32.f32 %v1575
    %v1640 = vcvt.s32.f32 %v1576
    %v1641 = vcvt.s32.f32 %v1577
    %v1642 = vcvt.s32.f32 %v1578
    %v1643 = vcvt.s32.f32 %v1579
    %v1644 = vcvt.s32.f32 %v1580
    %v1645 = vcvt.s32.f32 %v1581
    %v1646 = vcvt.s32.f32 %v1582
    %v1647 = vcvt.s32.f32 %v1583
    %v1648 = vcvt.s32.f32 %v1584
    %v1649 = vcvt.s32.f32 %v1585
    %v1650 = vcvt.s32.f32 %v1586
    %v1651 = vcvt.s32.f32 %v1587
    %v1652 = vcvt.s32.f32 %v1588
    %v1653 = vcvt.s32.f32 %v1589
    %v1654 = vcvt.s32.f32 %v1590
    %v1655 = vcvt.s32.f32 %v1591
    %v1656 = vcvt.s32.f32 %v1592
    %v1657 = vcvt.s32.f32 %v1593
    %v1658 = vcvt.s32.f32 %v1594
    %v1659 = vcvt.s32.f32 %v1595
    %v1660 = vcvt.s32.f32 %v1596
    %v1661 = vcvt.s32.f32 %v1597
    %v1662 = vcvt.s32.f32 %v1598
    %v1663 = vcvt.s32.f32 %v1599
    %v1664 = vcvt.s32.f32 %v1600
    %v1665 = vcvt.s32.f32 %v1601
    %v1666 = vcvt.s32.f32 %v1602
    %v1667 = vcvt.s32.f32 %v1603
    %v1668 = vcvt.s32.f32 %v1604
    %v1669 = vcvt.s32.f32 %v1605
    %v1670 = vcvt.s32.f32 %v1606
    %v1671 = vcvt.s32.f32 %v1607
    %v1672 = vcvt.s32.f32 %v1608
    %v1673 = vcvt.s32.f32 %v1609
    %v1674 = vcvt.s32.f32 %v1610
    %v1675 = vcvt.s32.f32 %v1611
    %v1676 = vcvt.s32.f32 %v1612
    %v1677 = vcvt.s32.f32 %v1613
    %v1678 = vcvt.s32.f32 %v1614
    %v1679 = vcvt.s32.f32 %v1615
    %v1680 = vcvt.s32.f32 %v1616
    %v1681 = vcvt.s32.f32 %v1617
    %v1682 = vcvt.s32.f32 %v1618
    %v1683 = vcvt.s32.f32 %v1619
    %v1684 = vcvt.s32.f32 %v1620
    %v1685 = vcvt.s32.f32 %v1621
    %v1686 = vcvt.s32.f32 %v1622
    %v1687 = vcvt.s32.f32 %v1623
    %v1688 = vcvt.s32.f32 %v1624
    %v1689 = vcvt.s32.f32 %v1625
    %v1690 = vcvt.s32.f32 %v1626
    %v1691 = vcvt.s32.f32 %v1627
    %v1692 = vcvt.s32.f32 %v1628
    %v1693 = vcvt.s32.f32 %v1629
    %v1694 = vcvt.s32.f32 %v1630
    %v1695 = vcvt.s32.f32 %v1631
    %v1696 = vcvt.s32.f32 %v1632
    %vm1697 = vcmp.le.s32.totalorder %v1057, 14
    %vm1698 = vcmp.le.s32.totalorder %v1058, 14
    %vm1699 = vcmp.le.s32.totalorder %v1059, 14
    %vm1700 = vcmp.le.s32.totalorder %v1060, 14
    %vm1701 = vcmp.le.s32.totalorder %v1061, 14
    %vm1702 = vcmp.le.s32.totalorder %v1062, 14
    %vm1703 = vcmp.le.s32.totalorder %v1063, 14
    %vm1704 = vcmp.le.s32.totalorder %v1064, 14
    %vm1705 = vcmp.le.s32.totalorder %v1065, 14
    %vm1706 = vcmp.le.s32.totalorder %v1066, 14
    %vm1707 = vcmp.le.s32.totalorder %v1067, 14
    %vm1708 = vcmp.le.s32.totalorder %v1068, 14
    %vm1709 = vcmp.le.s32.totalorder %v1069, 14
    %vm1710 = vcmp.le.s32.totalorder %v1070, 14
    %vm1711 = vcmp.le.s32.totalorder %v1071, 14
    %vm1712 = vcmp.le.s32.totalorder %v1072, 14
    %vm1713 = vcmp.le.s32.totalorder %v1073, 14
    %vm1714 = vcmp.le.s32.totalorder %v1074, 14
    %vm1715 = vcmp.le.s32.totalorder %v1075, 14
    %vm1716 = vcmp.le.s32.totalorder %v1076, 14
    %vm1717 = vcmp.le.s32.totalorder %v1077, 14
    %vm1718 = vcmp.le.s32.totalorder %v1078, 14
    %vm1719 = vcmp.le.s32.totalorder %v1079, 14
    %vm1720 = vcmp.le.s32.totalorder %v1080, 14
    %vm1721 = vcmp.le.s32.totalorder %v1081, 14
    %vm1722 = vcmp.le.s32.totalorder %v1082, 14
    %vm1723 = vcmp.le.s32.totalorder %v1083, 14
    %vm1724 = vcmp.le.s32.totalorder %v1084, 14
    %vm1725 = vcmp.le.s32.totalorder %v1085, 14
    %vm1726 = vcmp.le.s32.totalorder %v1086, 14
    %vm1727 = vcmp.le.s32.totalorder %v1087, 14
    %vm1728 = vcmp.le.s32.totalorder %v1088, 14
    %vm1729 = vcmp.le.s32.totalorder %v1089, 14
    %vm1730 = vcmp.le.s32.totalorder %v1090, 14
    %vm1731 = vcmp.le.s32.totalorder %v1091, 14
    %vm1732 = vcmp.le.s32.totalorder %v1092, 14
    %vm1733 = vcmp.le.s32.totalorder %v1093, 14
    %vm1734 = vcmp.le.s32.totalorder %v1094, 14
    %vm1735 = vcmp.le.s32.totalorder %v1095, 14
    %vm1736 = vcmp.le.s32.totalorder %v1096, 14
    %vm1737 = vcmp.le.s32.totalorder %v1097, 14
    %vm1738 = vcmp.le.s32.totalorder %v1098, 14
    %vm1739 = vcmp.le.s32.totalorder %v1099, 14
    %vm1740 = vcmp.le.s32.totalorder %v1100, 14
    %vm1741 = vcmp.le.s32.totalorder %v1101, 14
    %vm1742 = vcmp.le.s32.totalorder %v1102, 14
    %vm1743 = vcmp.le.s32.totalorder %v1103, 14
    %vm1744 = vcmp.le.s32.totalorder %v1104, 14
    %vm1745 = vcmp.le.s32.totalorder %v1105, 14
    %vm1746 = vcmp.le.s32.totalorder %v1106, 14
    %vm1747 = vcmp.le.s32.totalorder %v1107, 14
    %vm1748 = vcmp.le.s32.totalorder %v1108, 14
    %vm1749 = vcmp.le.s32.totalorder %v1109, 14
    %vm1750 = vcmp.le.s32.totalorder %v1110, 14
    %vm1751 = vcmp.le.s32.totalorder %v1111, 14
    %vm1752 = vcmp.le.s32.totalorder %v1112, 14
    %vm1753 = vcmp.le.s32.totalorder %v1113, 14
    %vm1754 = vcmp.le.s32.totalorder %v1114, 14
    %vm1755 = vcmp.le.s32.totalorder %v1115, 14
    %vm1756 = vcmp.le.s32.totalorder %v1116, 14
    %vm1757 = vcmp.le.s32.totalorder %v1117, 14
    %vm1758 = vcmp.le.s32.totalorder %v1118, 14
    %vm1759 = vcmp.le.s32.totalorder %v1119, 14
    %vm1760 = vcmp.le.s32.totalorder %v1120, 14
    %v1761 = vsel %vm1697, 1, 0
    %v1762 = vsel %vm1698, 1, 0
    %v1763 = vsel %vm1699, 1, 0
    %v1764 = vsel %vm1700, 1, 0
    %v1765 = vsel %vm1701, 1, 0
    %v1766 = vsel %vm1702, 1, 0
    %v1767 = vsel %vm1703, 1, 0
    %v1768 = vsel %vm1704, 1, 0
    %v1769 = vsel %vm1705, 1, 0
    %v1770 = vsel %vm1706, 1, 0
    %v1771 = vsel %vm1707, 1, 0
    %v1772 = vsel %vm1708, 1, 0
    %v1773 = vsel %vm1709, 1, 0
    %v1774 = vsel %vm1710, 1, 0
    %v1775 = vsel %vm1711, 1, 0
    %v1776 = vsel %vm1712, 1, 0
    %v1777 = vsel %vm1713, 1, 0
    %v1778 = vsel %vm1714, 1, 0
    %v1779 = vsel %vm1715, 1, 0
    %v1780 = vsel %vm1716, 1, 0
    %v1781 = vsel %vm1717, 1, 0
    %v1782 = vsel %vm1718, 1, 0
    %v1783 = vsel %vm1719, 1, 0
    %v1784 = vsel %vm1720, 1, 0
    %v1785 = vsel %vm1721, 1, 0
    %v1786 = vsel %vm1722, 1, 0
    %v1787 = vsel %vm1723, 1, 0
    %v1788 = vsel %vm1724, 1, 0
    %v1789 = vsel %vm1725, 1, 0
    %v1790 = vsel %vm1726, 1, 0
    %v1791 = vsel %vm1727, 1, 0
    %v1792 = vsel %vm1728, 1, 0
    %v1793 = vsel %vm1729, 1, 0
    %v1794 = vsel %vm1730, 1, 0
    %v1795 = vsel %vm1731, 1, 0
    %v1796 = vsel %vm1732, 1, 0
    %v1797 = vsel %vm1733, 1, 0
    %v1798 = vsel %vm1734, 1, 0
    %v1799 = vsel %vm1735, 1, 0
    %v1800 = vsel %vm1736, 1, 0
    %v1801 = vsel %vm1737, 1, 0
    %v1802 = vsel %vm1738, 1, 0
    %v1803 = vsel %vm1739, 1, 0
    %v1804 = vsel %vm1740, 1, 0
    %v1805 = vsel %vm1741, 1, 0
    %v1806 = vsel %vm1742, 1, 0
    %v1807 = vsel %vm1743, 1, 0
    %v1808 = vsel %vm1744, 1, 0
    %v1809 = vsel %vm1745, 1, 0
    %v1810 = vsel %vm1746, 1, 0
    %v1811 = vsel %vm1747, 1, 0
    %v1812 = vsel %vm1748, 1, 0
    %v1813 = vsel %vm1749, 1, 0
    %v1814 = vsel %vm1750, 1, 0
    %v1815 = vsel %vm1751, 1, 0
    %v1816 = vsel %vm1752, 1, 0
    %v1817 = vsel %vm1753, 1, 0
    %v1818 = vsel %vm1754, 1, 0
    %v1819 = vsel %vm1755, 1, 0
    %v1820 = vsel %vm1756, 1, 0
    %v1821 = vsel %vm1757, 1, 0
    %v1822 = vsel %vm1758, 1, 0
    %v1823 = vsel %vm1759, 1, 0
    %v1824 = vsel %vm1760, 1, 0
    %v1825 = vcvt.s32.f32 %v1761
    %v1826 = vcvt.s32.f32 %v1762
    %v1827 = vcvt.s32.f32 %v1763
    %v1828 = vcvt.s32.f32 %v1764
    %v1829 = vcvt.s32.f32 %v1765
    %v1830 = vcvt.s32.f32 %v1766
    %v1831 = vcvt.s32.f32 %v1767
    %v1832 = vcvt.s32.f32 %v1768
    %v1833 = vcvt.s32.f32 %v1769
    %v1834 = vcvt.s32.f32 %v1770
    %v1835 = vcvt.s32.f32 %v1771
    %v1836 = vcvt.s32.f32 %v1772
    %v1837 = vcvt.s32.f32 %v1773
    %v1838 = vcvt.s32.f32 %v1774
    %v1839 = vcvt.s32.f32 %v1775
    %v1840 = vcvt.s32.f32 %v1776
    %v1841 = vcvt.s32.f32 %v1777
    %v1842 = vcvt.s32.f32 %v1778
    %v1843 = vcvt.s32.f32 %v1779
    %v1844 = vcvt.s32.f32 %v1780
    %v1845 = vcvt.s32.f32 %v1781
    %v1846 = vcvt.s32.f32 %v1782
    %v1847 = vcvt.s32.f32 %v1783
    %v1848 = vcvt.s32.f32 %v1784
    %v1849 = vcvt.s32.f32 %v1785
    %v1850 = vcvt.s32.f32 %v1786
    %v1851 = vcvt.s32.f32 %v1787
    %v1852 = vcvt.s32.f32 %v1788
    %v1853 = vcvt.s32.f32 %v1789
    %v1854 = vcvt.s32.f32 %v1790
    %v1855 = vcvt.s32.f32 %v1791
    %v1856 = vcvt.s32.f32 %v1792
    %v1857 = vcvt.s32.f32 %v1793
    %v1858 = vcvt.s32.f32 %v1794
    %v1859 = vcvt.s32.f32 %v1795
    %v1860 = vcvt.s32.f32 %v1796
    %v1861 = vcvt.s32.f32 %v1797
    %v1862 = vcvt.s32.f32 %v1798
    %v1863 = vcvt.s32.f32 %v1799
    %v1864 = vcvt.s32.f32 %v1800
    %v1865 = vcvt.s32.f32 %v1801
    %v1866 = vcvt.s32.f32 %v1802
    %v1867 = vcvt.s32.f32 %v1803
    %v1868 = vcvt.s32.f32 %v1804
    %v1869 = vcvt.s32.f32 %v1805
    %v1870 = vcvt.s32.f32 %v1806
    %v1871 = vcvt.s32.f32 %v1807
    %v1872 = vcvt.s32.f32 %v1808
    %v1873 = vcvt.s32.f32 %v1809
    %v1874 = vcvt.s32.f32 %v1810
    %v1875 = vcvt.s32.f32 %v1811
    %v1876 = vcvt.s32.f32 %v1812
    %v1877 = vcvt.s32.f32 %v1813
    %v1878 = vcvt.s32.f32 %v1814
    %v1879 = vcvt.s32.f32 %v1815
    %v1880 = vcvt.s32.f32 %v1816
    %v1881 = vcvt.s32.f32 %v1817
    %v1882 = vcvt.s32.f32 %v1818
    %v1883 = vcvt.s32.f32 %v1819
    %v1884 = vcvt.s32.f32 %v1820
    %v1885 = vcvt.s32.f32 %v1821
    %v1886 = vcvt.s32.f32 %v1822
    %v1887 = vcvt.s32.f32 %v1823
    %v1888 = vcvt.s32.f32 %v1824
    %v1889 = vld [vmem:[#allocation2 + $0x7] sm:$0xff]
    %v1890 = vld [vmem:[#allocation2 + $0xf] sm:$0xff]
    %v1891 = vld [vmem:[#allocation2 + $0x17] sm:$0xff]
    %v1892 = vld [vmem:[#allocation2 + $0x1f] sm:$0xff]
    %v1893 = vld [vmem:[#allocation2 + $0x27] sm:$0xff]
    %v1894 = vld [vmem:[#allocation2 + $0x2f] sm:$0xff]
    %v1895 = vld [vmem:[#allocation2 + $0x37] sm:$0xff]
    %v1896 = vld [vmem:[#allocation2 + $0x3f] sm:$0xff]
    %v1897 = vld [vmem:[#allocation2 + $0x47] sm:$0xff]
    %v1898 = vld [vmem:[#allocation2 + $0x4f] sm:$0xff]
    %v1899 = vld [vmem:[#allocation2 + $0x57] sm:$0xff]
    %v1900 = vld [vmem:[#allocation2 + $0x5f] sm:$0xff]
    %v1901 = vld [vmem:[#allocation2 + $0x67] sm:$0xff]
    %v1902 = vld [vmem:[#allocation2 + $0x6f] sm:$0xff]
    %v1903 = vld [vmem:[#allocation2 + $0x77] sm:$0xff]
    %v1904 = vld [vmem:[#allocation2 + $0x7f] sm:$0xff]
    %v1905 = vld [vmem:[#allocation2 + $0x87] sm:$0xff]
    %v1906 = vld [vmem:[#allocation2 + $0x8f] sm:$0xff]
    %v1907 = vld [vmem:[#allocation2 + $0x97] sm:$0xff]
    %v1908 = vld [vmem:[#allocation2 + $0x9f] sm:$0xff]
    %v1909 = vld [vmem:[#allocation2 + $0xa7] sm:$0xff]
    %v1910 = vld [vmem:[#allocation2 + $0xaf] sm:$0xff]
    %v1911 = vld [vmem:[#allocation2 + $0xb7] sm:$0xff]
    %v1912 = vld [vmem:[#allocation2 + $0xbf] sm:$0xff]
    %v1913 = vld [vmem:[#allocation2 + $0xc7] sm:$0xff]
    %v1914 = vld [vmem:[#allocation2 + $0xcf] sm:$0xff]
    %v1915 = vld [vmem:[#allocation2 + $0xd7] sm:$0xff]
    %v1916 = vld [vmem:[#allocation2 + $0xdf] sm:$0xff]
    %v1917 = vld [vmem:[#allocation2 + $0xe7] sm:$0xff]
    %v1918 = vld [vmem:[#allocation2 + $0xef] sm:$0xff]
    %v1919 = vld [vmem:[#allocation2 + $0xf7] sm:$0xff]
    %v1920 = vld [vmem:[#allocation2 + $0xff] sm:$0xff]
    %v1921 = vld [vmem:[#allocation2 + $0x107] sm:$0xff]
    %v1922 = vld [vmem:[#allocation2 + $0x10f] sm:$0xff]
    %v1923 = vld [vmem:[#allocation2 + $0x117] sm:$0xff]
    %v1924 = vld [vmem:[#allocation2 + $0x11f] sm:$0xff]
    %v1925 = vld [vmem:[#allocation2 + $0x127] sm:$0xff]
    %v1926 = vld [vmem:[#allocation2 + $0x12f] sm:$0xff]
    %v1927 = vld [vmem:[#allocation2 + $0x137] sm:$0xff]
    %v1928 = vld [vmem:[#allocation2 + $0x13f] sm:$0xff]
    %v1929 = vld [vmem:[#allocation2 + $0x147] sm:$0xff]
    %v1930 = vld [vmem:[#allocation2 + $0x14f] sm:$0xff]
    %v1931 = vld [vmem:[#allocation2 + $0x157] sm:$0xff]
    %v1932 = vld [vmem:[#allocation2 + $0x15f] sm:$0xff]
    %v1933 = vld [vmem:[#allocation2 + $0x167] sm:$0xff]
    %v1934 = vld [vmem:[#allocation2 + $0x16f] sm:$0xff]
    %v1935 = vld [vmem:[#allocation2 + $0x177] sm:$0xff]
    %v1936 = vld [vmem:[#allocation2 + $0x17f] sm:$0xff]
    %v1937 = vld [vmem:[#allocation2 + $0x187] sm:$0xff]
    %v1938 = vld [vmem:[#allocation2 + $0x18f] sm:$0xff]
    %v1939 = vld [vmem:[#allocation2 + $0x197] sm:$0xff]
    %v1940 = vld [vmem:[#allocation2 + $0x19f] sm:$0xff]
    %v1941 = vld [vmem:[#allocation2 + $0x1a7] sm:$0xff]
    %v1942 = vld [vmem:[#allocation2 + $0x1af] sm:$0xff]
    %v1943 = vld [vmem:[#allocation2 + $0x1b7] sm:$0xff]
    %v1944 = vld [vmem:[#allocation2 + $0x1bf] sm:$0xff]
    %v1945 = vld [vmem:[#allocation2 + $0x1c7] sm:$0xff]
    %v1946 = vld [vmem:[#allocation2 + $0x1cf] sm:$0xff]
    %v1947 = vld [vmem:[#allocation2 + $0x1d7] sm:$0xff]
    %v1948 = vld [vmem:[#allocation2 + $0x1df] sm:$0xff]
    %v1949 = vld [vmem:[#allocation2 + $0x1e7] sm:$0xff]
    %v1950 = vld [vmem:[#allocation2 + $0x1ef] sm:$0xff]
    %v1951 = vld [vmem:[#allocation2 + $0x1f7] sm:$0xff]
    %v1952 = vld [vmem:[#allocation2 + $0x1ff] sm:$0xff]
    %v1953 = vmul.f32 %v1249, %v1633
    %v1954 = vmul.f32 %v1250, %v1634
    %v1955 = vmul.f32 %v1251, %v1635
    %v1956 = vmul.f32 %v1252, %v1636
    %v1957 = vmul.f32 %v1253, %v1637
    %v1958 = vmul.f32 %v1254, %v1638
    %v1959 = vmul.f32 %v1255, %v1639
    %v1960 = vmul.f32 %v1256, %v1640
    %v1961 = vmul.f32 %v1257, %v1641
    %v1962 = vmul.f32 %v1258, %v1642
    %v1963 = vmul.f32 %v1259, %v1643
    %v1964 = vmul.f32 %v1260, %v1644
    %v1965 = vmul.f32 %v1261, %v1645
    %v1966 = vmul.f32 %v1262, %v1646
    %v1967 = vmul.f32 %v1263, %v1647
    %v1968 = vmul.f32 %v1264, %v1648
    %v1969 = vmul.f32 %v1265, %v1649
    %v1970 = vmul.f32 %v1266, %v1650
    %v1971 = vmul.f32 %v1267, %v1651
    %v1972 = vmul.f32 %v1268, %v1652
    %v1973 = vmul.f32 %v1269, %v1653
    %v1974 = vmul.f32 %v1270, %v1654
    %v1975 = vmul.f32 %v1271, %v1655
    %v1976 = vmul.f32 %v1272, %v1656
    %v1977 = vmul.f32 %v1273, %v1657
    %v1978 = vmul.f32 %v1274, %v1658
    %v1979 = vmul.f32 %v1275, %v1659
    %v1980 = vmul.f32 %v1276, %v1660
    %v1981 = vmul.f32 %v1277, %v1661
    %v1982 = vmul.f32 %v1278, %v1662
    %v1983 = vmul.f32 %v1279, %v1663
    %v1984 = vmul.f32 %v1280, %v1664
    %v1985 = vmul.f32 %v1281, %v1665
    %v1986 = vmul.f32 %v1282, %v1666
    %v1987 = vmul.f32 %v1283, %v1667
    %v1988 = vmul.f32 %v1284, %v1668
    %v1989 = vmul.f32 %v1285, %v1669
    %v1990 = vmul.f32 %v1286, %v1670
    %v1991 = vmul.f32 %v1287, %v1671
    %v1992 = vmul.f32 %v1288, %v1672
    %v1993 = vmul.f32 %v1289, %v1673
    %v1994 = vmul.f32 %v1290, %v1674
    %v1995 = vmul.f32 %v1291, %v1675
    %v1996 = vmul.f32 %v1292, %v1676
    %v1997 = vmul.f32 %v1293, %v1677
    %v1998 = vmul.f32 %v1294, %v1678
    %v1999 = vmul.f32 %v1295, %v1679
    %v2000 = vmul.f32 %v1296, %v1680
    %v2001 = vmul.f32 %v1297, %v1681
    %v2002 = vmul.f32 %v1298, %v1682
    %v2003 = vmul.f32 %v1299, %v1683
    %v2004 = vmul.f32 %v1300, %v1684
    %v2005 = vmul.f32 %v1301, %v1685
    %v2006 = vmul.f32 %v1302, %v1686
    %v2007 = vmul.f32 %v1303, %v1687
    %v2008 = vmul.f32 %v1304, %v1688
    %v2009 = vmul.f32 %v1305, %v1689
    %v2010 = vmul.f32 %v1306, %v1690
    %v2011 = vmul.f32 %v1307, %v1691
    %v2012 = vmul.f32 %v1308, %v1692
    %v2013 = vmul.f32 %v1309, %v1693
    %v2014 = vmul.f32 %v1310, %v1694
    %v2015 = vmul.f32 %v1311, %v1695
    %v2016 = vmul.f32 %v1312, %v1696
    %2018 = vset.pattern.permute.xlu0 0
    %2019 = vperm.xlu0 %2018, %v1953
    %v2020 = vpop.permute.xlu0 %2019
    %2023 = vset.pattern.permute.xlu0 0
    %2024 = vperm.xlu0 %2023, %v1954
    %v2025 = vpop.permute.xlu0 %2024
    %2028 = vset.pattern.permute.xlu0 0
    %2029 = vperm.xlu0 %2028, %v1955
    %v2030 = vpop.permute.xlu0 %2029
    %2033 = vset.pattern.permute.xlu0 0
    %2034 = vperm.xlu0 %2033, %v1956
    %v2035 = vpop.permute.xlu0 %2034
    %2038 = vset.pattern.permute.xlu0 0
    %2039 = vperm.xlu0 %2038, %v1957
    %v2040 = vpop.permute.xlu0 %2039
    %2043 = vset.pattern.permute.xlu0 0
    %2044 = vperm.xlu0 %2043, %v1958
    %v2045 = vpop.permute.xlu0 %2044
    %2048 = vset.pattern.permute.xlu0 0
    %2049 = vperm.xlu0 %2048, %v1959
    %v2050 = vpop.permute.xlu0 %2049
    %2053 = vset.pattern.permute.xlu0 0
    %2054 = vperm.xlu0 %2053, %v1960
    %v2055 = vpop.permute.xlu0 %2054
    %2058 = vset.pattern.permute.xlu0 0
    %2059 = vperm.xlu0 %2058, %v1961
    %v2060 = vpop.permute.xlu0 %2059
    %2063 = vset.pattern.permute.xlu0 0
    %2064 = vperm.xlu0 %2063, %v1962
    %v2065 = vpop.permute.xlu0 %2064
    %2068 = vset.pattern.permute.xlu0 0
    %2069 = vperm.xlu0 %2068, %v1963
    %v2070 = vpop.permute.xlu0 %2069
    %2073 = vset.pattern.permute.xlu0 0
    %2074 = vperm.xlu0 %2073, %v1964
    %v2075 = vpop.permute.xlu0 %2074
    %2078 = vset.pattern.permute.xlu0 0
    %2079 = vperm.xlu0 %2078, %v1965
    %v2080 = vpop.permute.xlu0 %2079
    %2083 = vset.pattern.permute.xlu0 0
    %2084 = vperm.xlu0 %2083, %v1966
    %v2085 = vpop.permute.xlu0 %2084
    %2088 = vset.pattern.permute.xlu0 0
    %2089 = vperm.xlu0 %2088, %v1967
    %v2090 = vpop.permute.xlu0 %2089
    %2093 = vset.pattern.permute.xlu0 0
    %2094 = vperm.xlu0 %2093, %v1968
    %v2095 = vpop.permute.xlu0 %2094
    %2098 = vset.pattern.permute.xlu0 0
    %2099 = vperm.xlu0 %2098, %v1969
    %v2100 = vpop.permute.xlu0 %2099
    %2103 = vset.pattern.permute.xlu0 0
    %2104 = vperm.xlu0 %2103, %v1970
    %v2105 = vpop.permute.xlu0 %2104
    %2108 = vset.pattern.permute.xlu0 0
    %2109 = vperm.xlu0 %2108, %v1971
    %v2110 = vpop.permute.xlu0 %2109
    %2113 = vset.pattern.permute.xlu0 0
    %2114 = vperm.xlu0 %2113, %v1972
    %v2115 = vpop.permute.xlu0 %2114
    %2118 = vset.pattern.permute.xlu0 0
    %2119 = vperm.xlu0 %2118, %v1973
    %v2120 = vpop.permute.xlu0 %2119
    %2123 = vset.pattern.permute.xlu0 0
    %2124 = vperm.xlu0 %2123, %v1974
    %v2125 = vpop.permute.xlu0 %2124
    %2128 = vset.pattern.permute.xlu0 0
    %2129 = vperm.xlu0 %2128, %v1975
    %v2130 = vpop.permute.xlu0 %2129
    %2133 = vset.pattern.permute.xlu0 0
    %2134 = vperm.xlu0 %2133, %v1976
    %v2135 = vpop.permute.xlu0 %2134
    %2138 = vset.pattern.permute.xlu0 0
    %2139 = vperm.xlu0 %2138, %v1977
    %v2140 = vpop.permute.xlu0 %2139
    %2143 = vset.pattern.permute.xlu0 0
    %2144 = vperm.xlu0 %2143, %v1978
    %v2145 = vpop.permute.xlu0 %2144
    %2148 = vset.pattern.permute.xlu0 0
    %2149 = vperm.xlu0 %2148, %v1979
    %v2150 = vpop.permute.xlu0 %2149
    %2153 = vset.pattern.permute.xlu0 0
    %2154 = vperm.xlu0 %2153, %v1980
    %v2155 = vpop.permute.xlu0 %2154
    %2158 = vset.pattern.permute.xlu0 0
    %2159 = vperm.xlu0 %2158, %v1981
    %v2160 = vpop.permute.xlu0 %2159
    %2163 = vset.pattern.permute.xlu0 0
    %2164 = vperm.xlu0 %2163, %v1982
    %v2165 = vpop.permute.xlu0 %2164
    %2168 = vset.pattern.permute.xlu0 0
    %2169 = vperm.xlu0 %2168, %v1983
    %v2170 = vpop.permute.xlu0 %2169
    %2173 = vset.pattern.permute.xlu0 0
    %2174 = vperm.xlu0 %2173, %v1984
    %v2175 = vpop.permute.xlu0 %2174
    %2178 = vset.pattern.permute.xlu0 0
    %2179 = vperm.xlu0 %2178, %v1985
    %v2180 = vpop.permute.xlu0 %2179
    %2183 = vset.pattern.permute.xlu0 0
    %2184 = vperm.xlu0 %2183, %v1986
    %v2185 = vpop.permute.xlu0 %2184
    %2188 = vset.pattern.permute.xlu0 0
    %2189 = vperm.xlu0 %2188, %v1987
    %v2190 = vpop.permute.xlu0 %2189
    %2193 = vset.pattern.permute.xlu0 0
    %2194 = vperm.xlu0 %2193, %v1988
    %v2195 = vpop.permute.xlu0 %2194
    %2198 = vset.pattern.permute.xlu0 0
    %2199 = vperm.xlu0 %2198, %v1989
    %v2200 = vpop.permute.xlu0 %2199
    %2203 = vset.pattern.permute.xlu0 0
    %2204 = vperm.xlu0 %2203, %v1990
    %v2205 = vpop.permute.xlu0 %2204
    %2208 = vset.pattern.permute.xlu0 0
    %2209 = vperm.xlu0 %2208, %v1991
    %v2210 = vpop.permute.xlu0 %2209
    %2213 = vset.pattern.permute.xlu0 0
    %2214 = vperm.xlu0 %2213, %v1992
    %v2215 = vpop.permute.xlu0 %2214
    %2218 = vset.pattern.permute.xlu0 0
    %2219 = vperm.xlu0 %2218, %v1993
    %v2220 = vpop.permute.xlu0 %2219
    %2223 = vset.pattern.permute.xlu0 0
    %2224 = vperm.xlu0 %2223, %v1994
    %v2225 = vpop.permute.xlu0 %2224
    %2228 = vset.pattern.permute.xlu0 0
    %2229 = vperm.xlu0 %2228, %v1995
    %v2230 = vpop.permute.xlu0 %2229
    %2233 = vset.pattern.permute.xlu0 0
    %2234 = vperm.xlu0 %2233, %v1996
    %v2235 = vpop.permute.xlu0 %2234
    %2238 = vset.pattern.permute.xlu0 0
    %2239 = vperm.xlu0 %2238, %v1997
    %v2240 = vpop.permute.xlu0 %2239
    %2243 = vset.pattern.permute.xlu0 0
    %2244 = vperm.xlu0 %2243, %v1998
    %v2245 = vpop.permute.xlu0 %2244
    %2248 = vset.pattern.permute.xlu0 0
    %2249 = vperm.xlu0 %2248, %v1999
    %v2250 = vpop.permute.xlu0 %2249
    %2253 = vset.pattern.permute.xlu0 0
    %2254 = vperm.xlu0 %2253, %v2000
    %v2255 = vpop.permute.xlu0 %2254
    %2258 = vset.pattern.permute.xlu0 0
    %2259 = vperm.xlu0 %2258, %v2001
    %v2260 = vpop.permute.xlu0 %2259
    %2263 = vset.pattern.permute.xlu0 0
    %2264 = vperm.xlu0 %2263, %v2002
    %v2265 = vpop.permute.xlu0 %2264
    %2268 = vset.pattern.permute.xlu0 0
    %2269 = vperm.xlu0 %2268, %v2003
    %v2270 = vpop.permute.xlu0 %2269
    %2273 = vset.pattern.permute.xlu0 0
    %2274 = vperm.xlu0 %2273, %v2004
    %v2275 = vpop.permute.xlu0 %2274
    %2278 = vset.pattern.permute.xlu0 0
    %2279 = vperm.xlu0 %2278, %v2005
    %v2280 = vpop.permute.xlu0 %2279
    %2283 = vset.pattern.permute.xlu0 0
    %2284 = vperm.xlu0 %2283, %v2006
    %v2285 = vpop.permute.xlu0 %2284
    %2288 = vset.pattern.permute.xlu0 0
    %2289 = vperm.xlu0 %2288, %v2007
    %v2290 = vpop.permute.xlu0 %2289
    %2293 = vset.pattern.permute.xlu0 0
    %2294 = vperm.xlu0 %2293, %v2008
    %v2295 = vpop.permute.xlu0 %2294
    %2298 = vset.pattern.permute.xlu0 0
    %2299 = vperm.xlu0 %2298, %v2009
    %v2300 = vpop.permute.xlu0 %2299
    %2303 = vset.pattern.permute.xlu0 0
    %2304 = vperm.xlu0 %2303, %v2010
    %v2305 = vpop.permute.xlu0 %2304
    %2308 = vset.pattern.permute.xlu0 0
    %2309 = vperm.xlu0 %2308, %v2011
    %v2310 = vpop.permute.xlu0 %2309
    %2313 = vset.pattern.permute.xlu0 0
    %2314 = vperm.xlu0 %2313, %v2012
    %v2315 = vpop.permute.xlu0 %2314
    %2318 = vset.pattern.permute.xlu0 0
    %2319 = vperm.xlu0 %2318, %v2013
    %v2320 = vpop.permute.xlu0 %2319
    %2323 = vset.pattern.permute.xlu0 0
    %2324 = vperm.xlu0 %2323, %v2014
    %v2325 = vpop.permute.xlu0 %2324
    %2328 = vset.pattern.permute.xlu0 0
    %2329 = vperm.xlu0 %2328, %v2015
    %v2330 = vpop.permute.xlu0 %2329
    %2333 = vset.pattern.permute.xlu0 0
    %2334 = vperm.xlu0 %2333, %v2016
    %v2335 = vpop.permute.xlu0 %2334
    %v2337 = vmul.f32 %v1889, %v2020
    %v2338 = vmul.f32 %v1890, %v2025
    %v2339 = vmul.f32 %v1891, %v2030
    %v2340 = vmul.f32 %v1892, %v2035
    %v2341 = vmul.f32 %v1893, %v2040
    %v2342 = vmul.f32 %v1894, %v2045
    %v2343 = vmul.f32 %v1895, %v2050
    %v2344 = vmul.f32 %v1896, %v2055
    %v2345 = vmul.f32 %v1897, %v2060
    %v2346 = vmul.f32 %v1898, %v2065
    %v2347 = vmul.f32 %v1899, %v2070
    %v2348 = vmul.f32 %v1900, %v2075
    %v2349 = vmul.f32 %v1901, %v2080
    %v2350 = vmul.f32 %v1902, %v2085
    %v2351 = vmul.f32 %v1903, %v2090
    %v2352 = vmul.f32 %v1904, %v2095
    %v2353 = vmul.f32 %v1905, %v2100
    %v2354 = vmul.f32 %v1906, %v2105
    %v2355 = vmul.f32 %v1907, %v2110
    %v2356 = vmul.f32 %v1908, %v2115
    %v2357 = vmul.f32 %v1909, %v2120
    %v2358 = vmul.f32 %v1910, %v2125
    %v2359 = vmul.f32 %v1911, %v2130
    %v2360 = vmul.f32 %v1912, %v2135
    %v2361 = vmul.f32 %v1913, %v2140
    %v2362 = vmul.f32 %v1914, %v2145
    %v2363 = vmul.f32 %v1915, %v2150
    %v2364 = vmul.f32 %v1916, %v2155
    %v2365 = vmul.f32 %v1917, %v2160
    %v2366 = vmul.f32 %v1918, %v2165
    %v2367 = vmul.f32 %v1919, %v2170
    %v2368 = vmul.f32 %v1920, %v2175
    %v2369 = vmul.f32 %v1921, %v2180
    %v2370 = vmul.f32 %v1922, %v2185
    %v2371 = vmul.f32 %v1923, %v2190
    %v2372 = vmul.f32 %v1924, %v2195
    %v2373 = vmul.f32 %v1925, %v2200
    %v2374 = vmul.f32 %v1926, %v2205
    %v2375 = vmul.f32 %v1927, %v2210
    %v2376 = vmul.f32 %v1928, %v2215
    %v2377 = vmul.f32 %v1929, %v2220
    %v2378 = vmul.f32 %v1930, %v2225
    %v2379 = vmul.f32 %v1931, %v2230
    %v2380 = vmul.f32 %v1932, %v2235
    %v2381 = vmul.f32 %v1933, %v2240
    %v2382 = vmul.f32 %v1934, %v2245
    %v2383 = vmul.f32 %v1935, %v2250
    %v2384 = vmul.f32 %v1936, %v2255
    %v2385 = vmul.f32 %v1937, %v2260
    %v2386 = vmul.f32 %v1938, %v2265
    %v2387 = vmul.f32 %v1939, %v2270
    %v2388 = vmul.f32 %v1940, %v2275
    %v2389 = vmul.f32 %v1941, %v2280
    %v2390 = vmul.f32 %v1942, %v2285
    %v2391 = vmul.f32 %v1943, %v2290
    %v2392 = vmul.f32 %v1944, %v2295
    %v2393 = vmul.f32 %v1945, %v2300
    %v2394 = vmul.f32 %v1946, %v2305
    %v2395 = vmul.f32 %v1947, %v2310
    %v2396 = vmul.f32 %v1948, %v2315
    %v2397 = vmul.f32 %v1949, %v2320
    %v2398 = vmul.f32 %v1950, %v2325
    %v2399 = vmul.f32 %v1951, %v2330
    %v2400 = vmul.f32 %v1952, %v2335
    %v2401 = vpack.c.bf16 %v2338, %v2337
    %v2402 = vpack.c.bf16 %v2340, %v2339
    %v2403 = vpack.c.bf16 %v2342, %v2341
    %v2404 = vpack.c.bf16 %v2344, %v2343
    %v2405 = vpack.c.bf16 %v2346, %v2345
    %v2406 = vpack.c.bf16 %v2348, %v2347
    %v2407 = vpack.c.bf16 %v2350, %v2349
    %v2408 = vpack.c.bf16 %v2352, %v2351
    %v2409 = vpack.c.bf16 %v2354, %v2353
    %v2410 = vpack.c.bf16 %v2356, %v2355
    %v2411 = vpack.c.bf16 %v2358, %v2357
    %v2412 = vpack.c.bf16 %v2360, %v2359
    %v2413 = vpack.c.bf16 %v2362, %v2361
    %v2414 = vpack.c.bf16 %v2364, %v2363
    %v2415 = vpack.c.bf16 %v2366, %v2365
    %v2416 = vpack.c.bf16 %v2368, %v2367
    %v2417 = vpack.c.bf16 %v2370, %v2369
    %v2418 = vpack.c.bf16 %v2372, %v2371
    %v2419 = vpack.c.bf16 %v2374, %v2373
    %v2420 = vpack.c.bf16 %v2376, %v2375
    %v2421 = vpack.c.bf16 %v2378, %v2377
    %v2422 = vpack.c.bf16 %v2380, %v2379
    %v2423 = vpack.c.bf16 %v2382, %v2381
    %v2424 = vpack.c.bf16 %v2384, %v2383
    %v2425 = vpack.c.bf16 %v2386, %v2385
    %v2426 = vpack.c.bf16 %v2388, %v2387
    %v2427 = vpack.c.bf16 %v2390, %v2389
    %v2428 = vpack.c.bf16 %v2392, %v2391
    %v2429 = vpack.c.bf16 %v2394, %v2393
    %v2430 = vpack.c.bf16 %v2396, %v2395
    %v2431 = vpack.c.bf16 %v2398, %v2397
    %v2432 = vpack.c.bf16 %v2400, %v2399
    %2433 = vst [vmem:[#allocation3] sm:$0xff] %v2401
    %2434 = vst [vmem:[#allocation3 + $0x48] sm:$0xff] %v2402
    %2435 = vst [vmem:[#allocation3 + $0x90] sm:$0xff] %v2403
    %2436 = vst [vmem:[#allocation3 + $0xd8] sm:$0xff] %v2404
    %2437 = vst [vmem:[#allocation3 + $0x120] sm:$0xff] %v2405
    %2438 = vst [vmem:[#allocation3 + $0x168] sm:$0xff] %v2406
    %2439 = vst [vmem:[#allocation3 + $0x1b0] sm:$0xff] %v2407
    %2440 = vst [vmem:[#allocation3 + $0x1f8] sm:$0xff] %v2408
    %2441 = vst [vmem:[#allocation3 + $0x240] sm:$0xff] %v2409
    %2442 = vst [vmem:[#allocation3 + $0x288] sm:$0xff] %v2410
    %2443 = vst [vmem:[#allocation3 + $0x2d0] sm:$0xff] %v2411
    %2444 = vst [vmem:[#allocation3 + $0x318] sm:$0xff] %v2412
    %2445 = vst [vmem:[#allocation3 + $0x360] sm:$0xff] %v2413
    %2446 = vst [vmem:[#allocation3 + $0x3a8] sm:$0xff] %v2414
    %2447 = vst [vmem:[#allocation3 + $0x3f0] sm:$0xff] %v2415
    %2448 = vst [vmem:[#allocation3 + $0x438] sm:$0xff] %v2416
    %2449 = vst [vmem:[#allocation3 + $0x480] sm:$0xff] %v2417
    %2450 = vst [vmem:[#allocation3 + $0x4c8] sm:$0xff] %v2418
    %2451 = vst [vmem:[#allocation3 + $0x510] sm:$0xff] %v2419
    %2452 = vst [vmem:[#allocation3 + $0x558] sm:$0xff] %v2420
    %2453 = vst [vmem:[#allocation3 + $0x5a0] sm:$0xff] %v2421
    %2454 = vst [vmem:[#allocation3 + $0x5e8] sm:$0xff] %v2422
    %2455 = vst [vmem:[#allocation3 + $0x630] sm:$0xff] %v2423
    %2456 = vst [vmem:[#allocation3 + $0x678] sm:$0xff] %v2424
    %2457 = vst [vmem:[#allocation3 + $0x6c0] sm:$0xff] %v2425
    %2458 = vst [vmem:[#allocation3 + $0x708] sm:$0xff] %v2426
    %2459 = vst [vmem:[#allocation3 + $0x750] sm:$0xff] %v2427
    %2460 = vst [vmem:[#allocation3 + $0x798] sm:$0xff] %v2428
    %2461 = vst [vmem:[#allocation3 + $0x7e0] sm:$0xff] %v2429
    %2462 = vst [vmem:[#allocation3 + $0x828] sm:$0xff] %v2430
    %2463 = vst [vmem:[#allocation3 + $0x870] sm:$0xff] %v2431
    %2464 = vst [vmem:[#allocation3 + $0x8b8] sm:$0xff] %v2432
    %v2465 = vld [vmem:[#allocation2 + $0x8] sm:$0xff]
    %v2466 = vld [vmem:[#allocation2 + $0x10] sm:$0xff]
    %v2467 = vld [vmem:[#allocation2 + $0x18] sm:$0xff]
    %v2468 = vld [vmem:[#allocation2 + $0x20] sm:$0xff]
    %v2469 = vld [vmem:[#allocation2 + $0x28] sm:$0xff]
    %v2470 = vld [vmem:[#allocation2 + $0x30] sm:$0xff]
    %v2471 = vld [vmem:[#allocation2 + $0x38] sm:$0xff]
    %v2472 = vld [vmem:[#allocation2 + $0x40] sm:$0xff]
    %v2473 = vld [vmem:[#allocation2 + $0x48] sm:$0xff]
    %v2474 = vld [vmem:[#allocation2 + $0x50] sm:$0xff]
    %v2475 = vld [vmem:[#allocation2 + $0x58] sm:$0xff]
    %v2476 = vld [vmem:[#allocation2 + $0x60] sm:$0xff]
    %v2477 = vld [vmem:[#allocation2 + $0x68] sm:$0xff]
    %v2478 = vld [vmem:[#allocation2 + $0x70] sm:$0xff]
    %v2479 = vld [vmem:[#allocation2 + $0x78] sm:$0xff]
    %v2480 = vld [vmem:[#allocation2 + $0x80] sm:$0xff]
    %v2481 = vld [vmem:[#allocation2 + $0x88] sm:$0xff]
    %v2482 = vld [vmem:[#allocation2 + $0x90] sm:$0xff]
    %v2483 = vld [vmem:[#allocation2 + $0x98] sm:$0xff]
    %v2484 = vld [vmem:[#allocation2 + $0xa0] sm:$0xff]
    %v2485 = vld [vmem:[#allocation2 + $0xa8] sm:$0xff]
    %v2486 = vld [vmem:[#allocation2 + $0xb0] sm:$0xff]
    %v2487 = vld [vmem:[#allocation2 + $0xb8] sm:$0xff]
    %v2488 = vld [vmem:[#allocation2 + $0xc0] sm:$0xff]
    %v2489 = vld [vmem:[#allocation2 + $0xc8] sm:$0xff]
    %v2490 = vld [vmem:[#allocation2 + $0xd0] sm:$0xff]
    %v2491 = vld [vmem:[#allocation2 + $0xd8] sm:$0xff]
    %v2492 = vld [vmem:[#allocation2 + $0xe0] sm:$0xff]
    %v2493 = vld [vmem:[#allocation2 + $0xe8] sm:$0xff]
    %v2494 = vld [vmem:[#allocation2 + $0xf0] sm:$0xff]
    %v2495 = vld [vmem:[#allocation2 + $0xf8] sm:$0xff]
    %v2496 = vld [vmem:[#allocation2 + $0x100] sm:$0xff]
    %v2497 = vld [vmem:[#allocation2 + $0x108] sm:$0xff]
    %v2498 = vld [vmem:[#allocation2 + $0x110] sm:$0xff]
    %v2499 = vld [vmem:[#allocation2 + $0x118] sm:$0xff]
    %v2500 = vld [vmem:[#allocation2 + $0x120] sm:$0xff]
    %v2501 = vld [vmem:[#allocation2 + $0x128] sm:$0xff]
    %v2502 = vld [vmem:[#allocation2 + $0x130] sm:$0xff]
    %v2503 = vld [vmem:[#allocation2 + $0x138] sm:$0xff]
    %v2504 = vld [vmem:[#allocation2 + $0x140] sm:$0xff]
    %v2505 = vld [vmem:[#allocation2 + $0x148] sm:$0xff]
    %v2506 = vld [vmem:[#allocation2 + $0x150] sm:$0xff]
    %v2507 = vld [vmem:[#allocation2 + $0x158] sm:$0xff]
    %v2508 = vld [vmem:[#allocation2 + $0x160] sm:$0xff]
    %v2509 = vld [vmem:[#allocation2 + $0x168] sm:$0xff]
    %v2510 = vld [vmem:[#allocation2 + $0x170] sm:$0xff]
    %v2511 = vld [vmem:[#allocation2 + $0x178] sm:$0xff]
    %v2512 = vld [vmem:[#allocation2 + $0x180] sm:$0xff]
    %v2513 = vld [vmem:[#allocation2 + $0x188] sm:$0xff]
    %v2514 = vld [vmem:[#allocation2 + $0x190] sm:$0xff]
    %v2515 = vld [vmem:[#allocation2 + $0x198] sm:$0xff]
    %v2516 = vld [vmem:[#allocation2 + $0x1a0] sm:$0xff]
    %v2517 = vld [vmem:[#allocation2 + $0x1a8] sm:$0xff]
    %v2518 = vld [vmem:[#allocation2 + $0x1b0] sm:$0xff]
    %v2519 = vld [vmem:[#allocation2 + $0x1b8] sm:$0xff]
    %v2520 = vld [vmem:[#allocation2 + $0x1c0] sm:$0xff]
    %v2521 = vld [vmem:[#allocation2 + $0x1c8] sm:$0xff]
    %v2522 = vld [vmem:[#allocation2 + $0x1d0] sm:$0xff]
    %v2523 = vld [vmem:[#allocation2 + $0x1d8] sm:$0xff]
    %v2524 = vld [vmem:[#allocation2 + $0x1e0] sm:$0xff]
    %v2525 = vld [vmem:[#allocation2 + $0x1e8] sm:$0xff]
    %v2526 = vld [vmem:[#allocation2 + $0x1f0] sm:$0xff]
    %v2527 = vld [vmem:[#allocation2 + $0x1f8] sm:$0xff]
    %v2528 = vld [vmem:[#allocation2 + $0x200] sm:$0xff]
    %2530 = vset.pattern.permute.xlu0 0
    %2531 = vperm.xlu0 %2530, %v1249
    %v2532 = vpop.permute.xlu0 %2531
    %2535 = vset.pattern.permute.xlu0 0
    %2536 = vperm.xlu0 %2535, %v1250
    %v2537 = vpop.permute.xlu0 %2536
    %2540 = vset.pattern.permute.xlu0 0
    %2541 = vperm.xlu0 %2540, %v1251
    %v2542 = vpop.permute.xlu0 %2541
    %2545 = vset.pattern.permute.xlu0 0
    %2546 = vperm.xlu0 %2545, %v1252
    %v2547 = vpop.permute.xlu0 %2546
    %2550 = vset.pattern.permute.xlu0 0
    %2551 = vperm.xlu0 %2550, %v1253
    %v2552 = vpop.permute.xlu0 %2551
    %2555 = vset.pattern.permute.xlu0 0
    %2556 = vperm.xlu0 %2555, %v1254
    %v2557 = vpop.permute.xlu0 %2556
    %2560 = vset.pattern.permute.xlu0 0
    %2561 = vperm.xlu0 %2560, %v1255
    %v2562 = vpop.permute.xlu0 %2561
    %2565 = vset.pattern.permute.xlu0 0
    %2566 = vperm.xlu0 %2565, %v1256
    %v2567 = vpop.permute.xlu0 %2566
    %2570 = vset.pattern.permute.xlu0 0
    %2571 = vperm.xlu0 %2570, %v1257
    %v2572 = vpop.permute.xlu0 %2571
    %2575 = vset.pattern.permute.xlu0 0
    %2576 = vperm.xlu0 %2575, %v1258
    %v2577 = vpop.permute.xlu0 %2576
    %2580 = vset.pattern.permute.xlu0 0
    %2581 = vperm.xlu0 %2580, %v1259
    %v2582 = vpop.permute.xlu0 %2581
    %2585 = vset.pattern.permute.xlu0 0
    %2586 = vperm.xlu0 %2585, %v1260
    %v2587 = vpop.permute.xlu0 %2586
    %2590 = vset.pattern.permute.xlu0 0
    %2591 = vperm.xlu0 %2590, %v1261
    %v2592 = vpop.permute.xlu0 %2591
    %2595 = vset.pattern.permute.xlu0 0
    %2596 = vperm.xlu0 %2595, %v1262
    %v2597 = vpop.permute.xlu0 %2596
    %2600 = vset.pattern.permute.xlu0 0
    %2601 = vperm.xlu0 %2600, %v1263
    %v2602 = vpop.permute.xlu0 %2601
    %2605 = vset.pattern.permute.xlu0 0
    %2606 = vperm.xlu0 %2605, %v1264
    %v2607 = vpop.permute.xlu0 %2606
    %2610 = vset.pattern.permute.xlu0 0
    %2611 = vperm.xlu0 %2610, %v1265
    %v2612 = vpop.permute.xlu0 %2611
    %2615 = vset.pattern.permute.xlu0 0
    %2616 = vperm.xlu0 %2615, %v1266
    %v2617 = vpop.permute.xlu0 %2616
    %2620 = vset.pattern.permute.xlu0 0
    %2621 = vperm.xlu0 %2620, %v1267
    %v2622 = vpop.permute.xlu0 %2621
    %2625 = vset.pattern.permute.xlu0 0
    %2626 = vperm.xlu0 %2625, %v1268
    %v2627 = vpop.permute.xlu0 %2626
    %2630 = vset.pattern.permute.xlu0 0
    %2631 = vperm.xlu0 %2630, %v1269
    %v2632 = vpop.permute.xlu0 %2631
    %2635 = vset.pattern.permute.xlu0 0
    %2636 = vperm.xlu0 %2635, %v1270
    %v2637 = vpop.permute.xlu0 %2636
    %2640 = vset.pattern.permute.xlu0 0
    %2641 = vperm.xlu0 %2640, %v1271
    %v2642 = vpop.permute.xlu0 %2641
    %2645 = vset.pattern.permute.xlu0 0
    %2646 = vperm.xlu0 %2645, %v1272
    %v2647 = vpop.permute.xlu0 %2646
    %2650 = vset.pattern.permute.xlu0 0
    %2651 = vperm.xlu0 %2650, %v1273
    %v2652 = vpop.permute.xlu0 %2651
    %2655 = vset.pattern.permute.xlu0 0
    %2656 = vperm.xlu0 %2655, %v1274
    %v2657 = vpop.permute.xlu0 %2656
    %2660 = vset.pattern.permute.xlu0 0
    %2661 = vperm.xlu0 %2660, %v1275
    %v2662 = vpop.permute.xlu0 %2661
    %2665 = vset.pattern.permute.xlu0 0
    %2666 = vperm.xlu0 %2665, %v1276
    %v2667 = vpop.permute.xlu0 %2666
    %2670 = vset.pattern.permute.xlu0 0
    %2671 = vperm.xlu0 %2670, %v1277
    %v2672 = vpop.permute.xlu0 %2671
    %2675 = vset.pattern.permute.xlu0 0
    %2676 = vperm.xlu0 %2675, %v1278
    %v2677 = vpop.permute.xlu0 %2676
    %2680 = vset.pattern.permute.xlu0 0
    %2681 = vperm.xlu0 %2680, %v1279
    %v2682 = vpop.permute.xlu0 %2681
    %2685 = vset.pattern.permute.xlu0 0
    %2686 = vperm.xlu0 %2685, %v1280
    %v2687 = vpop.permute.xlu0 %2686
    %2690 = vset.pattern.permute.xlu0 0
    %2691 = vperm.xlu0 %2690, %v1281
    %v2692 = vpop.permute.xlu0 %2691
    %2695 = vset.pattern.permute.xlu0 0
    %2696 = vperm.xlu0 %2695, %v1282
    %v2697 = vpop.permute.xlu0 %2696
    %2700 = vset.pattern.permute.xlu0 0
    %2701 = vperm.xlu0 %2700, %v1283
    %v2702 = vpop.permute.xlu0 %2701
    %2705 = vset.pattern.permute.xlu0 0
    %2706 = vperm.xlu0 %2705, %v1284
    %v2707 = vpop.permute.xlu0 %2706
    %2710 = vset.pattern.permute.xlu0 0
    %2711 = vperm.xlu0 %2710, %v1285
    %v2712 = vpop.permute.xlu0 %2711
    %2715 = vset.pattern.permute.xlu0 0
    %2716 = vperm.xlu0 %2715, %v1286
    %v2717 = vpop.permute.xlu0 %2716
    %2720 = vset.pattern.permute.xlu0 0
    %2721 = vperm.xlu0 %2720, %v1287
    %v2722 = vpop.permute.xlu0 %2721
    %2725 = vset.pattern.permute.xlu0 0
    %2726 = vperm.xlu0 %2725, %v1288
    %v2727 = vpop.permute.xlu0 %2726
    %2730 = vset.pattern.permute.xlu0 0
    %2731 = vperm.xlu0 %2730, %v1289
    %v2732 = vpop.permute.xlu0 %2731
    %2735 = vset.pattern.permute.xlu0 0
    %2736 = vperm.xlu0 %2735, %v1290
    %v2737 = vpop.permute.xlu0 %2736
    %2740 = vset.pattern.permute.xlu0 0
    %2741 = vperm.xlu0 %2740, %v1291
    %v2742 = vpop.permute.xlu0 %2741
    %2745 = vset.pattern.permute.xlu0 0
    %2746 = vperm.xlu0 %2745, %v1292
    %v2747 = vpop.permute.xlu0 %2746
    %2750 = vset.pattern.permute.xlu0 0
    %2751 = vperm.xlu0 %2750, %v1293
    %v2752 = vpop.permute.xlu0 %2751
    %2755 = vset.pattern.permute.xlu0 0
    %2756 = vperm.xlu0 %2755, %v1294
    %v2757 = vpop.permute.xlu0 %2756
    %2760 = vset.pattern.permute.xlu0 0
    %2761 = vperm.xlu0 %2760, %v1295
    %v2762 = vpop.permute.xlu0 %2761
    %2765 = vset.pattern.permute.xlu0 0
    %2766 = vperm.xlu0 %2765, %v1296
    %v2767 = vpop.permute.xlu0 %2766
    %2770 = vset.pattern.permute.xlu0 0
    %2771 = vperm.xlu0 %2770, %v1297
    %v2772 = vpop.permute.xlu0 %2771
    %2775 = vset.pattern.permute.xlu0 0
    %2776 = vperm.xlu0 %2775, %v1298
    %v2777 = vpop.permute.xlu0 %2776
    %2780 = vset.pattern.permute.xlu0 0
    %2781 = vperm.xlu0 %2780, %v1299
    %v2782 = vpop.permute.xlu0 %2781
    %2785 = vset.pattern.permute.xlu0 0
    %2786 = vperm.xlu0 %2785, %v1300
    %v2787 = vpop.permute.xlu0 %2786
    %2790 = vset.pattern.permute.xlu0 0
    %2791 = vperm.xlu0 %2790, %v1301
    %v2792 = vpop.permute.xlu0 %2791
    %2795 = vset.pattern.permute.xlu0 0
    %2796 = vperm.xlu0 %2795, %v1302
    %v2797 = vpop.permute.xlu0 %2796
    %2800 = vset.pattern.permute.xlu0 0
    %2801 = vperm.xlu0 %2800, %v1303
    %v2802 = vpop.permute.xlu0 %2801
    %2805 = vset.pattern.permute.xlu0 0
    %2806 = vperm.xlu0 %2805, %v1304
    %v2807 = vpop.permute.xlu0 %2806
    %2810 = vset.pattern.permute.xlu0 0
    %2811 = vperm.xlu0 %2810, %v1305
    %v2812 = vpop.permute.xlu0 %2811
    %2815 = vset.pattern.permute.xlu0 0
    %2816 = vperm.xlu0 %2815, %v1306
    %v2817 = vpop.permute.xlu0 %2816
    %2820 = vset.pattern.permute.xlu0 0
    %2821 = vperm.xlu0 %2820, %v1307
    %v2822 = vpop.permute.xlu0 %2821
    %2825 = vset.pattern.permute.xlu0 0
    %2826 = vperm.xlu0 %2825, %v1308
    %v2827 = vpop.permute.xlu0 %2826
    %2830 = vset.pattern.permute.xlu0 0
    %2831 = vperm.xlu0 %2830, %v1309
    %v2832 = vpop.permute.xlu0 %2831
    %2835 = vset.pattern.permute.xlu0 0
    %2836 = vperm.xlu0 %2835, %v1310
    %v2837 = vpop.permute.xlu0 %2836
    %2840 = vset.pattern.permute.xlu0 0
    %2841 = vperm.xlu0 %2840, %v1311
    %v2842 = vpop.permute.xlu0 %2841
    %2845 = vset.pattern.permute.xlu0 0
    %2846 = vperm.xlu0 %2845, %v1312
    %v2847 = vpop.permute.xlu0 %2846
    %v2849 = vmul.f32 %v2465, %v2532
    %v2850 = vmul.f32 %v2466, %v2537
    %v2851 = vmul.f32 %v2467, %v2542
    %v2852 = vmul.f32 %v2468, %v2547
    %v2853 = vmul.f32 %v2469, %v2552
    %v2854 = vmul.f32 %v2470, %v2557
    %v2855 = vmul.f32 %v2471, %v2562
    %v2856 = vmul.f32 %v2472, %v2567
    %v2857 = vmul.f32 %v2473, %v2572
    %v2858 = vmul.f32 %v2474, %v2577
    %v2859 = vmul.f32 %v2475, %v2582
    %v2860 = vmul.f32 %v2476, %v2587
    %v2861 = vmul.f32 %v2477, %v2592
    %v2862 = vmul.f32 %v2478, %v2597
    %v2863 = vmul.f32 %v2479, %v2602
    %v2864 = vmul.f32 %v2480, %v2607
    %v2865 = vmul.f32 %v2481, %v2612
    %v2866 = vmul.f32 %v2482, %v2617
    %v2867 = vmul.f32 %v2483, %v2622
    %v2868 = vmul.f32 %v2484, %v2627
    %v2869 = vmul.f32 %v2485, %v2632
    %v2870 = vmul.f32 %v2486, %v2637
    %v2871 = vmul.f32 %v2487, %v2642
    %v2872 = vmul.f32 %v2488, %v2647
    %v2873 = vmul.f32 %v2489, %v2652
    %v2874 = vmul.f32 %v2490, %v2657
    %v2875 = vmul.f32 %v2491, %v2662
    %v2876 = vmul.f32 %v2492, %v2667
    %v2877 = vmul.f32 %v2493, %v2672
    %v2878 = vmul.f32 %v2494, %v2677
    %v2879 = vmul.f32 %v2495, %v2682
    %v2880 = vmul.f32 %v2496, %v2687
    %v2881 = vmul.f32 %v2497, %v2692
    %v2882 = vmul.f32 %v2498, %v2697
    %v2883 = vmul.f32 %v2499, %v2702
    %v2884 = vmul.f32 %v2500, %v2707
    %v2885 = vmul.f32 %v2501, %v2712
    %v2886 = vmul.f32 %v2502, %v2717
    %v2887 = vmul.f32 %v2503, %v2722
    %v2888 = vmul.f32 %v2504, %v2727
    %v2889 = vmul.f32 %v2505, %v2732
    %v2890 = vmul.f32 %v2506, %v2737
    %v2891 = vmul.f32 %v2507, %v2742
    %v2892 = vmul.f32 %v2508, %v2747
    %v2893 = vmul.f32 %v2509, %v2752
    %v2894 = vmul.f32 %v2510, %v2757
    %v2895 = vmul.f32 %v2511, %v2762
    %v2896 = vmul.f32 %v2512, %v2767
    %v2897 = vmul.f32 %v2513, %v2772
    %v2898 = vmul.f32 %v2514, %v2777
    %v2899 = vmul.f32 %v2515, %v2782
    %v2900 = vmul.f32 %v2516, %v2787
    %v2901 = vmul.f32 %v2517, %v2792
    %v2902 = vmul.f32 %v2518, %v2797
    %v2903 = vmul.f32 %v2519, %v2802
    %v2904 = vmul.f32 %v2520, %v2807
    %v2905 = vmul.f32 %v2521, %v2812
    %v2906 = vmul.f32 %v2522, %v2817
    %v2907 = vmul.f32 %v2523, %v2822
    %v2908 = vmul.f32 %v2524, %v2827
    %v2909 = vmul.f32 %v2525, %v2832
    %v2910 = vmul.f32 %v2526, %v2837
    %v2911 = vmul.f32 %v2527, %v2842
    %v2912 = vmul.f32 %v2528, %v2847
    %v2913 = vpack.c.bf16 %v2850, %v2849
    %v2914 = vpack.c.bf16 %v2852, %v2851
    %v2915 = vpack.c.bf16 %v2854, %v2853
    %v2916 = vpack.c.bf16 %v2856, %v2855
    %v2917 = vpack.c.bf16 %v2858, %v2857
    %v2918 = vpack.c.bf16 %v2860, %v2859
    %v2919 = vpack.c.bf16 %v2862, %v2861
    %v2920 = vpack.c.bf16 %v2864, %v2863
    %v2921 = vpack.c.bf16 %v2866, %v2865
    %v2922 = vpack.c.bf16 %v2868, %v2867
    %v2923 = vpack.c.bf16 %v2870, %v2869
    %v2924 = vpack.c.bf16 %v2872, %v2871
    %v2925 = vpack.c.bf16 %v2874, %v2873
    %v2926 = vpack.c.bf16 %v2876, %v2875
    %v2927 = vpack.c.bf16 %v2878, %v2877
    %v2928 = vpack.c.bf16 %v2880, %v2879
    %v2929 = vpack.c.bf16 %v2882, %v2881
    %v2930 = vpack.c.bf16 %v2884, %v2883
    %v2931 = vpack.c.bf16 %v2886, %v2885
    %v2932 = vpack.c.bf16 %v2888, %v2887
    %v2933 = vpack.c.bf16 %v2890, %v2889
    %v2934 = vpack.c.bf16 %v2892, %v2891
    %v2935 = vpack.c.bf16 %v2894, %v2893
    %v2936 = vpack.c.bf16 %v2896, %v2895
    %v2937 = vpack.c.bf16 %v2898, %v2897
    %v2938 = vpack.c.bf16 %v2900, %v2899
    %v2939 = vpack.c.bf16 %v2902, %v2901
    %v2940 = vpack.c.bf16 %v2904, %v2903
    %v2941 = vpack.c.bf16 %v2906, %v2905
    %v2942 = vpack.c.bf16 %v2908, %v2907
    %v2943 = vpack.c.bf16 %v2910, %v2909
    %v2944 = vpack.c.bf16 %v2912, %v2911
    %2945 = vst [vmem:[#allocation3 + $0x8] sm:$0xff] %v2913
    %2946 = vst [vmem:[#allocation3 + $0x50] sm:$0xff] %v2914
    %2947 = vst [vmem:[#allocation3 + $0x98] sm:$0xff] %v2915
    %2948 = vst [vmem:[#allocation3 + $0xe0] sm:$0xff] %v2916
    %2949 = vst [vmem:[#allocation3 + $0x128] sm:$0xff] %v2917
    %2950 = vst [vmem:[#allocation3 + $0x170] sm:$0xff] %v2918
    %2951 = vst [vmem:[#allocation3 + $0x1b8] sm:$0xff] %v2919
    %2952 = vst [vmem:[#allocation3 + $0x200] sm:$0xff] %v2920
    %2953 = vst [vmem:[#allocation3 + $0x248] sm:$0xff] %v2921
    %2954 = vst [vmem:[#allocation3 + $0x290] sm:$0xff] %v2922
    %2955 = vst [vmem:[#allocation3 + $0x2d8] sm:$0xff] %v2923
    %2956 = vst [vmem:[#allocation3 + $0x320] sm:$0xff] %v2924
    %2957 = vst [vmem:[#allocation3 + $0x368] sm:$0xff] %v2925
    %2958 = vst [vmem:[#allocation3 + $0x3b0] sm:$0xff] %v2926
    %2959 = vst [vmem:[#allocation3 + $0x3f8] sm:$0xff] %v2927
    %2960 = vst [vmem:[#allocation3 + $0x440] sm:$0xff] %v2928
    %2961 = vst [vmem:[#allocation3 + $0x488] sm:$0xff] %v2929
    %2962 = vst [vmem:[#allocation3 + $0x4d0] sm:$0xff] %v2930
    %2963 = vst [vmem:[#allocation3 + $0x518] sm:$0xff] %v2931
    %2964 = vst [vmem:[#allocation3 + $0x560] sm:$0xff] %v2932
    %2965 = vst [vmem:[#allocation3 + $0x5a8] sm:$0xff] %v2933
    %2966 = vst [vmem:[#allocation3 + $0x5f0] sm:$0xff] %v2934
    %2967 = vst [vmem:[#allocation3 + $0x638] sm:$0xff] %v2935
    %2968 = vst [vmem:[#allocation3 + $0x680] sm:$0xff] %v2936
    %2969 = vst [vmem:[#allocation3 + $0x6c8] sm:$0xff] %v2937
    %2970 = vst [vmem:[#allocation3 + $0x710] sm:$0xff] %v2938
    %2971 = vst [vmem:[#allocation3 + $0x758] sm:$0xff] %v2939
    %2972 = vst [vmem:[#allocation3 + $0x7a0] sm:$0xff] %v2940
    %2973 = vst [vmem:[#allocation3 + $0x7e8] sm:$0xff] %v2941
    %2974 = vst [vmem:[#allocation3 + $0x830] sm:$0xff] %v2942
    %2975 = vst [vmem:[#allocation3 + $0x878] sm:$0xff] %v2943
    %2976 = vst [vmem:[#allocation3 + $0x8c0] sm:$0xff] %v2944
    %v2977 = vld [vmem:[#allocation2 + $0x9] sm:$0xff]
    %v2978 = vld [vmem:[#allocation2 + $0x11] sm:$0xff]
    %v2979 = vld [vmem:[#allocation2 + $0x19] sm:$0xff]
    %v2980 = vld [vmem:[#allocation2 + $0x21] sm:$0xff]
    %v2981 = vld [vmem:[#allocation2 + $0x29] sm:$0xff]
    %v2982 = vld [vmem:[#allocation2 + $0x31] sm:$0xff]
    %v2983 = vld [vmem:[#allocation2 + $0x39] sm:$0xff]
    %v2984 = vld [vmem:[#allocation2 + $0x41] sm:$0xff]
    %v2985 = vld [vmem:[#allocation2 + $0x49] sm:$0xff]
    %v2986 = vld [vmem:[#allocation2 + $0x51] sm:$0xff]
    %v2987 = vld [vmem:[#allocation2 + $0x59] sm:$0xff]
    %v2988 = vld [vmem:[#allocation2 + $0x61] sm:$0xff]
    %v2989 = vld [vmem:[#allocation2 + $0x69] sm:$0xff]
    %v2990 = vld [vmem:[#allocation2 + $0x71] sm:$0xff]
    %v2991 = vld [vmem:[#allocation2 + $0x79] sm:$0xff]
    %v2992 = vld [vmem:[#allocation2 + $0x81] sm:$0xff]
    %v2993 = vld [vmem:[#allocation2 + $0x89] sm:$0xff]
    %v2994 = vld [vmem:[#allocation2 + $0x91] sm:$0xff]
    %v2995 = vld [vmem:[#allocation2 + $0x99] sm:$0xff]
    %v2996 = vld [vmem:[#allocation2 + $0xa1] sm:$0xff]
    %v2997 = vld [vmem:[#allocation2 + $0xa9] sm:$0xff]
    %v2998 = vld [vmem:[#allocation2 + $0xb1] sm:$0xff]
    %v2999 = vld [vmem:[#allocation2 + $0xb9] sm:$0xff]
    %v3000 = vld [vmem:[#allocation2 + $0xc1] sm:$0xff]
    %v3001 = vld [vmem:[#allocation2 + $0xc9] sm:$0xff]
    %v3002 = vld [vmem:[#allocation2 + $0xd1] sm:$0xff]
    %v3003 = vld [vmem:[#allocation2 + $0xd9] sm:$0xff]
    %v3004 = vld [vmem:[#allocation2 + $0xe1] sm:$0xff]
    %v3005 = vld [vmem:[#allocation2 + $0xe9] sm:$0xff]
    %v3006 = vld [vmem:[#allocation2 + $0xf1] sm:$0xff]
    %v3007 = vld [vmem:[#allocation2 + $0xf9] sm:$0xff]
    %v3008 = vld [vmem:[#allocation2 + $0x101] sm:$0xff]
    %v3009 = vld [vmem:[#allocation2 + $0x109] sm:$0xff]
    %v3010 = vld [vmem:[#allocation2 + $0x111] sm:$0xff]
    %v3011 = vld [vmem:[#allocation2 + $0x119] sm:$0xff]
    %v3012 = vld [vmem:[#allocation2 + $0x121] sm:$0xff]
    %v3013 = vld [vmem:[#allocation2 + $0x129] sm:$0xff]
    %v3014 = vld [vmem:[#allocation2 + $0x131] sm:$0xff]
    %v3015 = vld [vmem:[#allocation2 + $0x139] sm:$0xff]
    %v3016 = vld [vmem:[#allocation2 + $0x141] sm:$0xff]
    %v3017 = vld [vmem:[#allocation2 + $0x149] sm:$0xff]
    %v3018 = vld [vmem:[#allocation2 + $0x151] sm:$0xff]
    %v3019 = vld [vmem:[#allocation2 + $0x159] sm:$0xff]
    %v3020 = vld [vmem:[#allocation2 + $0x161] sm:$0xff]
    %v3021 = vld [vmem:[#allocation2 + $0x169] sm:$0xff]
    %v3022 = vld [vmem:[#allocation2 + $0x171] sm:$0xff]
    %v3023 = vld [vmem:[#allocation2 + $0x179] sm:$0xff]
    %v3024 = vld [vmem:[#allocation2 + $0x181] sm:$0xff]
    %v3025 = vld [vmem:[#allocation2 + $0x189] sm:$0xff]
    %v3026 = vld [vmem:[#allocation2 + $0x191] sm:$0xff]
    %v3027 = vld [vmem:[#allocation2 + $0x199] sm:$0xff]
    %v3028 = vld [vmem:[#allocation2 + $0x1a1] sm:$0xff]
    %v3029 = vld [vmem:[#allocation2 + $0x1a9] sm:$0xff]
    %v3030 = vld [vmem:[#allocation2 + $0x1b1] sm:$0xff]
    %v3031 = vld [vmem:[#allocation2 + $0x1b9] sm:$0xff]
    %v3032 = vld [vmem:[#allocation2 + $0x1c1] sm:$0xff]
    %v3033 = vld [vmem:[#allocation2 + $0x1c9] sm:$0xff]
    %v3034 = vld [vmem:[#allocation2 + $0x1d1] sm:$0xff]
    %v3035 = vld [vmem:[#allocation2 + $0x1d9] sm:$0xff]
    %v3036 = vld [vmem:[#allocation2 + $0x1e1] sm:$0xff]
    %v3037 = vld [vmem:[#allocation2 + $0x1e9] sm:$0xff]
    %v3038 = vld [vmem:[#allocation2 + $0x1f1] sm:$0xff]
    %v3039 = vld [vmem:[#allocation2 + $0x1f9] sm:$0xff]
    %v3040 = vld [vmem:[#allocation2 + $0x201] sm:$0xff]
    %v3041 = vmul.f32 %v1249, %v1825
    %v3042 = vmul.f32 %v1250, %v1826
    %v3043 = vmul.f32 %v1251, %v1827
    %v3044 = vmul.f32 %v1252, %v1828
    %v3045 = vmul.f32 %v1253, %v1829
    %v3046 = vmul.f32 %v1254, %v1830
    %v3047 = vmul.f32 %v1255, %v1831
    %v3048 = vmul.f32 %v1256, %v1832
    %v3049 = vmul.f32 %v1257, %v1833
    %v3050 = vmul.f32 %v1258, %v1834
    %v3051 = vmul.f32 %v1259, %v1835
    %v3052 = vmul.f32 %v1260, %v1836
    %v3053 = vmul.f32 %v1261, %v1837
    %v3054 = vmul.f32 %v1262, %v1838
    %v3055 = vmul.f32 %v1263, %v1839
    %v3056 = vmul.f32 %v1264, %v1840
    %v3057 = vmul.f32 %v1265, %v1841
    %v3058 = vmul.f32 %v1266, %v1842
    %v3059 = vmul.f32 %v1267, %v1843
    %v3060 = vmul.f32 %v1268, %v1844
    %v3061 = vmul.f32 %v1269, %v1845
    %v3062 = vmul.f32 %v1270, %v1846
    %v3063 = vmul.f32 %v1271, %v1847
    %v3064 = vmul.f32 %v1272, %v1848
    %v3065 = vmul.f32 %v1273, %v1849
    %v3066 = vmul.f32 %v1274, %v1850
    %v3067 = vmul.f32 %v1275, %v1851
    %v3068 = vmul.f32 %v1276, %v1852
    %v3069 = vmul.f32 %v1277, %v1853
    %v3070 = vmul.f32 %v1278, %v1854
    %v3071 = vmul.f32 %v1279, %v1855
    %v3072 = vmul.f32 %v1280, %v1856
    %v3073 = vmul.f32 %v1281, %v1857
    %v3074 = vmul.f32 %v1282, %v1858
    %v3075 = vmul.f32 %v1283, %v1859
    %v3076 = vmul.f32 %v1284, %v1860
    %v3077 = vmul.f32 %v1285, %v1861
    %v3078 = vmul.f32 %v1286, %v1862
    %v3079 = vmul.f32 %v1287, %v1863
    %v3080 = vmul.f32 %v1288, %v1864
    %v3081 = vmul.f32 %v1289, %v1865
    %v3082 = vmul.f32 %v1290, %v1866
    %v3083 = vmul.f32 %v1291, %v1867
    %v3084 = vmul.f32 %v1292, %v1868
    %v3085 = vmul.f32 %v1293, %v1869
    %v3086 = vmul.f32 %v1294, %v1870
    %v3087 = vmul.f32 %v1295, %v1871
    %v3088 = vmul.f32 %v1296, %v1872
    %v3089 = vmul.f32 %v1297, %v1873
    %v3090 = vmul.f32 %v1298, %v1874
    %v3091 = vmul.f32 %v1299, %v1875
    %v3092 = vmul.f32 %v1300, %v1876
    %v3093 = vmul.f32 %v1301, %v1877
    %v3094 = vmul.f32 %v1302, %v1878
    %v3095 = vmul.f32 %v1303, %v1879
    %v3096 = vmul.f32 %v1304, %v1880
    %v3097 = vmul.f32 %v1305, %v1881
    %v3098 = vmul.f32 %v1306, %v1882
    %v3099 = vmul.f32 %v1307, %v1883
    %v3100 = vmul.f32 %v1308, %v1884
    %v3101 = vmul.f32 %v1309, %v1885
    %v3102 = vmul.f32 %v1310, %v1886
    %v3103 = vmul.f32 %v1311, %v1887
    %v3104 = vmul.f32 %v1312, %v1888
    %3106 = vset.pattern.permute.xlu0 0
    %3107 = vperm.xlu0 %3106, %v3041
    %v3108 = vpop.permute.xlu0 %3107
    %3111 = vset.pattern.permute.xlu0 0
    %3112 = vperm.xlu0 %3111, %v3042
    %v3113 = vpop.permute.xlu0 %3112
    %3116 = vset.pattern.permute.xlu0 0
    %3117 = vperm.xlu0 %3116, %v3043
    %v3118 = vpop.permute.xlu0 %3117
    %3121 = vset.pattern.permute.xlu0 0
    %3122 = vperm.xlu0 %3121, %v3044
    %v3123 = vpop.permute.xlu0 %3122
    %3126 = vset.pattern.permute.xlu0 0
    %3127 = vperm.xlu0 %3126, %v3045
    %v3128 = vpop.permute.xlu0 %3127
    %3131 = vset.pattern.permute.xlu0 0
    %3132 = vperm.xlu0 %3131, %v3046
    %v3133 = vpop.permute.xlu0 %3132
    %3136 = vset.pattern.permute.xlu0 0
    %3137 = vperm.xlu0 %3136, %v3047
    %v3138 = vpop.permute.xlu0 %3137
    %3141 = vset.pattern.permute.xlu0 0
    %3142 = vperm.xlu0 %3141, %v3048
    %v3143 = vpop.permute.xlu0 %3142
    %3146 = vset.pattern.permute.xlu0 0
    %3147 = vperm.xlu0 %3146, %v3049
    %v3148 = vpop.permute.xlu0 %3147
    %3151 = vset.pattern.permute.xlu0 0
    %3152 = vperm.xlu0 %3151, %v3050
    %v3153 = vpop.permute.xlu0 %3152
    %3156 = vset.pattern.permute.xlu0 0
    %3157 = vperm.xlu0 %3156, %v3051
    %v3158 = vpop.permute.xlu0 %3157
    %3161 = vset.pattern.permute.xlu0 0
    %3162 = vperm.xlu0 %3161, %v3052
    %v3163 = vpop.permute.xlu0 %3162
    %3166 = vset.pattern.permute.xlu0 0
    %3167 = vperm.xlu0 %3166, %v3053
    %v3168 = vpop.permute.xlu0 %3167
    %3171 = vset.pattern.permute.xlu0 0
    %3172 = vperm.xlu0 %3171, %v3054
    %v3173 = vpop.permute.xlu0 %3172
    %3176 = vset.pattern.permute.xlu0 0
    %3177 = vperm.xlu0 %3176, %v3055
    %v3178 = vpop.permute.xlu0 %3177
    %3181 = vset.pattern.permute.xlu0 0
    %3182 = vperm.xlu0 %3181, %v3056
    %v3183 = vpop.permute.xlu0 %3182
    %3186 = vset.pattern.permute.xlu0 0
    %3187 = vperm.xlu0 %3186, %v3057
    %v3188 = vpop.permute.xlu0 %3187
    %3191 = vset.pattern.permute.xlu0 0
    %3192 = vperm.xlu0 %3191, %v3058
    %v3193 = vpop.permute.xlu0 %3192
    %3196 = vset.pattern.permute.xlu0 0
    %3197 = vperm.xlu0 %3196, %v3059
    %v3198 = vpop.permute.xlu0 %3197
    %3201 = vset.pattern.permute.xlu0 0
    %3202 = vperm.xlu0 %3201, %v3060
    %v3203 = vpop.permute.xlu0 %3202
    %3206 = vset.pattern.permute.xlu0 0
    %3207 = vperm.xlu0 %3206, %v3061
    %v3208 = vpop.permute.xlu0 %3207
    %3211 = vset.pattern.permute.xlu0 0
    %3212 = vperm.xlu0 %3211, %v3062
    %v3213 = vpop.permute.xlu0 %3212
    %3216 = vset.pattern.permute.xlu0 0
    %3217 = vperm.xlu0 %3216, %v3063
    %v3218 = vpop.permute.xlu0 %3217
    %3221 = vset.pattern.permute.xlu0 0
    %3222 = vperm.xlu0 %3221, %v3064
    %v3223 = vpop.permute.xlu0 %3222
    %3226 = vset.pattern.permute.xlu0 0
    %3227 = vperm.xlu0 %3226, %v3065
    %v3228 = vpop.permute.xlu0 %3227
    %3231 = vset.pattern.permute.xlu0 0
    %3232 = vperm.xlu0 %3231, %v3066
    %v3233 = vpop.permute.xlu0 %3232
    %3236 = vset.pattern.permute.xlu0 0
    %3237 = vperm.xlu0 %3236, %v3067
    %v3238 = vpop.permute.xlu0 %3237
    %3241 = vset.pattern.permute.xlu0 0
    %3242 = vperm.xlu0 %3241, %v3068
    %v3243 = vpop.permute.xlu0 %3242
    %3246 = vset.pattern.permute.xlu0 0
    %3247 = vperm.xlu0 %3246, %v3069
    %v3248 = vpop.permute.xlu0 %3247
    %3251 = vset.pattern.permute.xlu0 0
    %3252 = vperm.xlu0 %3251, %v3070
    %v3253 = vpop.permute.xlu0 %3252
    %3256 = vset.pattern.permute.xlu0 0
    %3257 = vperm.xlu0 %3256, %v3071
    %v3258 = vpop.permute.xlu0 %3257
    %3261 = vset.pattern.permute.xlu0 0
    %3262 = vperm.xlu0 %3261, %v3072
    %v3263 = vpop.permute.xlu0 %3262
    %3266 = vset.pattern.permute.xlu0 0
    %3267 = vperm.xlu0 %3266, %v3073
    %v3268 = vpop.permute.xlu0 %3267
    %3271 = vset.pattern.permute.xlu0 0
    %3272 = vperm.xlu0 %3271, %v3074
    %v3273 = vpop.permute.xlu0 %3272
    %3276 = vset.pattern.permute.xlu0 0
    %3277 = vperm.xlu0 %3276, %v3075
    %v3278 = vpop.permute.xlu0 %3277
    %3281 = vset.pattern.permute.xlu0 0
    %3282 = vperm.xlu0 %3281, %v3076
    %v3283 = vpop.permute.xlu0 %3282
    %3286 = vset.pattern.permute.xlu0 0
    %3287 = vperm.xlu0 %3286, %v3077
    %v3288 = vpop.permute.xlu0 %3287
    %3291 = vset.pattern.permute.xlu0 0
    %3292 = vperm.xlu0 %3291, %v3078
    %v3293 = vpop.permute.xlu0 %3292
    %3296 = vset.pattern.permute.xlu0 0
    %3297 = vperm.xlu0 %3296, %v3079
    %v3298 = vpop.permute.xlu0 %3297
    %3301 = vset.pattern.permute.xlu0 0
    %3302 = vperm.xlu0 %3301, %v3080
    %v3303 = vpop.permute.xlu0 %3302
    %3306 = vset.pattern.permute.xlu0 0
    %3307 = vperm.xlu0 %3306, %v3081
    %v3308 = vpop.permute.xlu0 %3307
    %3311 = vset.pattern.permute.xlu0 0
    %3312 = vperm.xlu0 %3311, %v3082
    %v3313 = vpop.permute.xlu0 %3312
    %3316 = vset.pattern.permute.xlu0 0
    %3317 = vperm.xlu0 %3316, %v3083
    %v3318 = vpop.permute.xlu0 %3317
    %3321 = vset.pattern.permute.xlu0 0
    %3322 = vperm.xlu0 %3321, %v3084
    %v3323 = vpop.permute.xlu0 %3322
    %3326 = vset.pattern.permute.xlu0 0
    %3327 = vperm.xlu0 %3326, %v3085
    %v3328 = vpop.permute.xlu0 %3327
    %3331 = vset.pattern.permute.xlu0 0
    %3332 = vperm.xlu0 %3331, %v3086
    %v3333 = vpop.permute.xlu0 %3332
    %3336 = vset.pattern.permute.xlu0 0
    %3337 = vperm.xlu0 %3336, %v3087
    %v3338 = vpop.permute.xlu0 %3337
    %3341 = vset.pattern.permute.xlu0 0
    %3342 = vperm.xlu0 %3341, %v3088
    %v3343 = vpop.permute.xlu0 %3342
    %3346 = vset.pattern.permute.xlu0 0
    %3347 = vperm.xlu0 %3346, %v3089
    %v3348 = vpop.permute.xlu0 %3347
    %3351 = vset.pattern.permute.xlu0 0
    %3352 = vperm.xlu0 %3351, %v3090
    %v3353 = vpop.permute.xlu0 %3352
    %3356 = vset.pattern.permute.xlu0 0
    %3357 = vperm.xlu0 %3356, %v3091
    %v3358 = vpop.permute.xlu0 %3357
    %3361 = vset.pattern.permute.xlu0 0
    %3362 = vperm.xlu0 %3361, %v3092
    %v3363 = vpop.permute.xlu0 %3362
    %3366 = vset.pattern.permute.xlu0 0
    %3367 = vperm.xlu0 %3366, %v3093
    %v3368 = vpop.permute.xlu0 %3367
    %3371 = vset.pattern.permute.xlu0 0
    %3372 = vperm.xlu0 %3371, %v3094
    %v3373 = vpop.permute.xlu0 %3372
    %3376 = vset.pattern.permute.xlu0 0
    %3377 = vperm.xlu0 %3376, %v3095
    %v3378 = vpop.permute.xlu0 %3377
    %3381 = vset.pattern.permute.xlu0 0
    %3382 = vperm.xlu0 %3381, %v3096
    %v3383 = vpop.permute.xlu0 %3382
    %3386 = vset.pattern.permute.xlu0 0
    %3387 = vperm.xlu0 %3386, %v3097
    %v3388 = vpop.permute.xlu0 %3387
    %3391 = vset.pattern.permute.xlu0 0
    %3392 = vperm.xlu0 %3391, %v3098
    %v3393 = vpop.permute.xlu0 %3392
    %3396 = vset.pattern.permute.xlu0 0
    %3397 = vperm.xlu0 %3396, %v3099
    %v3398 = vpop.permute.xlu0 %3397
    %3401 = vset.pattern.permute.xlu0 0
    %3402 = vperm.xlu0 %3401, %v3100
    %v3403 = vpop.permute.xlu0 %3402
    %3406 = vset.pattern.permute.xlu0 0
    %3407 = vperm.xlu0 %3406, %v3101
    %v3408 = vpop.permute.xlu0 %3407
    %3411 = vset.pattern.permute.xlu0 0
    %3412 = vperm.xlu0 %3411, %v3102
    %v3413 = vpop.permute.xlu0 %3412
    %3416 = vset.pattern.permute.xlu0 0
    %3417 = vperm.xlu0 %3416, %v3103
    %v3418 = vpop.permute.xlu0 %3417
    %3421 = vset.pattern.permute.xlu0 0
    %3422 = vperm.xlu0 %3421, %v3104
    %v3423 = vpop.permute.xlu0 %3422
    %v3425 = vmul.f32 %v2977, %v3108
    %v3426 = vmul.f32 %v2978, %v3113
    %v3427 = vmul.f32 %v2979, %v3118
    %v3428 = vmul.f32 %v2980, %v3123
    %v3429 = vmul.f32 %v2981, %v3128
    %v3430 = vmul.f32 %v2982, %v3133
    %v3431 = vmul.f32 %v2983, %v3138
    %v3432 = vmul.f32 %v2984, %v3143
    %v3433 = vmul.f32 %v2985, %v3148
    %v3434 = vmul.f32 %v2986, %v3153
    %v3435 = vmul.f32 %v2987, %v3158
    %v3436 = vmul.f32 %v2988, %v3163
    %v3437 = vmul.f32 %v2989, %v3168
    %v3438 = vmul.f32 %v2990, %v3173
    %v3439 = vmul.f32 %v2991, %v3178
    %v3440 = vmul.f32 %v2992, %v3183
    %v3441 = vmul.f32 %v2993, %v3188
    %v3442 = vmul.f32 %v2994, %v3193
    %v3443 = vmul.f32 %v2995, %v3198
    %v3444 = vmul.f32 %v2996, %v3203
    %v3445 = vmul.f32 %v2997, %v3208
    %v3446 = vmul.f32 %v2998, %v3213
    %v3447 = vmul.f32 %v2999, %v3218
    %v3448 = vmul.f32 %v3000, %v3223
    %v3449 = vmul.f32 %v3001, %v3228
    %v3450 = vmul.f32 %v3002, %v3233
    %v3451 = vmul.f32 %v3003, %v3238
    %v3452 = vmul.f32 %v3004, %v3243
    %v3453 = vmul.f32 %v3005, %v3248
    %v3454 = vmul.f32 %v3006, %v3253
    %v3455 = vmul.f32 %v3007, %v3258
    %v3456 = vmul.f32 %v3008, %v3263
    %v3457 = vmul.f32 %v3009, %v3268
    %v3458 = vmul.f32 %v3010, %v3273
    %v3459 = vmul.f32 %v3011, %v3278
    %v3460 = vmul.f32 %v3012, %v3283
    %v3461 = vmul.f32 %v3013, %v3288
    %v3462 = vmul.f32 %v3014, %v3293
    %v3463 = vmul.f32 %v3015, %v3298
    %v3464 = vmul.f32 %v3016, %v3303
    %v3465 = vmul.f32 %v3017, %v3308
    %v3466 = vmul.f32 %v3018, %v3313
    %v3467 = vmul.f32 %v3019, %v3318
    %v3468 = vmul.f32 %v3020, %v3323
    %v3469 = vmul.f32 %v3021, %v3328
    %v3470 = vmul.f32 %v3022, %v3333
    %v3471 = vmul.f32 %v3023, %v3338
    %v3472 = vmul.f32 %v3024, %v3343
    %v3473 = vmul.f32 %v3025, %v3348
    %v3474 = vmul.f32 %v3026, %v3353
    %v3475 = vmul.f32 %v3027, %v3358
    %v3476 = vmul.f32 %v3028, %v3363
    %v3477 = vmul.f32 %v3029, %v3368
    %v3478 = vmul.f32 %v3030, %v3373
    %v3479 = vmul.f32 %v3031, %v3378
    %v3480 = vmul.f32 %v3032, %v3383
    %v3481 = vmul.f32 %v3033, %v3388
    %v3482 = vmul.f32 %v3034, %v3393
    %v3483 = vmul.f32 %v3035, %v3398
    %v3484 = vmul.f32 %v3036, %v3403
    %v3485 = vmul.f32 %v3037, %v3408
    %v3486 = vmul.f32 %v3038, %v3413
    %v3487 = vmul.f32 %v3039, %v3418
    %v3488 = vmul.f32 %v3040, %v3423
    %v3489 = vpack.c.bf16 %v3426, %v3425
    %v3490 = vpack.c.bf16 %v3428, %v3427
    %v3491 = vpack.c.bf16 %v3430, %v3429
    %v3492 = vpack.c.bf16 %v3432, %v3431
    %v3493 = vpack.c.bf16 %v3434, %v3433
    %v3494 = vpack.c.bf16 %v3436, %v3435
    %v3495 = vpack.c.bf16 %v3438, %v3437
    %v3496 = vpack.c.bf16 %v3440, %v3439
    %v3497 = vpack.c.bf16 %v3442, %v3441
    %v3498 = vpack.c.bf16 %v3444, %v3443
    %v3499 = vpack.c.bf16 %v3446, %v3445
    %v3500 = vpack.c.bf16 %v3448, %v3447
    %v3501 = vpack.c.bf16 %v3450, %v3449
    %v3502 = vpack.c.bf16 %v3452, %v3451
    %v3503 = vpack.c.bf16 %v3454, %v3453
    %v3504 = vpack.c.bf16 %v3456, %v3455
    %v3505 = vpack.c.bf16 %v3458, %v3457
    %v3506 = vpack.c.bf16 %v3460, %v3459
    %v3507 = vpack.c.bf16 %v3462, %v3461
    %v3508 = vpack.c.bf16 %v3464, %v3463
    %v3509 = vpack.c.bf16 %v3466, %v3465
    %v3510 = vpack.c.bf16 %v3468, %v3467
    %v3511 = vpack.c.bf16 %v3470, %v3469
    %v3512 = vpack.c.bf16 %v3472, %v3471
    %v3513 = vpack.c.bf16 %v3474, %v3473
    %v3514 = vpack.c.bf16 %v3476, %v3475
    %v3515 = vpack.c.bf16 %v3478, %v3477
    %v3516 = vpack.c.bf16 %v3480, %v3479
    %v3517 = vpack.c.bf16 %v3482, %v3481
    %v3518 = vpack.c.bf16 %v3484, %v3483
    %v3519 = vpack.c.bf16 %v3486, %v3485
    %v3520 = vpack.c.bf16 %v3488, %v3487
    %3521 = vst [vmem:[#allocation3 + $0x10] sm:$0xff] %v3489
    %3522 = vst [vmem:[#allocation3 + $0x58] sm:$0xff] %v3490
    %3523 = vst [vmem:[#allocation3 + $0xa0] sm:$0xff] %v3491
    %3524 = vst [vmem:[#allocation3 + $0xe8] sm:$0xff] %v3492
    %3525 = vst [vmem:[#allocation3 + $0x130] sm:$0xff] %v3493
    %3526 = vst [vmem:[#allocation3 + $0x178] sm:$0xff] %v3494
    %3527 = vst [vmem:[#allocation3 + $0x1c0] sm:$0xff] %v3495
    %3528 = vst [vmem:[#allocation3 + $0x208] sm:$0xff] %v3496
    %3529 = vst [vmem:[#allocation3 + $0x250] sm:$0xff] %v3497
    %3530 = vst [vmem:[#allocation3 + $0x298] sm:$0xff] %v3498
    %3531 = vst [vmem:[#allocation3 + $0x2e0] sm:$0xff] %v3499
    %3532 = vst [vmem:[#allocation3 + $0x328] sm:$0xff] %v3500
    %3533 = vst [vmem:[#allocation3 + $0x370] sm:$0xff] %v3501
    %3534 = vst [vmem:[#allocation3 + $0x3b8] sm:$0xff] %v3502
    %3535 = vst [vmem:[#allocation3 + $0x400] sm:$0xff] %v3503
    %3536 = vst [vmem:[#allocation3 + $0x448] sm:$0xff] %v3504
    %3537 = vst [vmem:[#allocation3 + $0x490] sm:$0xff] %v3505
    %3538 = vst [vmem:[#allocation3 + $0x4d8] sm:$0xff] %v3506
    %3539 = vst [vmem:[#allocation3 + $0x520] sm:$0xff] %v3507
    %3540 = vst [vmem:[#allocation3 + $0x568] sm:$0xff] %v3508
    %3541 = vst [vmem:[#allocation3 + $0x5b0] sm:$0xff] %v3509
    %3542 = vst [vmem:[#allocation3 + $0x5f8] sm:$0xff] %v3510
    %3543 = vst [vmem:[#allocation3 + $0x640] sm:$0xff] %v3511
    %3544 = vst [vmem:[#allocation3 + $0x688] sm:$0xff] %v3512
    %3545 = vst [vmem:[#allocation3 + $0x6d0] sm:$0xff] %v3513
    %3546 = vst [vmem:[#allocation3 + $0x718] sm:$0xff] %v3514
    %3547 = vst [vmem:[#allocation3 + $0x760] sm:$0xff] %v3515
    %3548 = vst [vmem:[#allocation3 + $0x7a8] sm:$0xff] %v3516
    %3549 = vst [vmem:[#allocation3 + $0x7f0] sm:$0xff] %v3517
    %3550 = vst [vmem:[#allocation3 + $0x838] sm:$0xff] %v3518
    %3551 = vst [vmem:[#allocation3 + $0x880] sm:$0xff] %v3519
    %3552 = vst [vmem:[#allocation3 + $0x8c8] sm:$0xff] %v3520
    %v3553 = vld [vmem:[#allocation2 + $0x17] sm:$0xff]
    %v3554 = vld [vmem:[#allocation2 + $0x1f] sm:$0xff]
    %v3555 = vld [vmem:[#allocation2 + $0x27] sm:$0xff]
    %v3556 = vld [vmem:[#allocation2 + $0x2f] sm:$0xff]
    %v3557 = vld [vmem:[#allocation2 + $0x37] sm:$0xff]
    %v3558 = vld [vmem:[#allocation2 + $0x3f] sm:$0xff]
    %v3559 = vld [vmem:[#allocation2 + $0x47] sm:$0xff]
    %v3560 = vld [vmem:[#allocation2 + $0x4f] sm:$0xff]
    %v3561 = vld [vmem:[#allocation2 + $0x57] sm:$0xff]
    %v3562 = vld [vmem:[#allocation2 + $0x5f] sm:$0xff]
    %v3563 = vld [vmem:[#allocation2 + $0x67] sm:$0xff]
    %v3564 = vld [vmem:[#allocation2 + $0x6f] sm:$0xff]
    %v3565 = vld [vmem:[#allocation2 + $0x77] sm:$0xff]
    %v3566 = vld [vmem:[#allocation2 + $0x7f] sm:$0xff]
    %v3567 = vld [vmem:[#allocation2 + $0x87] sm:$0xff]
    %v3568 = vld [vmem:[#allocation2 + $0x8f] sm:$0xff]
    %v3569 = vld [vmem:[#allocation2 + $0x97] sm:$0xff]
    %v3570 = vld [vmem:[#allocation2 + $0x9f] sm:$0xff]
    %v3571 = vld [vmem:[#allocation2 + $0xa7] sm:$0xff]
    %v3572 = vld [vmem:[#allocation2 + $0xaf] sm:$0xff]
    %v3573 = vld [vmem:[#allocation2 + $0xb7] sm:$0xff]
    %v3574 = vld [vmem:[#allocation2 + $0xbf] sm:$0xff]
    %v3575 = vld [vmem:[#allocation2 + $0xc7] sm:$0xff]
    %v3576 = vld [vmem:[#allocation2 + $0xcf] sm:$0xff]
    %v3577 = vld [vmem:[#allocation2 + $0xd7] sm:$0xff]
    %v3578 = vld [vmem:[#allocation2 + $0xdf] sm:$0xff]
    %v3579 = vld [vmem:[#allocation2 + $0xe7] sm:$0xff]
    %v3580 = vld [vmem:[#allocation2 + $0xef] sm:$0xff]
    %v3581 = vld [vmem:[#allocation2 + $0xf7] sm:$0xff]
    %v3582 = vld [vmem:[#allocation2 + $0xff] sm:$0xff]
    %v3583 = vld [vmem:[#allocation2 + $0x107] sm:$0xff]
    %v3584 = vld [vmem:[#allocation2 + $0x10f] sm:$0xff]
    %v3585 = vld [vmem:[#allocation2 + $0x117] sm:$0xff]
    %v3586 = vld [vmem:[#allocation2 + $0x11f] sm:$0xff]
    %v3587 = vld [vmem:[#allocation2 + $0x127] sm:$0xff]
    %v3588 = vld [vmem:[#allocation2 + $0x12f] sm:$0xff]
    %v3589 = vld [vmem:[#allocation2 + $0x137] sm:$0xff]
    %v3590 = vld [vmem:[#allocation2 + $0x13f] sm:$0xff]
    %v3591 = vld [vmem:[#allocation2 + $0x147] sm:$0xff]
    %v3592 = vld [vmem:[#allocation2 + $0x14f] sm:$0xff]
    %v3593 = vld [vmem:[#allocation2 + $0x157] sm:$0xff]
    %v3594 = vld [vmem:[#allocation2 + $0x15f] sm:$0xff]
    %v3595 = vld [vmem:[#allocation2 + $0x167] sm:$0xff]
    %v3596 = vld [vmem:[#allocation2 + $0x16f] sm:$0xff]
    %v3597 = vld [vmem:[#allocation2 + $0x177] sm:$0xff]
    %v3598 = vld [vmem:[#allocation2 + $0x17f] sm:$0xff]
    %v3599 = vld [vmem:[#allocation2 + $0x187] sm:$0xff]
    %v3600 = vld [vmem:[#allocation2 + $0x18f] sm:$0xff]
    %v3601 = vld [vmem:[#allocation2 + $0x197] sm:$0xff]
    %v3602 = vld [vmem:[#allocation2 + $0x19f] sm:$0xff]
    %v3603 = vld [vmem:[#allocation2 + $0x1a7] sm:$0xff]
    %v3604 = vld [vmem:[#allocation2 + $0x1af] sm:$0xff]
    %v3605 = vld [vmem:[#allocation2 + $0x1b7] sm:$0xff]
    %v3606 = vld [vmem:[#allocation2 + $0x1bf] sm:$0xff]
    %v3607 = vld [vmem:[#allocation2 + $0x1c7] sm:$0xff]
    %v3608 = vld [vmem:[#allocation2 + $0x1cf] sm:$0xff]
    %v3609 = vld [vmem:[#allocation2 + $0x1d7] sm:$0xff]
    %v3610 = vld [vmem:[#allocation2 + $0x1df] sm:$0xff]
    %v3611 = vld [vmem:[#allocation2 + $0x1e7] sm:$0xff]
    %v3612 = vld [vmem:[#allocation2 + $0x1ef] sm:$0xff]
    %v3613 = vld [vmem:[#allocation2 + $0x1f7] sm:$0xff]
    %v3614 = vld [vmem:[#allocation2 + $0x1ff] sm:$0xff]
    %v3615 = vld [vmem:[#allocation2 + $0x207] sm:$0xff]
    %v3616 = vld [vmem:[#allocation2 + $0x20f] sm:$0xff]
    %3618 = vset.pattern.permute.xlu0 0
    %3619 = vperm.xlu0 %3618, %v1633
    %v3620 = vpop.permute.xlu0 %3619
    %3623 = vset.pattern.permute.xlu0 0
    %3624 = vperm.xlu0 %3623, %v1634
    %v3625 = vpop.permute.xlu0 %3624
    %3628 = vset.pattern.permute.xlu0 0
    %3629 = vperm.xlu0 %3628, %v1635
    %v3630 = vpop.permute.xlu0 %3629
    %3633 = vset.pattern.permute.xlu0 0
    %3634 = vperm.xlu0 %3633, %v1636
    %v3635 = vpop.permute.xlu0 %3634
    %3638 = vset.pattern.permute.xlu0 0
    %3639 = vperm.xlu0 %3638, %v1637
    %v3640 = vpop.permute.xlu0 %3639
    %3643 = vset.pattern.permute.xlu0 0
    %3644 = vperm.xlu0 %3643, %v1638
    %v3645 = vpop.permute.xlu0 %3644
    %3648 = vset.pattern.permute.xlu0 0
    %3649 = vperm.xlu0 %3648, %v1639
    %v3650 = vpop.permute.xlu0 %3649
    %3653 = vset.pattern.permute.xlu0 0
    %3654 = vperm.xlu0 %3653, %v1640
    %v3655 = vpop.permute.xlu0 %3654
    %3658 = vset.pattern.permute.xlu0 0
    %3659 = vperm.xlu0 %3658, %v1641
    %v3660 = vpop.permute.xlu0 %3659
    %3663 = vset.pattern.permute.xlu0 0
    %3664 = vperm.xlu0 %3663, %v1642
    %v3665 = vpop.permute.xlu0 %3664
    %3668 = vset.pattern.permute.xlu0 0
    %3669 = vperm.xlu0 %3668, %v1643
    %v3670 = vpop.permute.xlu0 %3669
    %3673 = vset.pattern.permute.xlu0 0
    %3674 = vperm.xlu0 %3673, %v1644
    %v3675 = vpop.permute.xlu0 %3674
    %3678 = vset.pattern.permute.xlu0 0
    %3679 = vperm.xlu0 %3678, %v1645
    %v3680 = vpop.permute.xlu0 %3679
    %3683 = vset.pattern.permute.xlu0 0
    %3684 = vperm.xlu0 %3683, %v1646
    %v3685 = vpop.permute.xlu0 %3684
    %3688 = vset.pattern.permute.xlu0 0
    %3689 = vperm.xlu0 %3688, %v1647
    %v3690 = vpop.permute.xlu0 %3689
    %3693 = vset.pattern.permute.xlu0 0
    %3694 = vperm.xlu0 %3693, %v1648
    %v3695 = vpop.permute.xlu0 %3694
    %3698 = vset.pattern.permute.xlu0 0
    %3699 = vperm.xlu0 %3698, %v1649
    %v3700 = vpop.permute.xlu0 %3699
    %3703 = vset.pattern.permute.xlu0 0
    %3704 = vperm.xlu0 %3703, %v1650
    %v3705 = vpop.permute.xlu0 %3704
    %3708 = vset.pattern.permute.xlu0 0
    %3709 = vperm.xlu0 %3708, %v1651
    %v3710 = vpop.permute.xlu0 %3709
    %3713 = vset.pattern.permute.xlu0 0
    %3714 = vperm.xlu0 %3713, %v1652
    %v3715 = vpop.permute.xlu0 %3714
    %3718 = vset.pattern.permute.xlu0 0
    %3719 = vperm.xlu0 %3718, %v1653
    %v3720 = vpop.permute.xlu0 %3719
    %3723 = vset.pattern.permute.xlu0 0
    %3724 = vperm.xlu0 %3723, %v1654
    %v3725 = vpop.permute.xlu0 %3724
    %3728 = vset.pattern.permute.xlu0 0
    %3729 = vperm.xlu0 %3728, %v1655
    %v3730 = vpop.permute.xlu0 %3729
    %3733 = vset.pattern.permute.xlu0 0
    %3734 = vperm.xlu0 %3733, %v1656
    %v3735 = vpop.permute.xlu0 %3734
    %3738 = vset.pattern.permute.xlu0 0
    %3739 = vperm.xlu0 %3738, %v1657
    %v3740 = vpop.permute.xlu0 %3739
    %3743 = vset.pattern.permute.xlu0 0
    %3744 = vperm.xlu0 %3743, %v1658
    %v3745 = vpop.permute.xlu0 %3744
    %3748 = vset.pattern.permute.xlu0 0
    %3749 = vperm.xlu0 %3748, %v1659
    %v3750 = vpop.permute.xlu0 %3749
    %3753 = vset.pattern.permute.xlu0 0
    %3754 = vperm.xlu0 %3753, %v1660
    %v3755 = vpop.permute.xlu0 %3754
    %3758 = vset.pattern.permute.xlu0 0
    %3759 = vperm.xlu0 %3758, %v1661
    %v3760 = vpop.permute.xlu0 %3759
    %3763 = vset.pattern.permute.xlu0 0
    %3764 = vperm.xlu0 %3763, %v1662
    %v3765 = vpop.permute.xlu0 %3764
    %3768 = vset.pattern.permute.xlu0 0
    %3769 = vperm.xlu0 %3768, %v1663
    %v3770 = vpop.permute.xlu0 %3769
    %3773 = vset.pattern.permute.xlu0 0
    %3774 = vperm.xlu0 %3773, %v1664
    %v3775 = vpop.permute.xlu0 %3774
    %3778 = vset.pattern.permute.xlu0 0
    %3779 = vperm.xlu0 %3778, %v1665
    %v3780 = vpop.permute.xlu0 %3779
    %3783 = vset.pattern.permute.xlu0 0
    %3784 = vperm.xlu0 %3783, %v1666
    %v3785 = vpop.permute.xlu0 %3784
    %3788 = vset.pattern.permute.xlu0 0
    %3789 = vperm.xlu0 %3788, %v1667
    %v3790 = vpop.permute.xlu0 %3789
    %3793 = vset.pattern.permute.xlu0 0
    %3794 = vperm.xlu0 %3793, %v1668
    %v3795 = vpop.permute.xlu0 %3794
    %3798 = vset.pattern.permute.xlu0 0
    %3799 = vperm.xlu0 %3798, %v1669
    %v3800 = vpop.permute.xlu0 %3799
    %3803 = vset.pattern.permute.xlu0 0
    %3804 = vperm.xlu0 %3803, %v1670
    %v3805 = vpop.permute.xlu0 %3804
    %3808 = vset.pattern.permute.xlu0 0
    %3809 = vperm.xlu0 %3808, %v1671
    %v3810 = vpop.permute.xlu0 %3809
    %3813 = vset.pattern.permute.xlu0 0
    %3814 = vperm.xlu0 %3813, %v1672
    %v3815 = vpop.permute.xlu0 %3814
    %3818 = vset.pattern.permute.xlu0 0
    %3819 = vperm.xlu0 %3818, %v1673
    %v3820 = vpop.permute.xlu0 %3819
    %3823 = vset.pattern.permute.xlu0 0
    %3824 = vperm.xlu0 %3823, %v1674
    %v3825 = vpop.permute.xlu0 %3824
    %3828 = vset.pattern.permute.xlu0 0
    %3829 = vperm.xlu0 %3828, %v1675
    %v3830 = vpop.permute.xlu0 %3829
    %3833 = vset.pattern.permute.xlu0 0
    %3834 = vperm.xlu0 %3833, %v1676
    %v3835 = vpop.permute.xlu0 %3834
    %3838 = vset.pattern.permute.xlu0 0
    %3839 = vperm.xlu0 %3838, %v1677
    %v3840 = vpop.permute.xlu0 %3839
    %3843 = vset.pattern.permute.xlu0 0
    %3844 = vperm.xlu0 %3843, %v1678
    %v3845 = vpop.permute.xlu0 %3844
    %3848 = vset.pattern.permute.xlu0 0
    %3849 = vperm.xlu0 %3848, %v1679
    %v3850 = vpop.permute.xlu0 %3849
    %3853 = vset.pattern.permute.xlu0 0
    %3854 = vperm.xlu0 %3853, %v1680
    %v3855 = vpop.permute.xlu0 %3854
    %3858 = vset.pattern.permute.xlu0 0
    %3859 = vperm.xlu0 %3858, %v1681
    %v3860 = vpop.permute.xlu0 %3859
    %3863 = vset.pattern.permute.xlu0 0
    %3864 = vperm.xlu0 %3863, %v1682
    %v3865 = vpop.permute.xlu0 %3864
    %3868 = vset.pattern.permute.xlu0 0
    %3869 = vperm.xlu0 %3868, %v1683
    %v3870 = vpop.permute.xlu0 %3869
    %3873 = vset.pattern.permute.xlu0 0
    %3874 = vperm.xlu0 %3873, %v1684
    %v3875 = vpop.permute.xlu0 %3874
    %3878 = vset.pattern.permute.xlu0 0
    %3879 = vperm.xlu0 %3878, %v1685
    %v3880 = vpop.permute.xlu0 %3879
    %3883 = vset.pattern.permute.xlu0 0
    %3884 = vperm.xlu0 %3883, %v1686
    %v3885 = vpop.permute.xlu0 %3884
    %3888 = vset.pattern.permute.xlu0 0
    %3889 = vperm.xlu0 %3888, %v1687
    %v3890 = vpop.permute.xlu0 %3889
    %3893 = vset.pattern.permute.xlu0 0
    %3894 = vperm.xlu0 %3893, %v1688
    %v3895 = vpop.permute.xlu0 %3894
    %3898 = vset.pattern.permute.xlu0 0
    %3899 = vperm.xlu0 %3898, %v1689
    %v3900 = vpop.permute.xlu0 %3899
    %3903 = vset.pattern.permute.xlu0 0
    %3904 = vperm.xlu0 %3903, %v1690
    %v3905 = vpop.permute.xlu0 %3904
    %3908 = vset.pattern.permute.xlu0 0
    %3909 = vperm.xlu0 %3908, %v1691
    %v3910 = vpop.permute.xlu0 %3909
    %3913 = vset.pattern.permute.xlu0 0
    %3914 = vperm.xlu0 %3913, %v1692
    %v3915 = vpop.permute.xlu0 %3914
    %3918 = vset.pattern.permute.xlu0 0
    %3919 = vperm.xlu0 %3918, %v1693
    %v3920 = vpop.permute.xlu0 %3919
    %3923 = vset.pattern.permute.xlu0 0
    %3924 = vperm.xlu0 %3923, %v1694
    %v3925 = vpop.permute.xlu0 %3924
    %3928 = vset.pattern.permute.xlu0 0
    %3929 = vperm.xlu0 %3928, %v1695
    %v3930 = vpop.permute.xlu0 %3929
    %3933 = vset.pattern.permute.xlu0 0
    %3934 = vperm.xlu0 %3933, %v1696
    %v3935 = vpop.permute.xlu0 %3934
    %v3937 = vmul.f32 %v3553, %v3620
    %v3938 = vmul.f32 %v3554, %v3625
    %v3939 = vmul.f32 %v3555, %v3630
    %v3940 = vmul.f32 %v3556, %v3635
    %v3941 = vmul.f32 %v3557, %v3640
    %v3942 = vmul.f32 %v3558, %v3645
    %v3943 = vmul.f32 %v3559, %v3650
    %v3944 = vmul.f32 %v3560, %v3655
    %v3945 = vmul.f32 %v3561, %v3660
    %v3946 = vmul.f32 %v3562, %v3665
    %v3947 = vmul.f32 %v3563, %v3670
    %v3948 = vmul.f32 %v3564, %v3675
    %v3949 = vmul.f32 %v3565, %v3680
    %v3950 = vmul.f32 %v3566, %v3685
    %v3951 = vmul.f32 %v3567, %v3690
    %v3952 = vmul.f32 %v3568, %v3695
    %v3953 = vmul.f32 %v3569, %v3700
    %v3954 = vmul.f32 %v3570, %v3705
    %v3955 = vmul.f32 %v3571, %v3710
    %v3956 = vmul.f32 %v3572, %v3715
    %v3957 = vmul.f32 %v3573, %v3720
    %v3958 = vmul.f32 %v3574, %v3725
    %v3959 = vmul.f32 %v3575, %v3730
    %v3960 = vmul.f32 %v3576, %v3735
    %v3961 = vmul.f32 %v3577, %v3740
    %v3962 = vmul.f32 %v3578, %v3745
    %v3963 = vmul.f32 %v3579, %v3750
    %v3964 = vmul.f32 %v3580, %v3755
    %v3965 = vmul.f32 %v3581, %v3760
    %v3966 = vmul.f32 %v3582, %v3765
    %v3967 = vmul.f32 %v3583, %v3770
    %v3968 = vmul.f32 %v3584, %v3775
    %v3969 = vmul.f32 %v3585, %v3780
    %v3970 = vmul.f32 %v3586, %v3785
    %v3971 = vmul.f32 %v3587, %v3790
    %v3972 = vmul.f32 %v3588, %v3795
    %v3973 = vmul.f32 %v3589, %v3800
    %v3974 = vmul.f32 %v3590, %v3805
    %v3975 = vmul.f32 %v3591, %v3810
    %v3976 = vmul.f32 %v3592, %v3815
    %v3977 = vmul.f32 %v3593, %v3820
    %v3978 = vmul.f32 %v3594, %v3825
    %v3979 = vmul.f32 %v3595, %v3830
    %v3980 = vmul.f32 %v3596, %v3835
    %v3981 = vmul.f32 %v3597, %v3840
    %v3982 = vmul.f32 %v3598, %v3845
    %v3983 = vmul.f32 %v3599, %v3850
    %v3984 = vmul.f32 %v3600, %v3855
    %v3985 = vmul.f32 %v3601, %v3860
    %v3986 = vmul.f32 %v3602, %v3865
    %v3987 = vmul.f32 %v3603, %v3870
    %v3988 = vmul.f32 %v3604, %v3875
    %v3989 = vmul.f32 %v3605, %v3880
    %v3990 = vmul.f32 %v3606, %v3885
    %v3991 = vmul.f32 %v3607, %v3890
    %v3992 = vmul.f32 %v3608, %v3895
    %v3993 = vmul.f32 %v3609, %v3900
    %v3994 = vmul.f32 %v3610, %v3905
    %v3995 = vmul.f32 %v3611, %v3910
    %v3996 = vmul.f32 %v3612, %v3915
    %v3997 = vmul.f32 %v3613, %v3920
    %v3998 = vmul.f32 %v3614, %v3925
    %v3999 = vmul.f32 %v3615, %v3930
    %v4000 = vmul.f32 %v3616, %v3935
    %v4001 = vpack.c.bf16 %v3938, %v3937
    %v4002 = vpack.c.bf16 %v3940, %v3939
    %v4003 = vpack.c.bf16 %v3942, %v3941
    %v4004 = vpack.c.bf16 %v3944, %v3943
    %v4005 = vpack.c.bf16 %v3946, %v3945
    %v4006 = vpack.c.bf16 %v3948, %v3947
    %v4007 = vpack.c.bf16 %v3950, %v3949
    %v4008 = vpack.c.bf16 %v3952, %v3951
    %v4009 = vpack.c.bf16 %v3954, %v3953
    %v4010 = vpack.c.bf16 %v3956, %v3955
    %v4011 = vpack.c.bf16 %v3958, %v3957
    %v4012 = vpack.c.bf16 %v3960, %v3959
    %v4013 = vpack.c.bf16 %v3962, %v3961
    %v4014 = vpack.c.bf16 %v3964, %v3963
    %v4015 = vpack.c.bf16 %v3966, %v3965
    %v4016 = vpack.c.bf16 %v3968, %v3967
    %v4017 = vpack.c.bf16 %v3970, %v3969
    %v4018 = vpack.c.bf16 %v3972, %v3971
    %v4019 = vpack.c.bf16 %v3974, %v3973
    %v4020 = vpack.c.bf16 %v3976, %v3975
    %v4021 = vpack.c.bf16 %v3978, %v3977
    %v4022 = vpack.c.bf16 %v3980, %v3979
    %v4023 = vpack.c.bf16 %v3982, %v3981
    %v4024 = vpack.c.bf16 %v3984, %v3983
    %v4025 = vpack.c.bf16 %v3986, %v3985
    %v4026 = vpack.c.bf16 %v3988, %v3987
    %v4027 = vpack.c.bf16 %v3990, %v3989
    %v4028 = vpack.c.bf16 %v3992, %v3991
    %v4029 = vpack.c.bf16 %v3994, %v3993
    %v4030 = vpack.c.bf16 %v3996, %v3995
    %v4031 = vpack.c.bf16 %v3998, %v3997
    %v4032 = vpack.c.bf16 %v4000, %v3999
    %4033 = vst [vmem:[#allocation3 + $0x18] sm:$0xff] %v4001
    %4034 = vst [vmem:[#allocation3 + $0x60] sm:$0xff] %v4002
    %4035 = vst [vmem:[#allocation3 + $0xa8] sm:$0xff] %v4003
    %4036 = vst [vmem:[#allocation3 + $0xf0] sm:$0xff] %v4004
    %4037 = vst [vmem:[#allocation3 + $0x138] sm:$0xff] %v4005
    %4038 = vst [vmem:[#allocation3 + $0x180] sm:$0xff] %v4006
    %4039 = vst [vmem:[#allocation3 + $0x1c8] sm:$0xff] %v4007
    %4040 = vst [vmem:[#allocation3 + $0x210] sm:$0xff] %v4008
    %4041 = vst [vmem:[#allocation3 + $0x258] sm:$0xff] %v4009
    %4042 = vst [vmem:[#allocation3 + $0x2a0] sm:$0xff] %v4010
    %4043 = vst [vmem:[#allocation3 + $0x2e8] sm:$0xff] %v4011
    %4044 = vst [vmem:[#allocation3 + $0x330] sm:$0xff] %v4012
    %4045 = vst [vmem:[#allocation3 + $0x378] sm:$0xff] %v4013
    %4046 = vst [vmem:[#allocation3 + $0x3c0] sm:$0xff] %v4014
    %4047 = vst [vmem:[#allocation3 + $0x408] sm:$0xff] %v4015
    %4048 = vst [vmem:[#allocation3 + $0x450] sm:$0xff] %v4016
    %4049 = vst [vmem:[#allocation3 + $0x498] sm:$0xff] %v4017
    %4050 = vst [vmem:[#allocation3 + $0x4e0] sm:$0xff] %v4018
    %4051 = vst [vmem:[#allocation3 + $0x528] sm:$0xff] %v4019
    %4052 = vst [vmem:[#allocation3 + $0x570] sm:$0xff] %v4020
    %4053 = vst [vmem:[#allocation3 + $0x5b8] sm:$0xff] %v4021
    %4054 = vst [vmem:[#allocation3 + $0x600] sm:$0xff] %v4022
    %4055 = vst [vmem:[#allocation3 + $0x648] sm:$0xff] %v4023
    %4056 = vst [vmem:[#allocation3 + $0x690] sm:$0xff] %v4024
    %4057 = vst [vmem:[#allocation3 + $0x6d8] sm:$0xff] %v4025
    %4058 = vst [vmem:[#allocation3 + $0x720] sm:$0xff] %v4026
    %4059 = vst [vmem:[#allocation3 + $0x768] sm:$0xff] %v4027
    %4060 = vst [vmem:[#allocation3 + $0x7b0] sm:$0xff] %v4028
    %4061 = vst [vmem:[#allocation3 + $0x7f8] sm:$0xff] %v4029
    %4062 = vst [vmem:[#allocation3 + $0x840] sm:$0xff] %v4030
    %4063 = vst [vmem:[#allocation3 + $0x888] sm:$0xff] %v4031
    %4064 = vst [vmem:[#allocation3 + $0x8d0] sm:$0xff] %v4032
    %v4065 = vld [vmem:[#allocation2 + $0x18] sm:$0xff]
    %v4066 = vld [vmem:[#allocation2 + $0x20] sm:$0xff]
    %v4067 = vld [vmem:[#allocation2 + $0x28] sm:$0xff]
    %v4068 = vld [vmem:[#allocation2 + $0x30] sm:$0xff]
    %v4069 = vld [vmem:[#allocation2 + $0x38] sm:$0xff]
    %v4070 = vld [vmem:[#allocation2 + $0x40] sm:$0xff]
    %v4071 = vld [vmem:[#allocation2 + $0x48] sm:$0xff]
    %v4072 = vld [vmem:[#allocation2 + $0x50] sm:$0xff]
    %v4073 = vld [vmem:[#allocation2 + $0x58] sm:$0xff]
    %v4074 = vld [vmem:[#allocation2 + $0x60] sm:$0xff]
    %v4075 = vld [vmem:[#allocation2 + $0x68] sm:$0xff]
    %v4076 = vld [vmem:[#allocation2 + $0x70] sm:$0xff]
    %v4077 = vld [vmem:[#allocation2 + $0x78] sm:$0xff]
    %v4078 = vld [vmem:[#allocation2 + $0x80] sm:$0xff]
    %v4079 = vld [vmem:[#allocation2 + $0x88] sm:$0xff]
    %v4080 = vld [vmem:[#allocation2 + $0x90] sm:$0xff]
    %v4081 = vld [vmem:[#allocation2 + $0x98] sm:$0xff]
    %v4082 = vld [vmem:[#allocation2 + $0xa0] sm:$0xff]
    %v4083 = vld [vmem:[#allocation2 + $0xa8] sm:$0xff]
    %v4084 = vld [vmem:[#allocation2 + $0xb0] sm:$0xff]
    %v4085 = vld [vmem:[#allocation2 + $0xb8] sm:$0xff]
    %v4086 = vld [vmem:[#allocation2 + $0xc0] sm:$0xff]
    %v4087 = vld [vmem:[#allocation2 + $0xc8] sm:$0xff]
    %v4088 = vld [vmem:[#allocation2 + $0xd0] sm:$0xff]
    %v4089 = vld [vmem:[#allocation2 + $0xd8] sm:$0xff]
    %v4090 = vld [vmem:[#allocation2 + $0xe0] sm:$0xff]
    %v4091 = vld [vmem:[#allocation2 + $0xe8] sm:$0xff]
    %v4092 = vld [vmem:[#allocation2 + $0xf0] sm:$0xff]
    %v4093 = vld [vmem:[#allocation2 + $0xf8] sm:$0xff]
    %v4094 = vld [vmem:[#allocation2 + $0x100] sm:$0xff]
    %v4095 = vld [vmem:[#allocation2 + $0x108] sm:$0xff]
    %v4096 = vld [vmem:[#allocation2 + $0x110] sm:$0xff]
    %v4097 = vld [vmem:[#allocation2 + $0x118] sm:$0xff]
    %v4098 = vld [vmem:[#allocation2 + $0x120] sm:$0xff]
    %v4099 = vld [vmem:[#allocation2 + $0x128] sm:$0xff]
    %v4100 = vld [vmem:[#allocation2 + $0x130] sm:$0xff]
    %v4101 = vld [vmem:[#allocation2 + $0x138] sm:$0xff]
    %v4102 = vld [vmem:[#allocation2 + $0x140] sm:$0xff]
    %v4103 = vld [vmem:[#allocation2 + $0x148] sm:$0xff]
    %v4104 = vld [vmem:[#allocation2 + $0x150] sm:$0xff]
    %v4105 = vld [vmem:[#allocation2 + $0x158] sm:$0xff]
    %v4106 = vld [vmem:[#allocation2 + $0x160] sm:$0xff]
    %v4107 = vld [vmem:[#allocation2 + $0x168] sm:$0xff]
    %v4108 = vld [vmem:[#allocation2 + $0x170] sm:$0xff]
    %v4109 = vld [vmem:[#allocation2 + $0x178] sm:$0xff]
    %v4110 = vld [vmem:[#allocation2 + $0x180] sm:$0xff]
    %v4111 = vld [vmem:[#allocation2 + $0x188] sm:$0xff]
    %v4112 = vld [vmem:[#allocation2 + $0x190] sm:$0xff]
    %v4113 = vld [vmem:[#allocation2 + $0x198] sm:$0xff]
    %v4114 = vld [vmem:[#allocation2 + $0x1a0] sm:$0xff]
    %v4115 = vld [vmem:[#allocation2 + $0x1a8] sm:$0xff]
    %v4116 = vld [vmem:[#allocation2 + $0x1b0] sm:$0xff]
    %v4117 = vld [vmem:[#allocation2 + $0x1b8] sm:$0xff]
    %v4118 = vld [vmem:[#allocation2 + $0x1c0] sm:$0xff]
    %v4119 = vld [vmem:[#allocation2 + $0x1c8] sm:$0xff]
    %v4120 = vld [vmem:[#allocation2 + $0x1d0] sm:$0xff]
    %v4121 = vld [vmem:[#allocation2 + $0x1d8] sm:$0xff]
    %v4122 = vld [vmem:[#allocation2 + $0x1e0] sm:$0xff]
    %v4123 = vld [vmem:[#allocation2 + $0x1e8] sm:$0xff]
    %v4124 = vld [vmem:[#allocation2 + $0x1f0] sm:$0xff]
    %v4125 = vld [vmem:[#allocation2 + $0x1f8] sm:$0xff]
    %v4126 = vld [vmem:[#allocation2 + $0x200] sm:$0xff]
    %v4127 = vld [vmem:[#allocation2 + $0x208] sm:$0xff]
    %v4128 = vld [vmem:[#allocation2 + $0x210] sm:$0xff]
    %v4129 = vpack.c.bf16 %v4066, %v4065
    %v4130 = vpack.c.bf16 %v4068, %v4067
    %v4131 = vpack.c.bf16 %v4070, %v4069
    %v4132 = vpack.c.bf16 %v4072, %v4071
    %v4133 = vpack.c.bf16 %v4074, %v4073
    %v4134 = vpack.c.bf16 %v4076, %v4075
    %v4135 = vpack.c.bf16 %v4078, %v4077
    %v4136 = vpack.c.bf16 %v4080, %v4079
    %v4137 = vpack.c.bf16 %v4082, %v4081
    %v4138 = vpack.c.bf16 %v4084, %v4083
    %v4139 = vpack.c.bf16 %v4086, %v4085
    %v4140 = vpack.c.bf16 %v4088, %v4087
    %v4141 = vpack.c.bf16 %v4090, %v4089
    %v4142 = vpack.c.bf16 %v4092, %v4091
    %v4143 = vpack.c.bf16 %v4094, %v4093
    %v4144 = vpack.c.bf16 %v4096, %v4095
    %v4145 = vpack.c.bf16 %v4098, %v4097
    %v4146 = vpack.c.bf16 %v4100, %v4099
    %v4147 = vpack.c.bf16 %v4102, %v4101
    %v4148 = vpack.c.bf16 %v4104, %v4103
    %v4149 = vpack.c.bf16 %v4106, %v4105
    %v4150 = vpack.c.bf16 %v4108, %v4107
    %v4151 = vpack.c.bf16 %v4110, %v4109
    %v4152 = vpack.c.bf16 %v4112, %v4111
    %v4153 = vpack.c.bf16 %v4114, %v4113
    %v4154 = vpack.c.bf16 %v4116, %v4115
    %v4155 = vpack.c.bf16 %v4118, %v4117
    %v4156 = vpack.c.bf16 %v4120, %v4119
    %v4157 = vpack.c.bf16 %v4122, %v4121
    %v4158 = vpack.c.bf16 %v4124, %v4123
    %v4159 = vpack.c.bf16 %v4126, %v4125
    %v4160 = vpack.c.bf16 %v4128, %v4127
    %4161 = vst [vmem:[#allocation3 + $0x20] sm:$0xff] %v4129
    %4162 = vst [vmem:[#allocation3 + $0x68] sm:$0xff] %v4130
    %4163 = vst [vmem:[#allocation3 + $0xb0] sm:$0xff] %v4131
    %4164 = vst [vmem:[#allocation3 + $0xf8] sm:$0xff] %v4132
    %4165 = vst [vmem:[#allocation3 + $0x140] sm:$0xff] %v4133
    %4166 = vst [vmem:[#allocation3 + $0x188] sm:$0xff] %v4134
    %4167 = vst [vmem:[#allocation3 + $0x1d0] sm:$0xff] %v4135
    %4168 = vst [vmem:[#allocation3 + $0x218] sm:$0xff] %v4136
    %4169 = vst [vmem:[#allocation3 + $0x260] sm:$0xff] %v4137
    %4170 = vst [vmem:[#allocation3 + $0x2a8] sm:$0xff] %v4138
    %4171 = vst [vmem:[#allocation3 + $0x2f0] sm:$0xff] %v4139
    %4172 = vst [vmem:[#allocation3 + $0x338] sm:$0xff] %v4140
    %4173 = vst [vmem:[#allocation3 + $0x380] sm:$0xff] %v4141
    %4174 = vst [vmem:[#allocation3 + $0x3c8] sm:$0xff] %v4142
    %4175 = vst [vmem:[#allocation3 + $0x410] sm:$0xff] %v4143
    %4176 = vst [vmem:[#allocation3 + $0x458] sm:$0xff] %v4144
    %4177 = vst [vmem:[#allocation3 + $0x4a0] sm:$0xff] %v4145
    %4178 = vst [vmem:[#allocation3 + $0x4e8] sm:$0xff] %v4146
    %4179 = vst [vmem:[#allocation3 + $0x530] sm:$0xff] %v4147
    %4180 = vst [vmem:[#allocation3 + $0x578] sm:$0xff] %v4148
    %4181 = vst [vmem:[#allocation3 + $0x5c0] sm:$0xff] %v4149
    %4182 = vst [vmem:[#allocation3 + $0x608] sm:$0xff] %v4150
    %4183 = vst [vmem:[#allocation3 + $0x650] sm:$0xff] %v4151
    %4184 = vst [vmem:[#allocation3 + $0x698] sm:$0xff] %v4152
    %4185 = vst [vmem:[#allocation3 + $0x6e0] sm:$0xff] %v4153
    %4186 = vst [vmem:[#allocation3 + $0x728] sm:$0xff] %v4154
    %4187 = vst [vmem:[#allocation3 + $0x770] sm:$0xff] %v4155
    %4188 = vst [vmem:[#allocation3 + $0x7b8] sm:$0xff] %v4156
    %4189 = vst [vmem:[#allocation3 + $0x800] sm:$0xff] %v4157
    %4190 = vst [vmem:[#allocation3 + $0x848] sm:$0xff] %v4158
    %4191 = vst [vmem:[#allocation3 + $0x890] sm:$0xff] %v4159
    %4192 = vst [vmem:[#allocation3 + $0x8d8] sm:$0xff] %v4160
    %v4193 = vld [vmem:[#allocation2 + $0x19] sm:$0xff]
    %v4194 = vld [vmem:[#allocation2 + $0x21] sm:$0xff]
    %v4195 = vld [vmem:[#allocation2 + $0x29] sm:$0xff]
    %v4196 = vld [vmem:[#allocation2 + $0x31] sm:$0xff]
    %v4197 = vld [vmem:[#allocation2 + $0x39] sm:$0xff]
    %v4198 = vld [vmem:[#allocation2 + $0x41] sm:$0xff]
    %v4199 = vld [vmem:[#allocation2 + $0x49] sm:$0xff]
    %v4200 = vld [vmem:[#allocation2 + $0x51] sm:$0xff]
    %v4201 = vld [vmem:[#allocation2 + $0x59] sm:$0xff]
    %v4202 = vld [vmem:[#allocation2 + $0x61] sm:$0xff]
    %v4203 = vld [vmem:[#allocation2 + $0x69] sm:$0xff]
    %v4204 = vld [vmem:[#allocation2 + $0x71] sm:$0xff]
    %v4205 = vld [vmem:[#allocation2 + $0x79] sm:$0xff]
    %v4206 = vld [vmem:[#allocation2 + $0x81] sm:$0xff]
    %v4207 = vld [vmem:[#allocation2 + $0x89] sm:$0xff]
    %v4208 = vld [vmem:[#allocation2 + $0x91] sm:$0xff]
    %v4209 = vld [vmem:[#allocation2 + $0x99] sm:$0xff]
    %v4210 = vld [vmem:[#allocation2 + $0xa1] sm:$0xff]
    %v4211 = vld [vmem:[#allocation2 + $0xa9] sm:$0xff]
    %v4212 = vld [vmem:[#allocation2 + $0xb1] sm:$0xff]
    %v4213 = vld [vmem:[#allocation2 + $0xb9] sm:$0xff]
    %v4214 = vld [vmem:[#allocation2 + $0xc1] sm:$0xff]
    %v4215 = vld [vmem:[#allocation2 + $0xc9] sm:$0xff]
    %v4216 = vld [vmem:[#allocation2 + $0xd1] sm:$0xff]
    %v4217 = vld [vmem:[#allocation2 + $0xd9] sm:$0xff]
    %v4218 = vld [vmem:[#allocation2 + $0xe1] sm:$0xff]
    %v4219 = vld [vmem:[#allocation2 + $0xe9] sm:$0xff]
    %v4220 = vld [vmem:[#allocation2 + $0xf1] sm:$0xff]
    %v4221 = vld [vmem:[#allocation2 + $0xf9] sm:$0xff]
    %v4222 = vld [vmem:[#allocation2 + $0x101] sm:$0xff]
    %v4223 = vld [vmem:[#allocation2 + $0x109] sm:$0xff]
    %v4224 = vld [vmem:[#allocation2 + $0x111] sm:$0xff]
    %v4225 = vld [vmem:[#allocation2 + $0x119] sm:$0xff]
    %v4226 = vld [vmem:[#allocation2 + $0x121] sm:$0xff]
    %v4227 = vld [vmem:[#allocation2 + $0x129] sm:$0xff]
    %v4228 = vld [vmem:[#allocation2 + $0x131] sm:$0xff]
    %v4229 = vld [vmem:[#allocation2 + $0x139] sm:$0xff]
    %v4230 = vld [vmem:[#allocation2 + $0x141] sm:$0xff]
    %v4231 = vld [vmem:[#allocation2 + $0x149] sm:$0xff]
    %v4232 = vld [vmem:[#allocation2 + $0x151] sm:$0xff]
    %v4233 = vld [vmem:[#allocation2 + $0x159] sm:$0xff]
    %v4234 = vld [vmem:[#allocation2 + $0x161] sm:$0xff]
    %v4235 = vld [vmem:[#allocation2 + $0x169] sm:$0xff]
    %v4236 = vld [vmem:[#allocation2 + $0x171] sm:$0xff]
    %v4237 = vld [vmem:[#allocation2 + $0x179] sm:$0xff]
    %v4238 = vld [vmem:[#allocation2 + $0x181] sm:$0xff]
    %v4239 = vld [vmem:[#allocation2 + $0x189] sm:$0xff]
    %v4240 = vld [vmem:[#allocation2 + $0x191] sm:$0xff]
    %v4241 = vld [vmem:[#allocation2 + $0x199] sm:$0xff]
    %v4242 = vld [vmem:[#allocation2 + $0x1a1] sm:$0xff]
    %v4243 = vld [vmem:[#allocation2 + $0x1a9] sm:$0xff]
    %v4244 = vld [vmem:[#allocation2 + $0x1b1] sm:$0xff]
    %v4245 = vld [vmem:[#allocation2 + $0x1b9] sm:$0xff]
    %v4246 = vld [vmem:[#allocation2 + $0x1c1] sm:$0xff]
    %v4247 = vld [vmem:[#allocation2 + $0x1c9] sm:$0xff]
    %v4248 = vld [vmem:[#allocation2 + $0x1d1] sm:$0xff]
    %v4249 = vld [vmem:[#allocation2 + $0x1d9] sm:$0xff]
    %v4250 = vld [vmem:[#allocation2 + $0x1e1] sm:$0xff]
    %v4251 = vld [vmem:[#allocation2 + $0x1e9] sm:$0xff]
    %v4252 = vld [vmem:[#allocation2 + $0x1f1] sm:$0xff]
    %v4253 = vld [vmem:[#allocation2 + $0x1f9] sm:$0xff]
    %v4254 = vld [vmem:[#allocation2 + $0x201] sm:$0xff]
    %v4255 = vld [vmem:[#allocation2 + $0x209] sm:$0xff]
    %v4256 = vld [vmem:[#allocation2 + $0x211] sm:$0xff]
    %4258 = vset.pattern.permute.xlu0 0
    %4259 = vperm.xlu0 %4258, %v1825
    %v4260 = vpop.permute.xlu0 %4259
    %4263 = vset.pattern.permute.xlu0 0
    %4264 = vperm.xlu0 %4263, %v1826
    %v4265 = vpop.permute.xlu0 %4264
    %4268 = vset.pattern.permute.xlu0 0
    %4269 = vperm.xlu0 %4268, %v1827
    %v4270 = vpop.permute.xlu0 %4269
    %4273 = vset.pattern.permute.xlu0 0
    %4274 = vperm.xlu0 %4273, %v1828
    %v4275 = vpop.permute.xlu0 %4274
    %4278 = vset.pattern.permute.xlu0 0
    %4279 = vperm.xlu0 %4278, %v1829
    %v4280 = vpop.permute.xlu0 %4279
    %4283 = vset.pattern.permute.xlu0 0
    %4284 = vperm.xlu0 %4283, %v1830
    %v4285 = vpop.permute.xlu0 %4284
    %4288 = vset.pattern.permute.xlu0 0
    %4289 = vperm.xlu0 %4288, %v1831
    %v4290 = vpop.permute.xlu0 %4289
    %4293 = vset.pattern.permute.xlu0 0
    %4294 = vperm.xlu0 %4293, %v1832
    %v4295 = vpop.permute.xlu0 %4294
    %4298 = vset.pattern.permute.xlu0 0
    %4299 = vperm.xlu0 %4298, %v1833
    %v4300 = vpop.permute.xlu0 %4299
    %4303 = vset.pattern.permute.xlu0 0
    %4304 = vperm.xlu0 %4303, %v1834
    %v4305 = vpop.permute.xlu0 %4304
    %4308 = vset.pattern.permute.xlu0 0
    %4309 = vperm.xlu0 %4308, %v1835
    %v4310 = vpop.permute.xlu0 %4309
    %4313 = vset.pattern.permute.xlu0 0
    %4314 = vperm.xlu0 %4313, %v1836
    %v4315 = vpop.permute.xlu0 %4314
    %4318 = vset.pattern.permute.xlu0 0
    %4319 = vperm.xlu0 %4318, %v1837
    %v4320 = vpop.permute.xlu0 %4319
    %4323 = vset.pattern.permute.xlu0 0
    %4324 = vperm.xlu0 %4323, %v1838
    %v4325 = vpop.permute.xlu0 %4324
    %4328 = vset.pattern.permute.xlu0 0
    %4329 = vperm.xlu0 %4328, %v1839
    %v4330 = vpop.permute.xlu0 %4329
    %4333 = vset.pattern.permute.xlu0 0
    %4334 = vperm.xlu0 %4333, %v1840
    %v4335 = vpop.permute.xlu0 %4334
    %4338 = vset.pattern.permute.xlu0 0
    %4339 = vperm.xlu0 %4338, %v1841
    %v4340 = vpop.permute.xlu0 %4339
    %4343 = vset.pattern.permute.xlu0 0
    %4344 = vperm.xlu0 %4343, %v1842
    %v4345 = vpop.permute.xlu0 %4344
    %4348 = vset.pattern.permute.xlu0 0
    %4349 = vperm.xlu0 %4348, %v1843
    %v4350 = vpop.permute.xlu0 %4349
    %4353 = vset.pattern.permute.xlu0 0
    %4354 = vperm.xlu0 %4353, %v1844
    %v4355 = vpop.permute.xlu0 %4354
    %4358 = vset.pattern.permute.xlu0 0
    %4359 = vperm.xlu0 %4358, %v1845
    %v4360 = vpop.permute.xlu0 %4359
    %4363 = vset.pattern.permute.xlu0 0
    %4364 = vperm.xlu0 %4363, %v1846
    %v4365 = vpop.permute.xlu0 %4364
    %4368 = vset.pattern.permute.xlu0 0
    %4369 = vperm.xlu0 %4368, %v1847
    %v4370 = vpop.permute.xlu0 %4369
    %4373 = vset.pattern.permute.xlu0 0
    %4374 = vperm.xlu0 %4373, %v1848
    %v4375 = vpop.permute.xlu0 %4374
    %4378 = vset.pattern.permute.xlu0 0
    %4379 = vperm.xlu0 %4378, %v1849
    %v4380 = vpop.permute.xlu0 %4379
    %4383 = vset.pattern.permute.xlu0 0
    %4384 = vperm.xlu0 %4383, %v1850
    %v4385 = vpop.permute.xlu0 %4384
    %4388 = vset.pattern.permute.xlu0 0
    %4389 = vperm.xlu0 %4388, %v1851
    %v4390 = vpop.permute.xlu0 %4389
    %4393 = vset.pattern.permute.xlu0 0
    %4394 = vperm.xlu0 %4393, %v1852
    %v4395 = vpop.permute.xlu0 %4394
    %4398 = vset.pattern.permute.xlu0 0
    %4399 = vperm.xlu0 %4398, %v1853
    %v4400 = vpop.permute.xlu0 %4399
    %4403 = vset.pattern.permute.xlu0 0
    %4404 = vperm.xlu0 %4403, %v1854
    %v4405 = vpop.permute.xlu0 %4404
    %4408 = vset.pattern.permute.xlu0 0
    %4409 = vperm.xlu0 %4408, %v1855
    %v4410 = vpop.permute.xlu0 %4409
    %4413 = vset.pattern.permute.xlu0 0
    %4414 = vperm.xlu0 %4413, %v1856
    %v4415 = vpop.permute.xlu0 %4414
    %4418 = vset.pattern.permute.xlu0 0
    %4419 = vperm.xlu0 %4418, %v1857
    %v4420 = vpop.permute.xlu0 %4419
    %4423 = vset.pattern.permute.xlu0 0
    %4424 = vperm.xlu0 %4423, %v1858
    %v4425 = vpop.permute.xlu0 %4424
    %4428 = vset.pattern.permute.xlu0 0
    %4429 = vperm.xlu0 %4428, %v1859
    %v4430 = vpop.permute.xlu0 %4429
    %4433 = vset.pattern.permute.xlu0 0
    %4434 = vperm.xlu0 %4433, %v1860
    %v4435 = vpop.permute.xlu0 %4434
    %4438 = vset.pattern.permute.xlu0 0
    %4439 = vperm.xlu0 %4438, %v1861
    %v4440 = vpop.permute.xlu0 %4439
    %4443 = vset.pattern.permute.xlu0 0
    %4444 = vperm.xlu0 %4443, %v1862
    %v4445 = vpop.permute.xlu0 %4444
    %4448 = vset.pattern.permute.xlu0 0
    %4449 = vperm.xlu0 %4448, %v1863
    %v4450 = vpop.permute.xlu0 %4449
    %4453 = vset.pattern.permute.xlu0 0
    %4454 = vperm.xlu0 %4453, %v1864
    %v4455 = vpop.permute.xlu0 %4454
    %4458 = vset.pattern.permute.xlu0 0
    %4459 = vperm.xlu0 %4458, %v1865
    %v4460 = vpop.permute.xlu0 %4459
    %4463 = vset.pattern.permute.xlu0 0
    %4464 = vperm.xlu0 %4463, %v1866
    %v4465 = vpop.permute.xlu0 %4464
    %4468 = vset.pattern.permute.xlu0 0
    %4469 = vperm.xlu0 %4468, %v1867
    %v4470 = vpop.permute.xlu0 %4469
    %4473 = vset.pattern.permute.xlu0 0
    %4474 = vperm.xlu0 %4473, %v1868
    %v4475 = vpop.permute.xlu0 %4474
    %4478 = vset.pattern.permute.xlu0 0
    %4479 = vperm.xlu0 %4478, %v1869
    %v4480 = vpop.permute.xlu0 %4479
    %4483 = vset.pattern.permute.xlu0 0
    %4484 = vperm.xlu0 %4483, %v1870
    %v4485 = vpop.permute.xlu0 %4484
    %4488 = vset.pattern.permute.xlu0 0
    %4489 = vperm.xlu0 %4488, %v1871
    %v4490 = vpop.permute.xlu0 %4489
    %4493 = vset.pattern.permute.xlu0 0
    %4494 = vperm.xlu0 %4493, %v1872
    %v4495 = vpop.permute.xlu0 %4494
    %4498 = vset.pattern.permute.xlu0 0
    %4499 = vperm.xlu0 %4498, %v1873
    %v4500 = vpop.permute.xlu0 %4499
    %4503 = vset.pattern.permute.xlu0 0
    %4504 = vperm.xlu0 %4503, %v1874
    %v4505 = vpop.permute.xlu0 %4504
    %4508 = vset.pattern.permute.xlu0 0
    %4509 = vperm.xlu0 %4508, %v1875
    %v4510 = vpop.permute.xlu0 %4509
    %4513 = vset.pattern.permute.xlu0 0
    %4514 = vperm.xlu0 %4513, %v1876
    %v4515 = vpop.permute.xlu0 %4514
    %4518 = vset.pattern.permute.xlu0 0
    %4519 = vperm.xlu0 %4518, %v1877
    %v4520 = vpop.permute.xlu0 %4519
    %4523 = vset.pattern.permute.xlu0 0
    %4524 = vperm.xlu0 %4523, %v1878
    %v4525 = vpop.permute.xlu0 %4524
    %4528 = vset.pattern.permute.xlu0 0
    %4529 = vperm.xlu0 %4528, %v1879
    %v4530 = vpop.permute.xlu0 %4529
    %4533 = vset.pattern.permute.xlu0 0
    %4534 = vperm.xlu0 %4533, %v1880
    %v4535 = vpop.permute.xlu0 %4534
    %4538 = vset.pattern.permute.xlu0 0
    %4539 = vperm.xlu0 %4538, %v1881
    %v4540 = vpop.permute.xlu0 %4539
    %4543 = vset.pattern.permute.xlu0 0
    %4544 = vperm.xlu0 %4543, %v1882
    %v4545 = vpop.permute.xlu0 %4544
    %4548 = vset.pattern.permute.xlu0 0
    %4549 = vperm.xlu0 %4548, %v1883
    %v4550 = vpop.permute.xlu0 %4549
    %4553 = vset.pattern.permute.xlu0 0
    %4554 = vperm.xlu0 %4553, %v1884
    %v4555 = vpop.permute.xlu0 %4554
    %4558 = vset.pattern.permute.xlu0 0
    %4559 = vperm.xlu0 %4558, %v1885
    %v4560 = vpop.permute.xlu0 %4559
    %4563 = vset.pattern.permute.xlu0 0
    %4564 = vperm.xlu0 %4563, %v1886
    %v4565 = vpop.permute.xlu0 %4564
    %4568 = vset.pattern.permute.xlu0 0
    %4569 = vperm.xlu0 %4568, %v1887
    %v4570 = vpop.permute.xlu0 %4569
    %4573 = vset.pattern.permute.xlu0 0
    %4574 = vperm.xlu0 %4573, %v1888
    %v4575 = vpop.permute.xlu0 %4574
    %v4577 = vmul.f32 %v4193, %v4260
    %v4578 = vmul.f32 %v4194, %v4265
    %v4579 = vmul.f32 %v4195, %v4270
    %v4580 = vmul.f32 %v4196, %v4275
    %v4581 = vmul.f32 %v4197, %v4280
    %v4582 = vmul.f32 %v4198, %v4285
    %v4583 = vmul.f32 %v4199, %v4290
    %v4584 = vmul.f32 %v4200, %v4295
    %v4585 = vmul.f32 %v4201, %v4300
    %v4586 = vmul.f32 %v4202, %v4305
    %v4587 = vmul.f32 %v4203, %v4310
    %v4588 = vmul.f32 %v4204, %v4315
    %v4589 = vmul.f32 %v4205, %v4320
    %v4590 = vmul.f32 %v4206, %v4325
    %v4591 = vmul.f32 %v4207, %v4330
    %v4592 = vmul.f32 %v4208, %v4335
    %v4593 = vmul.f32 %v4209, %v4340
    %v4594 = vmul.f32 %v4210, %v4345
    %v4595 = vmul.f32 %v4211, %v4350
    %v4596 = vmul.f32 %v4212, %v4355
    %v4597 = vmul.f32 %v4213, %v4360
    %v4598 = vmul.f32 %v4214, %v4365
    %v4599 = vmul.f32 %v4215, %v4370
    %v4600 = vmul.f32 %v4216, %v4375
    %v4601 = vmul.f32 %v4217, %v4380
    %v4602 = vmul.f32 %v4218, %v4385
    %v4603 = vmul.f32 %v4219, %v4390
    %v4604 = vmul.f32 %v4220, %v4395
    %v4605 = vmul.f32 %v4221, %v4400
    %v4606 = vmul.f32 %v4222, %v4405
    %v4607 = vmul.f32 %v4223, %v4410
    %v4608 = vmul.f32 %v4224, %v4415
    %v4609 = vmul.f32 %v4225, %v4420
    %v4610 = vmul.f32 %v4226, %v4425
    %v4611 = vmul.f32 %v4227, %v4430
    %v4612 = vmul.f32 %v4228, %v4435
    %v4613 = vmul.f32 %v4229, %v4440
    %v4614 = vmul.f32 %v4230, %v4445
    %v4615 = vmul.f32 %v4231, %v4450
    %v4616 = vmul.f32 %v4232, %v4455
    %v4617 = vmul.f32 %v4233, %v4460
    %v4618 = vmul.f32 %v4234, %v4465
    %v4619 = vmul.f32 %v4235, %v4470
    %v4620 = vmul.f32 %v4236, %v4475
    %v4621 = vmul.f32 %v4237, %v4480
    %v4622 = vmul.f32 %v4238, %v4485
    %v4623 = vmul.f32 %v4239, %v4490
    %v4624 = vmul.f32 %v4240, %v4495
    %v4625 = vmul.f32 %v4241, %v4500
    %v4626 = vmul.f32 %v4242, %v4505
    %v4627 = vmul.f32 %v4243, %v4510
    %v4628 = vmul.f32 %v4244, %v4515
    %v4629 = vmul.f32 %v4245, %v4520
    %v4630 = vmul.f32 %v4246, %v4525
    %v4631 = vmul.f32 %v4247, %v4530
    %v4632 = vmul.f32 %v4248, %v4535
    %v4633 = vmul.f32 %v4249, %v4540
    %v4634 = vmul.f32 %v4250, %v4545
    %v4635 = vmul.f32 %v4251, %v4550
    %v4636 = vmul.f32 %v4252, %v4555
    %v4637 = vmul.f32 %v4253, %v4560
    %v4638 = vmul.f32 %v4254, %v4565
    %v4639 = vmul.f32 %v4255, %v4570
    %v4640 = vmul.f32 %v4256, %v4575
    %v4641 = vpack.c.bf16 %v4578, %v4577
    %v4642 = vpack.c.bf16 %v4580, %v4579
    %v4643 = vpack.c.bf16 %v4582, %v4581
    %v4644 = vpack.c.bf16 %v4584, %v4583
    %v4645 = vpack.c.bf16 %v4586, %v4585
    %v4646 = vpack.c.bf16 %v4588, %v4587
    %v4647 = vpack.c.bf16 %v4590, %v4589
    %v4648 = vpack.c.bf16 %v4592, %v4591
    %v4649 = vpack.c.bf16 %v4594, %v4593
    %v4650 = vpack.c.bf16 %v4596, %v4595
    %v4651 = vpack.c.bf16 %v4598, %v4597
    %v4652 = vpack.c.bf16 %v4600, %v4599
    %v4653 = vpack.c.bf16 %v4602, %v4601
    %v4654 = vpack.c.bf16 %v4604, %v4603
    %v4655 = vpack.c.bf16 %v4606, %v4605
    %v4656 = vpack.c.bf16 %v4608, %v4607
    %v4657 = vpack.c.bf16 %v4610, %v4609
    %v4658 = vpack.c.bf16 %v4612, %v4611
    %v4659 = vpack.c.bf16 %v4614, %v4613
    %v4660 = vpack.c.bf16 %v4616, %v4615
    %v4661 = vpack.c.bf16 %v4618, %v4617
    %v4662 = vpack.c.bf16 %v4620, %v4619
    %v4663 = vpack.c.bf16 %v4622, %v4621
    %v4664 = vpack.c.bf16 %v4624, %v4623
    %v4665 = vpack.c.bf16 %v4626, %v4625
    %v4666 = vpack.c.bf16 %v4628, %v4627
    %v4667 = vpack.c.bf16 %v4630, %v4629
    %v4668 = vpack.c.bf16 %v4632, %v4631
    %v4669 = vpack.c.bf16 %v4634, %v4633
    %v4670 = vpack.c.bf16 %v4636, %v4635
    %v4671 = vpack.c.bf16 %v4638, %v4637
    %v4672 = vpack.c.bf16 %v4640, %v4639
    %4673 = vst [vmem:[#allocation3 + $0x28] sm:$0xff] %v4641
    %4674 = vst [vmem:[#allocation3 + $0x70] sm:$0xff] %v4642
    %4675 = vst [vmem:[#allocation3 + $0xb8] sm:$0xff] %v4643
    %4676 = vst [vmem:[#allocation3 + $0x100] sm:$0xff] %v4644
    %4677 = vst [vmem:[#allocation3 + $0x148] sm:$0xff] %v4645
    %4678 = vst [vmem:[#allocation3 + $0x190] sm:$0xff] %v4646
    %4679 = vst [vmem:[#allocation3 + $0x1d8] sm:$0xff] %v4647
    %4680 = vst [vmem:[#allocation3 + $0x220] sm:$0xff] %v4648
    %4681 = vst [vmem:[#allocation3 + $0x268] sm:$0xff] %v4649
    %4682 = vst [vmem:[#allocation3 + $0x2b0] sm:$0xff] %v4650
    %4683 = vst [vmem:[#allocation3 + $0x2f8] sm:$0xff] %v4651
    %4684 = vst [vmem:[#allocation3 + $0x340] sm:$0xff] %v4652
    %4685 = vst [vmem:[#allocation3 + $0x388] sm:$0xff] %v4653
    %4686 = vst [vmem:[#allocation3 + $0x3d0] sm:$0xff] %v4654
    %4687 = vst [vmem:[#allocation3 + $0x418] sm:$0xff] %v4655
    %4688 = vst [vmem:[#allocation3 + $0x460] sm:$0xff] %v4656
    %4689 = vst [vmem:[#allocation3 + $0x4a8] sm:$0xff] %v4657
    %4690 = vst [vmem:[#allocation3 + $0x4f0] sm:$0xff] %v4658
    %4691 = vst [vmem:[#allocation3 + $0x538] sm:$0xff] %v4659
    %4692 = vst [vmem:[#allocation3 + $0x580] sm:$0xff] %v4660
    %4693 = vst [vmem:[#allocation3 + $0x5c8] sm:$0xff] %v4661
    %4694 = vst [vmem:[#allocation3 + $0x610] sm:$0xff] %v4662
    %4695 = vst [vmem:[#allocation3 + $0x658] sm:$0xff] %v4663
    %4696 = vst [vmem:[#allocation3 + $0x6a0] sm:$0xff] %v4664
    %4697 = vst [vmem:[#allocation3 + $0x6e8] sm:$0xff] %v4665
    %4698 = vst [vmem:[#allocation3 + $0x730] sm:$0xff] %v4666
    %4699 = vst [vmem:[#allocation3 + $0x778] sm:$0xff] %v4667
    %4700 = vst [vmem:[#allocation3 + $0x7c0] sm:$0xff] %v4668
    %4701 = vst [vmem:[#allocation3 + $0x808] sm:$0xff] %v4669
    %4702 = vst [vmem:[#allocation3 + $0x850] sm:$0xff] %v4670
    %4703 = vst [vmem:[#allocation3 + $0x898] sm:$0xff] %v4671
    %4704 = vst [vmem:[#allocation3 + $0x8e0] sm:$0xff] %v4672
    %v4705 = vld [vmem:[#allocation2 + $0x27] sm:$0xff]
    %v4706 = vld [vmem:[#allocation2 + $0x2f] sm:$0xff]
    %v4707 = vld [vmem:[#allocation2 + $0x37] sm:$0xff]
    %v4708 = vld [vmem:[#allocation2 + $0x3f] sm:$0xff]
    %v4709 = vld [vmem:[#allocation2 + $0x47] sm:$0xff]
    %v4710 = vld [vmem:[#allocation2 + $0x4f] sm:$0xff]
    %v4711 = vld [vmem:[#allocation2 + $0x57] sm:$0xff]
    %v4712 = vld [vmem:[#allocation2 + $0x5f] sm:$0xff]
    %v4713 = vld [vmem:[#allocation2 + $0x67] sm:$0xff]
    %v4714 = vld [vmem:[#allocation2 + $0x6f] sm:$0xff]
    %v4715 = vld [vmem:[#allocation2 + $0x77] sm:$0xff]
    %v4716 = vld [vmem:[#allocation2 + $0x7f] sm:$0xff]
    %v4717 = vld [vmem:[#allocation2 + $0x87] sm:$0xff]
    %v4718 = vld [vmem:[#allocation2 + $0x8f] sm:$0xff]
    %v4719 = vld [vmem:[#allocation2 + $0x97] sm:$0xff]
    %v4720 = vld [vmem:[#allocation2 + $0x9f] sm:$0xff]
    %v4721 = vld [vmem:[#allocation2 + $0xa7] sm:$0xff]
    %v4722 = vld [vmem:[#allocation2 + $0xaf] sm:$0xff]
    %v4723 = vld [vmem:[#allocation2 + $0xb7] sm:$0xff]
    %v4724 = vld [vmem:[#allocation2 + $0xbf] sm:$0xff]
    %v4725 = vld [vmem:[#allocation2 + $0xc7] sm:$0xff]
    %v4726 = vld [vmem:[#allocation2 + $0xcf] sm:$0xff]
    %v4727 = vld [vmem:[#allocation2 + $0xd7] sm:$0xff]
    %v4728 = vld [vmem:[#allocation2 + $0xdf] sm:$0xff]
    %v4729 = vld [vmem:[#allocation2 + $0xe7] sm:$0xff]
    %v4730 = vld [vmem:[#allocation2 + $0xef] sm:$0xff]
    %v4731 = vld [vmem:[#allocation2 + $0xf7] sm:$0xff]
    %v4732 = vld [vmem:[#allocation2 + $0xff] sm:$0xff]
    %v4733 = vld [vmem:[#allocation2 + $0x107] sm:$0xff]
    %v4734 = vld [vmem:[#allocation2 + $0x10f] sm:$0xff]
    %v4735 = vld [vmem:[#allocation2 + $0x117] sm:$0xff]
    %v4736 = vld [vmem:[#allocation2 + $0x11f] sm:$0xff]
    %v4737 = vld [vmem:[#allocation2 + $0x127] sm:$0xff]
    %v4738 = vld [vmem:[#allocation2 + $0x12f] sm:$0xff]
    %v4739 = vld [vmem:[#allocation2 + $0x137] sm:$0xff]
    %v4740 = vld [vmem:[#allocation2 + $0x13f] sm:$0xff]
    %v4741 = vld [vmem:[#allocation2 + $0x147] sm:$0xff]
    %v4742 = vld [vmem:[#allocation2 + $0x14f] sm:$0xff]
    %v4743 = vld [vmem:[#allocation2 + $0x157] sm:$0xff]
    %v4744 = vld [vmem:[#allocation2 + $0x15f] sm:$0xff]
    %v4745 = vld [vmem:[#allocation2 + $0x167] sm:$0xff]
    %v4746 = vld [vmem:[#allocation2 + $0x16f] sm:$0xff]
    %v4747 = vld [vmem:[#allocation2 + $0x177] sm:$0xff]
    %v4748 = vld [vmem:[#allocation2 + $0x17f] sm:$0xff]
    %v4749 = vld [vmem:[#allocation2 + $0x187] sm:$0xff]
    %v4750 = vld [vmem:[#allocation2 + $0x18f] sm:$0xff]
    %v4751 = vld [vmem:[#allocation2 + $0x197] sm:$0xff]
    %v4752 = vld [vmem:[#allocation2 + $0x19f] sm:$0xff]
    %v4753 = vld [vmem:[#allocation2 + $0x1a7] sm:$0xff]
    %v4754 = vld [vmem:[#allocation2 + $0x1af] sm:$0xff]
    %v4755 = vld [vmem:[#allocation2 + $0x1b7] sm:$0xff]
    %v4756 = vld [vmem:[#allocation2 + $0x1bf] sm:$0xff]
    %v4757 = vld [vmem:[#allocation2 + $0x1c7] sm:$0xff]
    %v4758 = vld [vmem:[#allocation2 + $0x1cf] sm:$0xff]
    %v4759 = vld [vmem:[#allocation2 + $0x1d7] sm:$0xff]
    %v4760 = vld [vmem:[#allocation2 + $0x1df] sm:$0xff]
    %v4761 = vld [vmem:[#allocation2 + $0x1e7] sm:$0xff]
    %v4762 = vld [vmem:[#allocation2 + $0x1ef] sm:$0xff]
    %v4763 = vld [vmem:[#allocation2 + $0x1f7] sm:$0xff]
    %v4764 = vld [vmem:[#allocation2 + $0x1ff] sm:$0xff]
    %v4765 = vld [vmem:[#allocation2 + $0x207] sm:$0xff]
    %v4766 = vld [vmem:[#allocation2 + $0x20f] sm:$0xff]
    %v4767 = vld [vmem:[#allocation2 + $0x217] sm:$0xff]
    %v4768 = vld [vmem:[#allocation2 + $0x21f] sm:$0xff]
    %v4769 = vmul.f32 %v1441, %v1633
    %v4770 = vmul.f32 %v1442, %v1634
    %v4771 = vmul.f32 %v1443, %v1635
    %v4772 = vmul.f32 %v1444, %v1636
    %v4773 = vmul.f32 %v1445, %v1637
    %v4774 = vmul.f32 %v1446, %v1638
    %v4775 = vmul.f32 %v1447, %v1639
    %v4776 = vmul.f32 %v1448, %v1640
    %v4777 = vmul.f32 %v1449, %v1641
    %v4778 = vmul.f32 %v1450, %v1642
    %v4779 = vmul.f32 %v1451, %v1643
    %v4780 = vmul.f32 %v1452, %v1644
    %v4781 = vmul.f32 %v1453, %v1645
    %v4782 = vmul.f32 %v1454, %v1646
    %v4783 = vmul.f32 %v1455, %v1647
    %v4784 = vmul.f32 %v1456, %v1648
    %v4785 = vmul.f32 %v1457, %v1649
    %v4786 = vmul.f32 %v1458, %v1650
    %v4787 = vmul.f32 %v1459, %v1651
    %v4788 = vmul.f32 %v1460, %v1652
    %v4789 = vmul.f32 %v1461, %v1653
    %v4790 = vmul.f32 %v1462, %v1654
    %v4791 = vmul.f32 %v1463, %v1655
    %v4792 = vmul.f32 %v1464, %v1656
    %v4793 = vmul.f32 %v1465, %v1657
    %v4794 = vmul.f32 %v1466, %v1658
    %v4795 = vmul.f32 %v1467, %v1659
    %v4796 = vmul.f32 %v1468, %v1660
    %v4797 = vmul.f32 %v1469, %v1661
    %v4798 = vmul.f32 %v1470, %v1662
    %v4799 = vmul.f32 %v1471, %v1663
    %v4800 = vmul.f32 %v1472, %v1664
    %v4801 = vmul.f32 %v1473, %v1665
    %v4802 = vmul.f32 %v1474, %v1666
    %v4803 = vmul.f32 %v1475, %v1667
    %v4804 = vmul.f32 %v1476, %v1668
    %v4805 = vmul.f32 %v1477, %v1669
    %v4806 = vmul.f32 %v1478, %v1670
    %v4807 = vmul.f32 %v1479, %v1671
    %v4808 = vmul.f32 %v1480, %v1672
    %v4809 = vmul.f32 %v1481, %v1673
    %v4810 = vmul.f32 %v1482, %v1674
    %v4811 = vmul.f32 %v1483, %v1675
    %v4812 = vmul.f32 %v1484, %v1676
    %v4813 = vmul.f32 %v1485, %v1677
    %v4814 = vmul.f32 %v1486, %v1678
    %v4815 = vmul.f32 %v1487, %v1679
    %v4816 = vmul.f32 %v1488, %v1680
    %v4817 = vmul.f32 %v1489, %v1681
    %v4818 = vmul.f32 %v1490, %v1682
    %v4819 = vmul.f32 %v1491, %v1683
    %v4820 = vmul.f32 %v1492, %v1684
    %v4821 = vmul.f32 %v1493, %v1685
    %v4822 = vmul.f32 %v1494, %v1686
    %v4823 = vmul.f32 %v1495, %v1687
    %v4824 = vmul.f32 %v1496, %v1688
    %v4825 = vmul.f32 %v1497, %v1689
    %v4826 = vmul.f32 %v1498, %v1690
    %v4827 = vmul.f32 %v1499, %v1691
    %v4828 = vmul.f32 %v1500, %v1692
    %v4829 = vmul.f32 %v1501, %v1693
    %v4830 = vmul.f32 %v1502, %v1694
    %v4831 = vmul.f32 %v1503, %v1695
    %v4832 = vmul.f32 %v1504, %v1696
    %4834 = vset.pattern.permute.xlu0 0
    %4835 = vperm.xlu0 %4834, %v4769
    %v4836 = vpop.permute.xlu0 %4835
    %4839 = vset.pattern.permute.xlu0 0
    %4840 = vperm.xlu0 %4839, %v4770
    %v4841 = vpop.permute.xlu0 %4840
    %4844 = vset.pattern.permute.xlu0 0
    %4845 = vperm.xlu0 %4844, %v4771
    %v4846 = vpop.permute.xlu0 %4845
    %4849 = vset.pattern.permute.xlu0 0
    %4850 = vperm.xlu0 %4849, %v4772
    %v4851 = vpop.permute.xlu0 %4850
    %4854 = vset.pattern.permute.xlu0 0
    %4855 = vperm.xlu0 %4854, %v4773
    %v4856 = vpop.permute.xlu0 %4855
    %4859 = vset.pattern.permute.xlu0 0
    %4860 = vperm.xlu0 %4859, %v4774
    %v4861 = vpop.permute.xlu0 %4860
    %4864 = vset.pattern.permute.xlu0 0
    %4865 = vperm.xlu0 %4864, %v4775
    %v4866 = vpop.permute.xlu0 %4865
    %4869 = vset.pattern.permute.xlu0 0
    %4870 = vperm.xlu0 %4869, %v4776
    %v4871 = vpop.permute.xlu0 %4870
    %4874 = vset.pattern.permute.xlu0 0
    %4875 = vperm.xlu0 %4874, %v4777
    %v4876 = vpop.permute.xlu0 %4875
    %4879 = vset.pattern.permute.xlu0 0
    %4880 = vperm.xlu0 %4879, %v4778
    %v4881 = vpop.permute.xlu0 %4880
    %4884 = vset.pattern.permute.xlu0 0
    %4885 = vperm.xlu0 %4884, %v4779
    %v4886 = vpop.permute.xlu0 %4885
    %4889 = vset.pattern.permute.xlu0 0
    %4890 = vperm.xlu0 %4889, %v4780
    %v4891 = vpop.permute.xlu0 %4890
    %4894 = vset.pattern.permute.xlu0 0
    %4895 = vperm.xlu0 %4894, %v4781
    %v4896 = vpop.permute.xlu0 %4895
    %4899 = vset.pattern.permute.xlu0 0
    %4900 = vperm.xlu0 %4899, %v4782
    %v4901 = vpop.permute.xlu0 %4900
    %4904 = vset.pattern.permute.xlu0 0
    %4905 = vperm.xlu0 %4904, %v4783
    %v4906 = vpop.permute.xlu0 %4905
    %4909 = vset.pattern.permute.xlu0 0
    %4910 = vperm.xlu0 %4909, %v4784
    %v4911 = vpop.permute.xlu0 %4910
    %4914 = vset.pattern.permute.xlu0 0
    %4915 = vperm.xlu0 %4914, %v4785
    %v4916 = vpop.permute.xlu0 %4915
    %4919 = vset.pattern.permute.xlu0 0
    %4920 = vperm.xlu0 %4919, %v4786
    %v4921 = vpop.permute.xlu0 %4920
    %4924 = vset.pattern.permute.xlu0 0
    %4925 = vperm.xlu0 %4924, %v4787
    %v4926 = vpop.permute.xlu0 %4925
    %4929 = vset.pattern.permute.xlu0 0
    %4930 = vperm.xlu0 %4929, %v4788
    %v4931 = vpop.permute.xlu0 %4930
    %4934 = vset.pattern.permute.xlu0 0
    %4935 = vperm.xlu0 %4934, %v4789
    %v4936 = vpop.permute.xlu0 %4935
    %4939 = vset.pattern.permute.xlu0 0
    %4940 = vperm.xlu0 %4939, %v4790
    %v4941 = vpop.permute.xlu0 %4940
    %4944 = vset.pattern.permute.xlu0 0
    %4945 = vperm.xlu0 %4944, %v4791
    %v4946 = vpop.permute.xlu0 %4945
    %4949 = vset.pattern.permute.xlu0 0
    %4950 = vperm.xlu0 %4949, %v4792
    %v4951 = vpop.permute.xlu0 %4950
    %4954 = vset.pattern.permute.xlu0 0
    %4955 = vperm.xlu0 %4954, %v4793
    %v4956 = vpop.permute.xlu0 %4955
    %4959 = vset.pattern.permute.xlu0 0
    %4960 = vperm.xlu0 %4959, %v4794
    %v4961 = vpop.permute.xlu0 %4960
    %4964 = vset.pattern.permute.xlu0 0
    %4965 = vperm.xlu0 %4964, %v4795
    %v4966 = vpop.permute.xlu0 %4965
    %4969 = vset.pattern.permute.xlu0 0
    %4970 = vperm.xlu0 %4969, %v4796
    %v4971 = vpop.permute.xlu0 %4970
    %4974 = vset.pattern.permute.xlu0 0
    %4975 = vperm.xlu0 %4974, %v4797
    %v4976 = vpop.permute.xlu0 %4975
    %4979 = vset.pattern.permute.xlu0 0
    %4980 = vperm.xlu0 %4979, %v4798
    %v4981 = vpop.permute.xlu0 %4980
    %4984 = vset.pattern.permute.xlu0 0
    %4985 = vperm.xlu0 %4984, %v4799
    %v4986 = vpop.permute.xlu0 %4985
    %4989 = vset.pattern.permute.xlu0 0
    %4990 = vperm.xlu0 %4989, %v4800
    %v4991 = vpop.permute.xlu0 %4990
    %4994 = vset.pattern.permute.xlu0 0
    %4995 = vperm.xlu0 %4994, %v4801
    %v4996 = vpop.permute.xlu0 %4995
    %4999 = vset.pattern.permute.xlu0 0
    %5000 = vperm.xlu0 %4999, %v4802
    %v5001 = vpop.permute.xlu0 %5000
    %5004 = vset.pattern.permute.xlu0 0
    %5005 = vperm.xlu0 %5004, %v4803
    %v5006 = vpop.permute.xlu0 %5005
    %5009 = vset.pattern.permute.xlu0 0
    %5010 = vperm.xlu0 %5009, %v4804
    %v5011 = vpop.permute.xlu0 %5010
    %5014 = vset.pattern.permute.xlu0 0
    %5015 = vperm.xlu0 %5014, %v4805
    %v5016 = vpop.permute.xlu0 %5015
    %5019 = vset.pattern.permute.xlu0 0
    %5020 = vperm.xlu0 %5019, %v4806
    %v5021 = vpop.permute.xlu0 %5020
    %5024 = vset.pattern.permute.xlu0 0
    %5025 = vperm.xlu0 %5024, %v4807
    %v5026 = vpop.permute.xlu0 %5025
    %5029 = vset.pattern.permute.xlu0 0
    %5030 = vperm.xlu0 %5029, %v4808
    %v5031 = vpop.permute.xlu0 %5030
    %5034 = vset.pattern.permute.xlu0 0
    %5035 = vperm.xlu0 %5034, %v4809
    %v5036 = vpop.permute.xlu0 %5035
    %5039 = vset.pattern.permute.xlu0 0
    %5040 = vperm.xlu0 %5039, %v4810
    %v5041 = vpop.permute.xlu0 %5040
    %5044 = vset.pattern.permute.xlu0 0
    %5045 = vperm.xlu0 %5044, %v4811
    %v5046 = vpop.permute.xlu0 %5045
    %5049 = vset.pattern.permute.xlu0 0
    %5050 = vperm.xlu0 %5049, %v4812
    %v5051 = vpop.permute.xlu0 %5050
    %5054 = vset.pattern.permute.xlu0 0
    %5055 = vperm.xlu0 %5054, %v4813
    %v5056 = vpop.permute.xlu0 %5055
    %5059 = vset.pattern.permute.xlu0 0
    %5060 = vperm.xlu0 %5059, %v4814
    %v5061 = vpop.permute.xlu0 %5060
    %5064 = vset.pattern.permute.xlu0 0
    %5065 = vperm.xlu0 %5064, %v4815
    %v5066 = vpop.permute.xlu0 %5065
    %5069 = vset.pattern.permute.xlu0 0
    %5070 = vperm.xlu0 %5069, %v4816
    %v5071 = vpop.permute.xlu0 %5070
    %5074 = vset.pattern.permute.xlu0 0
    %5075 = vperm.xlu0 %5074, %v4817
    %v5076 = vpop.permute.xlu0 %5075
    %5079 = vset.pattern.permute.xlu0 0
    %5080 = vperm.xlu0 %5079, %v4818
    %v5081 = vpop.permute.xlu0 %5080
    %5084 = vset.pattern.permute.xlu0 0
    %5085 = vperm.xlu0 %5084, %v4819
    %v5086 = vpop.permute.xlu0 %5085
    %5089 = vset.pattern.permute.xlu0 0
    %5090 = vperm.xlu0 %5089, %v4820
    %v5091 = vpop.permute.xlu0 %5090
    %5094 = vset.pattern.permute.xlu0 0
    %5095 = vperm.xlu0 %5094, %v4821
    %v5096 = vpop.permute.xlu0 %5095
    %5099 = vset.pattern.permute.xlu0 0
    %5100 = vperm.xlu0 %5099, %v4822
    %v5101 = vpop.permute.xlu0 %5100
    %5104 = vset.pattern.permute.xlu0 0
    %5105 = vperm.xlu0 %5104, %v4823
    %v5106 = vpop.permute.xlu0 %5105
    %5109 = vset.pattern.permute.xlu0 0
    %5110 = vperm.xlu0 %5109, %v4824
    %v5111 = vpop.permute.xlu0 %5110
    %5114 = vset.pattern.permute.xlu0 0
    %5115 = vperm.xlu0 %5114, %v4825
    %v5116 = vpop.permute.xlu0 %5115
    %5119 = vset.pattern.permute.xlu0 0
    %5120 = vperm.xlu0 %5119, %v4826
    %v5121 = vpop.permute.xlu0 %5120
    %5124 = vset.pattern.permute.xlu0 0
    %5125 = vperm.xlu0 %5124, %v4827
    %v5126 = vpop.permute.xlu0 %5125
    %5129 = vset.pattern.permute.xlu0 0
    %5130 = vperm.xlu0 %5129, %v4828
    %v5131 = vpop.permute.xlu0 %5130
    %5134 = vset.pattern.permute.xlu0 0
    %5135 = vperm.xlu0 %5134, %v4829
    %v5136 = vpop.permute.xlu0 %5135
    %5139 = vset.pattern.permute.xlu0 0
    %5140 = vperm.xlu0 %5139, %v4830
    %v5141 = vpop.permute.xlu0 %5140
    %5144 = vset.pattern.permute.xlu0 0
    %5145 = vperm.xlu0 %5144, %v4831
    %v5146 = vpop.permute.xlu0 %5145
    %5149 = vset.pattern.permute.xlu0 0
    %5150 = vperm.xlu0 %5149, %v4832
    %v5151 = vpop.permute.xlu0 %5150
    %v5153 = vmul.f32 %v4705, %v4836
    %v5154 = vmul.f32 %v4706, %v4841
    %v5155 = vmul.f32 %v4707, %v4846
    %v5156 = vmul.f32 %v4708, %v4851
    %v5157 = vmul.f32 %v4709, %v4856
    %v5158 = vmul.f32 %v4710, %v4861
    %v5159 = vmul.f32 %v4711, %v4866
    %v5160 = vmul.f32 %v4712, %v4871
    %v5161 = vmul.f32 %v4713, %v4876
    %v5162 = vmul.f32 %v4714, %v4881
    %v5163 = vmul.f32 %v4715, %v4886
    %v5164 = vmul.f32 %v4716, %v4891
    %v5165 = vmul.f32 %v4717, %v4896
    %v5166 = vmul.f32 %v4718, %v4901
    %v5167 = vmul.f32 %v4719, %v4906
    %v5168 = vmul.f32 %v4720, %v4911
    %v5169 = vmul.f32 %v4721, %v4916
    %v5170 = vmul.f32 %v4722, %v4921
    %v5171 = vmul.f32 %v4723, %v4926
    %v5172 = vmul.f32 %v4724, %v4931
    %v5173 = vmul.f32 %v4725, %v4936
    %v5174 = vmul.f32 %v4726, %v4941
    %v5175 = vmul.f32 %v4727, %v4946
    %v5176 = vmul.f32 %v4728, %v4951
    %v5177 = vmul.f32 %v4729, %v4956
    %v5178 = vmul.f32 %v4730, %v4961
    %v5179 = vmul.f32 %v4731, %v4966
    %v5180 = vmul.f32 %v4732, %v4971
    %v5181 = vmul.f32 %v4733, %v4976
    %v5182 = vmul.f32 %v4734, %v4981
    %v5183 = vmul.f32 %v4735, %v4986
    %v5184 = vmul.f32 %v4736, %v4991
    %v5185 = vmul.f32 %v4737, %v4996
    %v5186 = vmul.f32 %v4738, %v5001
    %v5187 = vmul.f32 %v4739, %v5006
    %v5188 = vmul.f32 %v4740, %v5011
    %v5189 = vmul.f32 %v4741, %v5016
    %v5190 = vmul.f32 %v4742, %v5021
    %v5191 = vmul.f32 %v4743, %v5026
    %v5192 = vmul.f32 %v4744, %v5031
    %v5193 = vmul.f32 %v4745, %v5036
    %v5194 = vmul.f32 %v4746, %v5041
    %v5195 = vmul.f32 %v4747, %v5046
    %v5196 = vmul.f32 %v4748, %v5051
    %v5197 = vmul.f32 %v4749, %v5056
    %v5198 = vmul.f32 %v4750, %v5061
    %v5199 = vmul.f32 %v4751, %v5066
    %v5200 = vmul.f32 %v4752, %v5071
    %v5201 = vmul.f32 %v4753, %v5076
    %v5202 = vmul.f32 %v4754, %v5081
    %v5203 = vmul.f32 %v4755, %v5086
    %v5204 = vmul.f32 %v4756, %v5091
    %v5205 = vmul.f32 %v4757, %v5096
    %v5206 = vmul.f32 %v4758, %v5101
    %v5207 = vmul.f32 %v4759, %v5106
    %v5208 = vmul.f32 %v4760, %v5111
    %v5209 = vmul.f32 %v4761, %v5116
    %v5210 = vmul.f32 %v4762, %v5121
    %v5211 = vmul.f32 %v4763, %v5126
    %v5212 = vmul.f32 %v4764, %v5131
    %v5213 = vmul.f32 %v4765, %v5136
    %v5214 = vmul.f32 %v4766, %v5141
    %v5215 = vmul.f32 %v4767, %v5146
    %v5216 = vmul.f32 %v4768, %v5151
    %v5217 = vpack.c.bf16 %v5154, %v5153
    %v5218 = vpack.c.bf16 %v5156, %v5155
    %v5219 = vpack.c.bf16 %v5158, %v5157
    %v5220 = vpack.c.bf16 %v5160, %v5159
    %v5221 = vpack.c.bf16 %v5162, %v5161
    %v5222 = vpack.c.bf16 %v5164, %v5163
    %v5223 = vpack.c.bf16 %v5166, %v5165
    %v5224 = vpack.c.bf16 %v5168, %v5167
    %v5225 = vpack.c.bf16 %v5170, %v5169
    %v5226 = vpack.c.bf16 %v5172, %v5171
    %v5227 = vpack.c.bf16 %v5174, %v5173
    %v5228 = vpack.c.bf16 %v5176, %v5175
    %v5229 = vpack.c.bf16 %v5178, %v5177
    %v5230 = vpack.c.bf16 %v5180, %v5179
    %v5231 = vpack.c.bf16 %v5182, %v5181
    %v5232 = vpack.c.bf16 %v5184, %v5183
    %v5233 = vpack.c.bf16 %v5186, %v5185
    %v5234 = vpack.c.bf16 %v5188, %v5187
    %v5235 = vpack.c.bf16 %v5190, %v5189
    %v5236 = vpack.c.bf16 %v5192, %v5191
    %v5237 = vpack.c.bf16 %v5194, %v5193
    %v5238 = vpack.c.bf16 %v5196, %v5195
    %v5239 = vpack.c.bf16 %v5198, %v5197
    %v5240 = vpack.c.bf16 %v5200, %v5199
    %v5241 = vpack.c.bf16 %v5202, %v5201
    %v5242 = vpack.c.bf16 %v5204, %v5203
    %v5243 = vpack.c.bf16 %v5206, %v5205
    %v5244 = vpack.c.bf16 %v5208, %v5207
    %v5245 = vpack.c.bf16 %v5210, %v5209
    %v5246 = vpack.c.bf16 %v5212, %v5211
    %v5247 = vpack.c.bf16 %v5214, %v5213
    %v5248 = vpack.c.bf16 %v5216, %v5215
    %5249 = vst [vmem:[#allocation3 + $0x30] sm:$0xff] %v5217
    %5250 = vst [vmem:[#allocation3 + $0x78] sm:$0xff] %v5218
    %5251 = vst [vmem:[#allocation3 + $0xc0] sm:$0xff] %v5219
    %5252 = vst [vmem:[#allocation3 + $0x108] sm:$0xff] %v5220
    %5253 = vst [vmem:[#allocation3 + $0x150] sm:$0xff] %v5221
    %5254 = vst [vmem:[#allocation3 + $0x198] sm:$0xff] %v5222
    %5255 = vst [vmem:[#allocation3 + $0x1e0] sm:$0xff] %v5223
    %5256 = vst [vmem:[#allocation3 + $0x228] sm:$0xff] %v5224
    %5257 = vst [vmem:[#allocation3 + $0x270] sm:$0xff] %v5225
    %5258 = vst [vmem:[#allocation3 + $0x2b8] sm:$0xff] %v5226
    %5259 = vst [vmem:[#allocation3 + $0x300] sm:$0xff] %v5227
    %5260 = vst [vmem:[#allocation3 + $0x348] sm:$0xff] %v5228
    %5261 = vst [vmem:[#allocation3 + $0x390] sm:$0xff] %v5229
    %5262 = vst [vmem:[#allocation3 + $0x3d8] sm:$0xff] %v5230
    %5263 = vst [vmem:[#allocation3 + $0x420] sm:$0xff] %v5231
    %5264 = vst [vmem:[#allocation3 + $0x468] sm:$0xff] %v5232
    %5265 = vst [vmem:[#allocation3 + $0x4b0] sm:$0xff] %v5233
    %5266 = vst [vmem:[#allocation3 + $0x4f8] sm:$0xff] %v5234
    %5267 = vst [vmem:[#allocation3 + $0x540] sm:$0xff] %v5235
    %5268 = vst [vmem:[#allocation3 + $0x588] sm:$0xff] %v5236
    %5269 = vst [vmem:[#allocation3 + $0x5d0] sm:$0xff] %v5237
    %5270 = vst [vmem:[#allocation3 + $0x618] sm:$0xff] %v5238
    %5271 = vst [vmem:[#allocation3 + $0x660] sm:$0xff] %v5239
    %5272 = vst [vmem:[#allocation3 + $0x6a8] sm:$0xff] %v5240
    %5273 = vst [vmem:[#allocation3 + $0x6f0] sm:$0xff] %v5241
    %5274 = vst [vmem:[#allocation3 + $0x738] sm:$0xff] %v5242
    %5275 = vst [vmem:[#allocation3 + $0x780] sm:$0xff] %v5243
    %5276 = vst [vmem:[#allocation3 + $0x7c8] sm:$0xff] %v5244
    %5277 = vst [vmem:[#allocation3 + $0x810] sm:$0xff] %v5245
    %5278 = vst [vmem:[#allocation3 + $0x858] sm:$0xff] %v5246
    %5279 = vst [vmem:[#allocation3 + $0x8a0] sm:$0xff] %v5247
    %5280 = vst [vmem:[#allocation3 + $0x8e8] sm:$0xff] %v5248
    %v5281 = vld [vmem:[#allocation2 + $0x28] sm:$0xff]
    %v5282 = vld [vmem:[#allocation2 + $0x30] sm:$0xff]
    %v5283 = vld [vmem:[#allocation2 + $0x38] sm:$0xff]
    %v5284 = vld [vmem:[#allocation2 + $0x40] sm:$0xff]
    %v5285 = vld [vmem:[#allocation2 + $0x48] sm:$0xff]
    %v5286 = vld [vmem:[#allocation2 + $0x50] sm:$0xff]
    %v5287 = vld [vmem:[#allocation2 + $0x58] sm:$0xff]
    %v5288 = vld [vmem:[#allocation2 + $0x60] sm:$0xff]
    %v5289 = vld [vmem:[#allocation2 + $0x68] sm:$0xff]
    %v5290 = vld [vmem:[#allocation2 + $0x70] sm:$0xff]
    %v5291 = vld [vmem:[#allocation2 + $0x78] sm:$0xff]
    %v5292 = vld [vmem:[#allocation2 + $0x80] sm:$0xff]
    %v5293 = vld [vmem:[#allocation2 + $0x88] sm:$0xff]
    %v5294 = vld [vmem:[#allocation2 + $0x90] sm:$0xff]
    %v5295 = vld [vmem:[#allocation2 + $0x98] sm:$0xff]
    %v5296 = vld [vmem:[#allocation2 + $0xa0] sm:$0xff]
    %v5297 = vld [vmem:[#allocation2 + $0xa8] sm:$0xff]
    %v5298 = vld [vmem:[#allocation2 + $0xb0] sm:$0xff]
    %v5299 = vld [vmem:[#allocation2 + $0xb8] sm:$0xff]
    %v5300 = vld [vmem:[#allocation2 + $0xc0] sm:$0xff]
    %v5301 = vld [vmem:[#allocation2 + $0xc8] sm:$0xff]
    %v5302 = vld [vmem:[#allocation2 + $0xd0] sm:$0xff]
    %v5303 = vld [vmem:[#allocation2 + $0xd8] sm:$0xff]
    %v5304 = vld [vmem:[#allocation2 + $0xe0] sm:$0xff]
    %v5305 = vld [vmem:[#allocation2 + $0xe8] sm:$0xff]
    %v5306 = vld [vmem:[#allocation2 + $0xf0] sm:$0xff]
    %v5307 = vld [vmem:[#allocation2 + $0xf8] sm:$0xff]
    %v5308 = vld [vmem:[#allocation2 + $0x100] sm:$0xff]
    %v5309 = vld [vmem:[#allocation2 + $0x108] sm:$0xff]
    %v5310 = vld [vmem:[#allocation2 + $0x110] sm:$0xff]
    %v5311 = vld [vmem:[#allocation2 + $0x118] sm:$0xff]
    %v5312 = vld [vmem:[#allocation2 + $0x120] sm:$0xff]
    %v5313 = vld [vmem:[#allocation2 + $0x128] sm:$0xff]
    %v5314 = vld [vmem:[#allocation2 + $0x130] sm:$0xff]
    %v5315 = vld [vmem:[#allocation2 + $0x138] sm:$0xff]
    %v5316 = vld [vmem:[#allocation2 + $0x140] sm:$0xff]
    %v5317 = vld [vmem:[#allocation2 + $0x148] sm:$0xff]
    %v5318 = vld [vmem:[#allocation2 + $0x150] sm:$0xff]
    %v5319 = vld [vmem:[#allocation2 + $0x158] sm:$0xff]
    %v5320 = vld [vmem:[#allocation2 + $0x160] sm:$0xff]
    %v5321 = vld [vmem:[#allocation2 + $0x168] sm:$0xff]
    %v5322 = vld [vmem:[#allocation2 + $0x170] sm:$0xff]
    %v5323 = vld [vmem:[#allocation2 + $0x178] sm:$0xff]
    %v5324 = vld [vmem:[#allocation2 + $0x180] sm:$0xff]
    %v5325 = vld [vmem:[#allocation2 + $0x188] sm:$0xff]
    %v5326 = vld [vmem:[#allocation2 + $0x190] sm:$0xff]
    %v5327 = vld [vmem:[#allocation2 + $0x198] sm:$0xff]
    %v5328 = vld [vmem:[#allocation2 + $0x1a0] sm:$0xff]
    %v5329 = vld [vmem:[#allocation2 + $0x1a8] sm:$0xff]
    %v5330 = vld [vmem:[#allocation2 + $0x1b0] sm:$0xff]
    %v5331 = vld [vmem:[#allocation2 + $0x1b8] sm:$0xff]
    %v5332 = vld [vmem:[#allocation2 + $0x1c0] sm:$0xff]
    %v5333 = vld [vmem:[#allocation2 + $0x1c8] sm:$0xff]
    %v5334 = vld [vmem:[#allocation2 + $0x1d0] sm:$0xff]
    %v5335 = vld [vmem:[#allocation2 + $0x1d8] sm:$0xff]
    %v5336 = vld [vmem:[#allocation2 + $0x1e0] sm:$0xff]
    %v5337 = vld [vmem:[#allocation2 + $0x1e8] sm:$0xff]
    %v5338 = vld [vmem:[#allocation2 + $0x1f0] sm:$0xff]
    %v5339 = vld [vmem:[#allocation2 + $0x1f8] sm:$0xff]
    %v5340 = vld [vmem:[#allocation2 + $0x200] sm:$0xff]
    %v5341 = vld [vmem:[#allocation2 + $0x208] sm:$0xff]
    %v5342 = vld [vmem:[#allocation2 + $0x210] sm:$0xff]
    %v5343 = vld [vmem:[#allocation2 + $0x218] sm:$0xff]
    %v5344 = vld [vmem:[#allocation2 + $0x220] sm:$0xff]
    %5346 = vset.pattern.permute.xlu0 0
    %5347 = vperm.xlu0 %5346, %v1441
    %v5348 = vpop.permute.xlu0 %5347
    %5351 = vset.pattern.permute.xlu0 0
    %5352 = vperm.xlu0 %5351, %v1442
    %v5353 = vpop.permute.xlu0 %5352
    %5356 = vset.pattern.permute.xlu0 0
    %5357 = vperm.xlu0 %5356, %v1443
    %v5358 = vpop.permute.xlu0 %5357
    %5361 = vset.pattern.permute.xlu0 0
    %5362 = vperm.xlu0 %5361, %v1444
    %v5363 = vpop.permute.xlu0 %5362
    %5366 = vset.pattern.permute.xlu0 0
    %5367 = vperm.xlu0 %5366, %v1445
    %v5368 = vpop.permute.xlu0 %5367
    %5371 = vset.pattern.permute.xlu0 0
    %5372 = vperm.xlu0 %5371, %v1446
    %v5373 = vpop.permute.xlu0 %5372
    %5376 = vset.pattern.permute.xlu0 0
    %5377 = vperm.xlu0 %5376, %v1447
    %v5378 = vpop.permute.xlu0 %5377
    %5381 = vset.pattern.permute.xlu0 0
    %5382 = vperm.xlu0 %5381, %v1448
    %v5383 = vpop.permute.xlu0 %5382
    %5386 = vset.pattern.permute.xlu0 0
    %5387 = vperm.xlu0 %5386, %v1449
    %v5388 = vpop.permute.xlu0 %5387
    %5391 = vset.pattern.permute.xlu0 0
    %5392 = vperm.xlu0 %5391, %v1450
    %v5393 = vpop.permute.xlu0 %5392
    %5396 = vset.pattern.permute.xlu0 0
    %5397 = vperm.xlu0 %5396, %v1451
    %v5398 = vpop.permute.xlu0 %5397
    %5401 = vset.pattern.permute.xlu0 0
    %5402 = vperm.xlu0 %5401, %v1452
    %v5403 = vpop.permute.xlu0 %5402
    %5406 = vset.pattern.permute.xlu0 0
    %5407 = vperm.xlu0 %5406, %v1453
    %v5408 = vpop.permute.xlu0 %5407
    %5411 = vset.pattern.permute.xlu0 0
    %5412 = vperm.xlu0 %5411, %v1454
    %v5413 = vpop.permute.xlu0 %5412
    %5416 = vset.pattern.permute.xlu0 0
    %5417 = vperm.xlu0 %5416, %v1455
    %v5418 = vpop.permute.xlu0 %5417
    %5421 = vset.pattern.permute.xlu0 0
    %5422 = vperm.xlu0 %5421, %v1456
    %v5423 = vpop.permute.xlu0 %5422
    %5426 = vset.pattern.permute.xlu0 0
    %5427 = vperm.xlu0 %5426, %v1457
    %v5428 = vpop.permute.xlu0 %5427
    %5431 = vset.pattern.permute.xlu0 0
    %5432 = vperm.xlu0 %5431, %v1458
    %v5433 = vpop.permute.xlu0 %5432
    %5436 = vset.pattern.permute.xlu0 0
    %5437 = vperm.xlu0 %5436, %v1459
    %v5438 = vpop.permute.xlu0 %5437
    %5441 = vset.pattern.permute.xlu0 0
    %5442 = vperm.xlu0 %5441, %v1460
    %v5443 = vpop.permute.xlu0 %5442
    %5446 = vset.pattern.permute.xlu0 0
    %5447 = vperm.xlu0 %5446, %v1461
    %v5448 = vpop.permute.xlu0 %5447
    %5451 = vset.pattern.permute.xlu0 0
    %5452 = vperm.xlu0 %5451, %v1462
    %v5453 = vpop.permute.xlu0 %5452
    %5456 = vset.pattern.permute.xlu0 0
    %5457 = vperm.xlu0 %5456, %v1463
    %v5458 = vpop.permute.xlu0 %5457
    %5461 = vset.pattern.permute.xlu0 0
    %5462 = vperm.xlu0 %5461, %v1464
    %v5463 = vpop.permute.xlu0 %5462
    %5466 = vset.pattern.permute.xlu0 0
    %5467 = vperm.xlu0 %5466, %v1465
    %v5468 = vpop.permute.xlu0 %5467
    %5471 = vset.pattern.permute.xlu0 0
    %5472 = vperm.xlu0 %5471, %v1466
    %v5473 = vpop.permute.xlu0 %5472
    %5476 = vset.pattern.permute.xlu0 0
    %5477 = vperm.xlu0 %5476, %v1467
    %v5478 = vpop.permute.xlu0 %5477
    %5481 = vset.pattern.permute.xlu0 0
    %5482 = vperm.xlu0 %5481, %v1468
    %v5483 = vpop.permute.xlu0 %5482
    %5486 = vset.pattern.permute.xlu0 0
    %5487 = vperm.xlu0 %5486, %v1469
    %v5488 = vpop.permute.xlu0 %5487
    %5491 = vset.pattern.permute.xlu0 0
    %5492 = vperm.xlu0 %5491, %v1470
    %v5493 = vpop.permute.xlu0 %5492
    %5496 = vset.pattern.permute.xlu0 0
    %5497 = vperm.xlu0 %5496, %v1471
    %v5498 = vpop.permute.xlu0 %5497
    %5501 = vset.pattern.permute.xlu0 0
    %5502 = vperm.xlu0 %5501, %v1472
    %v5503 = vpop.permute.xlu0 %5502
    %5506 = vset.pattern.permute.xlu0 0
    %5507 = vperm.xlu0 %5506, %v1473
    %v5508 = vpop.permute.xlu0 %5507
    %5511 = vset.pattern.permute.xlu0 0
    %5512 = vperm.xlu0 %5511, %v1474
    %v5513 = vpop.permute.xlu0 %5512
    %5516 = vset.pattern.permute.xlu0 0
    %5517 = vperm.xlu0 %5516, %v1475
    %v5518 = vpop.permute.xlu0 %5517
    %5521 = vset.pattern.permute.xlu0 0
    %5522 = vperm.xlu0 %5521, %v1476
    %v5523 = vpop.permute.xlu0 %5522
    %5526 = vset.pattern.permute.xlu0 0
    %5527 = vperm.xlu0 %5526, %v1477
    %v5528 = vpop.permute.xlu0 %5527
    %5531 = vset.pattern.permute.xlu0 0
    %5532 = vperm.xlu0 %5531, %v1478
    %v5533 = vpop.permute.xlu0 %5532
    %5536 = vset.pattern.permute.xlu0 0
    %5537 = vperm.xlu0 %5536, %v1479
    %v5538 = vpop.permute.xlu0 %5537
    %5541 = vset.pattern.permute.xlu0 0
    %5542 = vperm.xlu0 %5541, %v1480
    %v5543 = vpop.permute.xlu0 %5542
    %5546 = vset.pattern.permute.xlu0 0
    %5547 = vperm.xlu0 %5546, %v1481
    %v5548 = vpop.permute.xlu0 %5547
    %5551 = vset.pattern.permute.xlu0 0
    %5552 = vperm.xlu0 %5551, %v1482
    %v5553 = vpop.permute.xlu0 %5552
    %5556 = vset.pattern.permute.xlu0 0
    %5557 = vperm.xlu0 %5556, %v1483
    %v5558 = vpop.permute.xlu0 %5557
    %5561 = vset.pattern.permute.xlu0 0
    %5562 = vperm.xlu0 %5561, %v1484
    %v5563 = vpop.permute.xlu0 %5562
    %5566 = vset.pattern.permute.xlu0 0
    %5567 = vperm.xlu0 %5566, %v1485
    %v5568 = vpop.permute.xlu0 %5567
    %5571 = vset.pattern.permute.xlu0 0
    %5572 = vperm.xlu0 %5571, %v1486
    %v5573 = vpop.permute.xlu0 %5572
    %5576 = vset.pattern.permute.xlu0 0
    %5577 = vperm.xlu0 %5576, %v1487
    %v5578 = vpop.permute.xlu0 %5577
    %5581 = vset.pattern.permute.xlu0 0
    %5582 = vperm.xlu0 %5581, %v1488
    %v5583 = vpop.permute.xlu0 %5582
    %5586 = vset.pattern.permute.xlu0 0
    %5587 = vperm.xlu0 %5586, %v1489
    %v5588 = vpop.permute.xlu0 %5587
    %5591 = vset.pattern.permute.xlu0 0
    %5592 = vperm.xlu0 %5591, %v1490
    %v5593 = vpop.permute.xlu0 %5592
    %5596 = vset.pattern.permute.xlu0 0
    %5597 = vperm.xlu0 %5596, %v1491
    %v5598 = vpop.permute.xlu0 %5597
    %5601 = vset.pattern.permute.xlu0 0
    %5602 = vperm.xlu0 %5601, %v1492
    %v5603 = vpop.permute.xlu0 %5602
    %5606 = vset.pattern.permute.xlu0 0
    %5607 = vperm.xlu0 %5606, %v1493
    %v5608 = vpop.permute.xlu0 %5607
    %5611 = vset.pattern.permute.xlu0 0
    %5612 = vperm.xlu0 %5611, %v1494
    %v5613 = vpop.permute.xlu0 %5612
    %5616 = vset.pattern.permute.xlu0 0
    %5617 = vperm.xlu0 %5616, %v1495
    %v5618 = vpop.permute.xlu0 %5617
    %5621 = vset.pattern.permute.xlu0 0
    %5622 = vperm.xlu0 %5621, %v1496
    %v5623 = vpop.permute.xlu0 %5622
    %5626 = vset.pattern.permute.xlu0 0
    %5627 = vperm.xlu0 %5626, %v1497
    %v5628 = vpop.permute.xlu0 %5627
    %5631 = vset.pattern.permute.xlu0 0
    %5632 = vperm.xlu0 %5631, %v1498
    %v5633 = vpop.permute.xlu0 %5632
    %5636 = vset.pattern.permute.xlu0 0
    %5637 = vperm.xlu0 %5636, %v1499
    %v5638 = vpop.permute.xlu0 %5637
    %5641 = vset.pattern.permute.xlu0 0
    %5642 = vperm.xlu0 %5641, %v1500
    %v5643 = vpop.permute.xlu0 %5642
    %5646 = vset.pattern.permute.xlu0 0
    %5647 = vperm.xlu0 %5646, %v1501
    %v5648 = vpop.permute.xlu0 %5647
    %5651 = vset.pattern.permute.xlu0 0
    %5652 = vperm.xlu0 %5651, %v1502
    %v5653 = vpop.permute.xlu0 %5652
    %5656 = vset.pattern.permute.xlu0 0
    %5657 = vperm.xlu0 %5656, %v1503
    %v5658 = vpop.permute.xlu0 %5657
    %5661 = vset.pattern.permute.xlu0 0
    %5662 = vperm.xlu0 %5661, %v1504
    %v5663 = vpop.permute.xlu0 %5662
    %v5665 = vmul.f32 %v5281, %v5348
    %v5666 = vmul.f32 %v5282, %v5353
    %v5667 = vmul.f32 %v5283, %v5358
    %v5668 = vmul.f32 %v5284, %v5363
    %v5669 = vmul.f32 %v5285, %v5368
    %v5670 = vmul.f32 %v5286, %v5373
    %v5671 = vmul.f32 %v5287, %v5378
    %v5672 = vmul.f32 %v5288, %v5383
    %v5673 = vmul.f32 %v5289, %v5388
    %v5674 = vmul.f32 %v5290, %v5393
    %v5675 = vmul.f32 %v5291, %v5398
    %v5676 = vmul.f32 %v5292, %v5403
    %v5677 = vmul.f32 %v5293, %v5408
    %v5678 = vmul.f32 %v5294, %v5413
    %v5679 = vmul.f32 %v5295, %v5418
    %v5680 = vmul.f32 %v5296, %v5423
    %v5681 = vmul.f32 %v5297, %v5428
    %v5682 = vmul.f32 %v5298, %v5433
    %v5683 = vmul.f32 %v5299, %v5438
    %v5684 = vmul.f32 %v5300, %v5443
    %v5685 = vmul.f32 %v5301, %v5448
    %v5686 = vmul.f32 %v5302, %v5453
    %v5687 = vmul.f32 %v5303, %v5458
    %v5688 = vmul.f32 %v5304, %v5463
    %v5689 = vmul.f32 %v5305, %v5468
    %v5690 = vmul.f32 %v5306, %v5473
    %v5691 = vmul.f32 %v5307, %v5478
    %v5692 = vmul.f32 %v5308, %v5483
    %v5693 = vmul.f32 %v5309, %v5488
    %v5694 = vmul.f32 %v5310, %v5493
    %v5695 = vmul.f32 %v5311, %v5498
    %v5696 = vmul.f32 %v5312, %v5503
    %v5697 = vmul.f32 %v5313, %v5508
    %v5698 = vmul.f32 %v5314, %v5513
    %v5699 = vmul.f32 %v5315, %v5518
    %v5700 = vmul.f32 %v5316, %v5523
    %v5701 = vmul.f32 %v5317, %v5528
    %v5702 = vmul.f32 %v5318, %v5533
    %v5703 = vmul.f32 %v5319, %v5538
    %v5704 = vmul.f32 %v5320, %v5543
    %v5705 = vmul.f32 %v5321, %v5548
    %v5706 = vmul.f32 %v5322, %v5553
    %v5707 = vmul.f32 %v5323, %v5558
    %v5708 = vmul.f32 %v5324, %v5563
    %v5709 = vmul.f32 %v5325, %v5568
    %v5710 = vmul.f32 %v5326, %v5573
    %v5711 = vmul.f32 %v5327, %v5578
    %v5712 = vmul.f32 %v5328, %v5583
    %v5713 = vmul.f32 %v5329, %v5588
    %v5714 = vmul.f32 %v5330, %v5593
    %v5715 = vmul.f32 %v5331, %v5598
    %v5716 = vmul.f32 %v5332, %v5603
    %v5717 = vmul.f32 %v5333, %v5608
    %v5718 = vmul.f32 %v5334, %v5613
    %v5719 = vmul.f32 %v5335, %v5618
    %v5720 = vmul.f32 %v5336, %v5623
    %v5721 = vmul.f32 %v5337, %v5628
    %v5722 = vmul.f32 %v5338, %v5633
    %v5723 = vmul.f32 %v5339, %v5638
    %v5724 = vmul.f32 %v5340, %v5643
    %v5725 = vmul.f32 %v5341, %v5648
    %v5726 = vmul.f32 %v5342, %v5653
    %v5727 = vmul.f32 %v5343, %v5658
    %v5728 = vmul.f32 %v5344, %v5663
    %v5729 = vpack.c.bf16 %v5666, %v5665
    %v5730 = vpack.c.bf16 %v5668, %v5667
    %v5731 = vpack.c.bf16 %v5670, %v5669
    %v5732 = vpack.c.bf16 %v5672, %v5671
    %v5733 = vpack.c.bf16 %v5674, %v5673
    %v5734 = vpack.c.bf16 %v5676, %v5675
    %v5735 = vpack.c.bf16 %v5678, %v5677
    %v5736 = vpack.c.bf16 %v5680, %v5679
    %v5737 = vpack.c.bf16 %v5682, %v5681
    %v5738 = vpack.c.bf16 %v5684, %v5683
    %v5739 = vpack.c.bf16 %v5686, %v5685
    %v5740 = vpack.c.bf16 %v5688, %v5687
    %v5741 = vpack.c.bf16 %v5690, %v5689
    %v5742 = vpack.c.bf16 %v5692, %v5691
    %v5743 = vpack.c.bf16 %v5694, %v5693
    %v5744 = vpack.c.bf16 %v5696, %v5695
    %v5745 = vpack.c.bf16 %v5698, %v5697
    %v5746 = vpack.c.bf16 %v5700, %v5699
    %v5747 = vpack.c.bf16 %v5702, %v5701
    %v5748 = vpack.c.bf16 %v5704, %v5703
    %v5749 = vpack.c.bf16 %v5706, %v5705
    %v5750 = vpack.c.bf16 %v5708, %v5707
    %v5751 = vpack.c.bf16 %v5710, %v5709
    %v5752 = vpack.c.bf16 %v5712, %v5711
    %v5753 = vpack.c.bf16 %v5714, %v5713
    %v5754 = vpack.c.bf16 %v5716, %v5715
    %v5755 = vpack.c.bf16 %v5718, %v5717
    %v5756 = vpack.c.bf16 %v5720, %v5719
    %v5757 = vpack.c.bf16 %v5722, %v5721
    %v5758 = vpack.c.bf16 %v5724, %v5723
    %v5759 = vpack.c.bf16 %v5726, %v5725
    %v5760 = vpack.c.bf16 %v5728, %v5727
    %5761 = vst [vmem:[#allocation3 + $0x38] sm:$0xff] %v5729
    %5762 = vst [vmem:[#allocation3 + $0x80] sm:$0xff] %v5730
    %5763 = vst [vmem:[#allocation3 + $0xc8] sm:$0xff] %v5731
    %5764 = vst [vmem:[#allocation3 + $0x110] sm:$0xff] %v5732
    %5765 = vst [vmem:[#allocation3 + $0x158] sm:$0xff] %v5733
    %5766 = vst [vmem:[#allocation3 + $0x1a0] sm:$0xff] %v5734
    %5767 = vst [vmem:[#allocation3 + $0x1e8] sm:$0xff] %v5735
    %5768 = vst [vmem:[#allocation3 + $0x230] sm:$0xff] %v5736
    %5769 = vst [vmem:[#allocation3 + $0x278] sm:$0xff] %v5737
    %5770 = vst [vmem:[#allocation3 + $0x2c0] sm:$0xff] %v5738
    %5771 = vst [vmem:[#allocation3 + $0x308] sm:$0xff] %v5739
    %5772 = vst [vmem:[#allocation3 + $0x350] sm:$0xff] %v5740
    %5773 = vst [vmem:[#allocation3 + $0x398] sm:$0xff] %v5741
    %5774 = vst [vmem:[#allocation3 + $0x3e0] sm:$0xff] %v5742
    %5775 = vst [vmem:[#allocation3 + $0x428] sm:$0xff] %v5743
    %5776 = vst [vmem:[#allocation3 + $0x470] sm:$0xff] %v5744
    %5777 = vst [vmem:[#allocation3 + $0x4b8] sm:$0xff] %v5745
    %5778 = vst [vmem:[#allocation3 + $0x500] sm:$0xff] %v5746
    %5779 = vst [vmem:[#allocation3 + $0x548] sm:$0xff] %v5747
    %5780 = vst [vmem:[#allocation3 + $0x590] sm:$0xff] %v5748
    %5781 = vst [vmem:[#allocation3 + $0x5d8] sm:$0xff] %v5749
    %5782 = vst [vmem:[#allocation3 + $0x620] sm:$0xff] %v5750
    %5783 = vst [vmem:[#allocation3 + $0x668] sm:$0xff] %v5751
    %5784 = vst [vmem:[#allocation3 + $0x6b0] sm:$0xff] %v5752
    %5785 = vst [vmem:[#allocation3 + $0x6f8] sm:$0xff] %v5753
    %5786 = vst [vmem:[#allocation3 + $0x740] sm:$0xff] %v5754
    %5787 = vst [vmem:[#allocation3 + $0x788] sm:$0xff] %v5755
    %5788 = vst [vmem:[#allocation3 + $0x7d0] sm:$0xff] %v5756
    %5789 = vst [vmem:[#allocation3 + $0x818] sm:$0xff] %v5757
    %5790 = vst [vmem:[#allocation3 + $0x860] sm:$0xff] %v5758
    %5791 = vst [vmem:[#allocation3 + $0x8a8] sm:$0xff] %v5759
    %5792 = vst [vmem:[#allocation3 + $0x8f0] sm:$0xff] %v5760
    %v5793 = vld [vmem:[#allocation2 + $0x29] sm:$0xff]
    %v5794 = vld [vmem:[#allocation2 + $0x31] sm:$0xff]
    %v5795 = vld [vmem:[#allocation2 + $0x39] sm:$0xff]
    %v5796 = vld [vmem:[#allocation2 + $0x41] sm:$0xff]
    %v5797 = vld [vmem:[#allocation2 + $0x49] sm:$0xff]
    %v5798 = vld [vmem:[#allocation2 + $0x51] sm:$0xff]
    %v5799 = vld [vmem:[#allocation2 + $0x59] sm:$0xff]
    %v5800 = vld [vmem:[#allocation2 + $0x61] sm:$0xff]
    %v5801 = vld [vmem:[#allocation2 + $0x69] sm:$0xff]
    %v5802 = vld [vmem:[#allocation2 + $0x71] sm:$0xff]
    %v5803 = vld [vmem:[#allocation2 + $0x79] sm:$0xff]
    %v5804 = vld [vmem:[#allocation2 + $0x81] sm:$0xff]
    %v5805 = vld [vmem:[#allocation2 + $0x89] sm:$0xff]
    %v5806 = vld [vmem:[#allocation2 + $0x91] sm:$0xff]
    %v5807 = vld [vmem:[#allocation2 + $0x99] sm:$0xff]
    %v5808 = vld [vmem:[#allocation2 + $0xa1] sm:$0xff]
    %v5809 = vld [vmem:[#allocation2 + $0xa9] sm:$0xff]
    %v5810 = vld [vmem:[#allocation2 + $0xb1] sm:$0xff]
    %v5811 = vld [vmem:[#allocation2 + $0xb9] sm:$0xff]
    %v5812 = vld [vmem:[#allocation2 + $0xc1] sm:$0xff]
    %v5813 = vld [vmem:[#allocation2 + $0xc9] sm:$0xff]
    %v5814 = vld [vmem:[#allocation2 + $0xd1] sm:$0xff]
    %v5815 = vld [vmem:[#allocation2 + $0xd9] sm:$0xff]
    %v5816 = vld [vmem:[#allocation2 + $0xe1] sm:$0xff]
    %v5817 = vld [vmem:[#allocation2 + $0xe9] sm:$0xff]
    %v5818 = vld [vmem:[#allocation2 + $0xf1] sm:$0xff]
    %v5819 = vld [vmem:[#allocation2 + $0xf9] sm:$0xff]
    %v5820 = vld [vmem:[#allocation2 + $0x101] sm:$0xff]
    %v5821 = vld [vmem:[#allocation2 + $0x109] sm:$0xff]
    %v5822 = vld [vmem:[#allocation2 + $0x111] sm:$0xff]
    %v5823 = vld [vmem:[#allocation2 + $0x119] sm:$0xff]
    %v5824 = vld [vmem:[#allocation2 + $0x121] sm:$0xff]
    %v5825 = vld [vmem:[#allocation2 + $0x129] sm:$0xff]
    %v5826 = vld [vmem:[#allocation2 + $0x131] sm:$0xff]
    %v5827 = vld [vmem:[#allocation2 + $0x139] sm:$0xff]
    %v5828 = vld [vmem:[#allocation2 + $0x141] sm:$0xff]
    %v5829 = vld [vmem:[#allocation2 + $0x149] sm:$0xff]
    %v5830 = vld [vmem:[#allocation2 + $0x151] sm:$0xff]
    %v5831 = vld [vmem:[#allocation2 + $0x159] sm:$0xff]
    %v5832 = vld [vmem:[#allocation2 + $0x161] sm:$0xff]
    %v5833 = vld [vmem:[#allocation2 + $0x169] sm:$0xff]
    %v5834 = vld [vmem:[#allocation2 + $0x171] sm:$0xff]
    %v5835 = vld [vmem:[#allocation2 + $0x179] sm:$0xff]
    %v5836 = vld [vmem:[#allocation2 + $0x181] sm:$0xff]
    %v5837 = vld [vmem:[#allocation2 + $0x189] sm:$0xff]
    %v5838 = vld [vmem:[#allocation2 + $0x191] sm:$0xff]
    %v5839 = vld [vmem:[#allocation2 + $0x199] sm:$0xff]
    %v5840 = vld [vmem:[#allocation2 + $0x1a1] sm:$0xff]
    %v5841 = vld [vmem:[#allocation2 + $0x1a9] sm:$0xff]
    %v5842 = vld [vmem:[#allocation2 + $0x1b1] sm:$0xff]
    %v5843 = vld [vmem:[#allocation2 + $0x1b9] sm:$0xff]
    %v5844 = vld [vmem:[#allocation2 + $0x1c1] sm:$0xff]
    %v5845 = vld [vmem:[#allocation2 + $0x1c9] sm:$0xff]
    %v5846 = vld [vmem:[#allocation2 + $0x1d1] sm:$0xff]
    %v5847 = vld [vmem:[#allocation2 + $0x1d9] sm:$0xff]
    %v5848 = vld [vmem:[#allocation2 + $0x1e1] sm:$0xff]
    %v5849 = vld [vmem:[#allocation2 + $0x1e9] sm:$0xff]
    %v5850 = vld [vmem:[#allocation2 + $0x1f1] sm:$0xff]
    %v5851 = vld [vmem:[#allocation2 + $0x1f9] sm:$0xff]
    %v5852 = vld [vmem:[#allocation2 + $0x201] sm:$0xff]
    %v5853 = vld [vmem:[#allocation2 + $0x209] sm:$0xff]
    %v5854 = vld [vmem:[#allocation2 + $0x211] sm:$0xff]
    %v5855 = vld [vmem:[#allocation2 + $0x219] sm:$0xff]
    %v5856 = vld [vmem:[#allocation2 + $0x221] sm:$0xff]
    %v5857 = vmul.f32 %v1441, %v1825
    %v5858 = vmul.f32 %v1442, %v1826
    %v5859 = vmul.f32 %v1443, %v1827
    %v5860 = vmul.f32 %v1444, %v1828
    %v5861 = vmul.f32 %v1445, %v1829
    %v5862 = vmul.f32 %v1446, %v1830
    %v5863 = vmul.f32 %v1447, %v1831
    %v5864 = vmul.f32 %v1448, %v1832
    %v5865 = vmul.f32 %v1449, %v1833
    %v5866 = vmul.f32 %v1450, %v1834
    %v5867 = vmul.f32 %v1451, %v1835
    %v5868 = vmul.f32 %v1452, %v1836
    %v5869 = vmul.f32 %v1453, %v1837
    %v5870 = vmul.f32 %v1454, %v1838
    %v5871 = vmul.f32 %v1455, %v1839
    %v5872 = vmul.f32 %v1456, %v1840
    %v5873 = vmul.f32 %v1457, %v1841
    %v5874 = vmul.f32 %v1458, %v1842
    %v5875 = vmul.f32 %v1459, %v1843
    %v5876 = vmul.f32 %v1460, %v1844
    %v5877 = vmul.f32 %v1461, %v1845
    %v5878 = vmul.f32 %v1462, %v1846
    %v5879 = vmul.f32 %v1463, %v1847
    %v5880 = vmul.f32 %v1464, %v1848
    %v5881 = vmul.f32 %v1465, %v1849
    %v5882 = vmul.f32 %v1466, %v1850
    %v5883 = vmul.f32 %v1467, %v1851
    %v5884 = vmul.f32 %v1468, %v1852
    %v5885 = vmul.f32 %v1469, %v1853
    %v5886 = vmul.f32 %v1470, %v1854
    %v5887 = vmul.f32 %v1471, %v1855
    %v5888 = vmul.f32 %v1472, %v1856
    %v5889 = vmul.f32 %v1473, %v1857
    %v5890 = vmul.f32 %v1474, %v1858
    %v5891 = vmul.f32 %v1475, %v1859
    %v5892 = vmul.f32 %v1476, %v1860
    %v5893 = vmul.f32 %v1477, %v1861
    %v5894 = vmul.f32 %v1478, %v1862
    %v5895 = vmul.f32 %v1479, %v1863
    %v5896 = vmul.f32 %v1480, %v1864
    %v5897 = vmul.f32 %v1481, %v1865
    %v5898 = vmul.f32 %v1482, %v1866
    %v5899 = vmul.f32 %v1483, %v1867
    %v5900 = vmul.f32 %v1484, %v1868
    %v5901 = vmul.f32 %v1485, %v1869
    %v5902 = vmul.f32 %v1486, %v1870
    %v5903 = vmul.f32 %v1487, %v1871
    %v5904 = vmul.f32 %v1488, %v1872
    %v5905 = vmul.f32 %v1489, %v1873
    %v5906 = vmul.f32 %v1490, %v1874
    %v5907 = vmul.f32 %v1491, %v1875
    %v5908 = vmul.f32 %v1492, %v1876
    %v5909 = vmul.f32 %v1493, %v1877
    %v5910 = vmul.f32 %v1494, %v1878
    %v5911 = vmul.f32 %v1495, %v1879
    %v5912 = vmul.f32 %v1496, %v1880
    %v5913 = vmul.f32 %v1497, %v1881
    %v5914 = vmul.f32 %v1498, %v1882
    %v5915 = vmul.f32 %v1499, %v1883
    %v5916 = vmul.f32 %v1500, %v1884
    %v5917 = vmul.f32 %v1501, %v1885
    %v5918 = vmul.f32 %v1502, %v1886
    %v5919 = vmul.f32 %v1503, %v1887
    %v5920 = vmul.f32 %v1504, %v1888
    %5922 = vset.pattern.permute.xlu0 0
    %5923 = vperm.xlu0 %5922, %v5857
    %v5924 = vpop.permute.xlu0 %5923
    %5927 = vset.pattern.permute.xlu0 0
    %5928 = vperm.xlu0 %5927, %v5858
    %v5929 = vpop.permute.xlu0 %5928
    %5932 = vset.pattern.permute.xlu0 0
    %5933 = vperm.xlu0 %5932, %v5859
    %v5934 = vpop.permute.xlu0 %5933
    %5937 = vset.pattern.permute.xlu0 0
    %5938 = vperm.xlu0 %5937, %v5860
    %v5939 = vpop.permute.xlu0 %5938
    %5942 = vset.pattern.permute.xlu0 0
    %5943 = vperm.xlu0 %5942, %v5861
    %v5944 = vpop.permute.xlu0 %5943
    %5947 = vset.pattern.permute.xlu0 0
    %5948 = vperm.xlu0 %5947, %v5862
    %v5949 = vpop.permute.xlu0 %5948
    %5952 = vset.pattern.permute.xlu0 0
    %5953 = vperm.xlu0 %5952, %v5863
    %v5954 = vpop.permute.xlu0 %5953
    %5957 = vset.pattern.permute.xlu0 0
    %5958 = vperm.xlu0 %5957, %v5864
    %v5959 = vpop.permute.xlu0 %5958
    %5962 = vset.pattern.permute.xlu0 0
    %5963 = vperm.xlu0 %5962, %v5865
    %v5964 = vpop.permute.xlu0 %5963
    %5967 = vset.pattern.permute.xlu0 0
    %5968 = vperm.xlu0 %5967, %v5866
    %v5969 = vpop.permute.xlu0 %5968
    %5972 = vset.pattern.permute.xlu0 0
    %5973 = vperm.xlu0 %5972, %v5867
    %v5974 = vpop.permute.xlu0 %5973
    %5977 = vset.pattern.permute.xlu0 0
    %5978 = vperm.xlu0 %5977, %v5868
    %v5979 = vpop.permute.xlu0 %5978
    %5982 = vset.pattern.permute.xlu0 0
    %5983 = vperm.xlu0 %5982, %v5869
    %v5984 = vpop.permute.xlu0 %5983
    %5987 = vset.pattern.permute.xlu0 0
    %5988 = vperm.xlu0 %5987, %v5870
    %v5989 = vpop.permute.xlu0 %5988
    %5992 = vset.pattern.permute.xlu0 0
    %5993 = vperm.xlu0 %5992, %v5871
    %v5994 = vpop.permute.xlu0 %5993
    %5997 = vset.pattern.permute.xlu0 0
    %5998 = vperm.xlu0 %5997, %v5872
    %v5999 = vpop.permute.xlu0 %5998
    %6002 = vset.pattern.permute.xlu0 0
    %6003 = vperm.xlu0 %6002, %v5873
    %v6004 = vpop.permute.xlu0 %6003
    %6007 = vset.pattern.permute.xlu0 0
    %6008 = vperm.xlu0 %6007, %v5874
    %v6009 = vpop.permute.xlu0 %6008
    %6012 = vset.pattern.permute.xlu0 0
    %6013 = vperm.xlu0 %6012, %v5875
    %v6014 = vpop.permute.xlu0 %6013
    %6017 = vset.pattern.permute.xlu0 0
    %6018 = vperm.xlu0 %6017, %v5876
    %v6019 = vpop.permute.xlu0 %6018
    %6022 = vset.pattern.permute.xlu0 0
    %6023 = vperm.xlu0 %6022, %v5877
    %v6024 = vpop.permute.xlu0 %6023
    %6027 = vset.pattern.permute.xlu0 0
    %6028 = vperm.xlu0 %6027, %v5878
    %v6029 = vpop.permute.xlu0 %6028
    %6032 = vset.pattern.permute.xlu0 0
    %6033 = vperm.xlu0 %6032, %v5879
    %v6034 = vpop.permute.xlu0 %6033
    %6037 = vset.pattern.permute.xlu0 0
    %6038 = vperm.xlu0 %6037, %v5880
    %v6039 = vpop.permute.xlu0 %6038
    %6042 = vset.pattern.permute.xlu0 0
    %6043 = vperm.xlu0 %6042, %v5881
    %v6044 = vpop.permute.xlu0 %6043
    %6047 = vset.pattern.permute.xlu0 0
    %6048 = vperm.xlu0 %6047, %v5882
    %v6049 = vpop.permute.xlu0 %6048
    %6052 = vset.pattern.permute.xlu0 0
    %6053 = vperm.xlu0 %6052, %v5883
    %v6054 = vpop.permute.xlu0 %6053
    %6057 = vset.pattern.permute.xlu0 0
    %6058 = vperm.xlu0 %6057, %v5884
    %v6059 = vpop.permute.xlu0 %6058
    %6062 = vset.pattern.permute.xlu0 0
    %6063 = vperm.xlu0 %6062, %v5885
    %v6064 = vpop.permute.xlu0 %6063
    %6067 = vset.pattern.permute.xlu0 0
    %6068 = vperm.xlu0 %6067, %v5886
    %v6069 = vpop.permute.xlu0 %6068
    %6072 = vset.pattern.permute.xlu0 0
    %6073 = vperm.xlu0 %6072, %v5887
    %v6074 = vpop.permute.xlu0 %6073
    %6077 = vset.pattern.permute.xlu0 0
    %6078 = vperm.xlu0 %6077, %v5888
    %v6079 = vpop.permute.xlu0 %6078
    %6082 = vset.pattern.permute.xlu0 0
    %6083 = vperm.xlu0 %6082, %v5889
    %v6084 = vpop.permute.xlu0 %6083
    %6087 = vset.pattern.permute.xlu0 0
    %6088 = vperm.xlu0 %6087, %v5890
    %v6089 = vpop.permute.xlu0 %6088
    %6092 = vset.pattern.permute.xlu0 0
    %6093 = vperm.xlu0 %6092, %v5891
    %v6094 = vpop.permute.xlu0 %6093
    %6097 = vset.pattern.permute.xlu0 0
    %6098 = vperm.xlu0 %6097, %v5892
    %v6099 = vpop.permute.xlu0 %6098
    %6102 = vset.pattern.permute.xlu0 0
    %6103 = vperm.xlu0 %6102, %v5893
    %v6104 = vpop.permute.xlu0 %6103
    %6107 = vset.pattern.permute.xlu0 0
    %6108 = vperm.xlu0 %6107, %v5894
    %v6109 = vpop.permute.xlu0 %6108
    %6112 = vset.pattern.permute.xlu0 0
    %6113 = vperm.xlu0 %6112, %v5895
    %v6114 = vpop.permute.xlu0 %6113
    %6117 = vset.pattern.permute.xlu0 0
    %6118 = vperm.xlu0 %6117, %v5896
    %v6119 = vpop.permute.xlu0 %6118
    %6122 = vset.pattern.permute.xlu0 0
    %6123 = vperm.xlu0 %6122, %v5897
    %v6124 = vpop.permute.xlu0 %6123
    %6127 = vset.pattern.permute.xlu0 0
    %6128 = vperm.xlu0 %6127, %v5898
    %v6129 = vpop.permute.xlu0 %6128
    %6132 = vset.pattern.permute.xlu0 0
    %6133 = vperm.xlu0 %6132, %v5899
    %v6134 = vpop.permute.xlu0 %6133
    %6137 = vset.pattern.permute.xlu0 0
    %6138 = vperm.xlu0 %6137, %v5900
    %v6139 = vpop.permute.xlu0 %6138
    %6142 = vset.pattern.permute.xlu0 0
    %6143 = vperm.xlu0 %6142, %v5901
    %v6144 = vpop.permute.xlu0 %6143
    %6147 = vset.pattern.permute.xlu0 0
    %6148 = vperm.xlu0 %6147, %v5902
    %v6149 = vpop.permute.xlu0 %6148
    %6152 = vset.pattern.permute.xlu0 0
    %6153 = vperm.xlu0 %6152, %v5903
    %v6154 = vpop.permute.xlu0 %6153
    %6157 = vset.pattern.permute.xlu0 0
    %6158 = vperm.xlu0 %6157, %v5904
    %v6159 = vpop.permute.xlu0 %6158
    %6162 = vset.pattern.permute.xlu0 0
    %6163 = vperm.xlu0 %6162, %v5905
    %v6164 = vpop.permute.xlu0 %6163
    %6167 = vset.pattern.permute.xlu0 0
    %6168 = vperm.xlu0 %6167, %v5906
    %v6169 = vpop.permute.xlu0 %6168
    %6172 = vset.pattern.permute.xlu0 0
    %6173 = vperm.xlu0 %6172, %v5907
    %v6174 = vpop.permute.xlu0 %6173
    %6177 = vset.pattern.permute.xlu0 0
    %6178 = vperm.xlu0 %6177, %v5908
    %v6179 = vpop.permute.xlu0 %6178
    %6182 = vset.pattern.permute.xlu0 0
    %6183 = vperm.xlu0 %6182, %v5909
    %v6184 = vpop.permute.xlu0 %6183
    %6187 = vset.pattern.permute.xlu0 0
    %6188 = vperm.xlu0 %6187, %v5910
    %v6189 = vpop.permute.xlu0 %6188
    %6192 = vset.pattern.permute.xlu0 0
    %6193 = vperm.xlu0 %6192, %v5911
    %v6194 = vpop.permute.xlu0 %6193
    %6197 = vset.pattern.permute.xlu0 0
    %6198 = vperm.xlu0 %6197, %v5912
    %v6199 = vpop.permute.xlu0 %6198
    %6202 = vset.pattern.permute.xlu0 0
    %6203 = vperm.xlu0 %6202, %v5913
    %v6204 = vpop.permute.xlu0 %6203
    %6207 = vset.pattern.permute.xlu0 0
    %6208 = vperm.xlu0 %6207, %v5914
    %v6209 = vpop.permute.xlu0 %6208
    %6212 = vset.pattern.permute.xlu0 0
    %6213 = vperm.xlu0 %6212, %v5915
    %v6214 = vpop.permute.xlu0 %6213
    %6217 = vset.pattern.permute.xlu0 0
    %6218 = vperm.xlu0 %6217, %v5916
    %v6219 = vpop.permute.xlu0 %6218
    %6222 = vset.pattern.permute.xlu0 0
    %6223 = vperm.xlu0 %6222, %v5917
    %v6224 = vpop.permute.xlu0 %6223
    %6227 = vset.pattern.permute.xlu0 0
    %6228 = vperm.xlu0 %6227, %v5918
    %v6229 = vpop.permute.xlu0 %6228
    %6232 = vset.pattern.permute.xlu0 0
    %6233 = vperm.xlu0 %6232, %v5919
    %v6234 = vpop.permute.xlu0 %6233
    %6237 = vset.pattern.permute.xlu0 0
    %6238 = vperm.xlu0 %6237, %v5920
    %v6239 = vpop.permute.xlu0 %6238
    %v6241 = vmul.f32 %v5793, %v5924
    %v6242 = vmul.f32 %v5794, %v5929
    %v6243 = vmul.f32 %v5795, %v5934
    %v6244 = vmul.f32 %v5796, %v5939
    %v6245 = vmul.f32 %v5797, %v5944
    %v6246 = vmul.f32 %v5798, %v5949
    %v6247 = vmul.f32 %v5799, %v5954
    %v6248 = vmul.f32 %v5800, %v5959
    %v6249 = vmul.f32 %v5801, %v5964
    %v6250 = vmul.f32 %v5802, %v5969
    %v6251 = vmul.f32 %v5803, %v5974
    %v6252 = vmul.f32 %v5804, %v5979
    %v6253 = vmul.f32 %v5805, %v5984
    %v6254 = vmul.f32 %v5806, %v5989
    %v6255 = vmul.f32 %v5807, %v5994
    %v6256 = vmul.f32 %v5808, %v5999
    %v6257 = vmul.f32 %v5809, %v6004
    %v6258 = vmul.f32 %v5810, %v6009
    %v6259 = vmul.f32 %v5811, %v6014
    %v6260 = vmul.f32 %v5812, %v6019
    %v6261 = vmul.f32 %v5813, %v6024
    %v6262 = vmul.f32 %v5814, %v6029
    %v6263 = vmul.f32 %v5815, %v6034
    %v6264 = vmul.f32 %v5816, %v6039
    %v6265 = vmul.f32 %v5817, %v6044
    %v6266 = vmul.f32 %v5818, %v6049
    %v6267 = vmul.f32 %v5819, %v6054
    %v6268 = vmul.f32 %v5820, %v6059
    %v6269 = vmul.f32 %v5821, %v6064
    %v6270 = vmul.f32 %v5822, %v6069
    %v6271 = vmul.f32 %v5823, %v6074
    %v6272 = vmul.f32 %v5824, %v6079
    %v6273 = vmul.f32 %v5825, %v6084
    %v6274 = vmul.f32 %v5826, %v6089
    %v6275 = vmul.f32 %v5827, %v6094
    %v6276 = vmul.f32 %v5828, %v6099
    %v6277 = vmul.f32 %v5829, %v6104
    %v6278 = vmul.f32 %v5830, %v6109
    %v6279 = vmul.f32 %v5831, %v6114
    %v6280 = vmul.f32 %v5832, %v6119
    %v6281 = vmul.f32 %v5833, %v6124
    %v6282 = vmul.f32 %v5834, %v6129
    %v6283 = vmul.f32 %v5835, %v6134
    %v6284 = vmul.f32 %v5836, %v6139
    %v6285 = vmul.f32 %v5837, %v6144
    %v6286 = vmul.f32 %v5838, %v6149
    %v6287 = vmul.f32 %v5839, %v6154
    %v6288 = vmul.f32 %v5840, %v6159
    %v6289 = vmul.f32 %v5841, %v6164
    %v6290 = vmul.f32 %v5842, %v6169
    %v6291 = vmul.f32 %v5843, %v6174
    %v6292 = vmul.f32 %v5844, %v6179
    %v6293 = vmul.f32 %v5845, %v6184
    %v6294 = vmul.f32 %v5846, %v6189
    %v6295 = vmul.f32 %v5847, %v6194
    %v6296 = vmul.f32 %v5848, %v6199
    %v6297 = vmul.f32 %v5849, %v6204
    %v6298 = vmul.f32 %v5850, %v6209
    %v6299 = vmul.f32 %v5851, %v6214
    %v6300 = vmul.f32 %v5852, %v6219
    %v6301 = vmul.f32 %v5853, %v6224
    %v6302 = vmul.f32 %v5854, %v6229
    %v6303 = vmul.f32 %v5855, %v6234
    %v6304 = vmul.f32 %v5856, %v6239
    %v6305 = vpack.c.bf16 %v6242, %v6241
    %v6306 = vpack.c.bf16 %v6244, %v6243
    %v6307 = vpack.c.bf16 %v6246, %v6245
    %v6308 = vpack.c.bf16 %v6248, %v6247
    %v6309 = vpack.c.bf16 %v6250, %v6249
    %v6310 = vpack.c.bf16 %v6252, %v6251
    %v6311 = vpack.c.bf16 %v6254, %v6253
    %v6312 = vpack.c.bf16 %v6256, %v6255
    %v6313 = vpack.c.bf16 %v6258, %v6257
    %v6314 = vpack.c.bf16 %v6260, %v6259
    %v6315 = vpack.c.bf16 %v6262, %v6261
    %v6316 = vpack.c.bf16 %v6264, %v6263
    %v6317 = vpack.c.bf16 %v6266, %v6265
    %v6318 = vpack.c.bf16 %v6268, %v6267
    %v6319 = vpack.c.bf16 %v6270, %v6269
    %v6320 = vpack.c.bf16 %v6272, %v6271
    %v6321 = vpack.c.bf16 %v6274, %v6273
    %v6322 = vpack.c.bf16 %v6276, %v6275
    %v6323 = vpack.c.bf16 %v6278, %v6277
    %v6324 = vpack.c.bf16 %v6280, %v6279
    %v6325 = vpack.c.bf16 %v6282, %v6281
    %v6326 = vpack.c.bf16 %v6284, %v6283
    %v6327 = vpack.c.bf16 %v6286, %v6285
    %v6328 = vpack.c.bf16 %v6288, %v6287
    %v6329 = vpack.c.bf16 %v6290, %v6289
    %v6330 = vpack.c.bf16 %v6292, %v6291
    %v6331 = vpack.c.bf16 %v6294, %v6293
    %v6332 = vpack.c.bf16 %v6296, %v6295
    %v6333 = vpack.c.bf16 %v6298, %v6297
    %v6334 = vpack.c.bf16 %v6300, %v6299
    %v6335 = vpack.c.bf16 %v6302, %v6301
    %v6336 = vpack.c.bf16 %v6304, %v6303
    %6337 = vst [vmem:[#allocation3 + $0x40] sm:$0xff] %v6305
    %6338 = vst [vmem:[#allocation3 + $0x88] sm:$0xff] %v6306
    %6339 = vst [vmem:[#allocation3 + $0xd0] sm:$0xff] %v6307
    %6340 = vst [vmem:[#allocation3 + $0x118] sm:$0xff] %v6308
    %6341 = vst [vmem:[#allocation3 + $0x160] sm:$0xff] %v6309
    %6342 = vst [vmem:[#allocation3 + $0x1a8] sm:$0xff] %v6310
    %6343 = vst [vmem:[#allocation3 + $0x1f0] sm:$0xff] %v6311
    %6344 = vst [vmem:[#allocation3 + $0x238] sm:$0xff] %v6312
    %6345 = vst [vmem:[#allocation3 + $0x280] sm:$0xff] %v6313
    %6346 = vst [vmem:[#allocation3 + $0x2c8] sm:$0xff] %v6314
    %6347 = vst [vmem:[#allocation3 + $0x310] sm:$0xff] %v6315
    %6348 = vst [vmem:[#allocation3 + $0x358] sm:$0xff] %v6316
    %6349 = vst [vmem:[#allocation3 + $0x3a0] sm:$0xff] %v6317
    %6350 = vst [vmem:[#allocation3 + $0x3e8] sm:$0xff] %v6318
    %6351 = vst [vmem:[#allocation3 + $0x430] sm:$0xff] %v6319
    %6352 = vst [vmem:[#allocation3 + $0x478] sm:$0xff] %v6320
    %6353 = vst [vmem:[#allocation3 + $0x4c0] sm:$0xff] %v6321
    %6354 = vst [vmem:[#allocation3 + $0x508] sm:$0xff] %v6322
    %6355 = vst [vmem:[#allocation3 + $0x550] sm:$0xff] %v6323
    %6356 = vst [vmem:[#allocation3 + $0x598] sm:$0xff] %v6324
    %6357 = vst [vmem:[#allocation3 + $0x5e0] sm:$0xff] %v6325
    %6358 = vst [vmem:[#allocation3 + $0x628] sm:$0xff] %v6326
    %6359 = vst [vmem:[#allocation3 + $0x670] sm:$0xff] %v6327
    %6360 = vst [vmem:[#allocation3 + $0x6b8] sm:$0xff] %v6328
    %6361 = vst [vmem:[#allocation3 + $0x700] sm:$0xff] %v6329
    %6362 = vst [vmem:[#allocation3 + $0x748] sm:$0xff] %v6330
    %6363 = vst [vmem:[#allocation3 + $0x790] sm:$0xff] %v6331
    %6364 = vst [vmem:[#allocation3 + $0x7d8] sm:$0xff] %v6332
    %6365 = vst [vmem:[#allocation3 + $0x820] sm:$0xff] %v6333
    %6366 = vst [vmem:[#allocation3 + $0x868] sm:$0xff] %v6334
    %6367 = vst [vmem:[#allocation3 + $0x8b0] sm:$0xff] %v6335
    %6368 = vst [vmem:[#allocation3 + $0x8f8] sm:$0xff] %v6336
    %v6369 = vld [vmem:[#allocation3] sm:$0xff]
    %v6370 = vld [vmem:[#allocation3 + $0x8] sm:$0xff]
    %v6371 = vld [vmem:[#allocation3 + $0x10] sm:$0xff]
    %v6372 = vld [vmem:[#allocation3 + $0x18] sm:$0xff]
    %v6373 = vld [vmem:[#allocation3 + $0x20] sm:$0xff]
    %v6374 = vld [vmem:[#allocation3 + $0x28] sm:$0xff]
    %v6375 = vld [vmem:[#allocation3 + $0x30] sm:$0xff]
    %v6376 = vld [vmem:[#allocation3 + $0x38] sm:$0xff]
    %v6377 = vld [vmem:[#allocation3 + $0x40] sm:$0xff]
    %v6378 = vld [vmem:[#allocation3 + $0x48] sm:$0xff]
    %v6379 = vld [vmem:[#allocation3 + $0x50] sm:$0xff]
    %v6380 = vld [vmem:[#allocation3 + $0x58] sm:$0xff]
    %v6381 = vld [vmem:[#allocation3 + $0x60] sm:$0xff]
    %v6382 = vld [vmem:[#allocation3 + $0x68] sm:$0xff]
    %v6383 = vld [vmem:[#allocation3 + $0x70] sm:$0xff]
    %v6384 = vld [vmem:[#allocation3 + $0x78] sm:$0xff]
    %v6385 = vld [vmem:[#allocation3 + $0x80] sm:$0xff]
    %v6386 = vld [vmem:[#allocation3 + $0x88] sm:$0xff]
    %v6387 = vld [vmem:[#allocation3 + $0x90] sm:$0xff]
    %v6388 = vld [vmem:[#allocation3 + $0x98] sm:$0xff]
    %v6389 = vld [vmem:[#allocation3 + $0xa0] sm:$0xff]
    %v6390 = vld [vmem:[#allocation3 + $0xa8] sm:$0xff]
    %v6391 = vld [vmem:[#allocation3 + $0xb0] sm:$0xff]
    %v6392 = vld [vmem:[#allocation3 + $0xb8] sm:$0xff]
    %v6393 = vld [vmem:[#allocation3 + $0xc0] sm:$0xff]
    %v6394 = vld [vmem:[#allocation3 + $0xc8] sm:$0xff]
    %v6395 = vld [vmem:[#allocation3 + $0xd0] sm:$0xff]
    %v6396 = vld [vmem:[#allocation3 + $0xd8] sm:$0xff]
    %v6397 = vld [vmem:[#allocation3 + $0xe0] sm:$0xff]
    %v6398 = vld [vmem:[#allocation3 + $0xe8] sm:$0xff]
    %v6399 = vld [vmem:[#allocation3 + $0xf0] sm:$0xff]
    %v6400 = vld [vmem:[#allocation3 + $0xf8] sm:$0xff]
    %v6401 = vld [vmem:[#allocation3 + $0x100] sm:$0xff]
    %v6402 = vld [vmem:[#allocation3 + $0x108] sm:$0xff]
    %v6403 = vld [vmem:[#allocation3 + $0x110] sm:$0xff]
    %v6404 = vld [vmem:[#allocation3 + $0x118] sm:$0xff]
    %v6405 = vld [vmem:[#allocation3 + $0x120] sm:$0xff]
    %v6406 = vld [vmem:[#allocation3 + $0x128] sm:$0xff]
    %v6407 = vld [vmem:[#allocation3 + $0x130] sm:$0xff]
    %v6408 = vld [vmem:[#allocation3 + $0x138] sm:$0xff]
    %v6409 = vld [vmem:[#allocation3 + $0x140] sm:$0xff]
    %v6410 = vld [vmem:[#allocation3 + $0x148] sm:$0xff]
    %v6411 = vld [vmem:[#allocation3 + $0x150] sm:$0xff]
    %v6412 = vld [vmem:[#allocation3 + $0x158] sm:$0xff]
    %v6413 = vld [vmem:[#allocation3 + $0x160] sm:$0xff]
    %v6414 = vld [vmem:[#allocation3 + $0x168] sm:$0xff]
    %v6415 = vld [vmem:[#allocation3 + $0x170] sm:$0xff]
    %v6416 = vld [vmem:[#allocation3 + $0x178] sm:$0xff]
    %v6417 = vld [vmem:[#allocation3 + $0x180] sm:$0xff]
    %v6418 = vld [vmem:[#allocation3 + $0x188] sm:$0xff]
    %v6419 = vld [vmem:[#allocation3 + $0x190] sm:$0xff]
    %v6420 = vld [vmem:[#allocation3 + $0x198] sm:$0xff]
    %v6421 = vld [vmem:[#allocation3 + $0x1a0] sm:$0xff]
    %v6422 = vld [vmem:[#allocation3 + $0x1a8] sm:$0xff]
    %v6423 = vld [vmem:[#allocation3 + $0x1b0] sm:$0xff]
    %v6424 = vld [vmem:[#allocation3 + $0x1b8] sm:$0xff]
    %v6425 = vld [vmem:[#allocation3 + $0x1c0] sm:$0xff]
    %v6426 = vld [vmem:[#allocation3 + $0x1c8] sm:$0xff]
    %v6427 = vld [vmem:[#allocation3 + $0x1d0] sm:$0xff]
    %v6428 = vld [vmem:[#allocation3 + $0x1d8] sm:$0xff]
    %v6429 = vld [vmem:[#allocation3 + $0x1e0] sm:$0xff]
    %v6430 = vld [vmem:[#allocation3 + $0x1e8] sm:$0xff]
    %v6431 = vld [vmem:[#allocation3 + $0x1f0] sm:$0xff]
    %v6432 = vld [vmem:[#allocation3 + $0x1f8] sm:$0xff]
    %v6433 = vld [vmem:[#allocation3 + $0x200] sm:$0xff]
    %v6434 = vld [vmem:[#allocation3 + $0x208] sm:$0xff]
    %v6435 = vld [vmem:[#allocation3 + $0x210] sm:$0xff]
    %v6436 = vld [vmem:[#allocation3 + $0x218] sm:$0xff]
    %v6437 = vld [vmem:[#allocation3 + $0x220] sm:$0xff]
    %v6438 = vld [vmem:[#allocation3 + $0x228] sm:$0xff]
    %v6439 = vld [vmem:[#allocation3 + $0x230] sm:$0xff]
    %v6440 = vld [vmem:[#allocation3 + $0x238] sm:$0xff]
    %v6441 = vld [vmem:[#allocation3 + $0x240] sm:$0xff]
    %v6442 = vld [vmem:[#allocation3 + $0x248] sm:$0xff]
    %v6443 = vld [vmem:[#allocation3 + $0x250] sm:$0xff]
    %v6444 = vld [vmem:[#allocation3 + $0x258] sm:$0xff]
    %v6445 = vld [vmem:[#allocation3 + $0x260] sm:$0xff]
    %v6446 = vld [vmem:[#allocation3 + $0x268] sm:$0xff]
    %v6447 = vld [vmem:[#allocation3 + $0x270] sm:$0xff]
    %v6448 = vld [vmem:[#allocation3 + $0x278] sm:$0xff]
    %v6449 = vld [vmem:[#allocation3 + $0x280] sm:$0xff]
    %v6450 = vld [vmem:[#allocation3 + $0x288] sm:$0xff]
    %v6451 = vld [vmem:[#allocation3 + $0x290] sm:$0xff]
    %v6452 = vld [vmem:[#allocation3 + $0x298] sm:$0xff]
    %v6453 = vld [vmem:[#allocation3 + $0x2a0] sm:$0xff]
    %v6454 = vld [vmem:[#allocation3 + $0x2a8] sm:$0xff]
    %v6455 = vld [vmem:[#allocation3 + $0x2b0] sm:$0xff]
    %v6456 = vld [vmem:[#allocation3 + $0x2b8] sm:$0xff]
    %v6457 = vld [vmem:[#allocation3 + $0x2c0] sm:$0xff]
    %v6458 = vld [vmem:[#allocation3 + $0x2c8] sm:$0xff]
    %v6459 = vld [vmem:[#allocation3 + $0x2d0] sm:$0xff]
    %v6460 = vld [vmem:[#allocation3 + $0x2d8] sm:$0xff]
    %v6461 = vld [vmem:[#allocation3 + $0x2e0] sm:$0xff]
    %v6462 = vld [vmem:[#allocation3 + $0x2e8] sm:$0xff]
    %v6463 = vld [vmem:[#allocation3 + $0x2f0] sm:$0xff]
    %v6464 = vld [vmem:[#allocation3 + $0x2f8] sm:$0xff]
    %v6465 = vld [vmem:[#allocation3 + $0x300] sm:$0xff]
    %v6466 = vld [vmem:[#allocation3 + $0x308] sm:$0xff]
    %v6467 = vld [vmem:[#allocation3 + $0x310] sm:$0xff]
    %v6468 = vld [vmem:[#allocation3 + $0x318] sm:$0xff]
    %v6469 = vld [vmem:[#allocation3 + $0x320] sm:$0xff]
    %v6470 = vld [vmem:[#allocation3 + $0x328] sm:$0xff]
    %v6471 = vld [vmem:[#allocation3 + $0x330] sm:$0xff]
    %v6472 = vld [vmem:[#allocation3 + $0x338] sm:$0xff]
    %v6473 = vld [vmem:[#allocation3 + $0x340] sm:$0xff]
    %v6474 = vld [vmem:[#allocation3 + $0x348] sm:$0xff]
    %v6475 = vld [vmem:[#allocation3 + $0x350] sm:$0xff]
    %v6476 = vld [vmem:[#allocation3 + $0x358] sm:$0xff]
    %v6477 = vld [vmem:[#allocation3 + $0x360] sm:$0xff]
    %v6478 = vld [vmem:[#allocation3 + $0x368] sm:$0xff]
    %v6479 = vld [vmem:[#allocation3 + $0x370] sm:$0xff]
    %v6480 = vld [vmem:[#allocation3 + $0x378] sm:$0xff]
    %v6481 = vld [vmem:[#allocation3 + $0x380] sm:$0xff]
    %v6482 = vld [vmem:[#allocation3 + $0x388] sm:$0xff]
    %v6483 = vld [vmem:[#allocation3 + $0x390] sm:$0xff]
    %v6484 = vld [vmem:[#allocation3 + $0x398] sm:$0xff]
    %v6485 = vld [vmem:[#allocation3 + $0x3a0] sm:$0xff]
    %v6486 = vld [vmem:[#allocation3 + $0x3a8] sm:$0xff]
    %v6487 = vld [vmem:[#allocation3 + $0x3b0] sm:$0xff]
    %v6488 = vld [vmem:[#allocation3 + $0x3b8] sm:$0xff]
    %v6489 = vld [vmem:[#allocation3 + $0x3c0] sm:$0xff]
    %v6490 = vld [vmem:[#allocation3 + $0x3c8] sm:$0xff]
    %v6491 = vld [vmem:[#allocation3 + $0x3d0] sm:$0xff]
    %v6492 = vld [vmem:[#allocation3 + $0x3d8] sm:$0xff]
    %v6493 = vld [vmem:[#allocation3 + $0x3e0] sm:$0xff]
    %v6494 = vld [vmem:[#allocation3 + $0x3e8] sm:$0xff]
    %v6495 = vld [vmem:[#allocation3 + $0x3f0] sm:$0xff]
    %v6496 = vld [vmem:[#allocation3 + $0x3f8] sm:$0xff]
    %v6497 = vld [vmem:[#allocation3 + $0x400] sm:$0xff]
    %v6498 = vld [vmem:[#allocation3 + $0x408] sm:$0xff]
    %v6499 = vld [vmem:[#allocation3 + $0x410] sm:$0xff]
    %v6500 = vld [vmem:[#allocation3 + $0x418] sm:$0xff]
    %v6501 = vld [vmem:[#allocation3 + $0x420] sm:$0xff]
    %v6502 = vld [vmem:[#allocation3 + $0x428] sm:$0xff]
    %v6503 = vld [vmem:[#allocation3 + $0x430] sm:$0xff]
    %v6504 = vld [vmem:[#allocation3 + $0x438] sm:$0xff]
    %v6505 = vld [vmem:[#allocation3 + $0x440] sm:$0xff]
    %v6506 = vld [vmem:[#allocation3 + $0x448] sm:$0xff]
    %v6507 = vld [vmem:[#allocation3 + $0x450] sm:$0xff]
    %v6508 = vld [vmem:[#allocation3 + $0x458] sm:$0xff]
    %v6509 = vld [vmem:[#allocation3 + $0x460] sm:$0xff]
    %v6510 = vld [vmem:[#allocation3 + $0x468] sm:$0xff]
    %v6511 = vld [vmem:[#allocation3 + $0x470] sm:$0xff]
    %v6512 = vld [vmem:[#allocation3 + $0x478] sm:$0xff]
    %v6513 = vld [vmem:[#allocation3 + $0x480] sm:$0xff]
    %v6514 = vld [vmem:[#allocation3 + $0x488] sm:$0xff]
    %v6515 = vld [vmem:[#allocation3 + $0x490] sm:$0xff]
    %v6516 = vld [vmem:[#allocation3 + $0x498] sm:$0xff]
    %v6517 = vld [vmem:[#allocation3 + $0x4a0] sm:$0xff]
    %v6518 = vld [vmem:[#allocation3 + $0x4a8] sm:$0xff]
    %v6519 = vld [vmem:[#allocation3 + $0x4b0] sm:$0xff]
    %v6520 = vld [vmem:[#allocation3 + $0x4b8] sm:$0xff]
    %v6521 = vld [vmem:[#allocation3 + $0x4c0] sm:$0xff]
    %v6522 = vld [vmem:[#allocation3 + $0x4c8] sm:$0xff]
    %v6523 = vld [vmem:[#allocation3 + $0x4d0] sm:$0xff]
    %v6524 = vld [vmem:[#allocation3 + $0x4d8] sm:$0xff]
    %v6525 = vld [vmem:[#allocation3 + $0x4e0] sm:$0xff]
    %v6526 = vld [vmem:[#allocation3 + $0x4e8] sm:$0xff]
    %v6527 = vld [vmem:[#allocation3 + $0x4f0] sm:$0xff]
    %v6528 = vld [vmem:[#allocation3 + $0x4f8] sm:$0xff]
    %v6529 = vld [vmem:[#allocation3 + $0x500] sm:$0xff]
    %v6530 = vld [vmem:[#allocation3 + $0x508] sm:$0xff]
    %v6531 = vld [vmem:[#allocation3 + $0x510] sm:$0xff]
    %v6532 = vld [vmem:[#allocation3 + $0x518] sm:$0xff]
    %v6533 = vld [vmem:[#allocation3 + $0x520] sm:$0xff]
    %v6534 = vld [vmem:[#allocation3 + $0x528] sm:$0xff]
    %v6535 = vld [vmem:[#allocation3 + $0x530] sm:$0xff]
    %v6536 = vld [vmem:[#allocation3 + $0x538] sm:$0xff]
    %v6537 = vld [vmem:[#allocation3 + $0x540] sm:$0xff]
    %v6538 = vld [vmem:[#allocation3 + $0x548] sm:$0xff]
    %v6539 = vld [vmem:[#allocation3 + $0x550] sm:$0xff]
    %v6540 = vld [vmem:[#allocation3 + $0x558] sm:$0xff]
    %v6541 = vld [vmem:[#allocation3 + $0x560] sm:$0xff]
    %v6542 = vld [vmem:[#allocation3 + $0x568] sm:$0xff]
    %v6543 = vld [vmem:[#allocation3 + $0x570] sm:$0xff]
    %v6544 = vld [vmem:[#allocation3 + $0x578] sm:$0xff]
    %v6545 = vld [vmem:[#allocation3 + $0x580] sm:$0xff]
    %v6546 = vld [vmem:[#allocation3 + $0x588] sm:$0xff]
    %v6547 = vld [vmem:[#allocation3 + $0x590] sm:$0xff]
    %v6548 = vld [vmem:[#allocation3 + $0x598] sm:$0xff]
    %v6549 = vld [vmem:[#allocation3 + $0x5a0] sm:$0xff]
    %v6550 = vld [vmem:[#allocation3 + $0x5a8] sm:$0xff]
    %v6551 = vld [vmem:[#allocation3 + $0x5b0] sm:$0xff]
    %v6552 = vld [vmem:[#allocation3 + $0x5b8] sm:$0xff]
    %v6553 = vld [vmem:[#allocation3 + $0x5c0] sm:$0xff]
    %v6554 = vld [vmem:[#allocation3 + $0x5c8] sm:$0xff]
    %v6555 = vld [vmem:[#allocation3 + $0x5d0] sm:$0xff]
    %v6556 = vld [vmem:[#allocation3 + $0x5d8] sm:$0xff]
    %v6557 = vld [vmem:[#allocation3 + $0x5e0] sm:$0xff]
    %v6558 = vld [vmem:[#allocation3 + $0x5e8] sm:$0xff]
    %v6559 = vld [vmem:[#allocation3 + $0x5f0] sm:$0xff]
    %v6560 = vld [vmem:[#allocation3 + $0x5f8] sm:$0xff]
    %v6561 = vld [vmem:[#allocation3 + $0x600] sm:$0xff]
    %v6562 = vld [vmem:[#allocation3 + $0x608] sm:$0xff]
    %v6563 = vld [vmem:[#allocation3 + $0x610] sm:$0xff]
    %v6564 = vld [vmem:[#allocation3 + $0x618] sm:$0xff]
    %v6565 = vld [vmem:[#allocation3 + $0x620] sm:$0xff]
    %v6566 = vld [vmem:[#allocation3 + $0x628] sm:$0xff]
    %v6567 = vld [vmem:[#allocation3 + $0x630] sm:$0xff]
    %v6568 = vld [vmem:[#allocation3 + $0x638] sm:$0xff]
    %v6569 = vld [vmem:[#allocation3 + $0x640] sm:$0xff]
    %v6570 = vld [vmem:[#allocation3 + $0x648] sm:$0xff]
    %v6571 = vld [vmem:[#allocation3 + $0x650] sm:$0xff]
    %v6572 = vld [vmem:[#allocation3 + $0x658] sm:$0xff]
    %v6573 = vld [vmem:[#allocation3 + $0x660] sm:$0xff]
    %v6574 = vld [vmem:[#allocation3 + $0x668] sm:$0xff]
    %v6575 = vld [vmem:[#allocation3 + $0x670] sm:$0xff]
    %v6576 = vld [vmem:[#allocation3 + $0x678] sm:$0xff]
    %v6577 = vld [vmem:[#allocation3 + $0x680] sm:$0xff]
    %v6578 = vld [vmem:[#allocation3 + $0x688] sm:$0xff]
    %v6579 = vld [vmem:[#allocation3 + $0x690] sm:$0xff]
    %v6580 = vld [vmem:[#allocation3 + $0x698] sm:$0xff]
    %v6581 = vld [vmem:[#allocation3 + $0x6a0] sm:$0xff]
    %v6582 = vld [vmem:[#allocation3 + $0x6a8] sm:$0xff]
    %v6583 = vld [vmem:[#allocation3 + $0x6b0] sm:$0xff]
    %v6584 = vld [vmem:[#allocation3 + $0x6b8] sm:$0xff]
    %v6585 = vld [vmem:[#allocation3 + $0x6c0] sm:$0xff]
    %v6586 = vld [vmem:[#allocation3 + $0x6c8] sm:$0xff]
    %v6587 = vld [vmem:[#allocation3 + $0x6d0] sm:$0xff]
    %v6588 = vld [vmem:[#allocation3 + $0x6d8] sm:$0xff]
    %v6589 = vld [vmem:[#allocation3 + $0x6e0] sm:$0xff]
    %v6590 = vld [vmem:[#allocation3 + $0x6e8] sm:$0xff]
    %v6591 = vld [vmem:[#allocation3 + $0x6f0] sm:$0xff]
    %v6592 = vld [vmem:[#allocation3 + $0x6f8] sm:$0xff]
    %v6593 = vld [vmem:[#allocation3 + $0x700] sm:$0xff]
    %v6594 = vld [vmem:[#allocation3 + $0x708] sm:$0xff]
    %v6595 = vld [vmem:[#allocation3 + $0x710] sm:$0xff]
    %v6596 = vld [vmem:[#allocation3 + $0x718] sm:$0xff]
    %v6597 = vld [vmem:[#allocation3 + $0x720] sm:$0xff]
    %v6598 = vld [vmem:[#allocation3 + $0x728] sm:$0xff]
    %v6599 = vld [vmem:[#allocation3 + $0x730] sm:$0xff]
    %v6600 = vld [vmem:[#allocation3 + $0x738] sm:$0xff]
    %v6601 = vld [vmem:[#allocation3 + $0x740] sm:$0xff]
    %v6602 = vld [vmem:[#allocation3 + $0x748] sm:$0xff]
    %v6603 = vld [vmem:[#allocation3 + $0x750] sm:$0xff]
    %v6604 = vld [vmem:[#allocation3 + $0x758] sm:$0xff]
    %v6605 = vld [vmem:[#allocation3 + $0x760] sm:$0xff]
    %v6606 = vld [vmem:[#allocation3 + $0x768] sm:$0xff]
    %v6607 = vld [vmem:[#allocation3 + $0x770] sm:$0xff]
    %v6608 = vld [vmem:[#allocation3 + $0x778] sm:$0xff]
    %v6609 = vld [vmem:[#allocation3 + $0x780] sm:$0xff]
    %v6610 = vld [vmem:[#allocation3 + $0x788] sm:$0xff]
    %v6611 = vld [vmem:[#allocation3 + $0x790] sm:$0xff]
    %v6612 = vld [vmem:[#allocation3 + $0x798] sm:$0xff]
    %v6613 = vld [vmem:[#allocation3 + $0x7a0] sm:$0xff]
    %v6614 = vld [vmem:[#allocation3 + $0x7a8] sm:$0xff]
    %v6615 = vld [vmem:[#allocation3 + $0x7b0] sm:$0xff]
    %v6616 = vld [vmem:[#allocation3 + $0x7b8] sm:$0xff]
    %v6617 = vld [vmem:[#allocation3 + $0x7c0] sm:$0xff]
    %v6618 = vld [vmem:[#allocation3 + $0x7c8] sm:$0xff]
    %v6619 = vld [vmem:[#allocation3 + $0x7d0] sm:$0xff]
    %v6620 = vld [vmem:[#allocation3 + $0x7d8] sm:$0xff]
    %v6621 = vld [vmem:[#allocation3 + $0x7e0] sm:$0xff]
    %v6622 = vld [vmem:[#allocation3 + $0x7e8] sm:$0xff]
    %v6623 = vld [vmem:[#allocation3 + $0x7f0] sm:$0xff]
    %v6624 = vld [vmem:[#allocation3 + $0x7f8] sm:$0xff]
    %v6625 = vld [vmem:[#allocation3 + $0x800] sm:$0xff]
    %v6626 = vld [vmem:[#allocation3 + $0x808] sm:$0xff]
    %v6627 = vld [vmem:[#allocation3 + $0x810] sm:$0xff]
    %v6628 = vld [vmem:[#allocation3 + $0x818] sm:$0xff]
    %v6629 = vld [vmem:[#allocation3 + $0x820] sm:$0xff]
    %v6630 = vld [vmem:[#allocation3 + $0x828] sm:$0xff]
    %v6631 = vld [vmem:[#allocation3 + $0x830] sm:$0xff]
    %v6632 = vld [vmem:[#allocation3 + $0x838] sm:$0xff]
    %v6633 = vld [vmem:[#allocation3 + $0x840] sm:$0xff]
    %v6634 = vld [vmem:[#allocation3 + $0x848] sm:$0xff]
    %v6635 = vld [vmem:[#allocation3 + $0x850] sm:$0xff]
    %v6636 = vld [vmem:[#allocation3 + $0x858] sm:$0xff]
    %v6637 = vld [vmem:[#allocation3 + $0x860] sm:$0xff]
    %v6638 = vld [vmem:[#allocation3 + $0x868] sm:$0xff]
    %v6639 = vld [vmem:[#allocation3 + $0x870] sm:$0xff]
    %v6640 = vld [vmem:[#allocation3 + $0x878] sm:$0xff]
    %v6641 = vld [vmem:[#allocation3 + $0x880] sm:$0xff]
    %v6642 = vld [vmem:[#allocation3 + $0x888] sm:$0xff]
    %v6643 = vld [vmem:[#allocation3 + $0x890] sm:$0xff]
    %v6644 = vld [vmem:[#allocation3 + $0x898] sm:$0xff]
    %v6645 = vld [vmem:[#allocation3 + $0x8a0] sm:$0xff]
    %v6646 = vld [vmem:[#allocation3 + $0x8a8] sm:$0xff]
    %v6647 = vld [vmem:[#allocation3 + $0x8b0] sm:$0xff]
    %v6648 = vld [vmem:[#allocation3 + $0x8b8] sm:$0xff]
    %v6649 = vld [vmem:[#allocation3 + $0x8c0] sm:$0xff]
    %v6650 = vld [vmem:[#allocation3 + $0x8c8] sm:$0xff]
    %v6651 = vld [vmem:[#allocation3 + $0x8d0] sm:$0xff]
    %v6652 = vld [vmem:[#allocation3 + $0x8d8] sm:$0xff]
    %v6653 = vld [vmem:[#allocation3 + $0x8e0] sm:$0xff]
    %v6654 = vld [vmem:[#allocation3 + $0x8e8] sm:$0xff]
    %v6655 = vld [vmem:[#allocation3 + $0x8f0] sm:$0xff]
    %v6656 = vld [vmem:[#allocation3 + $0x8f8] sm:$0xff]
    %v6657 = vld [vmem:[%s6] sm:$0xf]
    %v6658 = vld [vmem:[%s6 + $0x4] sm:$0xf]
    %v6659 = vld [vmem:[%s6 + $0x8] sm:$0xf]
    %v6660 = vld [vmem:[%s6 + $0xc] sm:$0xf]
    %v6661 = vld [vmem:[%s6 + $0x10] sm:$0xf]
    %v6662 = vld [vmem:[%s6 + $0x14] sm:$0xf]
    %v6663 = vld [vmem:[%s6 + $0x18] sm:$0xf]
    %v6664 = vld [vmem:[%s6 + $0x1c] sm:$0xf]
    %v6665 = vld [vmem:[%s6 + $0x20] sm:$0xf]
    %v6666 = vld [vmem:[%s6 + $0x24] sm:$0xf]
    %v6667 = vld [vmem:[%s6 + $0x28] sm:$0xf]
    %v6668 = vld [vmem:[%s6 + $0x2c] sm:$0xf]
    %v6669 = vld [vmem:[%s6 + $0x30] sm:$0xf]
    %v6670 = vld [vmem:[%s6 + $0x34] sm:$0xf]
    %v6671 = vld [vmem:[%s6 + $0x38] sm:$0xf]
    %v6672 = vld [vmem:[%s6 + $0x3c] sm:$0xf]
    %v6673 = vld [vmem:[%s6 + $0x40] sm:$0xf]
    %v6674 = vld [vmem:[%s6 + $0x44] sm:$0xf]
    %v6675 = vld [vmem:[%s6 + $0x48] sm:$0xf]
    %v6676 = vld [vmem:[%s6 + $0x4c] sm:$0xf]
    %v6677 = vld [vmem:[%s6 + $0x50] sm:$0xf]
    %v6678 = vld [vmem:[%s6 + $0x54] sm:$0xf]
    %v6679 = vld [vmem:[%s6 + $0x58] sm:$0xf]
    %v6680 = vld [vmem:[%s6 + $0x5c] sm:$0xf]
    %v6681 = vld [vmem:[%s6 + $0x60] sm:$0xf]
    %v6682 = vld [vmem:[%s6 + $0x64] sm:$0xf]
    %v6683 = vld [vmem:[%s6 + $0x68] sm:$0xf]
    %v6684 = vld [vmem:[%s6 + $0x6c] sm:$0xf]
    %v6685 = vld [vmem:[%s6 + $0x70] sm:$0xf]
    %v6686 = vld [vmem:[%s6 + $0x74] sm:$0xf]
    %v6687 = vld [vmem:[%s6 + $0x78] sm:$0xf]
    %v6688 = vld [vmem:[%s6 + $0x7c] sm:$0xf]
    %v6689 = vld [vmem:[%s6 + $0x80] sm:$0xf]
    %v6690 = vld [vmem:[%s6 + $0x84] sm:$0xf]
    %v6691 = vld [vmem:[%s6 + $0x88] sm:$0xf]
    %v6692 = vld [vmem:[%s6 + $0x8c] sm:$0xf]
    %v6693 = vld [vmem:[%s6 + $0x90] sm:$0xf]
    %v6694 = vld [vmem:[%s6 + $0x94] sm:$0xf]
    %v6695 = vld [vmem:[%s6 + $0x98] sm:$0xf]
    %v6696 = vld [vmem:[%s6 + $0x9c] sm:$0xf]
    %v6697 = vld [vmem:[%s6 + $0xa0] sm:$0xf]
    %v6698 = vld [vmem:[%s6 + $0xa4] sm:$0xf]
    %v6699 = vld [vmem:[%s6 + $0xa8] sm:$0xf]
    %v6700 = vld [vmem:[%s6 + $0xac] sm:$0xf]
    %v6701 = vld [vmem:[%s6 + $0xb0] sm:$0xf]
    %v6702 = vld [vmem:[%s6 + $0xb4] sm:$0xf]
    %v6703 = vld [vmem:[%s6 + $0xb8] sm:$0xf]
    %v6704 = vld [vmem:[%s6 + $0xbc] sm:$0xf]
    %v6705 = vld [vmem:[%s6 + $0xc0] sm:$0xf]
    %v6706 = vld [vmem:[%s6 + $0xc4] sm:$0xf]
    %v6707 = vld [vmem:[%s6 + $0xc8] sm:$0xf]
    %v6708 = vld [vmem:[%s6 + $0xcc] sm:$0xf]
    %v6709 = vld [vmem:[%s6 + $0xd0] sm:$0xf]
    %v6710 = vld [vmem:[%s6 + $0xd4] sm:$0xf]
    %v6711 = vld [vmem:[%s6 + $0xd8] sm:$0xf]
    %v6712 = vld [vmem:[%s6 + $0xdc] sm:$0xf]
    %v6713 = vld [vmem:[%s6 + $0xe0] sm:$0xf]
    %v6714 = vld [vmem:[%s6 + $0xe4] sm:$0xf]
    %v6715 = vld [vmem:[%s6 + $0xe8] sm:$0xf]
    %v6716 = vld [vmem:[%s6 + $0xec] sm:$0xf]
    %v6717 = vld [vmem:[%s6 + $0xf0] sm:$0xf]
    %v6718 = vld [vmem:[%s6 + $0xf4] sm:$0xf]
    %v6719 = vld [vmem:[%s6 + $0xf8] sm:$0xf]
    %v6720 = vld [vmem:[%s6 + $0xfc] sm:$0xf]
    %v6721 = vld [vmem:[%s6 + $0x100] sm:$0xf]
    %v6722 = vld [vmem:[%s6 + $0x104] sm:$0xf]
    %v6723 = vld [vmem:[%s6 + $0x108] sm:$0xf]
    %v6724 = vld [vmem:[%s6 + $0x10c] sm:$0xf]
    %v6725 = vld [vmem:[%s6 + $0x110] sm:$0xf]
    %v6726 = vld [vmem:[%s6 + $0x114] sm:$0xf]
    %v6727 = vld [vmem:[%s6 + $0x118] sm:$0xf]
    %v6728 = vld [vmem:[%s6 + $0x11c] sm:$0xf]
    %v6729 = vld [vmem:[%s6 + $0x120] sm:$0xf]
    %v6730 = vld [vmem:[%s6 + $0x124] sm:$0xf]
    %v6731 = vld [vmem:[%s6 + $0x128] sm:$0xf]
    %v6732 = vld [vmem:[%s6 + $0x12c] sm:$0xf]
    %v6733 = vld [vmem:[%s6 + $0x130] sm:$0xf]
    %v6734 = vld [vmem:[%s6 + $0x134] sm:$0xf]
    %v6735 = vld [vmem:[%s6 + $0x138] sm:$0xf]
    %v6736 = vld [vmem:[%s6 + $0x13c] sm:$0xf]
    %v6737 = vld [vmem:[%s6 + $0x140] sm:$0xf]
    %v6738 = vld [vmem:[%s6 + $0x144] sm:$0xf]
    %v6739 = vld [vmem:[%s6 + $0x148] sm:$0xf]
    %v6740 = vld [vmem:[%s6 + $0x14c] sm:$0xf]
    %v6741 = vld [vmem:[%s6 + $0x150] sm:$0xf]
    %v6742 = vld [vmem:[%s6 + $0x154] sm:$0xf]
    %v6743 = vld [vmem:[%s6 + $0x158] sm:$0xf]
    %v6744 = vld [vmem:[%s6 + $0x15c] sm:$0xf]
    %v6745 = vld [vmem:[%s6 + $0x160] sm:$0xf]
    %v6746 = vld [vmem:[%s6 + $0x164] sm:$0xf]
    %v6747 = vld [vmem:[%s6 + $0x168] sm:$0xf]
    %v6748 = vld [vmem:[%s6 + $0x16c] sm:$0xf]
    %v6749 = vld [vmem:[%s6 + $0x170] sm:$0xf]
    %v6750 = vld [vmem:[%s6 + $0x174] sm:$0xf]
    %v6751 = vld [vmem:[%s6 + $0x178] sm:$0xf]
    %v6752 = vld [vmem:[%s6 + $0x17c] sm:$0xf]
    %v6753 = vld [vmem:[%s6 + $0x180] sm:$0xf]
    %v6754 = vld [vmem:[%s6 + $0x184] sm:$0xf]
    %v6755 = vld [vmem:[%s6 + $0x188] sm:$0xf]
    %v6756 = vld [vmem:[%s6 + $0x18c] sm:$0xf]
    %v6757 = vld [vmem:[%s6 + $0x190] sm:$0xf]
    %v6758 = vld [vmem:[%s6 + $0x194] sm:$0xf]
    %v6759 = vld [vmem:[%s6 + $0x198] sm:$0xf]
    %v6760 = vld [vmem:[%s6 + $0x19c] sm:$0xf]
    %v6761 = vld [vmem:[%s6 + $0x1a0] sm:$0xf]
    %v6762 = vld [vmem:[%s6 + $0x1a4] sm:$0xf]
    %v6763 = vld [vmem:[%s6 + $0x1a8] sm:$0xf]
    %v6764 = vld [vmem:[%s6 + $0x1ac] sm:$0xf]
    %v6765 = vld [vmem:[%s6 + $0x1b0] sm:$0xf]
    %v6766 = vld [vmem:[%s6 + $0x1b4] sm:$0xf]
    %v6767 = vld [vmem:[%s6 + $0x1b8] sm:$0xf]
    %v6768 = vld [vmem:[%s6 + $0x1bc] sm:$0xf]
    %v6769 = vld [vmem:[%s6 + $0x1c0] sm:$0xf]
    %v6770 = vld [vmem:[%s6 + $0x1c4] sm:$0xf]
    %v6771 = vld [vmem:[%s6 + $0x1c8] sm:$0xf]
    %v6772 = vld [vmem:[%s6 + $0x1cc] sm:$0xf]
    %v6773 = vld [vmem:[%s6 + $0x1d0] sm:$0xf]
    %v6774 = vld [vmem:[%s6 + $0x1d4] sm:$0xf]
    %v6775 = vld [vmem:[%s6 + $0x1d8] sm:$0xf]
    %v6776 = vld [vmem:[%s6 + $0x1dc] sm:$0xf]
    %v6777 = vld [vmem:[%s6 + $0x1e0] sm:$0xf]
    %v6778 = vld [vmem:[%s6 + $0x1e4] sm:$0xf]
    %v6779 = vld [vmem:[%s6 + $0x1e8] sm:$0xf]
    %v6780 = vld [vmem:[%s6 + $0x1ec] sm:$0xf]
    %v6781 = vld [vmem:[%s6 + $0x1f0] sm:$0xf]
    %v6782 = vld [vmem:[%s6 + $0x1f4] sm:$0xf]
    %v6783 = vld [vmem:[%s6 + $0x1f8] sm:$0xf]
    %v6784 = vld [vmem:[%s6 + $0x1fc] sm:$0xf]
    %v6785 = vld [vmem:[%s6 + $0x200] sm:$0xf]
    %v6786 = vld [vmem:[%s6 + $0x204] sm:$0xf]
    %v6787 = vld [vmem:[%s6 + $0x208] sm:$0xf]
    %v6788 = vld [vmem:[%s6 + $0x20c] sm:$0xf]
    %v6789 = vld [vmem:[%s6 + $0x210] sm:$0xf]
    %v6790 = vld [vmem:[%s6 + $0x214] sm:$0xf]
    %v6791 = vld [vmem:[%s6 + $0x218] sm:$0xf]
    %v6792 = vld [vmem:[%s6 + $0x21c] sm:$0xf]
    %v6793 = vld [vmem:[%s6 + $0x220] sm:$0xf]
    %v6794 = vld [vmem:[%s6 + $0x224] sm:$0xf]
    %v6795 = vld [vmem:[%s6 + $0x228] sm:$0xf]
    %v6796 = vld [vmem:[%s6 + $0x22c] sm:$0xf]
    %v6797 = vld [vmem:[%s6 + $0x230] sm:$0xf]
    %v6798 = vld [vmem:[%s6 + $0x234] sm:$0xf]
    %v6799 = vld [vmem:[%s6 + $0x238] sm:$0xf]
    %v6800 = vld [vmem:[%s6 + $0x23c] sm:$0xf]
    %v6945 = vunpack.c.l.b16 %v6657
    %v6946 = vunpack.c.l.b16 %v6658
    %v6947 = vunpack.c.l.b16 %v6659
    %v6948 = vunpack.c.l.b16 %v6660
    %v6949 = vunpack.c.l.b16 %v6661
    %v6950 = vunpack.c.l.b16 %v6662
    %v6951 = vunpack.c.l.b16 %v6663
    %v6952 = vunpack.c.l.b16 %v6664
    %v6953 = vunpack.c.l.b16 %v6665
    %v6954 = vunpack.c.l.b16 %v6666
    %v6955 = vunpack.c.l.b16 %v6667
    %v6956 = vunpack.c.l.b16 %v6668
    %v6957 = vunpack.c.l.b16 %v6669
    %v6958 = vunpack.c.l.b16 %v6670
    %v6959 = vunpack.c.l.b16 %v6671
    %v6960 = vunpack.c.l.b16 %v6672
    %v6961 = vunpack.c.l.b16 %v6673
    %v6962 = vunpack.c.l.b16 %v6674
    %v6963 = vunpack.c.l.b16 %v6675
    %v6964 = vunpack.c.l.b16 %v6676
    %v6965 = vunpack.c.l.b16 %v6677
    %v6966 = vunpack.c.l.b16 %v6678
    %v6967 = vunpack.c.l.b16 %v6679
    %v6968 = vunpack.c.l.b16 %v6680
    %v6969 = vunpack.c.l.b16 %v6681
    %v6970 = vunpack.c.l.b16 %v6682
    %v6971 = vunpack.c.l.b16 %v6683
    %v6972 = vunpack.c.l.b16 %v6684
    %v6973 = vunpack.c.l.b16 %v6685
    %v6974 = vunpack.c.l.b16 %v6686
    %v6975 = vunpack.c.l.b16 %v6687
    %v6976 = vunpack.c.l.b16 %v6688
    %v6977 = vunpack.c.l.b16 %v6689
    %v6978 = vunpack.c.l.b16 %v6690
    %v6979 = vunpack.c.l.b16 %v6691
    %v6980 = vunpack.c.l.b16 %v6692
    %v6981 = vunpack.c.l.b16 %v6693
    %v6982 = vunpack.c.l.b16 %v6694
    %v6983 = vunpack.c.l.b16 %v6695
    %v6984 = vunpack.c.l.b16 %v6696
    %v6985 = vunpack.c.l.b16 %v6697
    %v6986 = vunpack.c.l.b16 %v6698
    %v6987 = vunpack.c.l.b16 %v6699
    %v6988 = vunpack.c.l.b16 %v6700
    %v6989 = vunpack.c.l.b16 %v6701
    %v6990 = vunpack.c.l.b16 %v6702
    %v6991 = vunpack.c.l.b16 %v6703
    %v6992 = vunpack.c.l.b16 %v6704
    %v6993 = vunpack.c.l.b16 %v6705
    %v6994 = vunpack.c.l.b16 %v6706
    %v6995 = vunpack.c.l.b16 %v6707
    %v6996 = vunpack.c.l.b16 %v6708
    %v6997 = vunpack.c.l.b16 %v6709
    %v6998 = vunpack.c.l.b16 %v6710
    %v6999 = vunpack.c.l.b16 %v6711
    %v7000 = vunpack.c.l.b16 %v6712
    %v7001 = vunpack.c.l.b16 %v6713
    %v7002 = vunpack.c.l.b16 %v6714
    %v7003 = vunpack.c.l.b16 %v6715
    %v7004 = vunpack.c.l.b16 %v6716
    %v7005 = vunpack.c.l.b16 %v6717
    %v7006 = vunpack.c.l.b16 %v6718
    %v7007 = vunpack.c.l.b16 %v6719
    %v7008 = vunpack.c.l.b16 %v6720
    %v7009 = vunpack.c.l.b16 %v6721
    %v7010 = vunpack.c.l.b16 %v6722
    %v7011 = vunpack.c.l.b16 %v6723
    %v7012 = vunpack.c.l.b16 %v6724
    %v7013 = vunpack.c.l.b16 %v6725
    %v7014 = vunpack.c.l.b16 %v6726
    %v7015 = vunpack.c.l.b16 %v6727
    %v7016 = vunpack.c.l.b16 %v6728
    %v7017 = vunpack.c.l.b16 %v6729
    %v7018 = vunpack.c.l.b16 %v6730
    %v7019 = vunpack.c.l.b16 %v6731
    %v7020 = vunpack.c.l.b16 %v6732
    %v7021 = vunpack.c.l.b16 %v6733
    %v7022 = vunpack.c.l.b16 %v6734
    %v7023 = vunpack.c.l.b16 %v6735
    %v7024 = vunpack.c.l.b16 %v6736
    %v7025 = vunpack.c.l.b16 %v6737
    %v7026 = vunpack.c.l.b16 %v6738
    %v7027 = vunpack.c.l.b16 %v6739
    %v7028 = vunpack.c.l.b16 %v6740
    %v7029 = vunpack.c.l.b16 %v6741
    %v7030 = vunpack.c.l.b16 %v6742
    %v7031 = vunpack.c.l.b16 %v6743
    %v7032 = vunpack.c.l.b16 %v6744
    %v7033 = vunpack.c.l.b16 %v6745
    %v7034 = vunpack.c.l.b16 %v6746
    %v7035 = vunpack.c.l.b16 %v6747
    %v7036 = vunpack.c.l.b16 %v6748
    %v7037 = vunpack.c.l.b16 %v6749
    %v7038 = vunpack.c.l.b16 %v6750
    %v7039 = vunpack.c.l.b16 %v6751
    %v7040 = vunpack.c.l.b16 %v6752
    %v7041 = vunpack.c.l.b16 %v6753
    %v7042 = vunpack.c.l.b16 %v6754
    %v7043 = vunpack.c.l.b16 %v6755
    %v7044 = vunpack.c.l.b16 %v6756
    %v7045 = vunpack.c.l.b16 %v6757
    %v7046 = vunpack.c.l.b16 %v6758
    %v7047 = vunpack.c.l.b16 %v6759
    %v7048 = vunpack.c.l.b16 %v6760
    %v7049 = vunpack.c.l.b16 %v6761
    %v7050 = vunpack.c.l.b16 %v6762
    %v7051 = vunpack.c.l.b16 %v6763
    %v7052 = vunpack.c.l.b16 %v6764
    %v7053 = vunpack.c.l.b16 %v6765
    %v7054 = vunpack.c.l.b16 %v6766
    %v7055 = vunpack.c.l.b16 %v6767
    %v7056 = vunpack.c.l.b16 %v6768
    %v7057 = vunpack.c.l.b16 %v6769
    %v7058 = vunpack.c.l.b16 %v6770
    %v7059 = vunpack.c.l.b16 %v6771
    %v7060 = vunpack.c.l.b16 %v6772
    %v7061 = vunpack.c.l.b16 %v6773
    %v7062 = vunpack.c.l.b16 %v6774
    %v7063 = vunpack.c.l.b16 %v6775
    %v7064 = vunpack.c.l.b16 %v6776
    %v7065 = vunpack.c.l.b16 %v6777
    %v7066 = vunpack.c.l.b16 %v6778
    %v7067 = vunpack.c.l.b16 %v6779
    %v7068 = vunpack.c.l.b16 %v6780
    %v7069 = vunpack.c.l.b16 %v6781
    %v7070 = vunpack.c.l.b16 %v6782
    %v7071 = vunpack.c.l.b16 %v6783
    %v7072 = vunpack.c.l.b16 %v6784
    %v7073 = vunpack.c.l.b16 %v6785
    %v7074 = vunpack.c.l.b16 %v6786
    %v7075 = vunpack.c.l.b16 %v6787
    %v7076 = vunpack.c.l.b16 %v6788
    %v7077 = vunpack.c.l.b16 %v6789
    %v7078 = vunpack.c.l.b16 %v6790
    %v7079 = vunpack.c.l.b16 %v6791
    %v7080 = vunpack.c.l.b16 %v6792
    %v7081 = vunpack.c.l.b16 %v6793
    %v7082 = vunpack.c.l.b16 %v6794
    %v7083 = vunpack.c.l.b16 %v6795
    %v7084 = vunpack.c.l.b16 %v6796
    %v7085 = vunpack.c.l.b16 %v6797
    %v7086 = vunpack.c.l.b16 %v6798
    %v7087 = vunpack.c.l.b16 %v6799
    %v7088 = vunpack.c.l.b16 %v6800
    %v7089 = vpack.c.b16 %v6946, %v6945
    %v7090 = vpack.c.b16 %v6948, %v6947
    %v7091 = vpack.c.b16 %v6950, %v6949
    %v7092 = vpack.c.b16 %v6952, %v6951
    %v7093 = vpack.c.b16 %v6954, %v6953
    %v7094 = vpack.c.b16 %v6956, %v6955
    %v7095 = vpack.c.b16 %v6958, %v6957
    %v7096 = vpack.c.b16 %v6960, %v6959
    %v7097 = vpack.c.b16 %v6962, %v6961
    %v7098 = vpack.c.b16 %v6964, %v6963
    %v7099 = vpack.c.b16 %v6966, %v6965
    %v7100 = vpack.c.b16 %v6968, %v6967
    %v7101 = vpack.c.b16 %v6970, %v6969
    %v7102 = vpack.c.b16 %v6972, %v6971
    %v7103 = vpack.c.b16 %v6974, %v6973
    %v7104 = vpack.c.b16 %v6976, %v6975
    %v7105 = vpack.c.b16 %v6978, %v6977
    %v7106 = vpack.c.b16 %v6980, %v6979
    %v7107 = vpack.c.b16 %v6982, %v6981
    %v7108 = vpack.c.b16 %v6984, %v6983
    %v7109 = vpack.c.b16 %v6986, %v6985
    %v7110 = vpack.c.b16 %v6988, %v6987
    %v7111 = vpack.c.b16 %v6990, %v6989
    %v7112 = vpack.c.b16 %v6992, %v6991
    %v7113 = vpack.c.b16 %v6994, %v6993
    %v7114 = vpack.c.b16 %v6996, %v6995
    %v7115 = vpack.c.b16 %v6998, %v6997
    %v7116 = vpack.c.b16 %v7000, %v6999
    %v7117 = vpack.c.b16 %v7002, %v7001
    %v7118 = vpack.c.b16 %v7004, %v7003
    %v7119 = vpack.c.b16 %v7006, %v7005
    %v7120 = vpack.c.b16 %v7008, %v7007
    %v7121 = vpack.c.b16 %v7010, %v7009
    %v7122 = vpack.c.b16 %v7012, %v7011
    %v7123 = vpack.c.b16 %v7014, %v7013
    %v7124 = vpack.c.b16 %v7016, %v7015
    %v7125 = vpack.c.b16 %v7018, %v7017
    %v7126 = vpack.c.b16 %v7020, %v7019
    %v7127 = vpack.c.b16 %v7022, %v7021
    %v7128 = vpack.c.b16 %v7024, %v7023
    %v7129 = vpack.c.b16 %v7026, %v7025
    %v7130 = vpack.c.b16 %v7028, %v7027
    %v7131 = vpack.c.b16 %v7030, %v7029
    %v7132 = vpack.c.b16 %v7032, %v7031
    %v7133 = vpack.c.b16 %v7034, %v7033
    %v7134 = vpack.c.b16 %v7036, %v7035
    %v7135 = vpack.c.b16 %v7038, %v7037
    %v7136 = vpack.c.b16 %v7040, %v7039
    %v7137 = vpack.c.b16 %v7042, %v7041
    %v7138 = vpack.c.b16 %v7044, %v7043
    %v7139 = vpack.c.b16 %v7046, %v7045
    %v7140 = vpack.c.b16 %v7048, %v7047
    %v7141 = vpack.c.b16 %v7050, %v7049
    %v7142 = vpack.c.b16 %v7052, %v7051
    %v7143 = vpack.c.b16 %v7054, %v7053
    %v7144 = vpack.c.b16 %v7056, %v7055
    %v7145 = vpack.c.b16 %v7058, %v7057
    %v7146 = vpack.c.b16 %v7060, %v7059
    %v7147 = vpack.c.b16 %v7062, %v7061
    %v7148 = vpack.c.b16 %v7064, %v7063
    %v7149 = vpack.c.b16 %v7066, %v7065
    %v7150 = vpack.c.b16 %v7068, %v7067
    %v7151 = vpack.c.b16 %v7070, %v7069
    %v7152 = vpack.c.b16 %v7072, %v7071
    %v7153 = vpack.c.b16 %v7074, %v7073
    %v7154 = vpack.c.b16 %v7076, %v7075
    %v7155 = vpack.c.b16 %v7078, %v7077
    %v7156 = vpack.c.b16 %v7080, %v7079
    %v7157 = vpack.c.b16 %v7082, %v7081
    %v7158 = vpack.c.b16 %v7084, %v7083
    %v7159 = vpack.c.b16 %v7086, %v7085
    %v7160 = vpack.c.b16 %v7088, %v7087
    %7233 = vmatprep.subr.bf16.mxu0 0
    %7234 = vmatpush1.bf16.msra.mxu0 %v7089
    %7235 = vmatprep.subr.bf16.mxu0 0
    %7236 = vmatpush1.bf16.msra.mxu0 %v7090
    %7237 = vmatprep.subr.bf16.mxu0 0
    %7238 = vmatpush1.bf16.msra.mxu0 %v7091
    %7239 = vmatprep.subr.bf16.mxu0 0
    %7240 = vmatpush1.bf16.msra.mxu0 %v7092
    %7241 = vmatprep.subr.bf16.mxu0 0
    %7242 = vmatpush1.bf16.msra.mxu0 %v7093
    %7243 = vmatprep.subr.bf16.mxu0 0
    %7244 = vmatpush1.bf16.msra.mxu0 %v7094
    %7245 = vmatprep.subr.bf16.mxu0 0
    %7246 = vmatpush1.bf16.msra.mxu0 %v7095
    %7247 = vmatprep.subr.bf16.mxu0 0
    %7248 = vmatpush1.bf16.msra.mxu0 %v7096
    %7249 = vmatprep.subr.bf16.mxu0 0
    %7250 = vmatpush1.bf16.msra.mxu0 %v7097
    %7251 = vmatprep.subr.bf16.mxu0 0
    %7252 = vmatpush1.bf16.msra.mxu0 %v7098
    %7253 = vmatprep.subr.bf16.mxu0 0
    %7254 = vmatpush1.bf16.msra.mxu0 %v7099
    %7255 = vmatprep.subr.bf16.mxu0 0
    %7256 = vmatpush1.bf16.msra.mxu0 %v7100
    %7257 = vmatprep.subr.bf16.mxu0 0
    %7258 = vmatpush1.bf16.msra.mxu0 %v7101
    %7259 = vmatprep.subr.bf16.mxu0 0
    %7260 = vmatpush1.bf16.msra.mxu0 %v7102
    %7261 = vmatprep.subr.bf16.mxu0 0
    %7262 = vmatpush1.bf16.msra.mxu0 %v7103
    %7263 = vmatprep.subr.bf16.mxu0 0
    %7264 = vmatpush1.bf16.msra.mxu0 %v7104
    %7265 = vmatprep.mubr.bf16.mxu0 %v6370
    %7266 = vmatmul.mubr.bf16.gmra.mrb[0].mxu0 %v6369
    %v7267 = vpop.f32.mrb[0].mxu0
    %v7268 = vadd.f32 0.0, %v7267
    %v7269 = vpop.f32.mrb[0].mxu0
    %v7270 = vpop.f32.mrb[0].mxu0
    %v7271 = vadd.f32 0.0, %v7270
    %v7272 = vpop.f32.mrb[0].mxu0
    %7273 = vmatprep.mubr.bf16.mxu0 %v6379
    %7274 = vmatmul.mubr.bf16.gmra.mrb[0].mxu0 %v6378
    %v7275 = vpop.f32.mrb[0].mxu0
    %v7276 = vadd.f32 0.0, %v7275
    %v7277 = vpop.f32.mrb[0].mxu0
    %v7278 = vpop.f32.mrb[0].mxu0
    %v7279 = vadd.f32 0.0, %v7278
    %v7280 = vpop.f32.mrb[0].mxu0
    %7281 = vmatprep.mubr.bf16.mxu0 %v6388
    %7282 = vmatmul.mubr.bf16.gmra.mrb[0].mxu0 %v6387
    %v7283 = vpop.f32.mrb[0].mxu0
    %v7284 = vadd.f32 0.0, %v7283
    %v7285 = vpop.f32.mrb[0].mxu0
    %v7286 = vpop.f32.mrb[0].mxu0
    %v7287 = vadd.f32 0.0, %v7286
    %v7288 = vpop.f32.mrb[0].mxu0
    %7289 = vmatprep.mubr.bf16.mxu0 %v6397
    %7290 = vmatmul.mubr.bf16.gmra.mrb[0].mxu0 %v6396
    %v7291 = vpop.f32.mrb[0].mxu0
    %v7292 = vadd.f32 0.0, %v7291
    %v7293 = vpop.f32.mrb[0].mxu0
    %v7294 = vpop.f32.mrb[0].mxu0
    %v7295 = vadd.f32 0.0, %v7294
    %v7296 = vpop.f32.mrb[0].mxu0
    %7297 = vmatprep.mubr.bf16.mxu0 %v6406
    %7298 = vmatmul.mubr.bf16.gmra.mrb[0].mxu0 %v6405
    %v7299 = vpop.f32.mrb[0].mxu0
    %v7300 = vadd.f32 0.0, %v7299
    %v7301 = vpop.f32.mrb[0].mxu0
    %v7302 = vpop.f32.mrb[0].mxu0
    %v7303 = vadd.f32 0.0, %v7302
    %v7304 = vpop.f32.mrb[0].mxu0
    %7305 = vmatprep.mubr.bf16.mxu0 %v6415
    %7306 = vmatmul.mubr.bf16.gmra.mrb[0].mxu0 %v6414
    %v7307 = vpop.f32.mrb[0].mxu0
    %v7308 = vadd.f32 0.0, %v7307
    %v7309 = vpop.f32.mrb[0].mxu0
    %v7310 = vpop.f32.mrb[0].mxu0
    %v7311 = vadd.f32 0.0, %v7310
    %v7312 = vpop.f32.mrb[0].mxu0
    %7313 = vmatprep.mubr.bf16.mxu0 %v6424
    %7314 = vmatmul.mubr.bf16.gmra.mrb[0].mxu0 %v6423
    %v7315 = vpop.f32.mrb[0].mxu0
    %v7316 = vadd.f32 0.0, %v7315
    %v7317 = vpop.f32.mrb[0].mxu0
    %v7318 = vpop.f32.mrb[0].mxu0
    %v7319 = vadd.f32 0.0, %v7318
    %v7320 = vpop.f32.mrb[0].mxu0
    %7321 = vmatprep.mubr.bf16.mxu0 %v6433
    %7322 = vmatmul.mubr.bf16.gmra.mrb[0].mxu0 %v6432
    %v7323 = vpop.f32.mrb[0].mxu0
    %v7324 = vadd.f32 0.0, %v7323
    %v7325 = vpop.f32.mrb[0].mxu0
    %v7326 = vpop.f32.mrb[0].mxu0
    %v7327 = vadd.f32 0.0, %v7326
    %v7328 = vpop.f32.mrb[0].mxu0
    %7329 = vmatprep.mubr.bf16.mxu0 %v6442
    %7330 = vmatmul.mubr.bf16.gmra.mrb[0].mxu0 %v6441
    %v7331 = vpop.f32.mrb[0].mxu0
    %v7332 = vadd.f32 0.0, %v7331
    %v7333 = vpop.f32.mrb[0].mxu0
    %v7334 = vpop.f32.mrb[0].mxu0
    %v7335 = vadd.f32 0.0, %v7334
    %v7336 = vpop.f32.mrb[0].mxu0
    %7337 = vmatprep.mubr.bf16.mxu0 %v6451
    %7338 = vmatmul.mubr.bf16.gmra.mrb[0].mxu0 %v6450
    %v7339 = vpop.f32.mrb[0].mxu0
    %v7340 = vadd.f32 0.0, %v7339
    %v7341 = vpop.f32.mrb[0].mxu0
    %v7342 = vpop.f32.mrb[0].mxu0
    %v7343 = vadd.f32 0.0, %v7342
    %v7344 = vpop.f32.mrb[0].mxu0
    %7345 = vmatprep.mubr.bf16.mxu0 %v6460
    %7346 = vmatmul.mubr.bf16.gmra.mrb[0].mxu0 %v6459
    %v7347 = vpop.f32.mrb[0].mxu0
    %v7348 = vadd.f32 0.0, %v7347
    %v7349 = vpop.f32.mrb[0].mxu0
    %v7350 = vpop.f32.mrb[0].mxu0
    %v7351 = vadd.f32 0.0, %v7350
    %v7352 = vpop.f32.mrb[0].mxu0
    %7353 = vmatprep.mubr.bf16.mxu0 %v6469
    %7354 = vmatmul.mubr.bf16.gmra.mrb[0].mxu0 %v6468
    %v7355 = vpop.f32.mrb[0].mxu0
    %v7356 = vadd.f32 0.0, %v7355
    %v7357 = vpop.f32.mrb[0].mxu0
    %v7358 = vpop.f32.mrb[0].mxu0
    %v7359 = vadd.f32 0.0, %v7358
    %v7360 = vpop.f32.mrb[0].mxu0
    %7361 = vmatprep.mubr.bf16.mxu0 %v6478
    %7362 = vmatmul.mubr.bf16.gmra.mrb[0].mxu0 %v6477
    %v7363 = vpop.f32.mrb[0].mxu0
    %v7364 = vadd.f32 0.0, %v7363
    %v7365 = vpop.f32.mrb[0].mxu0
    %v7366 = vpop.f32.mrb[0].mxu0
    %v7367 = vadd.f32 0.0, %v7366
    %v7368 = vpop.f32.mrb[0].mxu0
    %7369 = vmatprep.mubr.bf16.mxu0 %v6487
    %7370 = vmatmul.mubr.bf16.gmra.mrb[0].mxu0 %v6486
    %v7371 = vpop.f32.mrb[0].mxu0
    %v7372 = vadd.f32 0.0, %v7371
    %v7373 = vpop.f32.mrb[0].mxu0
    %v7374 = vpop.f32.mrb[0].mxu0
    %v7375 = vadd.f32 0.0, %v7374
    %v7376 = vpop.f32.mrb[0].mxu0
    %7377 = vmatprep.mubr.bf16.mxu0 %v6496
    %7378 = vmatmul.mubr.bf16.gmra.mrb[0].mxu0 %v6495
    %v7379 = vpop.f32.mrb[0].mxu0
    %v7380 = vadd.f32 0.0, %v7379
    %v7381 = vpop.f32.mrb[0].mxu0
    %v7382 = vpop.f32.mrb[0].mxu0
    %v7383 = vadd.f32 0.0, %v7382
    %v7384 = vpop.f32.mrb[0].mxu0
    %7385 = vmatprep.mubr.bf16.mxu0 %v6505
    %7386 = vmatmul.mubr.bf16.gmra.mrb[0].mxu0 %v6504
    %v7387 = vpop.f32.mrb[0].mxu0
    %v7388 = vadd.f32 0.0, %v7387
    %v7389 = vpop.f32.mrb[0].mxu0
    %v7390 = vpop.f32.mrb[0].mxu0
    %v7391 = vadd.f32 0.0, %v7390
    %v7392 = vpop.f32.mrb[0].mxu0
    %7393 = vmatprep.mubr.bf16.mxu0 %v6514
    %7394 = vmatmul.mubr.bf16.gmra.mrb[0].mxu0 %v6513
    %v7395 = vpop.f32.mrb[0].mxu0
    %v7396 = vadd.f32 0.0, %v7395
    %v7397 = vpop.f32.mrb[0].mxu0
    %v7398 = vpop.f32.mrb[0].mxu0
    %v7399 = vadd.f32 0.0, %v7398
    %v7400 = vpop.f32.mrb[0].mxu0
    %7401 = vmatprep.mubr.bf16.mxu0 %v6523
    %7402 = vmatmul.mubr.bf16.gmra.mrb[0].mxu0 %v6522
    %v7403 = vpop.f32.mrb[0].mxu0
    %v7404 = vadd.f32 0.0, %v7403
    %v7405 = vpop.f32.mrb[0].mxu0
    %v7406 = vpop.f32.mrb[0].mxu0
    %v7407 = vadd.f32 0.0, %v7406
    %v7408 = vpop.f32.mrb[0].mxu0
    %7409 = vmatprep.mubr.bf16.mxu0 %v6532
    %7410 = vmatmul.mubr.bf16.gmra.mrb[0].mxu0 %v6531
    %v7411 = vpop.f32.mrb[0].mxu0
    %v7412 = vadd.f32 0.0, %v7411
    %v7413 = vpop.f32.mrb[0].mxu0
    %v7414 = vpop.f32.mrb[0].mxu0
    %v7415 = vadd.f32 0.0, %v7414
    %v7416 = vpop.f32.mrb[0].mxu0
    %7417 = vmatprep.mubr.bf16.mxu0 %v6541
    %7418 = vmatmul.mubr.bf16.gmra.mrb[0].mxu0 %v6540
    %v7419 = vpop.f32.mrb[0].mxu0
    %v7420 = vadd.f32 0.0, %v7419
    %v7421 = vpop.f32.mrb[0].mxu0
    %v7422 = vpop.f32.mrb[0].mxu0
    %v7423 = vadd.f32 0.0, %v7422
    %v7424 = vpop.f32.mrb[0].mxu0
    %7425 = vmatprep.mubr.bf16.mxu0 %v6550
    %7426 = vmatmul.mubr.bf16.gmra.mrb[0].mxu0 %v6549
    %v7427 = vpop.f32.mrb[0].mxu0
    %v7428 = vadd.f32 0.0, %v7427
    %v7429 = vpop.f32.mrb[0].mxu0
    %v7430 = vpop.f32.mrb[0].mxu0
    %v7431 = vadd.f32 0.0, %v7430
    %v7432 = vpop.f32.mrb[0].mxu0
    %7433 = vmatprep.mubr.bf16.mxu0 %v6559
    %7434 = vmatmul.mubr.bf16.gmra.mrb[0].mxu0 %v6558
    %v7435 = vpop.f32.mrb[0].mxu0
    %v7436 = vadd.f32 0.0, %v7435
    %v7437 = vpop.f32.mrb[0].mxu0
    %v7438 = vpop.f32.mrb[0].mxu0
    %v7439 = vadd.f32 0.0, %v7438
    %v7440 = vpop.f32.mrb[0].mxu0
    %7441 = vmatprep.mubr.bf16.mxu0 %v6568
    %7442 = vmatmul.mubr.bf16.gmra.mrb[0].mxu0 %v6567
    %v7443 = vpop.f32.mrb[0].mxu0
    %v7444 = vadd.f32 0.0, %v7443
    %v7445 = vpop.f32.mrb[0].mxu0
    %v7446 = vpop.f32.mrb[0].mxu0
    %v7447 = vadd.f32 0.0, %v7446
    %v7448 = vpop.f32.mrb[0].mxu0
    %7449 = vmatprep.mubr.bf16.mxu0 %v6577
    %7450 = vmatmul.mubr.bf16.gmra.mrb[0].mxu0 %v6576
    %v7451 = vpop.f32.mrb[0].mxu0
    %v7452 = vadd.f32 0.0, %v7451
    %v7453 = vpop.f32.mrb[0].mxu0
    %v7454 = vpop.f32.mrb[0].mxu0
    %v7455 = vadd.f32 0.0, %v7454
    %v7456 = vpop.f32.mrb[0].mxu0
    %7457 = vmatprep.mubr.bf16.mxu0 %v6586
    %7458 = vmatmul.mubr.bf16.gmra.mrb[0].mxu0 %v6585
    %v7459 = vpop.f32.mrb[0].mxu0
    %v7460 = vadd.f32 0.0, %v7459
    %v7461 = vpop.f32.mrb[0].mxu0
    %v7462 = vpop.f32.mrb[0].mxu0
    %v7463 = vadd.f32 0.0, %v7462
    %v7464 = vpop.f32.mrb[0].mxu0
    %7465 = vmatprep.mubr.bf16.mxu0 %v6595
    %7466 = vmatmul.mubr.bf16.gmra.mrb[0].mxu0 %v6594
    %v7467 = vpop.f32.mrb[0].mxu0
    %v7468 = vadd.f32 0.0, %v7467
    %v7469 = vpop.f32.mrb[0].mxu0
    %v7470 = vpop.f32.mrb[0].mxu0
    %v7471 = vadd.f32 0.0, %v7470
    %v7472 = vpop.f32.mrb[0].mxu0
    %7473 = vmatprep.mubr.bf16.mxu0 %v6604
    %7474 = vmatmul.mubr.bf16.gmra.mrb[0].mxu0 %v6603
    %v7475 = vpop.f32.mrb[0].mxu0
    %v7476 = vadd.f32 0.0, %v7475
    %v7477 = vpop.f32.mrb[0].mxu0
    %v7478 = vpop.f32.mrb[0].mxu0
    %v7479 = vadd.f32 0.0, %v7478
    %v7480 = vpop.f32.mrb[0].mxu0
    %7481 = vmatprep.mubr.bf16.mxu0 %v6613
    %7482 = vmatmul.mubr.bf16.gmra.mrb[0].mxu0 %v6612
    %v7483 = vpop.f32.mrb[0].mxu0
    %v7484 = vadd.f32 0.0, %v7483
    %v7485 = vpop.f32.mrb[0].mxu0
    %v7486 = vpop.f32.mrb[0].mxu0
    %v7487 = vadd.f32 0.0, %v7486
    %v7488 = vpop.f32.mrb[0].mxu0
    %7489 = vmatprep.mubr.bf16.mxu0 %v6622
    %7490 = vmatmul.mubr.bf16.gmra.mrb[0].mxu0 %v6621
    %v7491 = vpop.f32.mrb[0].mxu0
    %v7492 = vadd.f32 0.0, %v7491
    %v7493 = vpop.f32.mrb[0].mxu0
    %v7494 = vpop.f32.mrb[0].mxu0
    %v7495 = vadd.f32 0.0, %v7494
    %v7496 = vpop.f32.mrb[0].mxu0
    %7497 = vmatprep.mubr.bf16.mxu0 %v6631
    %7498 = vmatmul.mubr.bf16.gmra.mrb[0].mxu0 %v6630
    %v7499 = vpop.f32.mrb[0].mxu0
    %v7500 = vadd.f32 0.0, %v7499
    %v7501 = vpop.f32.mrb[0].mxu0
    %v7502 = vpop.f32.mrb[0].mxu0
    %v7503 = vadd.f32 0.0, %v7502
    %v7504 = vpop.f32.mrb[0].mxu0
    %7505 = vmatprep.mubr.bf16.mxu0 %v6640
    %7506 = vmatmul.mubr.bf16.gmra.mrb[0].mxu0 %v6639
    %v7507 = vpop.f32.mrb[0].mxu0
    %v7508 = vadd.f32 0.0, %v7507
    %v7509 = vpop.f32.mrb[0].mxu0
    %v7510 = vpop.f32.mrb[0].mxu0
    %v7511 = vadd.f32 0.0, %v7510
    %v7512 = vpop.f32.mrb[0].mxu0
    %7513 = vmatprep.mubr.bf16.mxu0 %v6649
    %7514 = vmatmul.mubr.bf16.gmra.mrb[0].mxu0 %v6648
    %v7515 = vpop.f32.mrb[0].mxu0
    %v7516 = vadd.f32 0.0, %v7515
    %v7517 = vpop.f32.mrb[0].mxu0
    %v7518 = vpop.f32.mrb[0].mxu0
    %v7519 = vadd.f32 0.0, %v7518
    %v7520 = vpop.f32.mrb[0].mxu0
    %7521 = vdwg.mxu0
    %7522 = vmatprep.subr.bf16.mxu0 0
    %7523 = vmatpush1.bf16.msra.mxu0 %v7105
    %7524 = vmatprep.subr.bf16.mxu0 0
    %7525 = vmatpush1.bf16.msra.mxu0 %v7106
    %7526 = vmatprep.subr.bf16.mxu0 0
    %7527 = vmatpush1.bf16.msra.mxu0 %v7107
    %7528 = vmatprep.subr.bf16.mxu0 0
    %7529 = vmatpush1.bf16.msra.mxu0 %v7108
    %7530 = vmatprep.subr.bf16.mxu0 0
    %7531 = vmatpush1.bf16.msra.mxu0 %v7109
    %7532 = vmatprep.subr.bf16.mxu0 0
    %7533 = vmatpush1.bf16.msra.mxu0 %v7110
    %7534 = vmatprep.subr.bf16.mxu0 0
    %7535 = vmatpush1.bf16.msra.mxu0 %v7111
    %7536 = vmatprep.subr.bf16.mxu0 0
    %7537 = vmatpush1.bf16.msra.mxu0 %v7112
    %7538 = vmatprep.subr.bf16.mxu0 0
    %7539 = vmatpush1.bf16.msra.mxu0 %v7113
    %7540 = vmatprep.subr.bf16.mxu0 0
    %7541 = vmatpush1.bf16.msra.mxu0 %v7114
    %7542 = vmatprep.subr.bf16.mxu0 0
    %7543 = vmatpush1.bf16.msra.mxu0 %v7115
    %7544 = vmatprep.subr.bf16.mxu0 0
    %7545 = vmatpush1.bf16.msra.mxu0 %v7116
    %7546 = vmatprep.subr.bf16.mxu0 0
    %7547 = vmatpush1.bf16.msra.mxu0 %v7117
    %7548 = vmatprep.subr.bf16.mxu0 0
    %7549 = vmatpush1.bf16.msra.mxu0 %v7118
    %7550 = vmatprep.subr.bf16.mxu0 0
    %7551 = vmatpush1.bf16.msra.mxu0 %v7119
    %7552 = vmatprep.subr.bf16.mxu0 0
    %7553 = vmatpush1.bf16.msra.mxu0 %v7120
    %7554 = vmatprep.mubr.bf16.mxu0 %v6372
    %7555 = vmatmul.mubr.bf16.gmra.mrb[0].mxu0 %v6371
    %v7556 = vpop.f32.mrb[0].mxu0
    %v7557 = vadd.f32 %v7268, %v7556
    %v7558 = vpop.f32.mrb[0].mxu0
    %v7559 = vpop.f32.mrb[0].mxu0
    %v7560 = vadd.f32 %v7271, %v7559
    %v7561 = vpop.f32.mrb[0].mxu0
    %7562 = vmatprep.mubr.bf16.mxu0 %v6381
    %7563 = vmatmul.mubr.bf16.gmra.mrb[0].mxu0 %v6380
    %v7564 = vpop.f32.mrb[0].mxu0
    %v7565 = vadd.f32 %v7276, %v7564
    %v7566 = vpop.f32.mrb[0].mxu0
    %v7567 = vpop.f32.mrb[0].mxu0
    %v7568 = vadd.f32 %v7279, %v7567
    %v7569 = vpop.f32.mrb[0].mxu0
    %7570 = vmatprep.mubr.bf16.mxu0 %v6390
    %7571 = vmatmul.mubr.bf16.gmra.mrb[0].mxu0 %v6389
    %v7572 = vpop.f32.mrb[0].mxu0
    %v7573 = vadd.f32 %v7284, %v7572
    %v7574 = vpop.f32.mrb[0].mxu0
    %v7575 = vpop.f32.mrb[0].mxu0
    %v7576 = vadd.f32 %v7287, %v7575
    %v7577 = vpop.f32.mrb[0].mxu0
    %7578 = vmatprep.mubr.bf16.mxu0 %v6399
    %7579 = vmatmul.mubr.bf16.gmra.mrb[0].mxu0 %v6398
    %v7580 = vpop.f32.mrb[0].mxu0
    %v7581 = vadd.f32 %v7292, %v7580
    %v7582 = vpop.f32.mrb[0].mxu0
    %v7583 = vpop.f32.mrb[0].mxu0
    %v7584 = vadd.f32 %v7295, %v7583
    %v7585 = vpop.f32.mrb[0].mxu0
    %7586 = vmatprep.mubr.bf16.mxu0 %v6408
    %7587 = vmatmul.mubr.bf16.gmra.mrb[0].mxu0 %v6407
    %v7588 = vpop.f32.mrb[0].mxu0
    %v7589 = vadd.f32 %v7300, %v7588
    %v7590 = vpop.f32.mrb[0].mxu0
    %v7591 = vpop.f32.mrb[0].mxu0
    %v7592 = vadd.f32 %v7303, %v7591
    %v7593 = vpop.f32.mrb[0].mxu0
    %7594 = vmatprep.mubr.bf16.mxu0 %v6417
    %7595 = vmatmul.mubr.bf16.gmra.mrb[0].mxu0 %v6416
    %v7596 = vpop.f32.mrb[0].mxu0
    %v7597 = vadd.f32 %v7308, %v7596
    %v7598 = vpop.f32.mrb[0].mxu0
    %v7599 = vpop.f32.mrb[0].mxu0
    %v7600 = vadd.f32 %v7311, %v7599
    %v7601 = vpop.f32.mrb[0].mxu0
    %7602 = vmatprep.mubr.bf16.mxu0 %v6426
    %7603 = vmatmul.mubr.bf16.gmra.mrb[0].mxu0 %v6425
    %v7604 = vpop.f32.mrb[0].mxu0
    %v7605 = vadd.f32 %v7316, %v7604
    %v7606 = vpop.f32.mrb[0].mxu0
    %v7607 = vpop.f32.mrb[0].mxu0
    %v7608 = vadd.f32 %v7319, %v7607
    %v7609 = vpop.f32.mrb[0].mxu0
    %7610 = vmatprep.mubr.bf16.mxu0 %v6435
    %7611 = vmatmul.mubr.bf16.gmra.mrb[0].mxu0 %v6434
    %v7612 = vpop.f32.mrb[0].mxu0
    %v7613 = vadd.f32 %v7324, %v7612
    %v7614 = vpop.f32.mrb[0].mxu0
    %v7615 = vpop.f32.mrb[0].mxu0
    %v7616 = vadd.f32 %v7327, %v7615
    %v7617 = vpop.f32.mrb[0].mxu0
    %7618 = vmatprep.mubr.bf16.mxu0 %v6444
    %7619 = vmatmul.mubr.bf16.gmra.mrb[0].mxu0 %v6443
    %v7620 = vpop.f32.mrb[0].mxu0
    %v7621 = vadd.f32 %v7332, %v7620
    %v7622 = vpop.f32.mrb[0].mxu0
    %v7623 = vpop.f32.mrb[0].mxu0
    %v7624 = vadd.f32 %v7335, %v7623
    %v7625 = vpop.f32.mrb[0].mxu0
    %7626 = vmatprep.mubr.bf16.mxu0 %v6453
    %7627 = vmatmul.mubr.bf16.gmra.mrb[0].mxu0 %v6452
    %v7628 = vpop.f32.mrb[0].mxu0
    %v7629 = vadd.f32 %v7340, %v7628
    %v7630 = vpop.f32.mrb[0].mxu0
    %v7631 = vpop.f32.mrb[0].mxu0
    %v7632 = vadd.f32 %v7343, %v7631
    %v7633 = vpop.f32.mrb[0].mxu0
    %7634 = vmatprep.mubr.bf16.mxu0 %v6462
    %7635 = vmatmul.mubr.bf16.gmra.mrb[0].mxu0 %v6461
    %v7636 = vpop.f32.mrb[0].mxu0
    %v7637 = vadd.f32 %v7348, %v7636
    %v7638 = vpop.f32.mrb[0].mxu0
    %v7639 = vpop.f32.mrb[0].mxu0
    %v7640 = vadd.f32 %v7351, %v7639
    %v7641 = vpop.f32.mrb[0].mxu0
    %7642 = vmatprep.mubr.bf16.mxu0 %v6471
    %7643 = vmatmul.mubr.bf16.gmra.mrb[0].mxu0 %v6470
    %v7644 = vpop.f32.mrb[0].mxu0
    %v7645 = vadd.f32 %v7356, %v7644
    %v7646 = vpop.f32.mrb[0].mxu0
    %v7647 = vpop.f32.mrb[0].mxu0
    %v7648 = vadd.f32 %v7359, %v7647
    %v7649 = vpop.f32.mrb[0].mxu0
    %7650 = vmatprep.mubr.bf16.mxu0 %v6480
    %7651 = vmatmul.mubr.bf16.gmra.mrb[0].mxu0 %v6479
    %v7652 = vpop.f32.mrb[0].mxu0
    %v7653 = vadd.f32 %v7364, %v7652
    %v7654 = vpop.f32.mrb[0].mxu0
    %v7655 = vpop.f32.mrb[0].mxu0
    %v7656 = vadd.f32 %v7367, %v7655
    %v7657 = vpop.f32.mrb[0].mxu0
    %7658 = vmatprep.mubr.bf16.mxu0 %v6489
    %7659 = vmatmul.mubr.bf16.gmra.mrb[0].mxu0 %v6488
    %v7660 = vpop.f32.mrb[0].mxu0
    %v7661 = vadd.f32 %v7372, %v7660
    %v7662 = vpop.f32.mrb[0].mxu0
    %v7663 = vpop.f32.mrb[0].mxu0
    %v7664 = vadd.f32 %v7375, %v7663
    %v7665 = vpop.f32.mrb[0].mxu0
    %7666 = vmatprep.mubr.bf16.mxu0 %v6498
    %7667 = vmatmul.mubr.bf16.gmra.mrb[0].mxu0 %v6497
    %v7668 = vpop.f32.mrb[0].mxu0
    %v7669 = vadd.f32 %v7380, %v7668
    %v7670 = vpop.f32.mrb[0].mxu0
    %v7671 = vpop.f32.mrb[0].mxu0
    %v7672 = vadd.f32 %v7383, %v7671
    %v7673 = vpop.f32.mrb[0].mxu0
    %7674 = vmatprep.mubr.bf16.mxu0 %v6507
    %7675 = vmatmul.mubr.bf16.gmra.mrb[0].mxu0 %v6506
    %v7676 = vpop.f32.mrb[0].mxu0
    %v7677 = vadd.f32 %v7388, %v7676
    %v7678 = vpop.f32.mrb[0].mxu0
    %v7679 = vpop.f32.mrb[0].mxu0
    %v7680 = vadd.f32 %v7391, %v7679
    %v7681 = vpop.f32.mrb[0].mxu0
    %7682 = vmatprep.mubr.bf16.mxu0 %v6516
    %7683 = vmatmul.mubr.bf16.gmra.mrb[0].mxu0 %v6515
    %v7684 = vpop.f32.mrb[0].mxu0
    %v7685 = vadd.f32 %v7396, %v7684
    %v7686 = vpop.f32.mrb[0].mxu0
    %v7687 = vpop.f32.mrb[0].mxu0
    %v7688 = vadd.f32 %v7399, %v7687
    %v7689 = vpop.f32.mrb[0].mxu0
    %7690 = vmatprep.mubr.bf16.mxu0 %v6525
    %7691 = vmatmul.mubr.bf16.gmra.mrb[0].mxu0 %v6524
    %v7692 = vpop.f32.mrb[0].mxu0
    %v7693 = vadd.f32 %v7404, %v7692
    %v7694 = vpop.f32.mrb[0].mxu0
    %v7695 = vpop.f32.mrb[0].mxu0
    %v7696 = vadd.f32 %v7407, %v7695
    %v7697 = vpop.f32.mrb[0].mxu0
    %7698 = vmatprep.mubr.bf16.mxu0 %v6534
    %7699 = vmatmul.mubr.bf16.gmra.mrb[0].mxu0 %v6533
    %v7700 = vpop.f32.mrb[0].mxu0
    %v7701 = vadd.f32 %v7412, %v7700
    %v7702 = vpop.f32.mrb[0].mxu0
    %v7703 = vpop.f32.mrb[0].mxu0
    %v7704 = vadd.f32 %v7415, %v7703
    %v7705 = vpop.f32.mrb[0].mxu0
    %7706 = vmatprep.mubr.bf16.mxu0 %v6543
    %7707 = vmatmul.mubr.bf16.gmra.mrb[0].mxu0 %v6542
    %v7708 = vpop.f32.mrb[0].mxu0
    %v7709 = vadd.f32 %v7420, %v7708
    %v7710 = vpop.f32.mrb[0].mxu0
    %v7711 = vpop.f32.mrb[0].mxu0
    %v7712 = vadd.f32 %v7423, %v7711
    %v7713 = vpop.f32.mrb[0].mxu0
    %7714 = vmatprep.mubr.bf16.mxu0 %v6552
    %7715 = vmatmul.mubr.bf16.gmra.mrb[0].mxu0 %v6551
    %v7716 = vpop.f32.mrb[0].mxu0
    %v7717 = vadd.f32 %v7428, %v7716
    %v7718 = vpop.f32.mrb[0].mxu0
    %v7719 = vpop.f32.mrb[0].mxu0
    %v7720 = vadd.f32 %v7431, %v7719
    %v7721 = vpop.f32.mrb[0].mxu0
    %7722 = vmatprep.mubr.bf16.mxu0 %v6561
    %7723 = vmatmul.mubr.bf16.gmra.mrb[0].mxu0 %v6560
    %v7724 = vpop.f32.mrb[0].mxu0
    %v7725 = vadd.f32 %v7436, %v7724
    %v7726 = vpop.f32.mrb[0].mxu0
    %v7727 = vpop.f32.mrb[0].mxu0
    %v7728 = vadd.f32 %v7439, %v7727
    %v7729 = vpop.f32.mrb[0].mxu0
    %7730 = vmatprep.mubr.bf16.mxu0 %v6570
    %7731 = vmatmul.mubr.bf16.gmra.mrb[0].mxu0 %v6569
    %v7732 = vpop.f32.mrb[0].mxu0
    %v7733 = vadd.f32 %v7444, %v7732
    %v7734 = vpop.f32.mrb[0].mxu0
    %v7735 = vpop.f32.mrb[0].mxu0
    %v7736 = vadd.f32 %v7447, %v7735
    %v7737 = vpop.f32.mrb[0].mxu0
    %7738 = vmatprep.mubr.bf16.mxu0 %v6579
    %7739 = vmatmul.mubr.bf16.gmra.mrb[0].mxu0 %v6578
    %v7740 = vpop.f32.mrb[0].mxu0
    %v7741 = vadd.f32 %v7452, %v7740
    %v7742 = vpop.f32.mrb[0].mxu0
    %v7743 = vpop.f32.mrb[0].mxu0
    %v7744 = vadd.f32 %v7455, %v7743
    %v7745 = vpop.f32.mrb[0].mxu0
    %7746 = vmatprep.mubr.bf16.mxu0 %v6588
    %7747 = vmatmul.mubr.bf16.gmra.mrb[0].mxu0 %v6587
    %v7748 = vpop.f32.mrb[0].mxu0
    %v7749 = vadd.f32 %v7460, %v7748
    %v7750 = vpop.f32.mrb[0].mxu0
    %v7751 = vpop.f32.mrb[0].mxu0
    %v7752 = vadd.f32 %v7463, %v7751
    %v7753 = vpop.f32.mrb[0].mxu0
    %7754 = vmatprep.mubr.bf16.mxu0 %v6597
    %7755 = vmatmul.mubr.bf16.gmra.mrb[0].mxu0 %v6596
    %v7756 = vpop.f32.mrb[0].mxu0
    %v7757 = vadd.f32 %v7468, %v7756
    %v7758 = vpop.f32.mrb[0].mxu0
    %v7759 = vpop.f32.mrb[0].mxu0
    %v7760 = vadd.f32 %v7471, %v7759
    %v7761 = vpop.f32.mrb[0].mxu0
    %7762 = vmatprep.mubr.bf16.mxu0 %v6606
    %7763 = vmatmul.mubr.bf16.gmra.mrb[0].mxu0 %v6605
    %v7764 = vpop.f32.mrb[0].mxu0
    %v7765 = vadd.f32 %v7476, %v7764
    %v7766 = vpop.f32.mrb[0].mxu0
    %v7767 = vpop.f32.mrb[0].mxu0
    %v7768 = vadd.f32 %v7479, %v7767
    %v7769 = vpop.f32.mrb[0].mxu0
    %7770 = vmatprep.mubr.bf16.mxu0 %v6615
    %7771 = vmatmul.mubr.bf16.gmra.mrb[0].mxu0 %v6614
    %v7772 = vpop.f32.mrb[0].mxu0
    %v7773 = vadd.f32 %v7484, %v7772
    %v7774 = vpop.f32.mrb[0].mxu0
    %v7775 = vpop.f32.mrb[0].mxu0
    %v7776 = vadd.f32 %v7487, %v7775
    %v7777 = vpop.f32.mrb[0].mxu0
    %7778 = vmatprep.mubr.bf16.mxu0 %v6624
    %7779 = vmatmul.mubr.bf16.gmra.mrb[0].mxu0 %v6623
    %v7780 = vpop.f32.mrb[0].mxu0
    %v7781 = vadd.f32 %v7492, %v7780
    %v7782 = vpop.f32.mrb[0].mxu0
    %v7783 = vpop.f32.mrb[0].mxu0
    %v7784 = vadd.f32 %v7495, %v7783
    %v7785 = vpop.f32.mrb[0].mxu0
    %7786 = vmatprep.mubr.bf16.mxu0 %v6633
    %7787 = vmatmul.mubr.bf16.gmra.mrb[0].mxu0 %v6632
    %v7788 = vpop.f32.mrb[0].mxu0
    %v7789 = vadd.f32 %v7500, %v7788
    %v7790 = vpop.f32.mrb[0].mxu0
    %v7791 = vpop.f32.mrb[0].mxu0
    %v7792 = vadd.f32 %v7503, %v7791
    %v7793 = vpop.f32.mrb[0].mxu0
    %7794 = vmatprep.mubr.bf16.mxu0 %v6642
    %7795 = vmatmul.mubr.bf16.gmra.mrb[0].mxu0 %v6641
    %v7796 = vpop.f32.mrb[0].mxu0
    %v7797 = vadd.f32 %v7508, %v7796
    %v7798 = vpop.f32.mrb[0].mxu0
    %v7799 = vpop.f32.mrb[0].mxu0
    %v7800 = vadd.f32 %v7511, %v7799
    %v7801 = vpop.f32.mrb[0].mxu0
    %7802 = vmatprep.mubr.bf16.mxu0 %v6651
    %7803 = vmatmul.mubr.bf16.gmra.mrb[0].mxu0 %v6650
    %v7804 = vpop.f32.mrb[0].mxu0
    %v7805 = vadd.f32 %v7516, %v7804
    %v7806 = vpop.f32.mrb[0].mxu0
    %v7807 = vpop.f32.mrb[0].mxu0
    %v7808 = vadd.f32 %v7519, %v7807
    %v7809 = vpop.f32.mrb[0].mxu0
    %7810 = vdwg.mxu0
    %7811 = vmatprep.subr.bf16.mxu0 0
    %7812 = vmatpush1.bf16.msra.mxu0 %v7121
    %7813 = vmatprep.subr.bf16.mxu0 0
    %7814 = vmatpush1.bf16.msra.mxu0 %v7122
    %7815 = vmatprep.subr.bf16.mxu0 0
    %7816 = vmatpush1.bf16.msra.mxu0 %v7123
    %7817 = vmatprep.subr.bf16.mxu0 0
    %7818 = vmatpush1.bf16.msra.mxu0 %v7124
    %7819 = vmatprep.subr.bf16.mxu0 0
    %7820 = vmatpush1.bf16.msra.mxu0 %v7125
    %7821 = vmatprep.subr.bf16.mxu0 0
    %7822 = vmatpush1.bf16.msra.mxu0 %v7126
    %7823 = vmatprep.subr.bf16.mxu0 0
    %7824 = vmatpush1.bf16.msra.mxu0 %v7127
    %7825 = vmatprep.subr.bf16.mxu0 0
    %7826 = vmatpush1.bf16.msra.mxu0 %v7128
    %7827 = vmatprep.subr.bf16.mxu0 0
    %7828 = vmatpush1.bf16.msra.mxu0 %v7129
    %7829 = vmatprep.subr.bf16.mxu0 0
    %7830 = vmatpush1.bf16.msra.mxu0 %v7130
    %7831 = vmatprep.subr.bf16.mxu0 0
    %7832 = vmatpush1.bf16.msra.mxu0 %v7131
    %7833 = vmatprep.subr.bf16.mxu0 0
    %7834 = vmatpush1.bf16.msra.mxu0 %v7132
    %7835 = vmatprep.subr.bf16.mxu0 0
    %7836 = vmatpush1.bf16.msra.mxu0 %v7133
    %7837 = vmatprep.subr.bf16.mxu0 0
    %7838 = vmatpush1.bf16.msra.mxu0 %v7134
    %7839 = vmatprep.subr.bf16.mxu0 0
    %7840 = vmatpush1.bf16.msra.mxu0 %v7135
    %7841 = vmatprep.subr.bf16.mxu0 0
    %7842 = vmatpush1.bf16.msra.mxu0 %v7136
    %7843 = vmatprep.mubr.bf16.mxu0 %v6374
    %7844 = vmatmul.mubr.bf16.gmra.mrb[0].mxu0 %v6373
    %v7845 = vpop.f32.mrb[0].mxu0
    %v7846 = vadd.f32 %v7557, %v7845
    %v7847 = vpop.f32.mrb[0].mxu0
    %v7848 = vpop.f32.mrb[0].mxu0
    %v7849 = vadd.f32 %v7560, %v7848
    %v7850 = vpop.f32.mrb[0].mxu0
    %7851 = vmatprep.mubr.bf16.mxu0 %v6383
    %7852 = vmatmul.mubr.bf16.gmra.mrb[0].mxu0 %v6382
    %v7853 = vpop.f32.mrb[0].mxu0
    %v7854 = vadd.f32 %v7565, %v7853
    %v7855 = vpop.f32.mrb[0].mxu0
    %v7856 = vpop.f32.mrb[0].mxu0
    %v7857 = vadd.f32 %v7568, %v7856
    %v7858 = vpop.f32.mrb[0].mxu0
    %7859 = vmatprep.mubr.bf16.mxu0 %v6392
    %7860 = vmatmul.mubr.bf16.gmra.mrb[0].mxu0 %v6391
    %v7861 = vpop.f32.mrb[0].mxu0
    %v7862 = vadd.f32 %v7573, %v7861
    %v7863 = vpop.f32.mrb[0].mxu0
    %v7864 = vpop.f32.mrb[0].mxu0
    %v7865 = vadd.f32 %v7576, %v7864
    %v7866 = vpop.f32.mrb[0].mxu0
    %7867 = vmatprep.mubr.bf16.mxu0 %v6401
    %7868 = vmatmul.mubr.bf16.gmra.mrb[0].mxu0 %v6400
    %v7869 = vpop.f32.mrb[0].mxu0
    %v7870 = vadd.f32 %v7581, %v7869
    %v7871 = vpop.f32.mrb[0].mxu0
    %v7872 = vpop.f32.mrb[0].mxu0
    %v7873 = vadd.f32 %v7584, %v7872
    %v7874 = vpop.f32.mrb[0].mxu0
    %7875 = vmatprep.mubr.bf16.mxu0 %v6410
    %7876 = vmatmul.mubr.bf16.gmra.mrb[0].mxu0 %v6409
    %v7877 = vpop.f32.mrb[0].mxu0
    %v7878 = vadd.f32 %v7589, %v7877
    %v7879 = vpop.f32.mrb[0].mxu0
    %v7880 = vpop.f32.mrb[0].mxu0
    %v7881 = vadd.f32 %v7592, %v7880
    %v7882 = vpop.f32.mrb[0].mxu0
    %7883 = vmatprep.mubr.bf16.mxu0 %v6419
    %7884 = vmatmul.mubr.bf16.gmra.mrb[0].mxu0 %v6418
    %v7885 = vpop.f32.mrb[0].mxu0
    %v7886 = vadd.f32 %v7597, %v7885
    %v7887 = vpop.f32.mrb[0].mxu0
    %v7888 = vpop.f32.mrb[0].mxu0
    %v7889 = vadd.f32 %v7600, %v7888
    %v7890 = vpop.f32.mrb[0].mxu0
    %7891 = vmatprep.mubr.bf16.mxu0 %v6428
    %7892 = vmatmul.mubr.bf16.gmra.mrb[0].mxu0 %v6427
    %v7893 = vpop.f32.mrb[0].mxu0
    %v7894 = vadd.f32 %v7605, %v7893
    %v7895 = vpop.f32.mrb[0].mxu0
    %v7896 = vpop.f32.mrb[0].mxu0
    %v7897 = vadd.f32 %v7608, %v7896
    %v7898 = vpop.f32.mrb[0].mxu0
    %7899 = vmatprep.mubr.bf16.mxu0 %v6437
    %7900 = vmatmul.mubr.bf16.gmra.mrb[0].mxu0 %v6436
    %v7901 = vpop.f32.mrb[0].mxu0
    %v7902 = vadd.f32 %v7613, %v7901
    %v7903 = vpop.f32.mrb[0].mxu0
    %v7904 = vpop.f32.mrb[0].mxu0
    %v7905 = vadd.f32 %v7616, %v7904
    %v7906 = vpop.f32.mrb[0].mxu0
    %7907 = vmatprep.mubr.bf16.mxu0 %v6446
    %7908 = vmatmul.mubr.bf16.gmra.mrb[0].mxu0 %v6445
    %v7909 = vpop.f32.mrb[0].mxu0
    %v7910 = vadd.f32 %v7621, %v7909
    %v7911 = vpop.f32.mrb[0].mxu0
    %v7912 = vpop.f32.mrb[0].mxu0
    %v7913 = vadd.f32 %v7624, %v7912
    %v7914 = vpop.f32.mrb[0].mxu0
    %7915 = vmatprep.mubr.bf16.mxu0 %v6455
    %7916 = vmatmul.mubr.bf16.gmra.mrb[0].mxu0 %v6454
    %v7917 = vpop.f32.mrb[0].mxu0
    %v7918 = vadd.f32 %v7629, %v7917
    %v7919 = vpop.f32.mrb[0].mxu0
    %v7920 = vpop.f32.mrb[0].mxu0
    %v7921 = vadd.f32 %v7632, %v7920
    %v7922 = vpop.f32.mrb[0].mxu0
    %7923 = vmatprep.mubr.bf16.mxu0 %v6464
    %7924 = vmatmul.mubr.bf16.gmra.mrb[0].mxu0 %v6463
    %v7925 = vpop.f32.mrb[0].mxu0
    %v7926 = vadd.f32 %v7637, %v7925
    %v7927 = vpop.f32.mrb[0].mxu0
    %v7928 = vpop.f32.mrb[0].mxu0
    %v7929 = vadd.f32 %v7640, %v7928
    %v7930 = vpop.f32.mrb[0].mxu0
    %7931 = vmatprep.mubr.bf16.mxu0 %v6473
    %7932 = vmatmul.mubr.bf16.gmra.mrb[0].mxu0 %v6472
    %v7933 = vpop.f32.mrb[0].mxu0
    %v7934 = vadd.f32 %v7645, %v7933
    %v7935 = vpop.f32.mrb[0].mxu0
    %v7936 = vpop.f32.mrb[0].mxu0
    %v7937 = vadd.f32 %v7648, %v7936
    %v7938 = vpop.f32.mrb[0].mxu0
    %7939 = vmatprep.mubr.bf16.mxu0 %v6482
    %7940 = vmatmul.mubr.bf16.gmra.mrb[0].mxu0 %v6481
    %v7941 = vpop.f32.mrb[0].mxu0
    %v7942 = vadd.f32 %v7653, %v7941
    %v7943 = vpop.f32.mrb[0].mxu0
    %v7944 = vpop.f32.mrb[0].mxu0
    %v7945 = vadd.f32 %v7656, %v7944
    %v7946 = vpop.f32.mrb[0].mxu0
    %7947 = vmatprep.mubr.bf16.mxu0 %v6491
    %7948 = vmatmul.mubr.bf16.gmra.mrb[0].mxu0 %v6490
    %v7949 = vpop.f32.mrb[0].mxu0
    %v7950 = vadd.f32 %v7661, %v7949
    %v7951 = vpop.f32.mrb[0].mxu0
    %v7952 = vpop.f32.mrb[0].mxu0
    %v7953 = vadd.f32 %v7664, %v7952
    %v7954 = vpop.f32.mrb[0].mxu0
    %7955 = vmatprep.mubr.bf16.mxu0 %v6500
    %7956 = vmatmul.mubr.bf16.gmra.mrb[0].mxu0 %v6499
    %v7957 = vpop.f32.mrb[0].mxu0
    %v7958 = vadd.f32 %v7669, %v7957
    %v7959 = vpop.f32.mrb[0].mxu0
    %v7960 = vpop.f32.mrb[0].mxu0
    %v7961 = vadd.f32 %v7672, %v7960
    %v7962 = vpop.f32.mrb[0].mxu0
    %7963 = vmatprep.mubr.bf16.mxu0 %v6509
    %7964 = vmatmul.mubr.bf16.gmra.mrb[0].mxu0 %v6508
    %v7965 = vpop.f32.mrb[0].mxu0
    %v7966 = vadd.f32 %v7677, %v7965
    %v7967 = vpop.f32.mrb[0].mxu0
    %v7968 = vpop.f32.mrb[0].mxu0
    %v7969 = vadd.f32 %v7680, %v7968
    %v7970 = vpop.f32.mrb[0].mxu0
    %7971 = vmatprep.mubr.bf16.mxu0 %v6518
    %7972 = vmatmul.mubr.bf16.gmra.mrb[0].mxu0 %v6517
    %v7973 = vpop.f32.mrb[0].mxu0
    %v7974 = vadd.f32 %v7685, %v7973
    %v7975 = vpop.f32.mrb[0].mxu0
    %v7976 = vpop.f32.mrb[0].mxu0
    %v7977 = vadd.f32 %v7688, %v7976
    %v7978 = vpop.f32.mrb[0].mxu0
    %7979 = vmatprep.mubr.bf16.mxu0 %v6527
    %7980 = vmatmul.mubr.bf16.gmra.mrb[0].mxu0 %v6526
    %v7981 = vpop.f32.mrb[0].mxu0
    %v7982 = vadd.f32 %v7693, %v7981
    %v7983 = vpop.f32.mrb[0].mxu0
    %v7984 = vpop.f32.mrb[0].mxu0
    %v7985 = vadd.f32 %v7696, %v7984
    %v7986 = vpop.f32.mrb[0].mxu0
    %7987 = vmatprep.mubr.bf16.mxu0 %v6536
    %7988 = vmatmul.mubr.bf16.gmra.mrb[0].mxu0 %v6535
    %v7989 = vpop.f32.mrb[0].mxu0
    %v7990 = vadd.f32 %v7701, %v7989
    %v7991 = vpop.f32.mrb[0].mxu0
    %v7992 = vpop.f32.mrb[0].mxu0
    %v7993 = vadd.f32 %v7704, %v7992
    %v7994 = vpop.f32.mrb[0].mxu0
    %7995 = vmatprep.mubr.bf16.mxu0 %v6545
    %7996 = vmatmul.mubr.bf16.gmra.mrb[0].mxu0 %v6544
    %v7997 = vpop.f32.mrb[0].mxu0
    %v7998 = vadd.f32 %v7709, %v7997
    %v7999 = vpop.f32.mrb[0].mxu0
    %v8000 = vpop.f32.mrb[0].mxu0
    %v8001 = vadd.f32 %v7712, %v8000
    %v8002 = vpop.f32.mrb[0].mxu0
    %8003 = vmatprep.mubr.bf16.mxu0 %v6554
    %8004 = vmatmul.mubr.bf16.gmra.mrb[0].mxu0 %v6553
    %v8005 = vpop.f32.mrb[0].mxu0
    %v8006 = vadd.f32 %v7717, %v8005
    %v8007 = vpop.f32.mrb[0].mxu0
    %v8008 = vpop.f32.mrb[0].mxu0
    %v8009 = vadd.f32 %v7720, %v8008
    %v8010 = vpop.f32.mrb[0].mxu0
    %8011 = vmatprep.mubr.bf16.mxu0 %v6563
    %8012 = vmatmul.mubr.bf16.gmra.mrb[0].mxu0 %v6562
    %v8013 = vpop.f32.mrb[0].mxu0
    %v8014 = vadd.f32 %v7725, %v8013
    %v8015 = vpop.f32.mrb[0].mxu0
    %v8016 = vpop.f32.mrb[0].mxu0
    %v8017 = vadd.f32 %v7728, %v8016
    %v8018 = vpop.f32.mrb[0].mxu0
    %8019 = vmatprep.mubr.bf16.mxu0 %v6572
    %8020 = vmatmul.mubr.bf16.gmra.mrb[0].mxu0 %v6571
    %v8021 = vpop.f32.mrb[0].mxu0
    %v8022 = vadd.f32 %v7733, %v8021
    %v8023 = vpop.f32.mrb[0].mxu0
    %v8024 = vpop.f32.mrb[0].mxu0
    %v8025 = vadd.f32 %v7736, %v8024
    %v8026 = vpop.f32.mrb[0].mxu0
    %8027 = vmatprep.mubr.bf16.mxu0 %v6581
    %8028 = vmatmul.mubr.bf16.gmra.mrb[0].mxu0 %v6580
    %v8029 = vpop.f32.mrb[0].mxu0
    %v8030 = vadd.f32 %v7741, %v8029
    %v8031 = vpop.f32.mrb[0].mxu0
    %v8032 = vpop.f32.mrb[0].mxu0
    %v8033 = vadd.f32 %v7744, %v8032
    %v8034 = vpop.f32.mrb[0].mxu0
    %8035 = vmatprep.mubr.bf16.mxu0 %v6590
    %8036 = vmatmul.mubr.bf16.gmra.mrb[0].mxu0 %v6589
    %v8037 = vpop.f32.mrb[0].mxu0
    %v8038 = vadd.f32 %v7749, %v8037
    %v8039 = vpop.f32.mrb[0].mxu0
    %v8040 = vpop.f32.mrb[0].mxu0
    %v8041 = vadd.f32 %v7752, %v8040
    %v8042 = vpop.f32.mrb[0].mxu0
    %8043 = vmatprep.mubr.bf16.mxu0 %v6599
    %8044 = vmatmul.mubr.bf16.gmra.mrb[0].mxu0 %v6598
    %v8045 = vpop.f32.mrb[0].mxu0
    %v8046 = vadd.f32 %v7757, %v8045
    %v8047 = vpop.f32.mrb[0].mxu0
    %v8048 = vpop.f32.mrb[0].mxu0
    %v8049 = vadd.f32 %v7760, %v8048
    %v8050 = vpop.f32.mrb[0].mxu0
    %8051 = vmatprep.mubr.bf16.mxu0 %v6608
    %8052 = vmatmul.mubr.bf16.gmra.mrb[0].mxu0 %v6607
    %v8053 = vpop.f32.mrb[0].mxu0
    %v8054 = vadd.f32 %v7765, %v8053
    %v8055 = vpop.f32.mrb[0].mxu0
    %v8056 = vpop.f32.mrb[0].mxu0
    %v8057 = vadd.f32 %v7768, %v8056
    %v8058 = vpop.f32.mrb[0].mxu0
    %8059 = vmatprep.mubr.bf16.mxu0 %v6617
    %8060 = vmatmul.mubr.bf16.gmra.mrb[0].mxu0 %v6616
    %v8061 = vpop.f32.mrb[0].mxu0
    %v8062 = vadd.f32 %v7773, %v8061
    %v8063 = vpop.f32.mrb[0].mxu0
    %v8064 = vpop.f32.mrb[0].mxu0
    %v8065 = vadd.f32 %v7776, %v8064
    %v8066 = vpop.f32.mrb[0].mxu0
    %8067 = vmatprep.mubr.bf16.mxu0 %v6626
    %8068 = vmatmul.mubr.bf16.gmra.mrb[0].mxu0 %v6625
    %v8069 = vpop.f32.mrb[0].mxu0
    %v8070 = vadd.f32 %v7781, %v8069
    %v8071 = vpop.f32.mrb[0].mxu0
    %v8072 = vpop.f32.mrb[0].mxu0
    %v8073 = vadd.f32 %v7784, %v8072
    %v8074 = vpop.f32.mrb[0].mxu0
    %8075 = vmatprep.mubr.bf16.mxu0 %v6635
    %8076 = vmatmul.mubr.bf16.gmra.mrb[0].mxu0 %v6634
    %v8077 = vpop.f32.mrb[0].mxu0
    %v8078 = vadd.f32 %v7789, %v8077
    %v8079 = vpop.f32.mrb[0].mxu0
    %v8080 = vpop.f32.mrb[0].mxu0
    %v8081 = vadd.f32 %v7792, %v8080
    %v8082 = vpop.f32.mrb[0].mxu0
    %8083 = vmatprep.mubr.bf16.mxu0 %v6644
    %8084 = vmatmul.mubr.bf16.gmra.mrb[0].mxu0 %v6643
    %v8085 = vpop.f32.mrb[0].mxu0
    %v8086 = vadd.f32 %v7797, %v8085
    %v8087 = vpop.f32.mrb[0].mxu0
    %v8088 = vpop.f32.mrb[0].mxu0
    %v8089 = vadd.f32 %v7800, %v8088
    %v8090 = vpop.f32.mrb[0].mxu0
    %8091 = vmatprep.mubr.bf16.mxu0 %v6653
    %8092 = vmatmul.mubr.bf16.gmra.mrb[0].mxu0 %v6652
    %v8093 = vpop.f32.mrb[0].mxu0
    %v8094 = vadd.f32 %v7805, %v8093
    %v8095 = vpop.f32.mrb[0].mxu0
    %v8096 = vpop.f32.mrb[0].mxu0
    %v8097 = vadd.f32 %v7808, %v8096
    %v8098 = vpop.f32.mrb[0].mxu0
    %8099 = vdwg.mxu0
    %8100 = vmatprep.subr.bf16.mxu0 0
    %8101 = vmatpush1.bf16.msra.mxu0 %v7137
    %8102 = vmatprep.subr.bf16.mxu0 0
    %8103 = vmatpush1.bf16.msra.mxu0 %v7138
    %8104 = vmatprep.subr.bf16.mxu0 0
    %8105 = vmatpush1.bf16.msra.mxu0 %v7139
    %8106 = vmatprep.subr.bf16.mxu0 0
    %8107 = vmatpush1.bf16.msra.mxu0 %v7140
    %8108 = vmatprep.subr.bf16.mxu0 0
    %8109 = vmatpush1.bf16.msra.mxu0 %v7141
    %8110 = vmatprep.subr.bf16.mxu0 0
    %8111 = vmatpush1.bf16.msra.mxu0 %v7142
    %8112 = vmatprep.subr.bf16.mxu0 0
    %8113 = vmatpush1.bf16.msra.mxu0 %v7143
    %8114 = vmatprep.subr.bf16.mxu0 0
    %8115 = vmatpush1.bf16.msra.mxu0 %v7144
    %8116 = vmatprep.subr.bf16.mxu0 0
    %8117 = vmatpush1.bf16.msra.mxu0 %v7145
    %8118 = vmatprep.subr.bf16.mxu0 0
    %8119 = vmatpush1.bf16.msra.mxu0 %v7146
    %8120 = vmatprep.subr.bf16.mxu0 0
    %8121 = vmatpush1.bf16.msra.mxu0 %v7147
    %8122 = vmatprep.subr.bf16.mxu0 0
    %8123 = vmatpush1.bf16.msra.mxu0 %v7148
    %8124 = vmatprep.subr.bf16.mxu0 0
    %8125 = vmatpush1.bf16.msra.mxu0 %v7149
    %8126 = vmatprep.subr.bf16.mxu0 0
    %8127 = vmatpush1.bf16.msra.mxu0 %v7150
    %8128 = vmatprep.subr.bf16.mxu0 0
    %8129 = vmatpush1.bf16.msra.mxu0 %v7151
    %8130 = vmatprep.subr.bf16.mxu0 0
    %8131 = vmatpush1.bf16.msra.mxu0 %v7152
    %8132 = vmatprep.mubr.bf16.mxu0 %v6376
    %8133 = vmatmul.mubr.bf16.gmra.mrb[0].mxu0 %v6375
    %v8134 = vpop.f32.mrb[0].mxu0
    %v8135 = vadd.f32 %v7846, %v8134
    %v8136 = vpop.f32.mrb[0].mxu0
    %v8137 = vpop.f32.mrb[0].mxu0
    %v8138 = vadd.f32 %v7849, %v8137
    %v8139 = vpop.f32.mrb[0].mxu0
    %8140 = vmatprep.mubr.bf16.mxu0 %v6385
    %8141 = vmatmul.mubr.bf16.gmra.mrb[0].mxu0 %v6384
    %v8142 = vpop.f32.mrb[0].mxu0
    %v8143 = vadd.f32 %v7854, %v8142
    %v8144 = vpop.f32.mrb[0].mxu0
    %v8145 = vpop.f32.mrb[0].mxu0
    %v8146 = vadd.f32 %v7857, %v8145
    %v8147 = vpop.f32.mrb[0].mxu0
    %8148 = vmatprep.mubr.bf16.mxu0 %v6394
    %8149 = vmatmul.mubr.bf16.gmra.mrb[0].mxu0 %v6393
    %v8150 = vpop.f32.mrb[0].mxu0
    %v8151 = vadd.f32 %v7862, %v8150
    %v8152 = vpop.f32.mrb[0].mxu0
    %v8153 = vpop.f32.mrb[0].mxu0
    %v8154 = vadd.f32 %v7865, %v8153
    %v8155 = vpop.f32.mrb[0].mxu0
    %8156 = vmatprep.mubr.bf16.mxu0 %v6403
    %8157 = vmatmul.mubr.bf16.gmra.mrb[0].mxu0 %v6402
    %v8158 = vpop.f32.mrb[0].mxu0
    %v8159 = vadd.f32 %v7870, %v8158
    %v8160 = vpop.f32.mrb[0].mxu0
    %v8161 = vpop.f32.mrb[0].mxu0
    %v8162 = vadd.f32 %v7873, %v8161
    %v8163 = vpop.f32.mrb[0].mxu0
    %8164 = vmatprep.mubr.bf16.mxu0 %v6412
    %8165 = vmatmul.mubr.bf16.gmra.mrb[0].mxu0 %v6411
    %v8166 = vpop.f32.mrb[0].mxu0
    %v8167 = vadd.f32 %v7878, %v8166
    %v8168 = vpop.f32.mrb[0].mxu0
    %v8169 = vpop.f32.mrb[0].mxu0
    %v8170 = vadd.f32 %v7881, %v8169
    %v8171 = vpop.f32.mrb[0].mxu0
    %8172 = vmatprep.mubr.bf16.mxu0 %v6421
    %8173 = vmatmul.mubr.bf16.gmra.mrb[0].mxu0 %v6420
    %v8174 = vpop.f32.mrb[0].mxu0
    %v8175 = vadd.f32 %v7886, %v8174
    %v8176 = vpop.f32.mrb[0].mxu0
    %v8177 = vpop.f32.mrb[0].mxu0
    %v8178 = vadd.f32 %v7889, %v8177
    %v8179 = vpop.f32.mrb[0].mxu0
    %8180 = vmatprep.mubr.bf16.mxu0 %v6430
    %8181 = vmatmul.mubr.bf16.gmra.mrb[0].mxu0 %v6429
    %v8182 = vpop.f32.mrb[0].mxu0
    %v8183 = vadd.f32 %v7894, %v8182
    %v8184 = vpop.f32.mrb[0].mxu0
    %v8185 = vpop.f32.mrb[0].mxu0
    %v8186 = vadd.f32 %v7897, %v8185
    %v8187 = vpop.f32.mrb[0].mxu0
    %8188 = vmatprep.mubr.bf16.mxu0 %v6439
    %8189 = vmatmul.mubr.bf16.gmra.mrb[0].mxu0 %v6438
    %v8190 = vpop.f32.mrb[0].mxu0
    %v8191 = vadd.f32 %v7902, %v8190
    %v8192 = vpop.f32.mrb[0].mxu0
    %v8193 = vpop.f32.mrb[0].mxu0
    %v8194 = vadd.f32 %v7905, %v8193
    %v8195 = vpop.f32.mrb[0].mxu0
    %8196 = vmatprep.mubr.bf16.mxu0 %v6448
    %8197 = vmatmul.mubr.bf16.gmra.mrb[0].mxu0 %v6447
    %v8198 = vpop.f32.mrb[0].mxu0
    %v8199 = vadd.f32 %v7910, %v8198
    %v8200 = vpop.f32.mrb[0].mxu0
    %v8201 = vpop.f32.mrb[0].mxu0
    %v8202 = vadd.f32 %v7913, %v8201
    %v8203 = vpop.f32.mrb[0].mxu0
    %8204 = vmatprep.mubr.bf16.mxu0 %v6457
    %8205 = vmatmul.mubr.bf16.gmra.mrb[0].mxu0 %v6456
    %v8206 = vpop.f32.mrb[0].mxu0
    %v8207 = vadd.f32 %v7918, %v8206
    %v8208 = vpop.f32.mrb[0].mxu0
    %v8209 = vpop.f32.mrb[0].mxu0
    %v8210 = vadd.f32 %v7921, %v8209
    %v8211 = vpop.f32.mrb[0].mxu0
    %8212 = vmatprep.mubr.bf16.mxu0 %v6466
    %8213 = vmatmul.mubr.bf16.gmra.mrb[0].mxu0 %v6465
    %v8214 = vpop.f32.mrb[0].mxu0
    %v8215 = vadd.f32 %v7926, %v8214
    %v8216 = vpop.f32.mrb[0].mxu0
    %v8217 = vpop.f32.mrb[0].mxu0
    %v8218 = vadd.f32 %v7929, %v8217
    %v8219 = vpop.f32.mrb[0].mxu0
    %8220 = vmatprep.mubr.bf16.mxu0 %v6475
    %8221 = vmatmul.mubr.bf16.gmra.mrb[0].mxu0 %v6474
    %v8222 = vpop.f32.mrb[0].mxu0
    %v8223 = vadd.f32 %v7934, %v8222
    %v8224 = vpop.f32.mrb[0].mxu0
    %v8225 = vpop.f32.mrb[0].mxu0
    %v8226 = vadd.f32 %v7937, %v8225
    %v8227 = vpop.f32.mrb[0].mxu0
    %8228 = vmatprep.mubr.bf16.mxu0 %v6484
    %8229 = vmatmul.mubr.bf16.gmra.mrb[0].mxu0 %v6483
    %v8230 = vpop.f32.mrb[0].mxu0
    %v8231 = vadd.f32 %v7942, %v8230
    %v8232 = vpop.f32.mrb[0].mxu0
    %v8233 = vpop.f32.mrb[0].mxu0
    %v8234 = vadd.f32 %v7945, %v8233
    %v8235 = vpop.f32.mrb[0].mxu0
    %8236 = vmatprep.mubr.bf16.mxu0 %v6493
    %8237 = vmatmul.mubr.bf16.gmra.mrb[0].mxu0 %v6492
    %v8238 = vpop.f32.mrb[0].mxu0
    %v8239 = vadd.f32 %v7950, %v8238
    %v8240 = vpop.f32.mrb[0].mxu0
    %v8241 = vpop.f32.mrb[0].mxu0
    %v8242 = vadd.f32 %v7953, %v8241
    %v8243 = vpop.f32.mrb[0].mxu0
    %8244 = vmatprep.mubr.bf16.mxu0 %v6502
    %8245 = vmatmul.mubr.bf16.gmra.mrb[0].mxu0 %v6501
    %v8246 = vpop.f32.mrb[0].mxu0
    %v8247 = vadd.f32 %v7958, %v8246
    %v8248 = vpop.f32.mrb[0].mxu0
    %v8249 = vpop.f32.mrb[0].mxu0
    %v8250 = vadd.f32 %v7961, %v8249
    %v8251 = vpop.f32.mrb[0].mxu0
    %8252 = vmatprep.mubr.bf16.mxu0 %v6511
    %8253 = vmatmul.mubr.bf16.gmra.mrb[0].mxu0 %v6510
    %v8254 = vpop.f32.mrb[0].mxu0
    %v8255 = vadd.f32 %v7966, %v8254
    %v8256 = vpop.f32.mrb[0].mxu0
    %v8257 = vpop.f32.mrb[0].mxu0
    %v8258 = vadd.f32 %v7969, %v8257
    %v8259 = vpop.f32.mrb[0].mxu0
    %8260 = vmatprep.mubr.bf16.mxu0 %v6520
    %8261 = vmatmul.mubr.bf16.gmra.mrb[0].mxu0 %v6519
    %v8262 = vpop.f32.mrb[0].mxu0
    %v8263 = vadd.f32 %v7974, %v8262
    %v8264 = vpop.f32.mrb[0].mxu0
    %v8265 = vpop.f32.mrb[0].mxu0
    %v8266 = vadd.f32 %v7977, %v8265
    %v8267 = vpop.f32.mrb[0].mxu0
    %8268 = vmatprep.mubr.bf16.mxu0 %v6529
    %8269 = vmatmul.mubr.bf16.gmra.mrb[0].mxu0 %v6528
    %v8270 = vpop.f32.mrb[0].mxu0
    %v8271 = vadd.f32 %v7982, %v8270
    %v8272 = vpop.f32.mrb[0].mxu0
    %v8273 = vpop.f32.mrb[0].mxu0
    %v8274 = vadd.f32 %v7985, %v8273
    %v8275 = vpop.f32.mrb[0].mxu0
    %8276 = vmatprep.mubr.bf16.mxu0 %v6538
    %8277 = vmatmul.mubr.bf16.gmra.mrb[0].mxu0 %v6537
    %v8278 = vpop.f32.mrb[0].mxu0
    %v8279 = vadd.f32 %v7990, %v8278
    %v8280 = vpop.f32.mrb[0].mxu0
    %v8281 = vpop.f32.mrb[0].mxu0
    %v8282 = vadd.f32 %v7993, %v8281
    %v8283 = vpop.f32.mrb[0].mxu0
    %8284 = vmatprep.mubr.bf16.mxu0 %v6547
    %8285 = vmatmul.mubr.bf16.gmra.mrb[0].mxu0 %v6546
    %v8286 = vpop.f32.mrb[0].mxu0
    %v8287 = vadd.f32 %v7998, %v8286
    %v8288 = vpop.f32.mrb[0].mxu0
    %v8289 = vpop.f32.mrb[0].mxu0
    %v8290 = vadd.f32 %v8001, %v8289
    %v8291 = vpop.f32.mrb[0].mxu0
    %8292 = vmatprep.mubr.bf16.mxu0 %v6556
    %8293 = vmatmul.mubr.bf16.gmra.mrb[0].mxu0 %v6555
    %v8294 = vpop.f32.mrb[0].mxu0
    %v8295 = vadd.f32 %v8006, %v8294
    %v8296 = vpop.f32.mrb[0].mxu0
    %v8297 = vpop.f32.mrb[0].mxu0
    %v8298 = vadd.f32 %v8009, %v8297
    %v8299 = vpop.f32.mrb[0].mxu0
    %8300 = vmatprep.mubr.bf16.mxu0 %v6565
    %8301 = vmatmul.mubr.bf16.gmra.mrb[0].mxu0 %v6564
    %v8302 = vpop.f32.mrb[0].mxu0
    %v8303 = vadd.f32 %v8014, %v8302
    %v8304 = vpop.f32.mrb[0].mxu0
    %v8305 = vpop.f32.mrb[0].mxu0
    %v8306 = vadd.f32 %v8017, %v8305
    %v8307 = vpop.f32.mrb[0].mxu0
    %8308 = vmatprep.mubr.bf16.mxu0 %v6574
    %8309 = vmatmul.mubr.bf16.gmra.mrb[0].mxu0 %v6573
    %v8310 = vpop.f32.mrb[0].mxu0
    %v8311 = vadd.f32 %v8022, %v8310
    %v8312 = vpop.f32.mrb[0].mxu0
    %v8313 = vpop.f32.mrb[0].mxu0
    %v8314 = vadd.f32 %v8025, %v8313
    %v8315 = vpop.f32.mrb[0].mxu0
    %8316 = vmatprep.mubr.bf16.mxu0 %v6583
    %8317 = vmatmul.mubr.bf16.gmra.mrb[0].mxu0 %v6582
    %v8318 = vpop.f32.mrb[0].mxu0
    %v8319 = vadd.f32 %v8030, %v8318
    %v8320 = vpop.f32.mrb[0].mxu0
    %v8321 = vpop.f32.mrb[0].mxu0
    %v8322 = vadd.f32 %v8033, %v8321
    %v8323 = vpop.f32.mrb[0].mxu0
    %8324 = vmatprep.mubr.bf16.mxu0 %v6592
    %8325 = vmatmul.mubr.bf16.gmra.mrb[0].mxu0 %v6591
    %v8326 = vpop.f32.mrb[0].mxu0
    %v8327 = vadd.f32 %v8038, %v8326
    %v8328 = vpop.f32.mrb[0].mxu0
    %v8329 = vpop.f32.mrb[0].mxu0
    %v8330 = vadd.f32 %v8041, %v8329
    %v8331 = vpop.f32.mrb[0].mxu0
    %8332 = vmatprep.mubr.bf16.mxu0 %v6601
    %8333 = vmatmul.mubr.bf16.gmra.mrb[0].mxu0 %v6600
    %v8334 = vpop.f32.mrb[0].mxu0
    %v8335 = vadd.f32 %v8046, %v8334
    %v8336 = vpop.f32.mrb[0].mxu0
    %v8337 = vpop.f32.mrb[0].mxu0
    %v8338 = vadd.f32 %v8049, %v8337
    %v8339 = vpop.f32.mrb[0].mxu0
    %8340 = vmatprep.mubr.bf16.mxu0 %v6610
    %8341 = vmatmul.mubr.bf16.gmra.mrb[0].mxu0 %v6609
    %v8342 = vpop.f32.mrb[0].mxu0
    %v8343 = vadd.f32 %v8054, %v8342
    %v8344 = vpop.f32.mrb[0].mxu0
    %v8345 = vpop.f32.mrb[0].mxu0
    %v8346 = vadd.f32 %v8057, %v8345
    %v8347 = vpop.f32.mrb[0].mxu0
    %8348 = vmatprep.mubr.bf16.mxu0 %v6619
    %8349 = vmatmul.mubr.bf16.gmra.mrb[0].mxu0 %v6618
    %v8350 = vpop.f32.mrb[0].mxu0
    %v8351 = vadd.f32 %v8062, %v8350
    %v8352 = vpop.f32.mrb[0].mxu0
    %v8353 = vpop.f32.mrb[0].mxu0
    %v8354 = vadd.f32 %v8065, %v8353
    %v8355 = vpop.f32.mrb[0].mxu0
    %8356 = vmatprep.mubr.bf16.mxu0 %v6628
    %8357 = vmatmul.mubr.bf16.gmra.mrb[0].mxu0 %v6627
    %v8358 = vpop.f32.mrb[0].mxu0
    %v8359 = vadd.f32 %v8070, %v8358
    %v8360 = vpop.f32.mrb[0].mxu0
    %v8361 = vpop.f32.mrb[0].mxu0
    %v8362 = vadd.f32 %v8073, %v8361
    %v8363 = vpop.f32.mrb[0].mxu0
    %8364 = vmatprep.mubr.bf16.mxu0 %v6637
    %8365 = vmatmul.mubr.bf16.gmra.mrb[0].mxu0 %v6636
    %v8366 = vpop.f32.mrb[0].mxu0
    %v8367 = vadd.f32 %v8078, %v8366
    %v8368 = vpop.f32.mrb[0].mxu0
    %v8369 = vpop.f32.mrb[0].mxu0
    %v8370 = vadd.f32 %v8081, %v8369
    %v8371 = vpop.f32.mrb[0].mxu0
    %8372 = vmatprep.mubr.bf16.mxu0 %v6646
    %8373 = vmatmul.mubr.bf16.gmra.mrb[0].mxu0 %v6645
    %v8374 = vpop.f32.mrb[0].mxu0
    %v8375 = vadd.f32 %v8086, %v8374
    %v8376 = vpop.f32.mrb[0].mxu0
    %v8377 = vpop.f32.mrb[0].mxu0
    %v8378 = vadd.f32 %v8089, %v8377
    %v8379 = vpop.f32.mrb[0].mxu0
    %8380 = vmatprep.mubr.bf16.mxu0 %v6655
    %8381 = vmatmul.mubr.bf16.gmra.mrb[0].mxu0 %v6654
    %v8382 = vpop.f32.mrb[0].mxu0
    %v8383 = vadd.f32 %v8094, %v8382
    %v8384 = vpop.f32.mrb[0].mxu0
    %v8385 = vpop.f32.mrb[0].mxu0
    %v8386 = vadd.f32 %v8097, %v8385
    %v8387 = vpop.f32.mrb[0].mxu0
    %8388 = vdwg.mxu0
    %8389 = vmatprep.subr.bf16.mxu0 0
    %8390 = vmatpush1.bf16.msra.mxu0 %v7153
    %8391 = vmatprep.subr.bf16.mxu0 0
    %8392 = vmatpush1.bf16.msra.mxu0 %v7154
    %8393 = vmatprep.subr.bf16.mxu0 0
    %8394 = vmatpush1.bf16.msra.mxu0 %v7155
    %8395 = vmatprep.subr.bf16.mxu0 0
    %8396 = vmatpush1.bf16.msra.mxu0 %v7156
    %8397 = vmatprep.subr.bf16.mxu0 0
    %8398 = vmatpush1.bf16.msra.mxu0 %v7157
    %8399 = vmatprep.subr.bf16.mxu0 0
    %8400 = vmatpush1.bf16.msra.mxu0 %v7158
    %8401 = vmatprep.subr.bf16.mxu0 0
    %8402 = vmatpush1.bf16.msra.mxu0 %v7159
    %8403 = vmatprep.subr.bf16.mxu0 0
    %8404 = vmatpush1.bf16.msra.mxu0 %v7160
    %8405 = vmatprep.subr.bf16.mxu0 0
    %8406 = vmatpush1.bf16.msra.mxu0 0
    %8407 = vmatprep.subr.bf16.mxu0 0
    %8408 = vmatpush1.bf16.msra.mxu0 0
    %8409 = vmatprep.subr.bf16.mxu0 0
    %8410 = vmatpush1.bf16.msra.mxu0 0
    %8411 = vmatprep.subr.bf16.mxu0 0
    %8412 = vmatpush1.bf16.msra.mxu0 0
    %8413 = vmatprep.subr.bf16.mxu0 0
    %8414 = vmatpush1.bf16.msra.mxu0 0
    %8415 = vmatprep.subr.bf16.mxu0 0
    %8416 = vmatpush1.bf16.msra.mxu0 0
    %8417 = vmatprep.subr.bf16.mxu0 0
    %8418 = vmatpush1.bf16.msra.mxu0 0
    %8419 = vmatprep.subr.bf16.mxu0 0
    %8420 = vmatpush1.bf16.msra.mxu0 0
    %8421 = vmatprep.mubr.bf16.mxu0 0
    %8422 = vmatmul.mubr.bf16.gmra.mrb[0].mxu0 %v6377
    %v8423 = vpop.f32.mrb[0].mxu0
    %v8424 = vadd.f32 %v8135, %v8423
    %v8425 = vpop.f32.mrb[0].mxu0
    %v8426 = vpop.f32.mrb[0].mxu0
    %v8427 = vadd.f32 %v8138, %v8426
    %v8428 = vpop.f32.mrb[0].mxu0
    %8429 = vmatprep.mubr.bf16.mxu0 0
    %8430 = vmatmul.mubr.bf16.gmra.mrb[0].mxu0 %v6386
    %v8431 = vpop.f32.mrb[0].mxu0
    %v8432 = vadd.f32 %v8143, %v8431
    %v8433 = vpop.f32.mrb[0].mxu0
    %v8434 = vpop.f32.mrb[0].mxu0
    %v8435 = vadd.f32 %v8146, %v8434
    %v8436 = vpop.f32.mrb[0].mxu0
    %8437 = vmatprep.mubr.bf16.mxu0 0
    %8438 = vmatmul.mubr.bf16.gmra.mrb[0].mxu0 %v6395
    %v8439 = vpop.f32.mrb[0].mxu0
    %v8440 = vadd.f32 %v8151, %v8439
    %v8441 = vpop.f32.mrb[0].mxu0
    %v8442 = vpop.f32.mrb[0].mxu0
    %v8443 = vadd.f32 %v8154, %v8442
    %v8444 = vpop.f32.mrb[0].mxu0
    %8445 = vmatprep.mubr.bf16.mxu0 0
    %8446 = vmatmul.mubr.bf16.gmra.mrb[0].mxu0 %v6404
    %v8447 = vpop.f32.mrb[0].mxu0
    %v8448 = vadd.f32 %v8159, %v8447
    %v8449 = vpop.f32.mrb[0].mxu0
    %v8450 = vpop.f32.mrb[0].mxu0
    %v8451 = vadd.f32 %v8162, %v8450
    %v8452 = vpop.f32.mrb[0].mxu0
    %8453 = vmatprep.mubr.bf16.mxu0 0
    %8454 = vmatmul.mubr.bf16.gmra.mrb[0].mxu0 %v6413
    %v8455 = vpop.f32.mrb[0].mxu0
    %v8456 = vadd.f32 %v8167, %v8455
    %v8457 = vpop.f32.mrb[0].mxu0
    %v8458 = vpop.f32.mrb[0].mxu0
    %v8459 = vadd.f32 %v8170, %v8458
    %v8460 = vpop.f32.mrb[0].mxu0
    %8461 = vmatprep.mubr.bf16.mxu0 0
    %8462 = vmatmul.mubr.bf16.gmra.mrb[0].mxu0 %v6422
    %v8463 = vpop.f32.mrb[0].mxu0
    %v8464 = vadd.f32 %v8175, %v8463
    %v8465 = vpop.f32.mrb[0].mxu0
    %v8466 = vpop.f32.mrb[0].mxu0
    %v8467 = vadd.f32 %v8178, %v8466
    %v8468 = vpop.f32.mrb[0].mxu0
    %8469 = vmatprep.mubr.bf16.mxu0 0
    %8470 = vmatmul.mubr.bf16.gmra.mrb[0].mxu0 %v6431
    %v8471 = vpop.f32.mrb[0].mxu0
    %v8472 = vadd.f32 %v8183, %v8471
    %v8473 = vpop.f32.mrb[0].mxu0
    %v8474 = vpop.f32.mrb[0].mxu0
    %v8475 = vadd.f32 %v8186, %v8474
    %v8476 = vpop.f32.mrb[0].mxu0
    %8477 = vmatprep.mubr.bf16.mxu0 0
    %8478 = vmatmul.mubr.bf16.gmra.mrb[0].mxu0 %v6440
    %v8479 = vpop.f32.mrb[0].mxu0
    %v8480 = vadd.f32 %v8191, %v8479
    %v8481 = vpop.f32.mrb[0].mxu0
    %v8482 = vpop.f32.mrb[0].mxu0
    %v8483 = vadd.f32 %v8194, %v8482
    %v8484 = vpop.f32.mrb[0].mxu0
    %8485 = vmatprep.mubr.bf16.mxu0 0
    %8486 = vmatmul.mubr.bf16.gmra.mrb[0].mxu0 %v6449
    %v8487 = vpop.f32.mrb[0].mxu0
    %v8488 = vadd.f32 %v8199, %v8487
    %v8489 = vpop.f32.mrb[0].mxu0
    %v8490 = vpop.f32.mrb[0].mxu0
    %v8491 = vadd.f32 %v8202, %v8490
    %v8492 = vpop.f32.mrb[0].mxu0
    %8493 = vmatprep.mubr.bf16.mxu0 0
    %8494 = vmatmul.mubr.bf16.gmra.mrb[0].mxu0 %v6458
    %v8495 = vpop.f32.mrb[0].mxu0
    %v8496 = vadd.f32 %v8207, %v8495
    %v8497 = vpop.f32.mrb[0].mxu0
    %v8498 = vpop.f32.mrb[0].mxu0
    %v8499 = vadd.f32 %v8210, %v8498
    %v8500 = vpop.f32.mrb[0].mxu0
    %8501 = vmatprep.mubr.bf16.mxu0 0
    %8502 = vmatmul.mubr.bf16.gmra.mrb[0].mxu0 %v6467
    %v8503 = vpop.f32.mrb[0].mxu0
    %v8504 = vadd.f32 %v8215, %v8503
    %v8505 = vpop.f32.mrb[0].mxu0
    %v8506 = vpop.f32.mrb[0].mxu0
    %v8507 = vadd.f32 %v8218, %v8506
    %v8508 = vpop.f32.mrb[0].mxu0
    %8509 = vmatprep.mubr.bf16.mxu0 0
    %8510 = vmatmul.mubr.bf16.gmra.mrb[0].mxu0 %v6476
    %v8511 = vpop.f32.mrb[0].mxu0
    %v8512 = vadd.f32 %v8223, %v8511
    %v8513 = vpop.f32.mrb[0].mxu0
    %v8514 = vpop.f32.mrb[0].mxu0
    %v8515 = vadd.f32 %v8226, %v8514
    %v8516 = vpop.f32.mrb[0].mxu0
    %8517 = vmatprep.mubr.bf16.mxu0 0
    %8518 = vmatmul.mubr.bf16.gmra.mrb[0].mxu0 %v6485
    %v8519 = vpop.f32.mrb[0].mxu0
    %v8520 = vadd.f32 %v8231, %v8519
    %v8521 = vpop.f32.mrb[0].mxu0
    %v8522 = vpop.f32.mrb[0].mxu0
    %v8523 = vadd.f32 %v8234, %v8522
    %v8524 = vpop.f32.mrb[0].mxu0
    %8525 = vmatprep.mubr.bf16.mxu0 0
    %8526 = vmatmul.mubr.bf16.gmra.mrb[0].mxu0 %v6494
    %v8527 = vpop.f32.mrb[0].mxu0
    %v8528 = vadd.f32 %v8239, %v8527
    %v8529 = vpop.f32.mrb[0].mxu0
    %v8530 = vpop.f32.mrb[0].mxu0
    %v8531 = vadd.f32 %v8242, %v8530
    %v8532 = vpop.f32.mrb[0].mxu0
    %8533 = vmatprep.mubr.bf16.mxu0 0
    %8534 = vmatmul.mubr.bf16.gmra.mrb[0].mxu0 %v6503
    %v8535 = vpop.f32.mrb[0].mxu0
    %v8536 = vadd.f32 %v8247, %v8535
    %v8537 = vpop.f32.mrb[0].mxu0
    %v8538 = vpop.f32.mrb[0].mxu0
    %v8539 = vadd.f32 %v8250, %v8538
    %v8540 = vpop.f32.mrb[0].mxu0
    %8541 = vmatprep.mubr.bf16.mxu0 0
    %8542 = vmatmul.mubr.bf16.gmra.mrb[0].mxu0 %v6512
    %v8543 = vpop.f32.mrb[0].mxu0
    %v8544 = vadd.f32 %v8255, %v8543
    %v8545 = vpop.f32.mrb[0].mxu0
    %v8546 = vpop.f32.mrb[0].mxu0
    %v8547 = vadd.f32 %v8258, %v8546
    %v8548 = vpop.f32.mrb[0].mxu0
    %8549 = vmatprep.mubr.bf16.mxu0 0
    %8550 = vmatmul.mubr.bf16.gmra.mrb[0].mxu0 %v6521
    %v8551 = vpop.f32.mrb[0].mxu0
    %v8552 = vadd.f32 %v8263, %v8551
    %v8553 = vpop.f32.mrb[0].mxu0
    %v8554 = vpop.f32.mrb[0].mxu0
    %v8555 = vadd.f32 %v8266, %v8554
    %v8556 = vpop.f32.mrb[0].mxu0
    %8557 = vmatprep.mubr.bf16.mxu0 0
    %8558 = vmatmul.mubr.bf16.gmra.mrb[0].mxu0 %v6530
    %v8559 = vpop.f32.mrb[0].mxu0
    %v8560 = vadd.f32 %v8271, %v8559
    %v8561 = vpop.f32.mrb[0].mxu0
    %v8562 = vpop.f32.mrb[0].mxu0
    %v8563 = vadd.f32 %v8274, %v8562
    %v8564 = vpop.f32.mrb[0].mxu0
    %8565 = vmatprep.mubr.bf16.mxu0 0
    %8566 = vmatmul.mubr.bf16.gmra.mrb[0].mxu0 %v6539
    %v8567 = vpop.f32.mrb[0].mxu0
    %v8568 = vadd.f32 %v8279, %v8567
    %v8569 = vpop.f32.mrb[0].mxu0
    %v8570 = vpop.f32.mrb[0].mxu0
    %v8571 = vadd.f32 %v8282, %v8570
    %v8572 = vpop.f32.mrb[0].mxu0
    %8573 = vmatprep.mubr.bf16.mxu0 0
    %8574 = vmatmul.mubr.bf16.gmra.mrb[0].mxu0 %v6548
    %v8575 = vpop.f32.mrb[0].mxu0
    %v8576 = vadd.f32 %v8287, %v8575
    %v8577 = vpop.f32.mrb[0].mxu0
    %v8578 = vpop.f32.mrb[0].mxu0
    %v8579 = vadd.f32 %v8290, %v8578
    %v8580 = vpop.f32.mrb[0].mxu0
    %8581 = vmatprep.mubr.bf16.mxu0 0
    %8582 = vmatmul.mubr.bf16.gmra.mrb[0].mxu0 %v6557
    %v8583 = vpop.f32.mrb[0].mxu0
    %v8584 = vadd.f32 %v8295, %v8583
    %v8585 = vpop.f32.mrb[0].mxu0
    %v8586 = vpop.f32.mrb[0].mxu0
    %v8587 = vadd.f32 %v8298, %v8586
    %v8588 = vpop.f32.mrb[0].mxu0
    %8589 = vmatprep.mubr.bf16.mxu0 0
    %8590 = vmatmul.mubr.bf16.gmra.mrb[0].mxu0 %v6566
    %v8591 = vpop.f32.mrb[0].mxu0
    %v8592 = vadd.f32 %v8303, %v8591
    %v8593 = vpop.f32.mrb[0].mxu0
    %v8594 = vpop.f32.mrb[0].mxu0
    %v8595 = vadd.f32 %v8306, %v8594
    %v8596 = vpop.f32.mrb[0].mxu0
    %8597 = vmatprep.mubr.bf16.mxu0 0
    %8598 = vmatmul.mubr.bf16.gmra.mrb[0].mxu0 %v6575
    %v8599 = vpop.f32.mrb[0].mxu0
    %v8600 = vadd.f32 %v8311, %v8599
    %v8601 = vpop.f32.mrb[0].mxu0
    %v8602 = vpop.f32.mrb[0].mxu0
    %v8603 = vadd.f32 %v8314, %v8602
    %v8604 = vpop.f32.mrb[0].mxu0
    %8605 = vmatprep.mubr.bf16.mxu0 0
    %8606 = vmatmul.mubr.bf16.gmra.mrb[0].mxu0 %v6584
    %v8607 = vpop.f32.mrb[0].mxu0
    %v8608 = vadd.f32 %v8319, %v8607
    %v8609 = vpop.f32.mrb[0].mxu0
    %v8610 = vpop.f32.mrb[0].mxu0
    %v8611 = vadd.f32 %v8322, %v8610
    %v8612 = vpop.f32.mrb[0].mxu0
    %8613 = vmatprep.mubr.bf16.mxu0 0
    %8614 = vmatmul.mubr.bf16.gmra.mrb[0].mxu0 %v6593
    %v8615 = vpop.f32.mrb[0].mxu0
    %v8616 = vadd.f32 %v8327, %v8615
    %v8617 = vpop.f32.mrb[0].mxu0
    %v8618 = vpop.f32.mrb[0].mxu0
    %v8619 = vadd.f32 %v8330, %v8618
    %v8620 = vpop.f32.mrb[0].mxu0
    %8621 = vmatprep.mubr.bf16.mxu0 0
    %8622 = vmatmul.mubr.bf16.gmra.mrb[0].mxu0 %v6602
    %v8623 = vpop.f32.mrb[0].mxu0
    %v8624 = vadd.f32 %v8335, %v8623
    %v8625 = vpop.f32.mrb[0].mxu0
    %v8626 = vpop.f32.mrb[0].mxu0
    %v8627 = vadd.f32 %v8338, %v8626
    %v8628 = vpop.f32.mrb[0].mxu0
    %8629 = vmatprep.mubr.bf16.mxu0 0
    %8630 = vmatmul.mubr.bf16.gmra.mrb[0].mxu0 %v6611
    %v8631 = vpop.f32.mrb[0].mxu0
    %v8632 = vadd.f32 %v8343, %v8631
    %v8633 = vpop.f32.mrb[0].mxu0
    %v8634 = vpop.f32.mrb[0].mxu0
    %v8635 = vadd.f32 %v8346, %v8634
    %v8636 = vpop.f32.mrb[0].mxu0
    %8637 = vmatprep.mubr.bf16.mxu0 0
    %8638 = vmatmul.mubr.bf16.gmra.mrb[0].mxu0 %v6620
    %v8639 = vpop.f32.mrb[0].mxu0
    %v8640 = vadd.f32 %v8351, %v8639
    %v8641 = vpop.f32.mrb[0].mxu0
    %v8642 = vpop.f32.mrb[0].mxu0
    %v8643 = vadd.f32 %v8354, %v8642
    %v8644 = vpop.f32.mrb[0].mxu0
    %8645 = vmatprep.mubr.bf16.mxu0 0
    %8646 = vmatmul.mubr.bf16.gmra.mrb[0].mxu0 %v6629
    %v8647 = vpop.f32.mrb[0].mxu0
    %v8648 = vadd.f32 %v8359, %v8647
    %v8649 = vpop.f32.mrb[0].mxu0
    %v8650 = vpop.f32.mrb[0].mxu0
    %v8651 = vadd.f32 %v8362, %v8650
    %v8652 = vpop.f32.mrb[0].mxu0
    %8653 = vmatprep.mubr.bf16.mxu0 0
    %8654 = vmatmul.mubr.bf16.gmra.mrb[0].mxu0 %v6638
    %v8655 = vpop.f32.mrb[0].mxu0
    %v8656 = vadd.f32 %v8367, %v8655
    %v8657 = vpop.f32.mrb[0].mxu0
    %v8658 = vpop.f32.mrb[0].mxu0
    %v8659 = vadd.f32 %v8370, %v8658
    %v8660 = vpop.f32.mrb[0].mxu0
    %8661 = vmatprep.mubr.bf16.mxu0 0
    %8662 = vmatmul.mubr.bf16.gmra.mrb[0].mxu0 %v6647
    %v8663 = vpop.f32.mrb[0].mxu0
    %v8664 = vadd.f32 %v8375, %v8663
    %v8665 = vpop.f32.mrb[0].mxu0
    %v8666 = vpop.f32.mrb[0].mxu0
    %v8667 = vadd.f32 %v8378, %v8666
    %v8668 = vpop.f32.mrb[0].mxu0
    %8669 = vmatprep.mubr.bf16.mxu0 0
    %8670 = vmatmul.mubr.bf16.gmra.mrb[0].mxu0 %v6656
    %v8671 = vpop.f32.mrb[0].mxu0
    %v8672 = vadd.f32 %v8383, %v8671
    %v8673 = vpop.f32.mrb[0].mxu0
    %v8674 = vpop.f32.mrb[0].mxu0
    %v8675 = vadd.f32 %v8386, %v8674
    %v8676 = vpop.f32.mrb[0].mxu0
    %8677 = vdwg.mxu0
    %v8678 = vld [vmem:[%s7] sm:$0x1]
    %v8679 = vld [vmem:[%s8] sm:$0x1]
    %v8680 = vadd.f32 %v8424, %v8427
    %v8681 = vadd.f32 %v8680, %v8432
    %v8682 = vadd.f32 %v8681, %v8435
    %v8683 = vadd.f32 %v8682, %v8440
    %v8684 = vadd.f32 %v8683, %v8443
    %v8685 = vadd.f32 %v8684, %v8448
    %v8686 = vadd.f32 %v8685, %v8451
    %v8687 = vadd.f32 %v8686, %v8456
    %v8688 = vadd.f32 %v8687, %v8459
    %v8689 = vadd.f32 %v8688, %v8464
    %v8690 = vadd.f32 %v8689, %v8467
    %v8691 = vadd.f32 %v8690, %v8472
    %v8692 = vadd.f32 %v8691, %v8475
    %v8693 = vadd.f32 %v8692, %v8480
    %v8694 = vadd.f32 %v8693, %v8483
    %v8695 = vadd.f32 %v8694, %v8488
    %v8696 = vadd.f32 %v8695, %v8491
    %v8697 = vadd.f32 %v8696, %v8496
    %v8698 = vadd.f32 %v8697, %v8499
    %v8699 = vadd.f32 %v8698, %v8504
    %v8700 = vadd.f32 %v8699, %v8507
    %v8701 = vadd.f32 %v8700, %v8512
    %v8702 = vadd.f32 %v8701, %v8515
    %v8703 = vadd.f32 %v8702, %v8520
    %v8704 = vadd.f32 %v8703, %v8523
    %v8705 = vadd.f32 %v8704, %v8528
    %v8706 = vadd.f32 %v8705, %v8531
    %v8707 = vadd.f32 %v8706, %v8536
    %v8708 = vadd.f32 %v8707, %v8539
    %v8709 = vadd.f32 %v8708, %v8544
    %v8710 = vadd.f32 %v8709, %v8547
    %v8711 = vadd.f32 %v8710, %v8552
    %v8712 = vadd.f32 %v8711, %v8555
    %v8713 = vadd.f32 %v8712, %v8560
    %v8714 = vadd.f32 %v8713, %v8563
    %v8715 = vadd.f32 %v8714, %v8568
    %v8716 = vadd.f32 %v8715, %v8571
    %v8717 = vadd.f32 %v8716, %v8576
    %v8718 = vadd.f32 %v8717, %v8579
    %v8719 = vadd.f32 %v8718, %v8584
    %v8720 = vadd.f32 %v8719, %v8587
    %v8721 = vadd.f32 %v8720, %v8592
    %v8722 = vadd.f32 %v8721, %v8595
    %v8723 = vadd.f32 %v8722, %v8600
    %v8724 = vadd.f32 %v8723, %v8603
    %v8725 = vadd.f32 %v8724, %v8608
    %v8726 = vadd.f32 %v8725, %v8611
    %v8727 = vadd.f32 %v8726, %v8616
    %v8728 = vadd.f32 %v8727, %v8619
    %v8729 = vadd.f32 %v8728, %v8624
    %v8730 = vadd.f32 %v8729, %v8627
    %v8731 = vadd.f32 %v8730, %v8632
    %v8732 = vadd.f32 %v8731, %v8635
    %v8733 = vadd.f32 %v8732, %v8640
    %v8734 = vadd.f32 %v8733, %v8643
    %v8735 = vadd.f32 %v8734, %v8648
    %v8736 = vadd.f32 %v8735, %v8651
    %v8737 = vadd.f32 %v8736, %v8656
    %v8738 = vadd.f32 %v8737, %v8659
    %v8739 = vadd.f32 %v8738, %v8664
    %v8740 = vadd.f32 %v8739, %v8667
    %v8741 = vadd.f32 %v8740, %v8672
    %v8742 = vadd.f32 %v8741, %v8675
    %v8743 = vrot.slane %v8742, 4
    %v8744 = vadd.f32 %v8742, %v8743
    %v8745 = vrot.slane %v8744, 2
    %v8746 = vadd.f32 %v8744, %v8745
    %v8747 = vrot.slane %v8746, 1
    %v8748 = vadd.f32 %v8746, %v8747
    %v8749 = vmul.f32 %v8424, %v8424
    %v8750 = vmul.f32 %v8427, %v8427
    %v8751 = vmul.f32 %v8432, %v8432
    %v8752 = vmul.f32 %v8435, %v8435
    %v8753 = vmul.f32 %v8440, %v8440
    %v8754 = vmul.f32 %v8443, %v8443
    %v8755 = vmul.f32 %v8448, %v8448
    %v8756 = vmul.f32 %v8451, %v8451
    %v8757 = vmul.f32 %v8456, %v8456
    %v8758 = vmul.f32 %v8459, %v8459
    %v8759 = vmul.f32 %v8464, %v8464
    %v8760 = vmul.f32 %v8467, %v8467
    %v8761 = vmul.f32 %v8472, %v8472
    %v8762 = vmul.f32 %v8475, %v8475
    %v8763 = vmul.f32 %v8480, %v8480
    %v8764 = vmul.f32 %v8483, %v8483
    %v8765 = vmul.f32 %v8488, %v8488
    %v8766 = vmul.f32 %v8491, %v8491
    %v8767 = vmul.f32 %v8496, %v8496
    %v8768 = vmul.f32 %v8499, %v8499
    %v8769 = vmul.f32 %v8504, %v8504
    %v8770 = vmul.f32 %v8507, %v8507
    %v8771 = vmul.f32 %v8512, %v8512
    %v8772 = vmul.f32 %v8515, %v8515
    %v8773 = vmul.f32 %v8520, %v8520
    %v8774 = vmul.f32 %v8523, %v8523
    %v8775 = vmul.f32 %v8528, %v8528
    %v8776 = vmul.f32 %v8531, %v8531
    %v8777 = vmul.f32 %v8536, %v8536
    %v8778 = vmul.f32 %v8539, %v8539
    %v8779 = vmul.f32 %v8544, %v8544
    %v8780 = vmul.f32 %v8547, %v8547
    %v8781 = vmul.f32 %v8552, %v8552
    %v8782 = vmul.f32 %v8555, %v8555
    %v8783 = vmul.f32 %v8560, %v8560
    %v8784 = vmul.f32 %v8563, %v8563
    %v8785 = vmul.f32 %v8568, %v8568
    %v8786 = vmul.f32 %v8571, %v8571
    %v8787 = vmul.f32 %v8576, %v8576
    %v8788 = vmul.f32 %v8579, %v8579
    %v8789 = vmul.f32 %v8584, %v8584
    %v8790 = vmul.f32 %v8587, %v8587
    %v8791 = vmul.f32 %v8592, %v8592
    %v8792 = vmul.f32 %v8595, %v8595
    %v8793 = vmul.f32 %v8600, %v8600
    %v8794 = vmul.f32 %v8603, %v8603
    %v8795 = vmul.f32 %v8608, %v8608
    %v8796 = vmul.f32 %v8611, %v8611
    %v8797 = vmul.f32 %v8616, %v8616
    %v8798 = vmul.f32 %v8619, %v8619
    %v8799 = vmul.f32 %v8624, %v8624
    %v8800 = vmul.f32 %v8627, %v8627
    %v8801 = vmul.f32 %v8632, %v8632
    %v8802 = vmul.f32 %v8635, %v8635
    %v8803 = vmul.f32 %v8640, %v8640
    %v8804 = vmul.f32 %v8643, %v8643
    %v8805 = vmul.f32 %v8648, %v8648
    %v8806 = vmul.f32 %v8651, %v8651
    %v8807 = vmul.f32 %v8656, %v8656
    %v8808 = vmul.f32 %v8659, %v8659
    %v8809 = vmul.f32 %v8664, %v8664
    %v8810 = vmul.f32 %v8667, %v8667
    %v8811 = vmul.f32 %v8672, %v8672
    %v8812 = vmul.f32 %v8675, %v8675
    %v8813 = vadd.f32 %v8749, %v8750
    %v8814 = vadd.f32 %v8813, %v8751
    %v8815 = vadd.f32 %v8814, %v8752
    %v8816 = vadd.f32 %v8815, %v8753
    %v8817 = vadd.f32 %v8816, %v8754
    %v8818 = vadd.f32 %v8817, %v8755
    %v8819 = vadd.f32 %v8818, %v8756
    %v8820 = vadd.f32 %v8819, %v8757
    %v8821 = vadd.f32 %v8820, %v8758
    %v8822 = vadd.f32 %v8821, %v8759
    %v8823 = vadd.f32 %v8822, %v8760
    %v8824 = vadd.f32 %v8823, %v8761
    %v8825 = vadd.f32 %v8824, %v8762
    %v8826 = vadd.f32 %v8825, %v8763
    %v8827 = vadd.f32 %v8826, %v8764
    %v8828 = vadd.f32 %v8827, %v8765
    %v8829 = vadd.f32 %v8828, %v8766
    %v8830 = vadd.f32 %v8829, %v8767
    %v8831 = vadd.f32 %v8830, %v8768
    %v8832 = vadd.f32 %v8831, %v8769
    %v8833 = vadd.f32 %v8832, %v8770
    %v8834 = vadd.f32 %v8833, %v8771
    %v8835 = vadd.f32 %v8834, %v8772
    %v8836 = vadd.f32 %v8835, %v8773
    %v8837 = vadd.f32 %v8836, %v8774
    %v8838 = vadd.f32 %v8837, %v8775
    %v8839 = vadd.f32 %v8838, %v8776
    %v8840 = vadd.f32 %v8839, %v8777
    %v8841 = vadd.f32 %v8840, %v8778
    %v8842 = vadd.f32 %v8841, %v8779
    %v8843 = vadd.f32 %v8842, %v8780
    %v8844 = vadd.f32 %v8843, %v8781
    %v8845 = vadd.f32 %v8844, %v8782
    %v8846 = vadd.f32 %v8845, %v8783
    %v8847 = vadd.f32 %v8846, %v8784
    %v8848 = vadd.f32 %v8847, %v8785
    %v8849 = vadd.f32 %v8848, %v8786
    %v8850 = vadd.f32 %v8849, %v8787
    %v8851 = vadd.f32 %v8850, %v8788
    %v8852 = vadd.f32 %v8851, %v8789
    %v8853 = vadd.f32 %v8852, %v8790
    %v8854 = vadd.f32 %v8853, %v8791
    %v8855 = vadd.f32 %v8854, %v8792
    %v8856 = vadd.f32 %v8855, %v8793
    %v8857 = vadd.f32 %v8856, %v8794
    %v8858 = vadd.f32 %v8857, %v8795
    %v8859 = vadd.f32 %v8858, %v8796
    %v8860 = vadd.f32 %v8859, %v8797
    %v8861 = vadd.f32 %v8860, %v8798
    %v8862 = vadd.f32 %v8861, %v8799
    %v8863 = vadd.f32 %v8862, %v8800
    %v8864 = vadd.f32 %v8863, %v8801
    %v8865 = vadd.f32 %v8864, %v8802
    %v8866 = vadd.f32 %v8865, %v8803
    %v8867 = vadd.f32 %v8866, %v8804
    %v8868 = vadd.f32 %v8867, %v8805
    %v8869 = vadd.f32 %v8868, %v8806
    %v8870 = vadd.f32 %v8869, %v8807
    %v8871 = vadd.f32 %v8870, %v8808
    %v8872 = vadd.f32 %v8871, %v8809
    %v8873 = vadd.f32 %v8872, %v8810
    %v8874 = vadd.f32 %v8873, %v8811
    %v8875 = vadd.f32 %v8874, %v8812
    %v8876 = vrot.slane %v8875, 4
    %v8877 = vadd.f32 %v8875, %v8876
    %v8878 = vrot.slane %v8877, 2
    %v8879 = vadd.f32 %v8877, %v8878
    %v8880 = vrot.slane %v8879, 1
    %v8881 = vadd.f32 %v8879, %v8880
    %v8882 = vmul.f32 %v8748, 0.001953125
    %v8883 = vmul.f32 %v8881, 0.001953125
    %v8884 = vmul.f32 %v8882, %v8882
    %v8885 = vsub.f32 %v8883, %v8884
    %v8886 = vadd.f32 %v8885, 1e-05
    %v8887 = vrsqrt.pop %v8886
    %v8888 = vmul.f32 %v8678, %v8887
    %v8889 = vmul.f32 %v8882, %v8888
    %v8890 = vsub.f32 %v8679, %v8889
    %v8892 = vlaneseq
    %v8893 = vshrl.u32 %v8892, 7
    %v8894 = vsub.s32 0, %v8893
    %v8895 = vrot.slane %v8888, %v8894
    %v8897 = vmul.f32 %v8424, %v8895
    %v8898 = vmul.f32 %v8427, %v8895
    %v8899 = vmul.f32 %v8432, %v8895
    %v8900 = vmul.f32 %v8435, %v8895
    %v8901 = vmul.f32 %v8440, %v8895
    %v8902 = vmul.f32 %v8443, %v8895
    %v8903 = vmul.f32 %v8448, %v8895
    %v8904 = vmul.f32 %v8451, %v8895
    %v8905 = vmul.f32 %v8456, %v8895
    %v8906 = vmul.f32 %v8459, %v8895
    %v8907 = vmul.f32 %v8464, %v8895
    %v8908 = vmul.f32 %v8467, %v8895
    %v8909 = vmul.f32 %v8472, %v8895
    %v8910 = vmul.f32 %v8475, %v8895
    %v8911 = vmul.f32 %v8480, %v8895
    %v8912 = vmul.f32 %v8483, %v8895
    %v8913 = vmul.f32 %v8488, %v8895
    %v8914 = vmul.f32 %v8491, %v8895
    %v8915 = vmul.f32 %v8496, %v8895
    %v8916 = vmul.f32 %v8499, %v8895
    %v8917 = vmul.f32 %v8504, %v8895
    %v8918 = vmul.f32 %v8507, %v8895
    %v8919 = vmul.f32 %v8512, %v8895
    %v8920 = vmul.f32 %v8515, %v8895
    %v8921 = vmul.f32 %v8520, %v8895
    %v8922 = vmul.f32 %v8523, %v8895
    %v8923 = vmul.f32 %v8528, %v8895
    %v8924 = vmul.f32 %v8531, %v8895
    %v8925 = vmul.f32 %v8536, %v8895
    %v8926 = vmul.f32 %v8539, %v8895
    %v8927 = vmul.f32 %v8544, %v8895
    %v8928 = vmul.f32 %v8547, %v8895
    %v8929 = vmul.f32 %v8552, %v8895
    %v8930 = vmul.f32 %v8555, %v8895
    %v8931 = vmul.f32 %v8560, %v8895
    %v8932 = vmul.f32 %v8563, %v8895
    %v8933 = vmul.f32 %v8568, %v8895
    %v8934 = vmul.f32 %v8571, %v8895
    %v8935 = vmul.f32 %v8576, %v8895
    %v8936 = vmul.f32 %v8579, %v8895
    %v8937 = vmul.f32 %v8584, %v8895
    %v8938 = vmul.f32 %v8587, %v8895
    %v8939 = vmul.f32 %v8592, %v8895
    %v8940 = vmul.f32 %v8595, %v8895
    %v8941 = vmul.f32 %v8600, %v8895
    %v8942 = vmul.f32 %v8603, %v8895
    %v8943 = vmul.f32 %v8608, %v8895
    %v8944 = vmul.f32 %v8611, %v8895
    %v8945 = vmul.f32 %v8616, %v8895
    %v8946 = vmul.f32 %v8619, %v8895
    %v8947 = vmul.f32 %v8624, %v8895
    %v8948 = vmul.f32 %v8627, %v8895
    %v8949 = vmul.f32 %v8632, %v8895
    %v8950 = vmul.f32 %v8635, %v8895
    %v8951 = vmul.f32 %v8640, %v8895
    %v8952 = vmul.f32 %v8643, %v8895
    %v8953 = vmul.f32 %v8648, %v8895
    %v8954 = vmul.f32 %v8651, %v8895
    %v8955 = vmul.f32 %v8656, %v8895
    %v8956 = vmul.f32 %v8659, %v8895
    %v8957 = vmul.f32 %v8664, %v8895
    %v8958 = vmul.f32 %v8667, %v8895
    %v8959 = vmul.f32 %v8672, %v8895
    %v8960 = vmul.f32 %v8675, %v8895
    %v8962 = vlaneseq
    %v8963 = vshrl.u32 %v8962, 7
    %v8964 = vsub.s32 0, %v8963
    %v8965 = vrot.slane %v8890, %v8964
    %v8967 = vadd.f32 %v8897, %v8965
    %v8968 = vadd.f32 %v8898, %v8965
    %v8969 = vadd.f32 %v8899, %v8965
    %v8970 = vadd.f32 %v8900, %v8965
    %v8971 = vadd.f32 %v8901, %v8965
    %v8972 = vadd.f32 %v8902, %v8965
    %v8973 = vadd.f32 %v8903, %v8965
    %v8974 = vadd.f32 %v8904, %v8965
    %v8975 = vadd.f32 %v8905, %v8965
    %v8976 = vadd.f32 %v8906, %v8965
    %v8977 = vadd.f32 %v8907, %v8965
    %v8978 = vadd.f32 %v8908, %v8965
    %v8979 = vadd.f32 %v8909, %v8965
    %v8980 = vadd.f32 %v8910, %v8965
    %v8981 = vadd.f32 %v8911, %v8965
    %v8982 = vadd.f32 %v8912, %v8965
    %v8983 = vadd.f32 %v8913, %v8965
    %v8984 = vadd.f32 %v8914, %v8965
    %v8985 = vadd.f32 %v8915, %v8965
    %v8986 = vadd.f32 %v8916, %v8965
    %v8987 = vadd.f32 %v8917, %v8965
    %v8988 = vadd.f32 %v8918, %v8965
    %v8989 = vadd.f32 %v8919, %v8965
    %v8990 = vadd.f32 %v8920, %v8965
    %v8991 = vadd.f32 %v8921, %v8965
    %v8992 = vadd.f32 %v8922, %v8965
    %v8993 = vadd.f32 %v8923, %v8965
    %v8994 = vadd.f32 %v8924, %v8965
    %v8995 = vadd.f32 %v8925, %v8965
    %v8996 = vadd.f32 %v8926, %v8965
    %v8997 = vadd.f32 %v8927, %v8965
    %v8998 = vadd.f32 %v8928, %v8965
    %v8999 = vadd.f32 %v8929, %v8965
    %v9000 = vadd.f32 %v8930, %v8965
    %v9001 = vadd.f32 %v8931, %v8965
    %v9002 = vadd.f32 %v8932, %v8965
    %v9003 = vadd.f32 %v8933, %v8965
    %v9004 = vadd.f32 %v8934, %v8965
    %v9005 = vadd.f32 %v8935, %v8965
    %v9006 = vadd.f32 %v8936, %v8965
    %v9007 = vadd.f32 %v8937, %v8965
    %v9008 = vadd.f32 %v8938, %v8965
    %v9009 = vadd.f32 %v8939, %v8965
    %v9010 = vadd.f32 %v8940, %v8965
    %v9011 = vadd.f32 %v8941, %v8965
    %v9012 = vadd.f32 %v8942, %v8965
    %v9013 = vadd.f32 %v8943, %v8965
    %v9014 = vadd.f32 %v8944, %v8965
    %v9015 = vadd.f32 %v8945, %v8965
    %v9016 = vadd.f32 %v8946, %v8965
    %v9017 = vadd.f32 %v8947, %v8965
    %v9018 = vadd.f32 %v8948, %v8965
    %v9019 = vadd.f32 %v8949, %v8965
    %v9020 = vadd.f32 %v8950, %v8965
    %v9021 = vadd.f32 %v8951, %v8965
    %v9022 = vadd.f32 %v8952, %v8965
    %v9023 = vadd.f32 %v8953, %v8965
    %v9024 = vadd.f32 %v8954, %v8965
    %v9025 = vadd.f32 %v8955, %v8965
    %v9026 = vadd.f32 %v8956, %v8965
    %v9027 = vadd.f32 %v8957, %v8965
    %v9028 = vadd.f32 %v8958, %v8965
    %v9029 = vadd.f32 %v8959, %v8965
    %v9030 = vadd.f32 %v8960, %v8965
    %v9031 = vmax.f32 %v8967, 0.0
    %v9032 = vmax.f32 %v8968, 0.0
    %v9033 = vmax.f32 %v8969, 0.0
    %v9034 = vmax.f32 %v8970, 0.0
    %v9035 = vmax.f32 %v8971, 0.0
    %v9036 = vmax.f32 %v8972, 0.0
    %v9037 = vmax.f32 %v8973, 0.0
    %v9038 = vmax.f32 %v8974, 0.0
    %v9039 = vmax.f32 %v8975, 0.0
    %v9040 = vmax.f32 %v8976, 0.0
    %v9041 = vmax.f32 %v8977, 0.0
    %v9042 = vmax.f32 %v8978, 0.0
    %v9043 = vmax.f32 %v8979, 0.0
    %v9044 = vmax.f32 %v8980, 0.0
    %v9045 = vmax.f32 %v8981, 0.0
    %v9046 = vmax.f32 %v8982, 0.0
    %v9047 = vmax.f32 %v8983, 0.0
    %v9048 = vmax.f32 %v8984, 0.0
    %v9049 = vmax.f32 %v8985, 0.0
    %v9050 = vmax.f32 %v8986, 0.0
    %v9051 = vmax.f32 %v8987, 0.0
    %v9052 = vmax.f32 %v8988, 0.0
    %v9053 = vmax.f32 %v8989, 0.0
    %v9054 = vmax.f32 %v8990, 0.0
    %v9055 = vmax.f32 %v8991, 0.0
    %v9056 = vmax.f32 %v8992, 0.0
    %v9057 = vmax.f32 %v8993, 0.0
    %v9058 = vmax.f32 %v8994, 0.0
    %v9059 = vmax.f32 %v8995, 0.0
    %v9060 = vmax.f32 %v8996, 0.0
    %v9061 = vmax.f32 %v8997, 0.0
    %v9062 = vmax.f32 %v8998, 0.0
    %v9063 = vmax.f32 %v8999, 0.0
    %v9064 = vmax.f32 %v9000, 0.0
    %v9065 = vmax.f32 %v9001, 0.0
    %v9066 = vmax.f32 %v9002, 0.0
    %v9067 = vmax.f32 %v9003, 0.0
    %v9068 = vmax.f32 %v9004, 0.0
    %v9069 = vmax.f32 %v9005, 0.0
    %v9070 = vmax.f32 %v9006, 0.0
    %v9071 = vmax.f32 %v9007, 0.0
    %v9072 = vmax.f32 %v9008, 0.0
    %v9073 = vmax.f32 %v9009, 0.0
    %v9074 = vmax.f32 %v9010, 0.0
    %v9075 = vmax.f32 %v9011, 0.0
    %v9076 = vmax.f32 %v9012, 0.0
    %v9077 = vmax.f32 %v9013, 0.0
    %v9078 = vmax.f32 %v9014, 0.0
    %v9079 = vmax.f32 %v9015, 0.0
    %v9080 = vmax.f32 %v9016, 0.0
    %v9081 = vmax.f32 %v9017, 0.0
    %v9082 = vmax.f32 %v9018, 0.0
    %v9083 = vmax.f32 %v9019, 0.0
    %v9084 = vmax.f32 %v9020, 0.0
    %v9085 = vmax.f32 %v9021, 0.0
    %v9086 = vmax.f32 %v9022, 0.0
    %v9087 = vmax.f32 %v9023, 0.0
    %v9088 = vmax.f32 %v9024, 0.0
    %v9089 = vmax.f32 %v9025, 0.0
    %v9090 = vmax.f32 %v9026, 0.0
    %v9091 = vmax.f32 %v9027, 0.0
    %v9092 = vmax.f32 %v9028, 0.0
    %v9093 = vmax.f32 %v9029, 0.0
    %v9094 = vmax.f32 %v9030, 0.0
    %v9095 = vpack.c.bf16 %v9032, %v9031
    %v9096 = vpack.c.bf16 %v9034, %v9033
    %v9097 = vpack.c.bf16 %v9036, %v9035
    %v9098 = vpack.c.bf16 %v9038, %v9037
    %v9099 = vpack.c.bf16 %v9040, %v9039
    %v9100 = vpack.c.bf16 %v9042, %v9041
    %v9101 = vpack.c.bf16 %v9044, %v9043
    %v9102 = vpack.c.bf16 %v9046, %v9045
    %v9103 = vpack.c.bf16 %v9048, %v9047
    %v9104 = vpack.c.bf16 %v9050, %v9049
    %v9105 = vpack.c.bf16 %v9052, %v9051
    %v9106 = vpack.c.bf16 %v9054, %v9053
    %v9107 = vpack.c.bf16 %v9056, %v9055
    %v9108 = vpack.c.bf16 %v9058, %v9057
    %v9109 = vpack.c.bf16 %v9060, %v9059
    %v9110 = vpack.c.bf16 %v9062, %v9061
    %v9111 = vpack.c.bf16 %v9064, %v9063
    %v9112 = vpack.c.bf16 %v9066, %v9065
    %v9113 = vpack.c.bf16 %v9068, %v9067
    %v9114 = vpack.c.bf16 %v9070, %v9069
    %v9115 = vpack.c.bf16 %v9072, %v9071
    %v9116 = vpack.c.bf16 %v9074, %v9073
    %v9117 = vpack.c.bf16 %v9076, %v9075
    %v9118 = vpack.c.bf16 %v9078, %v9077
    %v9119 = vpack.c.bf16 %v9080, %v9079
    %v9120 = vpack.c.bf16 %v9082, %v9081
    %v9121 = vpack.c.bf16 %v9084, %v9083
    %v9122 = vpack.c.bf16 %v9086, %v9085
    %v9123 = vpack.c.bf16 %v9088, %v9087
    %v9124 = vpack.c.bf16 %v9090, %v9089
    %v9125 = vpack.c.bf16 %v9092, %v9091
    %v9126 = vpack.c.bf16 %v9094, %v9093
    %v9127 = vld [vmem:[%s9] sm:$0xf]
    %v9128 = vld [vmem:[%s9 + $0x4] sm:$0xf]
    %v9129 = vld [vmem:[%s9 + $0x8] sm:$0xf]
    %v9130 = vld [vmem:[%s9 + $0xc] sm:$0xf]
    %v9131 = vld [vmem:[%s9 + $0x10] sm:$0xf]
    %v9132 = vld [vmem:[%s9 + $0x14] sm:$0xf]
    %v9133 = vld [vmem:[%s9 + $0x18] sm:$0xf]
    %v9134 = vld [vmem:[%s9 + $0x1c] sm:$0xf]
    %v9135 = vld [vmem:[%s9 + $0x20] sm:$0xf]
    %v9136 = vld [vmem:[%s9 + $0x24] sm:$0xf]
    %v9137 = vld [vmem:[%s9 + $0x28] sm:$0xf]
    %v9138 = vld [vmem:[%s9 + $0x2c] sm:$0xf]
    %v9139 = vld [vmem:[%s9 + $0x30] sm:$0xf]
    %v9140 = vld [vmem:[%s9 + $0x34] sm:$0xf]
    %v9141 = vld [vmem:[%s9 + $0x38] sm:$0xf]
    %v9142 = vld [vmem:[%s9 + $0x3c] sm:$0xf]
    %v9159 = vunpack.c.l.b16 %v9127
    %v9160 = vunpack.c.l.b16 %v9128
    %v9161 = vunpack.c.l.b16 %v9129
    %v9162 = vunpack.c.l.b16 %v9130
    %v9163 = vunpack.c.l.b16 %v9131
    %v9164 = vunpack.c.l.b16 %v9132
    %v9165 = vunpack.c.l.b16 %v9133
    %v9166 = vunpack.c.l.b16 %v9134
    %v9167 = vunpack.c.l.b16 %v9135
    %v9168 = vunpack.c.l.b16 %v9136
    %v9169 = vunpack.c.l.b16 %v9137
    %v9170 = vunpack.c.l.b16 %v9138
    %v9171 = vunpack.c.l.b16 %v9139
    %v9172 = vunpack.c.l.b16 %v9140
    %v9173 = vunpack.c.l.b16 %v9141
    %v9174 = vunpack.c.l.b16 %v9142
    %v9175 = vpack.c.b16 %v9160, %v9159
    %v9176 = vpack.c.b16 %v9162, %v9161
    %v9177 = vpack.c.b16 %v9164, %v9163
    %v9178 = vpack.c.b16 %v9166, %v9165
    %v9179 = vpack.c.b16 %v9168, %v9167
    %v9180 = vpack.c.b16 %v9170, %v9169
    %v9181 = vpack.c.b16 %v9172, %v9171
    %v9182 = vpack.c.b16 %v9174, %v9173
    %9191 = vmatprep.subr.bf16.mxu0 0
    %9192 = vmatpush1.bf16.msra.mxu0 %v9175
    %9193 = vmatprep.subr.bf16.mxu0 0
    %9194 = vmatpush1.bf16.msra.mxu0 %v9176
    %9195 = vmatprep.subr.bf16.mxu0 0
    %9196 = vmatpush1.bf16.msra.mxu0 %v9177
    %9197 = vmatprep.subr.bf16.mxu0 0
    %9198 = vmatpush1.bf16.msra.mxu0 %v9178
    %9199 = vmatprep.subr.bf16.mxu0 0
    %9200 = vmatpush1.bf16.msra.mxu0 %v9179
    %9201 = vmatprep.subr.bf16.mxu0 0
    %9202 = vmatpush1.bf16.msra.mxu0 %v9180
    %9203 = vmatprep.subr.bf16.mxu0 0
    %9204 = vmatpush1.bf16.msra.mxu0 %v9181
    %9205 = vmatprep.subr.bf16.mxu0 0
    %9206 = vmatpush1.bf16.msra.mxu0 %v9182
    %9207 = vmatprep.subr.bf16.mxu0 0
    %9208 = vmatpush1.bf16.msra.mxu0 0
    %9209 = vmatprep.subr.bf16.mxu0 0
    %9210 = vmatpush1.bf16.msra.mxu0 0
    %9211 = vmatprep.subr.bf16.mxu0 0
    %9212 = vmatpush1.bf16.msra.mxu0 0
    %9213 = vmatprep.subr.bf16.mxu0 0
    %9214 = vmatpush1.bf16.msra.mxu0 0
    %9215 = vmatprep.subr.bf16.mxu0 0
    %9216 = vmatpush1.bf16.msra.mxu0 0
    %9217 = vmatprep.subr.bf16.mxu0 0
    %9218 = vmatpush1.bf16.msra.mxu0 0
    %9219 = vmatprep.subr.bf16.mxu0 0
    %9220 = vmatpush1.bf16.msra.mxu0 0
    %9221 = vmatprep.subr.bf16.mxu0 0
    %9222 = vmatpush1.bf16.msra.mxu0 0
    %9223 = vmatprep.mubr.bf16.mxu0 0
    %9224 = vmatmul.mubr.bf16.gmra.mrb[0].mxu0 %v9095
    %v9225 = vpop.f32.mrb[0].mxu0
    %v9226 = vadd.f32 0.0, %v9225
    %v9227 = vpop.f32.mrb[0].mxu0
    %v9228 = vpop.f32.mrb[0].mxu0
    %v9229 = vadd.f32 0.0, %v9228
    %v9230 = vpop.f32.mrb[0].mxu0
    %9231 = vmatprep.mubr.bf16.mxu0 0
    %9232 = vmatmul.mubr.bf16.gmra.mrb[0].mxu0 %v9096
    %v9233 = vpop.f32.mrb[0].mxu0
    %v9234 = vadd.f32 0.0, %v9233
    %v9235 = vpop.f32.mrb[0].mxu0
    %v9236 = vpop.f32.mrb[0].mxu0
    %v9237 = vadd.f32 0.0, %v9236
    %v9238 = vpop.f32.mrb[0].mxu0
    %9239 = vmatprep.mubr.bf16.mxu0 0
    %9240 = vmatmul.mubr.bf16.gmra.mrb[0].mxu0 %v9097
    %v9241 = vpop.f32.mrb[0].mxu0
    %v9242 = vadd.f32 0.0, %v9241
    %v9243 = vpop.f32.mrb[0].mxu0
    %v9244 = vpop.f32.mrb[0].mxu0
    %v9245 = vadd.f32 0.0, %v9244
    %v9246 = vpop.f32.mrb[0].mxu0
    %9247 = vmatprep.mubr.bf16.mxu0 0
    %9248 = vmatmul.mubr.bf16.gmra.mrb[0].mxu0 %v9098
    %v9249 = vpop.f32.mrb[0].mxu0
    %v9250 = vadd.f32 0.0, %v9249
    %v9251 = vpop.f32.mrb[0].mxu0
    %v9252 = vpop.f32.mrb[0].mxu0
    %v9253 = vadd.f32 0.0, %v9252
    %v9254 = vpop.f32.mrb[0].mxu0
    %9255 = vmatprep.mubr.bf16.mxu0 0
    %9256 = vmatmul.mubr.bf16.gmra.mrb[0].mxu0 %v9099
    %v9257 = vpop.f32.mrb[0].mxu0
    %v9258 = vadd.f32 0.0, %v9257
    %v9259 = vpop.f32.mrb[0].mxu0
    %v9260 = vpop.f32.mrb[0].mxu0
    %v9261 = vadd.f32 0.0, %v9260
    %v9262 = vpop.f32.mrb[0].mxu0
    %9263 = vmatprep.mubr.bf16.mxu0 0
    %9264 = vmatmul.mubr.bf16.gmra.mrb[0].mxu0 %v9100
    %v9265 = vpop.f32.mrb[0].mxu0
    %v9266 = vadd.f32 0.0, %v9265
    %v9267 = vpop.f32.mrb[0].mxu0
    %v9268 = vpop.f32.mrb[0].mxu0
    %v9269 = vadd.f32 0.0, %v9268
    %v9270 = vpop.f32.mrb[0].mxu0
    %9271 = vmatprep.mubr.bf16.mxu0 0
    %9272 = vmatmul.mubr.bf16.gmra.mrb[0].mxu0 %v9101
    %v9273 = vpop.f32.mrb[0].mxu0
    %v9274 = vadd.f32 0.0, %v9273
    %v9275 = vpop.f32.mrb[0].mxu0
    %v9276 = vpop.f32.mrb[0].mxu0
    %v9277 = vadd.f32 0.0, %v9276
    %v9278 = vpop.f32.mrb[0].mxu0
    %9279 = vmatprep.mubr.bf16.mxu0 0
    %9280 = vmatmul.mubr.bf16.gmra.mrb[0].mxu0 %v9102
    %v9281 = vpop.f32.mrb[0].mxu0
    %v9282 = vadd.f32 0.0, %v9281
    %v9283 = vpop.f32.mrb[0].mxu0
    %v9284 = vpop.f32.mrb[0].mxu0
    %v9285 = vadd.f32 0.0, %v9284
    %v9286 = vpop.f32.mrb[0].mxu0
    %9287 = vmatprep.mubr.bf16.mxu0 0
    %9288 = vmatmul.mubr.bf16.gmra.mrb[0].mxu0 %v9103
    %v9289 = vpop.f32.mrb[0].mxu0
    %v9290 = vadd.f32 0.0, %v9289
    %v9291 = vpop.f32.mrb[0].mxu0
    %v9292 = vpop.f32.mrb[0].mxu0
    %v9293 = vadd.f32 0.0, %v9292
    %v9294 = vpop.f32.mrb[0].mxu0
    %9295 = vmatprep.mubr.bf16.mxu0 0
    %9296 = vmatmul.mubr.bf16.gmra.mrb[0].mxu0 %v9104
    %v9297 = vpop.f32.mrb[0].mxu0
    %v9298 = vadd.f32 0.0, %v9297
    %v9299 = vpop.f32.mrb[0].mxu0
    %v9300 = vpop.f32.mrb[0].mxu0
    %v9301 = vadd.f32 0.0, %v9300
    %v9302 = vpop.f32.mrb[0].mxu0
    %9303 = vmatprep.mubr.bf16.mxu0 0
    %9304 = vmatmul.mubr.bf16.gmra.mrb[0].mxu0 %v9105
    %v9305 = vpop.f32.mrb[0].mxu0
    %v9306 = vadd.f32 0.0, %v9305
    %v9307 = vpop.f32.mrb[0].mxu0
    %v9308 = vpop.f32.mrb[0].mxu0
    %v9309 = vadd.f32 0.0, %v9308
    %v9310 = vpop.f32.mrb[0].mxu0
    %9311 = vmatprep.mubr.bf16.mxu0 0
    %9312 = vmatmul.mubr.bf16.gmra.mrb[0].mxu0 %v9106
    %v9313 = vpop.f32.mrb[0].mxu0
    %v9314 = vadd.f32 0.0, %v9313
    %v9315 = vpop.f32.mrb[0].mxu0
    %v9316 = vpop.f32.mrb[0].mxu0
    %v9317 = vadd.f32 0.0, %v9316
    %v9318 = vpop.f32.mrb[0].mxu0
    %9319 = vmatprep.mubr.bf16.mxu0 0
    %9320 = vmatmul.mubr.bf16.gmra.mrb[0].mxu0 %v9107
    %v9321 = vpop.f32.mrb[0].mxu0
    %v9322 = vadd.f32 0.0, %v9321
    %v9323 = vpop.f32.mrb[0].mxu0
    %v9324 = vpop.f32.mrb[0].mxu0
    %v9325 = vadd.f32 0.0, %v9324
    %v9326 = vpop.f32.mrb[0].mxu0
    %9327 = vmatprep.mubr.bf16.mxu0 0
    %9328 = vmatmul.mubr.bf16.gmra.mrb[0].mxu0 %v9108
    %v9329 = vpop.f32.mrb[0].mxu0
    %v9330 = vadd.f32 0.0, %v9329
    %v9331 = vpop.f32.mrb[0].mxu0
    %v9332 = vpop.f32.mrb[0].mxu0
    %v9333 = vadd.f32 0.0, %v9332
    %v9334 = vpop.f32.mrb[0].mxu0
    %9335 = vmatprep.mubr.bf16.mxu0 0
    %9336 = vmatmul.mubr.bf16.gmra.mrb[0].mxu0 %v9109
    %v9337 = vpop.f32.mrb[0].mxu0
    %v9338 = vadd.f32 0.0, %v9337
    %v9339 = vpop.f32.mrb[0].mxu0
    %v9340 = vpop.f32.mrb[0].mxu0
    %v9341 = vadd.f32 0.0, %v9340
    %v9342 = vpop.f32.mrb[0].mxu0
    %9343 = vmatprep.mubr.bf16.mxu0 0
    %9344 = vmatmul.mubr.bf16.gmra.mrb[0].mxu0 %v9110
    %v9345 = vpop.f32.mrb[0].mxu0
    %v9346 = vadd.f32 0.0, %v9345
    %v9347 = vpop.f32.mrb[0].mxu0
    %v9348 = vpop.f32.mrb[0].mxu0
    %v9349 = vadd.f32 0.0, %v9348
    %v9350 = vpop.f32.mrb[0].mxu0
    %9351 = vmatprep.mubr.bf16.mxu0 0
    %9352 = vmatmul.mubr.bf16.gmra.mrb[0].mxu0 %v9111
    %v9353 = vpop.f32.mrb[0].mxu0
    %v9354 = vadd.f32 0.0, %v9353
    %v9355 = vpop.f32.mrb[0].mxu0
    %v9356 = vpop.f32.mrb[0].mxu0
    %v9357 = vadd.f32 0.0, %v9356
    %v9358 = vpop.f32.mrb[0].mxu0
    %9359 = vmatprep.mubr.bf16.mxu0 0
    %9360 = vmatmul.mubr.bf16.gmra.mrb[0].mxu0 %v9112
    %v9361 = vpop.f32.mrb[0].mxu0
    %v9362 = vadd.f32 0.0, %v9361
    %v9363 = vpop.f32.mrb[0].mxu0
    %v9364 = vpop.f32.mrb[0].mxu0
    %v9365 = vadd.f32 0.0, %v9364
    %v9366 = vpop.f32.mrb[0].mxu0
    %9367 = vmatprep.mubr.bf16.mxu0 0
    %9368 = vmatmul.mubr.bf16.gmra.mrb[0].mxu0 %v9113
    %v9369 = vpop.f32.mrb[0].mxu0
    %v9370 = vadd.f32 0.0, %v9369
    %v9371 = vpop.f32.mrb[0].mxu0
    %v9372 = vpop.f32.mrb[0].mxu0
    %v9373 = vadd.f32 0.0, %v9372
    %v9374 = vpop.f32.mrb[0].mxu0
    %9375 = vmatprep.mubr.bf16.mxu0 0
    %9376 = vmatmul.mubr.bf16.gmra.mrb[0].mxu0 %v9114
    %v9377 = vpop.f32.mrb[0].mxu0
    %v9378 = vadd.f32 0.0, %v9377
    %v9379 = vpop.f32.mrb[0].mxu0
    %v9380 = vpop.f32.mrb[0].mxu0
    %v9381 = vadd.f32 0.0, %v9380
    %v9382 = vpop.f32.mrb[0].mxu0
    %9383 = vmatprep.mubr.bf16.mxu0 0
    %9384 = vmatmul.mubr.bf16.gmra.mrb[0].mxu0 %v9115
    %v9385 = vpop.f32.mrb[0].mxu0
    %v9386 = vadd.f32 0.0, %v9385
    %v9387 = vpop.f32.mrb[0].mxu0
    %v9388 = vpop.f32.mrb[0].mxu0
    %v9389 = vadd.f32 0.0, %v9388
    %v9390 = vpop.f32.mrb[0].mxu0
    %9391 = vmatprep.mubr.bf16.mxu0 0
    %9392 = vmatmul.mubr.bf16.gmra.mrb[0].mxu0 %v9116
    %v9393 = vpop.f32.mrb[0].mxu0
    %v9394 = vadd.f32 0.0, %v9393
    %v9395 = vpop.f32.mrb[0].mxu0
    %v9396 = vpop.f32.mrb[0].mxu0
    %v9397 = vadd.f32 0.0, %v9396
    %v9398 = vpop.f32.mrb[0].mxu0
    %9399 = vmatprep.mubr.bf16.mxu0 0
    %9400 = vmatmul.mubr.bf16.gmra.mrb[0].mxu0 %v9117
    %v9401 = vpop.f32.mrb[0].mxu0
    %v9402 = vadd.f32 0.0, %v9401
    %v9403 = vpop.f32.mrb[0].mxu0
    %v9404 = vpop.f32.mrb[0].mxu0
    %v9405 = vadd.f32 0.0, %v9404
    %v9406 = vpop.f32.mrb[0].mxu0
    %9407 = vmatprep.mubr.bf16.mxu0 0
    %9408 = vmatmul.mubr.bf16.gmra.mrb[0].mxu0 %v9118
    %v9409 = vpop.f32.mrb[0].mxu0
    %v9410 = vadd.f32 0.0, %v9409
    %v9411 = vpop.f32.mrb[0].mxu0
    %v9412 = vpop.f32.mrb[0].mxu0
    %v9413 = vadd.f32 0.0, %v9412
    %v9414 = vpop.f32.mrb[0].mxu0
    %9415 = vmatprep.mubr.bf16.mxu0 0
    %9416 = vmatmul.mubr.bf16.gmra.mrb[0].mxu0 %v9119
    %v9417 = vpop.f32.mrb[0].mxu0
    %v9418 = vadd.f32 0.0, %v9417
    %v9419 = vpop.f32.mrb[0].mxu0
    %v9420 = vpop.f32.mrb[0].mxu0
    %v9421 = vadd.f32 0.0, %v9420
    %v9422 = vpop.f32.mrb[0].mxu0
    %9423 = vmatprep.mubr.bf16.mxu0 0
    %9424 = vmatmul.mubr.bf16.gmra.mrb[0].mxu0 %v9120
    %v9425 = vpop.f32.mrb[0].mxu0
    %v9426 = vadd.f32 0.0, %v9425
    %v9427 = vpop.f32.mrb[0].mxu0
    %v9428 = vpop.f32.mrb[0].mxu0
    %v9429 = vadd.f32 0.0, %v9428
    %v9430 = vpop.f32.mrb[0].mxu0
    %9431 = vmatprep.mubr.bf16.mxu0 0
    %9432 = vmatmul.mubr.bf16.gmra.mrb[0].mxu0 %v9121
    %v9433 = vpop.f32.mrb[0].mxu0
    %v9434 = vadd.f32 0.0, %v9433
    %v9435 = vpop.f32.mrb[0].mxu0
    %v9436 = vpop.f32.mrb[0].mxu0
    %v9437 = vadd.f32 0.0, %v9436
    %v9438 = vpop.f32.mrb[0].mxu0
    %9439 = vmatprep.mubr.bf16.mxu0 0
    %9440 = vmatmul.mubr.bf16.gmra.mrb[0].mxu0 %v9122
    %v9441 = vpop.f32.mrb[0].mxu0
    %v9442 = vadd.f32 0.0, %v9441
    %v9443 = vpop.f32.mrb[0].mxu0
    %v9444 = vpop.f32.mrb[0].mxu0
    %v9445 = vadd.f32 0.0, %v9444
    %v9446 = vpop.f32.mrb[0].mxu0
    %9447 = vmatprep.mubr.bf16.mxu0 0
    %9448 = vmatmul.mubr.bf16.gmra.mrb[0].mxu0 %v9123
    %v9449 = vpop.f32.mrb[0].mxu0
    %v9450 = vadd.f32 0.0, %v9449
    %v9451 = vpop.f32.mrb[0].mxu0
    %v9452 = vpop.f32.mrb[0].mxu0
    %v9453 = vadd.f32 0.0, %v9452
    %v9454 = vpop.f32.mrb[0].mxu0
    %9455 = vmatprep.mubr.bf16.mxu0 0
    %9456 = vmatmul.mubr.bf16.gmra.mrb[0].mxu0 %v9124
    %v9457 = vpop.f32.mrb[0].mxu0
    %v9458 = vadd.f32 0.0, %v9457
    %v9459 = vpop.f32.mrb[0].mxu0
    %v9460 = vpop.f32.mrb[0].mxu0
    %v9461 = vadd.f32 0.0, %v9460
    %v9462 = vpop.f32.mrb[0].mxu0
    %9463 = vmatprep.mubr.bf16.mxu0 0
    %9464 = vmatmul.mubr.bf16.gmra.mrb[0].mxu0 %v9125
    %v9465 = vpop.f32.mrb[0].mxu0
    %v9466 = vadd.f32 0.0, %v9465
    %v9467 = vpop.f32.mrb[0].mxu0
    %v9468 = vpop.f32.mrb[0].mxu0
    %v9469 = vadd.f32 0.0, %v9468
    %v9470 = vpop.f32.mrb[0].mxu0
    %9471 = vmatprep.mubr.bf16.mxu0 0
    %9472 = vmatmul.mubr.bf16.gmra.mrb[0].mxu0 %v9126
    %v9473 = vpop.f32.mrb[0].mxu0
    %v9474 = vadd.f32 0.0, %v9473
    %v9475 = vpop.f32.mrb[0].mxu0
    %v9476 = vpop.f32.mrb[0].mxu0
    %v9477 = vadd.f32 0.0, %v9476
    %v9478 = vpop.f32.mrb[0].mxu0
    %9479 = vdwg.mxu0
    %v9480 = vld [vmem:[%s10] sm:$0x1]
    %v9481 = vld [vmem:[%s11] sm:$0x1]
    %v9482 = vadd.f32 %v9226, %v9229
    %v9483 = vadd.f32 %v9482, %v9234
    %v9484 = vadd.f32 %v9483, %v9237
    %v9485 = vadd.f32 %v9484, %v9242
    %v9486 = vadd.f32 %v9485, %v9245
    %v9487 = vadd.f32 %v9486, %v9250
    %v9488 = vadd.f32 %v9487, %v9253
    %v9489 = vadd.f32 %v9488, %v9258
    %v9490 = vadd.f32 %v9489, %v9261
    %v9491 = vadd.f32 %v9490, %v9266
    %v9492 = vadd.f32 %v9491, %v9269
    %v9493 = vadd.f32 %v9492, %v9274
    %v9494 = vadd.f32 %v9493, %v9277
    %v9495 = vadd.f32 %v9494, %v9282
    %v9496 = vadd.f32 %v9495, %v9285
    %v9497 = vadd.f32 %v9496, %v9290
    %v9498 = vadd.f32 %v9497, %v9293
    %v9499 = vadd.f32 %v9498, %v9298
    %v9500 = vadd.f32 %v9499, %v9301
    %v9501 = vadd.f32 %v9500, %v9306
    %v9502 = vadd.f32 %v9501, %v9309
    %v9503 = vadd.f32 %v9502, %v9314
    %v9504 = vadd.f32 %v9503, %v9317
    %v9505 = vadd.f32 %v9504, %v9322
    %v9506 = vadd.f32 %v9505, %v9325
    %v9507 = vadd.f32 %v9506, %v9330
    %v9508 = vadd.f32 %v9507, %v9333
    %v9509 = vadd.f32 %v9508, %v9338
    %v9510 = vadd.f32 %v9509, %v9341
    %v9511 = vadd.f32 %v9510, %v9346
    %v9512 = vadd.f32 %v9511, %v9349
    %v9513 = vadd.f32 %v9512, %v9354
    %v9514 = vadd.f32 %v9513, %v9357
    %v9515 = vadd.f32 %v9514, %v9362
    %v9516 = vadd.f32 %v9515, %v9365
    %v9517 = vadd.f32 %v9516, %v9370
    %v9518 = vadd.f32 %v9517, %v9373
    %v9519 = vadd.f32 %v9518, %v9378
    %v9520 = vadd.f32 %v9519, %v9381
    %v9521 = vadd.f32 %v9520, %v9386
    %v9522 = vadd.f32 %v9521, %v9389
    %v9523 = vadd.f32 %v9522, %v9394
    %v9524 = vadd.f32 %v9523, %v9397
    %v9525 = vadd.f32 %v9524, %v9402
    %v9526 = vadd.f32 %v9525, %v9405
    %v9527 = vadd.f32 %v9526, %v9410
    %v9528 = vadd.f32 %v9527, %v9413
    %v9529 = vadd.f32 %v9528, %v9418
    %v9530 = vadd.f32 %v9529, %v9421
    %v9531 = vadd.f32 %v9530, %v9426
    %v9532 = vadd.f32 %v9531, %v9429
    %v9533 = vadd.f32 %v9532, %v9434
    %v9534 = vadd.f32 %v9533, %v9437
    %v9535 = vadd.f32 %v9534, %v9442
    %v9536 = vadd.f32 %v9535, %v9445
    %v9537 = vadd.f32 %v9536, %v9450
    %v9538 = vadd.f32 %v9537, %v9453
    %v9539 = vadd.f32 %v9538, %v9458
    %v9540 = vadd.f32 %v9539, %v9461
    %v9541 = vadd.f32 %v9540, %v9466
    %v9542 = vadd.f32 %v9541, %v9469
    %v9543 = vadd.f32 %v9542, %v9474
    %v9544 = vadd.f32 %v9543, %v9477
    %v9545 = vrot.slane %v9544, 4
    %v9546 = vadd.f32 %v9544, %v9545
    %v9547 = vrot.slane %v9546, 2
    %v9548 = vadd.f32 %v9546, %v9547
    %v9549 = vrot.slane %v9548, 1
    %v9550 = vadd.f32 %v9548, %v9549
    %v9551 = vmul.f32 %v9226, %v9226
    %v9552 = vmul.f32 %v9229, %v9229
    %v9553 = vmul.f32 %v9234, %v9234
    %v9554 = vmul.f32 %v9237, %v9237
    %v9555 = vmul.f32 %v9242, %v9242
    %v9556 = vmul.f32 %v9245, %v9245
    %v9557 = vmul.f32 %v9250, %v9250
    %v9558 = vmul.f32 %v9253, %v9253
    %v9559 = vmul.f32 %v9258, %v9258
    %v9560 = vmul.f32 %v9261, %v9261
    %v9561 = vmul.f32 %v9266, %v9266
    %v9562 = vmul.f32 %v9269, %v9269
    %v9563 = vmul.f32 %v9274, %v9274
    %v9564 = vmul.f32 %v9277, %v9277
    %v9565 = vmul.f32 %v9282, %v9282
    %v9566 = vmul.f32 %v9285, %v9285
    %v9567 = vmul.f32 %v9290, %v9290
    %v9568 = vmul.f32 %v9293, %v9293
    %v9569 = vmul.f32 %v9298, %v9298
    %v9570 = vmul.f32 %v9301, %v9301
    %v9571 = vmul.f32 %v9306, %v9306
    %v9572 = vmul.f32 %v9309, %v9309
    %v9573 = vmul.f32 %v9314, %v9314
    %v9574 = vmul.f32 %v9317, %v9317
    %v9575 = vmul.f32 %v9322, %v9322
    %v9576 = vmul.f32 %v9325, %v9325
    %v9577 = vmul.f32 %v9330, %v9330
    %v9578 = vmul.f32 %v9333, %v9333
    %v9579 = vmul.f32 %v9338, %v9338
    %v9580 = vmul.f32 %v9341, %v9341
    %v9581 = vmul.f32 %v9346, %v9346
    %v9582 = vmul.f32 %v9349, %v9349
    %v9583 = vmul.f32 %v9354, %v9354
    %v9584 = vmul.f32 %v9357, %v9357
    %v9585 = vmul.f32 %v9362, %v9362
    %v9586 = vmul.f32 %v9365, %v9365
    %v9587 = vmul.f32 %v9370, %v9370
    %v9588 = vmul.f32 %v9373, %v9373
    %v9589 = vmul.f32 %v9378, %v9378
    %v9590 = vmul.f32 %v9381, %v9381
    %v9591 = vmul.f32 %v9386, %v9386
    %v9592 = vmul.f32 %v9389, %v9389
    %v9593 = vmul.f32 %v9394, %v9394
    %v9594 = vmul.f32 %v9397, %v9397
    %v9595 = vmul.f32 %v9402, %v9402
    %v9596 = vmul.f32 %v9405, %v9405
    %v9597 = vmul.f32 %v9410, %v9410
    %v9598 = vmul.f32 %v9413, %v9413
    %v9599 = vmul.f32 %v9418, %v9418
    %v9600 = vmul.f32 %v9421, %v9421
    %v9601 = vmul.f32 %v9426, %v9426
    %v9602 = vmul.f32 %v9429, %v9429
    %v9603 = vmul.f32 %v9434, %v9434
    %v9604 = vmul.f32 %v9437, %v9437
    %v9605 = vmul.f32 %v9442, %v9442
    %v9606 = vmul.f32 %v9445, %v9445
    %v9607 = vmul.f32 %v9450, %v9450
    %v9608 = vmul.f32 %v9453, %v9453
    %v9609 = vmul.f32 %v9458, %v9458
    %v9610 = vmul.f32 %v9461, %v9461
    %v9611 = vmul.f32 %v9466, %v9466
    %v9612 = vmul.f32 %v9469, %v9469
    %v9613 = vmul.f32 %v9474, %v9474
    %v9614 = vmul.f32 %v9477, %v9477
    %v9615 = vadd.f32 %v9551, %v9552
    %v9616 = vadd.f32 %v9615, %v9553
    %v9617 = vadd.f32 %v9616, %v9554
    %v9618 = vadd.f32 %v9617, %v9555
    %v9619 = vadd.f32 %v9618, %v9556
    %v9620 = vadd.f32 %v9619, %v9557
    %v9621 = vadd.f32 %v9620, %v9558
    %v9622 = vadd.f32 %v9621, %v9559
    %v9623 = vadd.f32 %v9622, %v9560
    %v9624 = vadd.f32 %v9623, %v9561
    %v9625 = vadd.f32 %v9624, %v9562
    %v9626 = vadd.f32 %v9625, %v9563
    %v9627 = vadd.f32 %v9626, %v9564
    %v9628 = vadd.f32 %v9627, %v9565
    %v9629 = vadd.f32 %v9628, %v9566
    %v9630 = vadd.f32 %v9629, %v9567
    %v9631 = vadd.f32 %v9630, %v9568
    %v9632 = vadd.f32 %v9631, %v9569
    %v9633 = vadd.f32 %v9632, %v9570
    %v9634 = vadd.f32 %v9633, %v9571
    %v9635 = vadd.f32 %v9634, %v9572
    %v9636 = vadd.f32 %v9635, %v9573
    %v9637 = vadd.f32 %v9636, %v9574
    %v9638 = vadd.f32 %v9637, %v9575
    %v9639 = vadd.f32 %v9638, %v9576
    %v9640 = vadd.f32 %v9639, %v9577
    %v9641 = vadd.f32 %v9640, %v9578
    %v9642 = vadd.f32 %v9641, %v9579
    %v9643 = vadd.f32 %v9642, %v9580
    %v9644 = vadd.f32 %v9643, %v9581
    %v9645 = vadd.f32 %v9644, %v9582
    %v9646 = vadd.f32 %v9645, %v9583
    %v9647 = vadd.f32 %v9646, %v9584
    %v9648 = vadd.f32 %v9647, %v9585
    %v9649 = vadd.f32 %v9648, %v9586
    %v9650 = vadd.f32 %v9649, %v9587
    %v9651 = vadd.f32 %v9650, %v9588
    %v9652 = vadd.f32 %v9651, %v9589
    %v9653 = vadd.f32 %v9652, %v9590
    %v9654 = vadd.f32 %v9653, %v9591
    %v9655 = vadd.f32 %v9654, %v9592
    %v9656 = vadd.f32 %v9655, %v9593
    %v9657 = vadd.f32 %v9656, %v9594
    %v9658 = vadd.f32 %v9657, %v9595
    %v9659 = vadd.f32 %v9658, %v9596
    %v9660 = vadd.f32 %v9659, %v9597
    %v9661 = vadd.f32 %v9660, %v9598
    %v9662 = vadd.f32 %v9661, %v9599
    %v9663 = vadd.f32 %v9662, %v9600
    %v9664 = vadd.f32 %v9663, %v9601
    %v9665 = vadd.f32 %v9664, %v9602
    %v9666 = vadd.f32 %v9665, %v9603
    %v9667 = vadd.f32 %v9666, %v9604
    %v9668 = vadd.f32 %v9667, %v9605
    %v9669 = vadd.f32 %v9668, %v9606
    %v9670 = vadd.f32 %v9669, %v9607
    %v9671 = vadd.f32 %v9670, %v9608
    %v9672 = vadd.f32 %v9671, %v9609
    %v9673 = vadd.f32 %v9672, %v9610
    %v9674 = vadd.f32 %v9673, %v9611
    %v9675 = vadd.f32 %v9674, %v9612
    %v9676 = vadd.f32 %v9675, %v9613
    %v9677 = vadd.f32 %v9676, %v9614
    %v9678 = vrot.slane %v9677, 4
    %v9679 = vadd.f32 %v9677, %v9678
    %v9680 = vrot.slane %v9679, 2
    %v9681 = vadd.f32 %v9679, %v9680
    %v9682 = vrot.slane %v9681, 1
    %v9683 = vadd.f32 %v9681, %v9682
    %v9684 = vmul.f32 %v9550, 0.001953125
    %v9685 = vmul.f32 %v9683, 0.001953125
    %v9686 = vmul.f32 %v9684, %v9684
    %v9687 = vsub.f32 %v9685, %v9686
    %v9688 = vadd.f32 %v9687, 1e-05
    %v9689 = vrsqrt.pop %v9688
    %v9690 = vmul.f32 %v9480, %v9689
    %v9691 = vmul.f32 %v9684, %v9690
    %v9692 = vsub.f32 %v9481, %v9691
    %v9694 = vlaneseq
    %v9695 = vshrl.u32 %v9694, 7
    %v9696 = vsub.s32 0, %v9695
    %v9697 = vrot.slane %v9690, %v9696
    %v9699 = vmul.f32 %v9226, %v9697
    %v9700 = vmul.f32 %v9229, %v9697
    %v9701 = vmul.f32 %v9234, %v9697
    %v9702 = vmul.f32 %v9237, %v9697
    %v9703 = vmul.f32 %v9242, %v9697
    %v9704 = vmul.f32 %v9245, %v9697
    %v9705 = vmul.f32 %v9250, %v9697
    %v9706 = vmul.f32 %v9253, %v9697
    %v9707 = vmul.f32 %v9258, %v9697
    %v9708 = vmul.f32 %v9261, %v9697
    %v9709 = vmul.f32 %v9266, %v9697
    %v9710 = vmul.f32 %v9269, %v9697
    %v9711 = vmul.f32 %v9274, %v9697
    %v9712 = vmul.f32 %v9277, %v9697
    %v9713 = vmul.f32 %v9282, %v9697
    %v9714 = vmul.f32 %v9285, %v9697
    %v9715 = vmul.f32 %v9290, %v9697
    %v9716 = vmul.f32 %v9293, %v9697
    %v9717 = vmul.f32 %v9298, %v9697
    %v9718 = vmul.f32 %v9301, %v9697
    %v9719 = vmul.f32 %v9306, %v9697
    %v9720 = vmul.f32 %v9309, %v9697
    %v9721 = vmul.f32 %v9314, %v9697
    %v9722 = vmul.f32 %v9317, %v9697
    %v9723 = vmul.f32 %v9322, %v9697
    %v9724 = vmul.f32 %v9325, %v9697
    %v9725 = vmul.f32 %v9330, %v9697
    %v9726 = vmul.f32 %v9333, %v9697
    %v9727 = vmul.f32 %v9338, %v9697
    %v9728 = vmul.f32 %v9341, %v9697
    %v9729 = vmul.f32 %v9346, %v9697
    %v9730 = vmul.f32 %v9349, %v9697
    %v9731 = vmul.f32 %v9354, %v9697
    %v9732 = vmul.f32 %v9357, %v9697
    %v9733 = vmul.f32 %v9362, %v9697
    %v9734 = vmul.f32 %v9365, %v9697
    %v9735 = vmul.f32 %v9370, %v9697
    %v9736 = vmul.f32 %v9373, %v9697
    %v9737 = vmul.f32 %v9378, %v9697
    %v9738 = vmul.f32 %v9381, %v9697
    %v9739 = vmul.f32 %v9386, %v9697
    %v9740 = vmul.f32 %v9389, %v9697
    %v9741 = vmul.f32 %v9394, %v9697
    %v9742 = vmul.f32 %v9397, %v9697
    %v9743 = vmul.f32 %v9402, %v9697
    %v9744 = vmul.f32 %v9405, %v9697
    %v9745 = vmul.f32 %v9410, %v9697
    %v9746 = vmul.f32 %v9413, %v9697
    %v9747 = vmul.f32 %v9418, %v9697
    %v9748 = vmul.f32 %v9421, %v9697
    %v9749 = vmul.f32 %v9426, %v9697
    %v9750 = vmul.f32 %v9429, %v9697
    %v9751 = vmul.f32 %v9434, %v9697
    %v9752 = vmul.f32 %v9437, %v9697
    %v9753 = vmul.f32 %v9442, %v9697
    %v9754 = vmul.f32 %v9445, %v9697
    %v9755 = vmul.f32 %v9450, %v9697
    %v9756 = vmul.f32 %v9453, %v9697
    %v9757 = vmul.f32 %v9458, %v9697
    %v9758 = vmul.f32 %v9461, %v9697
    %v9759 = vmul.f32 %v9466, %v9697
    %v9760 = vmul.f32 %v9469, %v9697
    %v9761 = vmul.f32 %v9474, %v9697
    %v9762 = vmul.f32 %v9477, %v9697
    %v9764 = vlaneseq
    %v9765 = vshrl.u32 %v9764, 7
    %v9766 = vsub.s32 0, %v9765
    %v9767 = vrot.slane %v9692, %v9766
    %v9769 = vadd.f32 %v9699, %v9767
    %v9770 = vadd.f32 %v9700, %v9767
    %v9771 = vadd.f32 %v9701, %v9767
    %v9772 = vadd.f32 %v9702, %v9767
    %v9773 = vadd.f32 %v9703, %v9767
    %v9774 = vadd.f32 %v9704, %v9767
    %v9775 = vadd.f32 %v9705, %v9767
    %v9776 = vadd.f32 %v9706, %v9767
    %v9777 = vadd.f32 %v9707, %v9767
    %v9778 = vadd.f32 %v9708, %v9767
    %v9779 = vadd.f32 %v9709, %v9767
    %v9780 = vadd.f32 %v9710, %v9767
    %v9781 = vadd.f32 %v9711, %v9767
    %v9782 = vadd.f32 %v9712, %v9767
    %v9783 = vadd.f32 %v9713, %v9767
    %v9784 = vadd.f32 %v9714, %v9767
    %v9785 = vadd.f32 %v9715, %v9767
    %v9786 = vadd.f32 %v9716, %v9767
    %v9787 = vadd.f32 %v9717, %v9767
    %v9788 = vadd.f32 %v9718, %v9767
    %v9789 = vadd.f32 %v9719, %v9767
    %v9790 = vadd.f32 %v9720, %v9767
    %v9791 = vadd.f32 %v9721, %v9767
    %v9792 = vadd.f32 %v9722, %v9767
    %v9793 = vadd.f32 %v9723, %v9767
    %v9794 = vadd.f32 %v9724, %v9767
    %v9795 = vadd.f32 %v9725, %v9767
    %v9796 = vadd.f32 %v9726, %v9767
    %v9797 = vadd.f32 %v9727, %v9767
    %v9798 = vadd.f32 %v9728, %v9767
    %v9799 = vadd.f32 %v9729, %v9767
    %v9800 = vadd.f32 %v9730, %v9767
    %v9801 = vadd.f32 %v9731, %v9767
    %v9802 = vadd.f32 %v9732, %v9767
    %v9803 = vadd.f32 %v9733, %v9767
    %v9804 = vadd.f32 %v9734, %v9767
    %v9805 = vadd.f32 %v9735, %v9767
    %v9806 = vadd.f32 %v9736, %v9767
    %v9807 = vadd.f32 %v9737, %v9767
    %v9808 = vadd.f32 %v9738, %v9767
    %v9809 = vadd.f32 %v9739, %v9767
    %v9810 = vadd.f32 %v9740, %v9767
    %v9811 = vadd.f32 %v9741, %v9767
    %v9812 = vadd.f32 %v9742, %v9767
    %v9813 = vadd.f32 %v9743, %v9767
    %v9814 = vadd.f32 %v9744, %v9767
    %v9815 = vadd.f32 %v9745, %v9767
    %v9816 = vadd.f32 %v9746, %v9767
    %v9817 = vadd.f32 %v9747, %v9767
    %v9818 = vadd.f32 %v9748, %v9767
    %v9819 = vadd.f32 %v9749, %v9767
    %v9820 = vadd.f32 %v9750, %v9767
    %v9821 = vadd.f32 %v9751, %v9767
    %v9822 = vadd.f32 %v9752, %v9767
    %v9823 = vadd.f32 %v9753, %v9767
    %v9824 = vadd.f32 %v9754, %v9767
    %v9825 = vadd.f32 %v9755, %v9767
    %v9826 = vadd.f32 %v9756, %v9767
    %v9827 = vadd.f32 %v9757, %v9767
    %v9828 = vadd.f32 %v9758, %v9767
    %v9829 = vadd.f32 %v9759, %v9767
    %v9830 = vadd.f32 %v9760, %v9767
    %v9831 = vadd.f32 %v9761, %v9767
    %v9832 = vadd.f32 %v9762, %v9767
    %v9833 = vld [vmem:[#allocation4] sm:$0xff]
    %v9834 = vld [vmem:[#allocation4 + $0x8] sm:$0xff]
    %v9835 = vld [vmem:[#allocation4 + $0x10] sm:$0xff]
    %v9836 = vld [vmem:[#allocation4 + $0x18] sm:$0xff]
    %v9837 = vld [vmem:[#allocation4 + $0x20] sm:$0xff]
    %v9838 = vld [vmem:[#allocation4 + $0x28] sm:$0xff]
    %v9839 = vld [vmem:[#allocation4 + $0x30] sm:$0xff]
    %v9840 = vld [vmem:[#allocation4 + $0x38] sm:$0xff]
    %v9841 = vld [vmem:[#allocation4 + $0x40] sm:$0xff]
    %v9842 = vld [vmem:[#allocation4 + $0x48] sm:$0xff]
    %v9843 = vld [vmem:[#allocation4 + $0x50] sm:$0xff]
    %v9844 = vld [vmem:[#allocation4 + $0x58] sm:$0xff]
    %v9845 = vld [vmem:[#allocation4 + $0x60] sm:$0xff]
    %v9846 = vld [vmem:[#allocation4 + $0x68] sm:$0xff]
    %v9847 = vld [vmem:[#allocation4 + $0x70] sm:$0xff]
    %v9848 = vld [vmem:[#allocation4 + $0x78] sm:$0xff]
    %v9849 = vld [vmem:[#allocation4 + $0x80] sm:$0xff]
    %v9850 = vld [vmem:[#allocation4 + $0x88] sm:$0xff]
    %v9851 = vld [vmem:[#allocation4 + $0x90] sm:$0xff]
    %v9852 = vld [vmem:[#allocation4 + $0x98] sm:$0xff]
    %v9853 = vld [vmem:[#allocation4 + $0xa0] sm:$0xff]
    %v9854 = vld [vmem:[#allocation4 + $0xa8] sm:$0xff]
    %v9855 = vld [vmem:[#allocation4 + $0xb0] sm:$0xff]
    %v9856 = vld [vmem:[#allocation4 + $0xb8] sm:$0xff]
    %v9857 = vld [vmem:[#allocation4 + $0xc0] sm:$0xff]
    %v9858 = vld [vmem:[#allocation4 + $0xc8] sm:$0xff]
    %v9859 = vld [vmem:[#allocation4 + $0xd0] sm:$0xff]
    %v9860 = vld [vmem:[#allocation4 + $0xd8] sm:$0xff]
    %v9861 = vld [vmem:[#allocation4 + $0xe0] sm:$0xff]
    %v9862 = vld [vmem:[#allocation4 + $0xe8] sm:$0xff]
    %v9863 = vld [vmem:[#allocation4 + $0xf0] sm:$0xff]
    %v9864 = vld [vmem:[#allocation4 + $0xf8] sm:$0xff]
    %v9865 = vld [vmem:[#allocation4 + $0x100] sm:$0xff]
    %v9866 = vld [vmem:[#allocation4 + $0x108] sm:$0xff]
    %v9867 = vld [vmem:[#allocation4 + $0x110] sm:$0xff]
    %v9868 = vld [vmem:[#allocation4 + $0x118] sm:$0xff]
    %v9869 = vld [vmem:[#allocation4 + $0x120] sm:$0xff]
    %v9870 = vld [vmem:[#allocation4 + $0x128] sm:$0xff]
    %v9871 = vld [vmem:[#allocation4 + $0x130] sm:$0xff]
    %v9872 = vld [vmem:[#allocation4 + $0x138] sm:$0xff]
    %v9873 = vld [vmem:[#allocation4 + $0x140] sm:$0xff]
    %v9874 = vld [vmem:[#allocation4 + $0x148] sm:$0xff]
    %v9875 = vld [vmem:[#allocation4 + $0x150] sm:$0xff]
    %v9876 = vld [vmem:[#allocation4 + $0x158] sm:$0xff]
    %v9877 = vld [vmem:[#allocation4 + $0x160] sm:$0xff]
    %v9878 = vld [vmem:[#allocation4 + $0x168] sm:$0xff]
    %v9879 = vld [vmem:[#allocation4 + $0x170] sm:$0xff]
    %v9880 = vld [vmem:[#allocation4 + $0x178] sm:$0xff]
    %v9881 = vld [vmem:[#allocation4 + $0x180] sm:$0xff]
    %v9882 = vld [vmem:[#allocation4 + $0x188] sm:$0xff]
    %v9883 = vld [vmem:[#allocation4 + $0x190] sm:$0xff]
    %v9884 = vld [vmem:[#allocation4 + $0x198] sm:$0xff]
    %v9885 = vld [vmem:[#allocation4 + $0x1a0] sm:$0xff]
    %v9886 = vld [vmem:[#allocation4 + $0x1a8] sm:$0xff]
    %v9887 = vld [vmem:[#allocation4 + $0x1b0] sm:$0xff]
    %v9888 = vld [vmem:[#allocation4 + $0x1b8] sm:$0xff]
    %v9889 = vld [vmem:[#allocation4 + $0x1c0] sm:$0xff]
    %v9890 = vld [vmem:[#allocation4 + $0x1c8] sm:$0xff]
    %v9891 = vld [vmem:[#allocation4 + $0x1d0] sm:$0xff]
    %v9892 = vld [vmem:[#allocation4 + $0x1d8] sm:$0xff]
    %v9893 = vld [vmem:[#allocation4 + $0x1e0] sm:$0xff]
    %v9894 = vld [vmem:[#allocation4 + $0x1e8] sm:$0xff]
    %v9895 = vld [vmem:[#allocation4 + $0x1f0] sm:$0xff]
    %v9896 = vld [vmem:[#allocation4 + $0x1f8] sm:$0xff]
    %v9897 = vadd.f32 %v9769, %v9833
    %v9898 = vadd.f32 %v9770, %v9834
    %v9899 = vadd.f32 %v9771, %v9835
    %v9900 = vadd.f32 %v9772, %v9836
    %v9901 = vadd.f32 %v9773, %v9837
    %v9902 = vadd.f32 %v9774, %v9838
    %v9903 = vadd.f32 %v9775, %v9839
    %v9904 = vadd.f32 %v9776, %v9840
    %v9905 = vadd.f32 %v9777, %v9841
    %v9906 = vadd.f32 %v9778, %v9842
    %v9907 = vadd.f32 %v9779, %v9843
    %v9908 = vadd.f32 %v9780, %v9844
    %v9909 = vadd.f32 %v9781, %v9845
    %v9910 = vadd.f32 %v9782, %v9846
    %v9911 = vadd.f32 %v9783, %v9847
    %v9912 = vadd.f32 %v9784, %v9848
    %v9913 = vadd.f32 %v9785, %v9849
    %v9914 = vadd.f32 %v9786, %v9850
    %v9915 = vadd.f32 %v9787, %v9851
    %v9916 = vadd.f32 %v9788, %v9852
    %v9917 = vadd.f32 %v9789, %v9853
    %v9918 = vadd.f32 %v9790, %v9854
    %v9919 = vadd.f32 %v9791, %v9855
    %v9920 = vadd.f32 %v9792, %v9856
    %v9921 = vadd.f32 %v9793, %v9857
    %v9922 = vadd.f32 %v9794, %v9858
    %v9923 = vadd.f32 %v9795, %v9859
    %v9924 = vadd.f32 %v9796, %v9860
    %v9925 = vadd.f32 %v9797, %v9861
    %v9926 = vadd.f32 %v9798, %v9862
    %v9927 = vadd.f32 %v9799, %v9863
    %v9928 = vadd.f32 %v9800, %v9864
    %v9929 = vadd.f32 %v9801, %v9865
    %v9930 = vadd.f32 %v9802, %v9866
    %v9931 = vadd.f32 %v9803, %v9867
    %v9932 = vadd.f32 %v9804, %v9868
    %v9933 = vadd.f32 %v9805, %v9869
    %v9934 = vadd.f32 %v9806, %v9870
    %v9935 = vadd.f32 %v9807, %v9871
    %v9936 = vadd.f32 %v9808, %v9872
    %v9937 = vadd.f32 %v9809, %v9873
    %v9938 = vadd.f32 %v9810, %v9874
    %v9939 = vadd.f32 %v9811, %v9875
    %v9940 = vadd.f32 %v9812, %v9876
    %v9941 = vadd.f32 %v9813, %v9877
    %v9942 = vadd.f32 %v9814, %v9878
    %v9943 = vadd.f32 %v9815, %v9879
    %v9944 = vadd.f32 %v9816, %v9880
    %v9945 = vadd.f32 %v9817, %v9881
    %v9946 = vadd.f32 %v9818, %v9882
    %v9947 = vadd.f32 %v9819, %v9883
    %v9948 = vadd.f32 %v9820, %v9884
    %v9949 = vadd.f32 %v9821, %v9885
    %v9950 = vadd.f32 %v9822, %v9886
    %v9951 = vadd.f32 %v9823, %v9887
    %v9952 = vadd.f32 %v9824, %v9888
    %v9953 = vadd.f32 %v9825, %v9889
    %v9954 = vadd.f32 %v9826, %v9890
    %v9955 = vadd.f32 %v9827, %v9891
    %v9956 = vadd.f32 %v9828, %v9892
    %v9957 = vadd.f32 %v9829, %v9893
    %v9958 = vadd.f32 %v9830, %v9894
    %v9959 = vadd.f32 %v9831, %v9895
    %v9960 = vadd.f32 %v9832, %v9896
    %v9961 = vmax.f32 %v9897, 0.0
    %v9962 = vmax.f32 %v9898, 0.0
    %v9963 = vmax.f32 %v9899, 0.0
    %v9964 = vmax.f32 %v9900, 0.0
    %v9965 = vmax.f32 %v9901, 0.0
    %v9966 = vmax.f32 %v9902, 0.0
    %v9967 = vmax.f32 %v9903, 0.0
    %v9968 = vmax.f32 %v9904, 0.0
    %v9969 = vmax.f32 %v9905, 0.0
    %v9970 = vmax.f32 %v9906, 0.0
    %v9971 = vmax.f32 %v9907, 0.0
    %v9972 = vmax.f32 %v9908, 0.0
    %v9973 = vmax.f32 %v9909, 0.0
    %v9974 = vmax.f32 %v9910, 0.0
    %v9975 = vmax.f32 %v9911, 0.0
    %v9976 = vmax.f32 %v9912, 0.0
    %v9977 = vmax.f32 %v9913, 0.0
    %v9978 = vmax.f32 %v9914, 0.0
    %v9979 = vmax.f32 %v9915, 0.0
    %v9980 = vmax.f32 %v9916, 0.0
    %v9981 = vmax.f32 %v9917, 0.0
    %v9982 = vmax.f32 %v9918, 0.0
    %v9983 = vmax.f32 %v9919, 0.0
    %v9984 = vmax.f32 %v9920, 0.0
    %v9985 = vmax.f32 %v9921, 0.0
    %v9986 = vmax.f32 %v9922, 0.0
    %v9987 = vmax.f32 %v9923, 0.0
    %v9988 = vmax.f32 %v9924, 0.0
    %v9989 = vmax.f32 %v9925, 0.0
    %v9990 = vmax.f32 %v9926, 0.0
    %v9991 = vmax.f32 %v9927, 0.0
    %v9992 = vmax.f32 %v9928, 0.0
    %v9993 = vmax.f32 %v9929, 0.0
    %v9994 = vmax.f32 %v9930, 0.0
    %v9995 = vmax.f32 %v9931, 0.0
    %v9996 = vmax.f32 %v9932, 0.0
    %v9997 = vmax.f32 %v9933, 0.0
    %v9998 = vmax.f32 %v9934, 0.0
    %v9999 = vmax.f32 %v9935, 0.0
    %v10000 = vmax.f32 %v9936, 0.0
    %v10001 = vmax.f32 %v9937, 0.0
    %v10002 = vmax.f32 %v9938, 0.0
    %v10003 = vmax.f32 %v9939, 0.0
    %v10004 = vmax.f32 %v9940, 0.0
    %v10005 = vmax.f32 %v9941, 0.0
    %v10006 = vmax.f32 %v9942, 0.0
    %v10007 = vmax.f32 %v9943, 0.0
    %v10008 = vmax.f32 %v9944, 0.0
    %v10009 = vmax.f32 %v9945, 0.0
    %v10010 = vmax.f32 %v9946, 0.0
    %v10011 = vmax.f32 %v9947, 0.0
    %v10012 = vmax.f32 %v9948, 0.0
    %v10013 = vmax.f32 %v9949, 0.0
    %v10014 = vmax.f32 %v9950, 0.0
    %v10015 = vmax.f32 %v9951, 0.0
    %v10016 = vmax.f32 %v9952, 0.0
    %v10017 = vmax.f32 %v9953, 0.0
    %v10018 = vmax.f32 %v9954, 0.0
    %v10019 = vmax.f32 %v9955, 0.0
    %v10020 = vmax.f32 %v9956, 0.0
    %v10021 = vmax.f32 %v9957, 0.0
    %v10022 = vmax.f32 %v9958, 0.0
    %v10023 = vmax.f32 %v9959, 0.0
    %v10024 = vmax.f32 %v9960, 0.0
    %10025 = vst [vmem:[#allocation7] sm:$0xff] %v9961
    %10026 = vst [vmem:[#allocation7 + $0x8] sm:$0xff] %v9962
    %10027 = vst [vmem:[#allocation7 + $0x10] sm:$0xff] %v9963
    %10028 = vst [vmem:[#allocation7 + $0x18] sm:$0xff] %v9964
    %10029 = vst [vmem:[#allocation7 + $0x20] sm:$0xff] %v9965
    %10030 = vst [vmem:[#allocation7 + $0x28] sm:$0xff] %v9966
    %10031 = vst [vmem:[#allocation7 + $0x30] sm:$0xff] %v9967
    %10032 = vst [vmem:[#allocation7 + $0x38] sm:$0xff] %v9968
    %10033 = vst [vmem:[#allocation7 + $0x40] sm:$0xff] %v9969
    %10034 = vst [vmem:[#allocation7 + $0x48] sm:$0xff] %v9970
    %10035 = vst [vmem:[#allocation7 + $0x50] sm:$0xff] %v9971
    %10036 = vst [vmem:[#allocation7 + $0x58] sm:$0xff] %v9972
    %10037 = vst [vmem:[#allocation7 + $0x60] sm:$0xff] %v9973
    %10038 = vst [vmem:[#allocation7 + $0x68] sm:$0xff] %v9974
    %10039 = vst [vmem:[#allocation7 + $0x70] sm:$0xff] %v9975
    %10040 = vst [vmem:[#allocation7 + $0x78] sm:$0xff] %v9976
    %10041 = vst [vmem:[#allocation7 + $0x80] sm:$0xff] %v9977
    %10042 = vst [vmem:[#allocation7 + $0x88] sm:$0xff] %v9978
    %10043 = vst [vmem:[#allocation7 + $0x90] sm:$0xff] %v9979
    %10044 = vst [vmem:[#allocation7 + $0x98] sm:$0xff] %v9980
    %10045 = vst [vmem:[#allocation7 + $0xa0] sm:$0xff] %v9981
    %10046 = vst [vmem:[#allocation7 + $0xa8] sm:$0xff] %v9982
    %10047 = vst [vmem:[#allocation7 + $0xb0] sm:$0xff] %v9983
    %10048 = vst [vmem:[#allocation7 + $0xb8] sm:$0xff] %v9984
    %10049 = vst [vmem:[#allocation7 + $0xc0] sm:$0xff] %v9985
    %10050 = vst [vmem:[#allocation7 + $0xc8] sm:$0xff] %v9986
    %10051 = vst [vmem:[#allocation7 + $0xd0] sm:$0xff] %v9987
    %10052 = vst [vmem:[#allocation7 + $0xd8] sm:$0xff] %v9988
    %10053 = vst [vmem:[#allocation7 + $0xe0] sm:$0xff] %v9989
    %10054 = vst [vmem:[#allocation7 + $0xe8] sm:$0xff] %v9990
    %10055 = vst [vmem:[#allocation7 + $0xf0] sm:$0xff] %v9991
    %10056 = vst [vmem:[#allocation7 + $0xf8] sm:$0xff] %v9992
    %10057 = vst [vmem:[#allocation7 + $0x100] sm:$0xff] %v9993
    %10058 = vst [vmem:[#allocation7 + $0x108] sm:$0xff] %v9994
    %10059 = vst [vmem:[#allocation7 + $0x110] sm:$0xff] %v9995
    %10060 = vst [vmem:[#allocation7 + $0x118] sm:$0xff] %v9996
    %10061 = vst [vmem:[#allocation7 + $0x120] sm:$0xff] %v9997
    %10062 = vst [vmem:[#allocation7 + $0x128] sm:$0xff] %v9998
    %10063 = vst [vmem:[#allocation7 + $0x130] sm:$0xff] %v9999
    %10064 = vst [vmem:[#allocation7 + $0x138] sm:$0xff] %v10000
    %10065 = vst [vmem:[#allocation7 + $0x140] sm:$0xff] %v10001
    %10066 = vst [vmem:[#allocation7 + $0x148] sm:$0xff] %v10002
    %10067 = vst [vmem:[#allocation7 + $0x150] sm:$0xff] %v10003
    %10068 = vst [vmem:[#allocation7 + $0x158] sm:$0xff] %v10004
    %10069 = vst [vmem:[#allocation7 + $0x160] sm:$0xff] %v10005
    %10070 = vst [vmem:[#allocation7 + $0x168] sm:$0xff] %v10006
    %10071 = vst [vmem:[#allocation7 + $0x170] sm:$0xff] %v10007
    %10072 = vst [vmem:[#allocation7 + $0x178] sm:$0xff] %v10008
    %10073 = vst [vmem:[#allocation7 + $0x180] sm:$0xff] %v10009
    %10074 = vst [vmem:[#allocation7 + $0x188] sm:$0xff] %v10010
    %10075 = vst [vmem:[#allocation7 + $0x190] sm:$0xff] %v10011
    %10076 = vst [vmem:[#allocation7 + $0x198] sm:$0xff] %v10012
    %10077 = vst [vmem:[#allocation7 + $0x1a0] sm:$0xff] %v10013
    %10078 = vst [vmem:[#allocation7 + $0x1a8] sm:$0xff] %v10014
    %10079 = vst [vmem:[#allocation7 + $0x1b0] sm:$0xff] %v10015
    %10080 = vst [vmem:[#allocation7 + $0x1b8] sm:$0xff] %v10016
    %10081 = vst [vmem:[#allocation7 + $0x1c0] sm:$0xff] %v10017
    %10082 = vst [vmem:[#allocation7 + $0x1c8] sm:$0xff] %v10018
    %10083 = vst [vmem:[#allocation7 + $0x1d0] sm:$0xff] %v10019
    %10084 = vst [vmem:[#allocation7 + $0x1d8] sm:$0xff] %v10020
    %10085 = vst [vmem:[#allocation7 + $0x1e0] sm:$0xff] %v10021
    %10086 = vst [vmem:[#allocation7 + $0x1e8] sm:$0xff] %v10022
    %10087 = vst [vmem:[#allocation7 + $0x1f0] sm:$0xff] %v10023
    %10088 = vst [vmem:[#allocation7 + $0x1f8] sm:$0xff] %v10024
    // Predicated region
    $region54: #{tpu_custom_call.1} parent=1 // pred_check
      _
    $region55: #{tpu_custom_call.1} parent=1 // pred_check_branch
      %10090 = sbr.rel (0) target = $region57
    $region56: #{tpu_custom_call.1} parent=1 // pred_region
      %s10092 = ssub.s32 8192, 8192
      %10093 = vsyncadd [#allocation6], %s10092
      %s10094 = sshll.u32 [#allocation7], 4
      %s10095 = int_to_ptr.vmem [resolvable:$true] %s10094
      %10100 = dma.vmem_to_hbm [thread:$0]  %s10095, 8192, %s12, [#allocation6], 128, 128, 8
    $region57: #{tpu_custom_call.1} parent=1 // pred_fallthru
      _
    // Predicated region
    $region58: #{tpu_custom_call.1} parent=1 // pred_check
      _
    $region59: #{tpu_custom_call.1} parent=1 // pred_check_branch
      %10102 = sbr.rel (0) target = $region61
    $region60: #{tpu_custom_call.1} parent=1 // pred_region
      %10103 = dma.done [#allocation6], 8192
    $region61: #{tpu_custom_call.1} parent=1 // pred_fallthru
      _
    %10104 = vsyncpa [#allocation5], 1
    %10105 = vsyncpa [#allocation6], 1

</llo_original>
